<compile_context>
chip_gen: v7x
topology: tpu7x:2x2x1
jax: 0.10.0
libtpu: 0.0.40
codegen_flags: <defaults>
</compile_context>

<pallas_src>
import functools

import numpy as np

import jax
import jax.numpy as jnp
from jax.experimental import pallas as pl
from jax.experimental.pallas import tpu as pltpu

_BN_EPS = 1e-5
_INV_SQRT2 = 0.7071067811865476
_KERNEL_SIZES = (3, 5, 7)
_MAX_PAD = max(_KERNEL_SIZES) // 2          # shared D-halo (=3) for all branches
_SMEM = pltpu.MemorySpace.SMEM


def _default_vmem_limit():
    try:
        cap = int(pltpu.get_tpu_info().vmem_capacity_bytes)
    except Exception:
        cap = 64 * 1024 * 1024
    return int(min(cap * 3 // 4, 96 * 1024 * 1024))


_VMEM_LIMIT = _default_vmem_limit()


def _cparams(*sem):
    return pltpu.CompilerParams(dimension_semantics=tuple(sem),
                                vmem_limit_bytes=_VMEM_LIMIT)


# ----------------------------- in-kernel math helpers -----------------------------
def _erf(x):
    # TODO(synk): Abramowitz & Stegun 7.1.26 approximation of torch's exact-erf GELU
    # (|err| ~ 1e-6 incl. the EUP approx reciprocal); close but not bit-identical.
    p = 0.3275911
    a1, a2, a3, a4, a5 = (0.254829592, -0.284496736, 1.421413741,
                          -1.453152027, 1.061405429)
    sgn = jnp.where(x >= 0.0, 1.0, -1.0)
    ax = jnp.abs(x)
    t = pl.reciprocal(1.0 + p * ax, approx=True)
    poly = t * (a1 + t * (a2 + t * (a3 + t * (a4 + t * a5))))
    return sgn * (1.0 - poly * jnp.exp(-ax * ax))


def _gelu(x):
    # torch.nn.GELU() default = exact (erf) GELU.
    return 0.5 * x * (1.0 + _erf(x * _INV_SQRT2))


def _bn_scale_shift(gamma, beta, mean, var):
    s = gamma / jnp.sqrt(var + _BN_EPS)
    return s, beta - mean * s


# ----------------------------------- kernels --------------------------------------
@functools.lru_cache(maxsize=None)
def _make_proj_kernel(cin, tn):
    """ChannelProjector: 1x1x1 Conv3d over `cin` channels + GELU on a tn-lane tile."""

    def kernel(x_ref, w_ref, b_ref, o_ref):
        if cin <= 8:
            acc = jnp.sum(w_ref[...] * x_ref[0], axis=0, keepdims=True)
        else:
            nfull, rem = divmod(cin, 8)

            def step(i, a):
                off = pl.multiple_of(i * 8, 8)
                return a + w_ref[pl.ds(off, 8), :] * x_ref[0, pl.ds(off, 8), :]

            acc8 = jax.lax.fori_loop(0, nfull, step,
                                     jnp.zeros((8, tn), jnp.float32))
            acc = jnp.sum(acc8, axis=0, keepdims=True)
            if rem:
                base = nfull * 8
                acc = acc + jnp.sum(
                    w_ref[pl.ds(base, rem), :] * x_ref[0, pl.ds(base, rem), :],
                    axis=0, keepdims=True)
        o_ref[0] = _gelu(acc + b_ref[0])

    return kernel


@functools.lru_cache(maxsize=None)
def _make_down_kernel(do, shared_input, fuse_sum):
    """One MultiScaleDownsampler stage for all three branches (k = 3, 5, 7).

    Per branch: Conv3d(1,1,k,stride=2,pad=k//2) -> GELU -> eval BatchNorm3d(1).
    Each conv is Sum_kd  X_t (do, S^2) @ B_kd (S^2, do^2) on the MXU, where X_t is a
    contiguous row slice of the D-parity stack of the 3-padded, plane-flattened input.
    """
    ks = _KERNEL_SIZES
    n_in = 1 if shared_input else len(ks)
    d2 = do * do

    def kernel(*refs):
        x_refs = refs[:n_in]
        b_refs = refs[n_in:n_in + len(ks)]
        s_ref = refs[n_in + len(ks)]
        out_refs = refs[n_in + len(ks) + 1:]

        outs = []
        for j, k in enumerate(ks):
            p = k // 2
            xr = x_refs[0] if shared_input else x_refs[j]
            acc = jnp.zeros((do, d2), jnp.float32)
            for kd in range(k):
                t = kd + _MAX_PAD - p                       # padded-D tap offset (0..6)
                lhs = xr[0, t % 2, t // 2:t // 2 + do, :]   # (do, S^2)
                acc = acc + jnp.dot(lhs, b_refs[j][kd],
                                    preferred_element_type=jnp.float32)
            z = acc + s_ref[3 * j]                                      # conv bias
            outs.append(_gelu(z) * s_ref[3 * j + 1] + s_ref[3 * j + 2])  # eval BN
        if fuse_sum:
            out_refs[0][0] = outs[0] + outs[1] + outs[2]
        else:
            for j in range(len(ks)):
                out_refs[j][0] = outs[j]

    return kernel


@functools.lru_cache(maxsize=None)
def _make_fuser_kernel(m, cx):
    """CrossLevelFeatureFuserv2 (L == 2) + final attention application, fully fused.

    All tensors live on the lane-major (m, m^2) layout; the 7^3 and 3^3 convs are
    per-kd (m, m^2) @ (m^2, m^2) MXU matmuls with zero-row concats supplying the
    D halo; the final gate is one broadcast multiply over x's channels.
    """
    m2 = m * m

    def kernel(f_ref, x_ref, c7_ref, c3_ref, ca_ref, sc_ref, o_ref):
        f0 = f_ref[0, 0]                                   # (m, m^2)
        f1 = f_ref[0, 1]

        # ChannelsAttention: Conv(L->1,1,no bias)+GELU, Conv(1->L,1,no bias)+Sigmoid
        h = _gelu(ca_ref[0] * f0 + ca_ref[1] * f1)
        g0 = jax.nn.sigmoid(ca_ref[2] * h) * f0
        g1 = jax.nn.sigmoid(ca_ref[3] * h) * f1

        # TODO(synk): torch's `mean, _ = torch.mean(...)` / cat with a max namedtuple
        # errors as written; the intended channel-wise mean+max spatial attention is used.
        mean_c = 0.5 * (g0 + g1)
        max_c = jnp.maximum(g0, g1)

        z3 = jnp.zeros((3, m2), jnp.float32)
        meanp = jnp.concatenate([z3, mean_c, z3], axis=0)   # (m+6, m^2) zero D-halo
        maxp = jnp.concatenate([z3, max_c, z3], axis=0)

        acc = jnp.zeros((m, m2), jnp.float32)
        for c, src in enumerate((meanp, maxp)):
            for kd in range(7):
                acc = acc + jnp.dot(src[kd:kd + m, :], c7_ref[c, kd],
                                    preferred_element_type=jnp.float32)
        gate = jax.nn.sigmoid(acc + sc_ref[0])

        y = gate * g0                                       # torch.chunk(.., 2, dim=1)
        fz = gate * g1

        # feature fuser: Conv3d(1,1,3,pad=1) -> eval BN -> GELU
        # TODO(synk): original declares BatchNorm3d(len(ch_list)) which mismatches the
        # 1-channel tensor (errors in PyTorch); implemented as eval BN over 1 channel.
        z1 = jnp.zeros((1, m2), jnp.float32)
        fzp = jnp.concatenate([z1, fz, z1], axis=0)         # (m+2, m^2)
        accf = jnp.zeros((m, m2), jnp.float32)
        for kd in range(3):
            accf = accf + jnp.dot(fzp[kd:kd + m, :], c3_ref[kd],
                                  preferred_element_type=jnp.float32)
        fused = _gelu((accf + sc_ref[1]) * sc_ref[2] + sc_ref[3])

        attn = y * fused                                    # (m, m^2) attention map
        o_ref[0] = attn[None, :, :] * x_ref[0]              # broadcast over cx channels

    return kernel


# ------------------------- trace-time conv-matrix builders -------------------------
def _down_matrices(weights, S, do):
    """Per branch: B (k, S^2, do^2) with B[kd][ih*S+iw, h*do+w] = W[kd, ih-2h+p, iw-2w+p]."""
    ih = np.arange(S)
    ho = np.arange(do)
    mats = []
    for w, k in zip(weights, _KERNEL_SIZES):
        p = k // 2
        a = ih[:, None] - 2 * ho[None, :] + p               # (S, do) tap index
        valid = (a >= 0) & (a < k)
        ac = np.clip(a, 0, k - 1).astype(np.int32)
        g = w[:, ac[:, :, None, None], ac[None, None, :, :]]        # (k, S, do, S, do)
        mask = (valid[:, :, None, None] & valid[None, None, :, :]).astype(np.float32)
        g = g * mask
        g = g.transpose(0, 1, 3, 2, 4).reshape(k, S * S, do * do)   # (kd, ih,iw, h,w)
        mats.append(g)
    return mats


def _fuser_matrices(sa_w, ff_w, m):
    """Stride-1 plane matrices: C[..., kd][ih*m+iw, h*m+w] = W[..., kd, ih-h+p, iw-w+p]."""
    i = np.arange(m)

    def conv_mats(w, k):
        p = k // 2
        a = i[:, None] - i[None, :] + p
        valid = (a >= 0) & (a < k)
        ac = np.clip(a, 0, k - 1).astype(np.int32)
        g = w[..., ac[:, :, None, None], ac[None, None, :, :]]      # (..., m, m, m, m)
        mask = (valid[:, :, None, None] & valid[None, None, :, :]).astype(np.float32)
        g = g * mask
        g = jnp.swapaxes(g, -3, -2)                                  # (..., ih, iw, h, w)
        return g.reshape(g.shape[:-4] + (m * m, m * m))

    return conv_mats(sa_w, 7), conv_mats(ff_w, 3)        # (2,7,m^2,m^2), (3,m^2,m^2)


# ----------------------------------- JAX glue --------------------------------------
def _pick_tile(n):
    for t in (2048, 1024, 512, 256, 128):
        if n % t == 0:
            return t
    return n


def _prep_parity(vol_planes):
    # (B, S, S^2): pad D by the shared halo (3), split even/odd rows.
    xp = jnp.pad(vol_planes, ((0, 0), (_MAX_PAD, _MAX_PAD), (0, 0)))
    return jnp.stack([xp[:, 0::2], xp[:, 1::2]], axis=1)   # (B, 2, (S+6)//2, S^2)


def _project_level(pp, feat):
    batch, cin = feat.shape[0], feat.shape[1]
    size = feat.shape[2]
    ns = size * size * size
    tn = _pick_tile(ns)
    x3 = feat.reshape(batch, cin, ns)
    out = pl.pallas_call(
        _make_proj_kernel(cin, tn),
        grid=(batch, ns // tn),
        out_shape=jax.ShapeDtypeStruct((batch, 1, ns), jnp.float32),
        in_specs=[
            pl.BlockSpec((1, cin, tn), lambda b, i: (b, 0, i)),
            pl.BlockSpec((cin, 1), lambda b, i: (0, 0)),
            pl.BlockSpec((1,), lambda b, i: (0,), memory_space=_SMEM),
        ],
        out_specs=pl.BlockSpec((1, 1, tn), lambda b, i: (b, 0, i)),
        compiler_params=_cparams("parallel", "parallel"),
        cost_estimate=pl.CostEstimate(flops=2 * batch * cin * ns,
                                      transcendentals=2 * batch * ns,
                                      bytes_accessed=4 * batch * (cin + 1) * ns),
    )(x3, pp["w"].reshape(cin, 1), pp["b"])
    return out.reshape(batch, size, size * size)           # (B, S, S^2) plane layout


def _down_stage(cur_list, branches, stage, S, batch, shared, fuse_sum):
    do = S // 2
    S2, d2 = S * S, do * do
    dpar = (S + 2 * _MAX_PAD) // 2

    xpars = [_prep_parity(v) for v in cur_list]
    mats = _down_matrices([branches[j][stage]["w"] for j in range(3)], S, do)
    svec = []
    for j in range(3):
        sb, tb = _bn_scale_shift(*branches[j][stage]["bn"])
        svec += [branches[j][stage]["b"], sb, tb]
    svec = jnp.concatenate(svec)                            # (9,)

    xp_specs = [pl.BlockSpec((1, 2, dpar, S2), lambda b: (b, 0, 0, 0)) for _ in xpars]
    mat_specs = [pl.BlockSpec((k, S2, d2), lambda b: (0, 0, 0)) for k in _KERNEL_SIZES]
    s_spec = pl.BlockSpec((9,), lambda b: (0,), memory_space=_SMEM)

    if fuse_sum:
        out_shape = jax.ShapeDtypeStruct((batch, do, d2), jnp.float32)
        out_specs = pl.BlockSpec((1, do, d2), lambda b: (b, 0, 0))
        out_elems = batch * do * d2
    else:
        out_shape = tuple(jax.ShapeDtypeStruct((batch, do, d2), jnp.float32)
                          for _ in range(3))
        out_specs = tuple(pl.BlockSpec((1, do, d2), lambda b: (b, 0, 0))
                          for _ in range(3))
        out_elems = 3 * batch * do * d2

    flops = 2 * batch * sum(_KERNEL_SIZES) * do * S2 * d2
    bytes_accessed = 4 * (batch * len(xpars) * 2 * dpar * S2
                          + sum(k * S2 * d2 for k in _KERNEL_SIZES) + out_elems)

    return pl.pallas_call(
        _make_down_kernel(do, shared, fuse_sum),
        grid=(batch,),
        out_shape=out_shape,
        in_specs=xp_specs + mat_specs + [s_spec],
        out_specs=out_specs,
        compiler_params=_cparams("parallel"),
        cost_estimate=pl.CostEstimate(flops=flops,
                                      transcendentals=3 * batch * do ** 3,
                                      bytes_accessed=bytes_accessed),
    )(*xpars, *mats, svec)


def _run_fuser(fu, feats, x2, m):
    batch, cx = x2.shape[0], x2.shape[1]
    m2 = m * m
    c7, c3 = _fuser_matrices(fu["sa_w"], fu["ff_w"], m)
    ca = jnp.concatenate([fu["ca_w1"], fu["ca_w2"]])        # (4,)
    s_, t_ = _bn_scale_shift(*fu["ff_bn"])
    sc = jnp.concatenate([fu["sa_b"], fu["ff_b"], s_, t_])  # (4,)

    flops = 2 * batch * (2 * 7 + 3) * m * m2 * m2
    bytes_accessed = 4 * (batch * (2 + 2 * cx) * m * m2 + 17 * m2 * m2)

    return pl.pallas_call(
        _make_fuser_kernel(m, cx),
        grid=(batch,),
        out_shape=jax.ShapeDtypeStruct((batch, cx, m, m2), jnp.float32),
        in_specs=[
            pl.BlockSpec((1, 2, m, m2), lambda b: (b, 0, 0, 0)),
            pl.BlockSpec((1, cx, m, m2), lambda b: (b, 0, 0, 0)),
            pl.BlockSpec((2, 7, m2, m2), lambda b: (0, 0, 0, 0)),
            pl.BlockSpec((3, m2, m2), lambda b: (0, 0, 0)),
            pl.BlockSpec((4,), lambda b: (0,), memory_space=_SMEM),
            pl.BlockSpec((4,), lambda b: (0,), memory_space=_SMEM),
        ],
        out_specs=pl.BlockSpec((1, cx, m, m2), lambda b: (b, 0, 0, 0)),
        compiler_params=_cparams("parallel"),
        cost_estimate=pl.CostEstimate(flops=flops,
                                      transcendentals=10 * batch * m * m2,
                                      bytes_accessed=bytes_accessed),
    )(feats, x2, c7, c3, ca, sc)


# ------------------------------- parameters (synthetic) -----------------------------
def init_params(key, ch_list, proj_channels, feat_sizes, min_size):
    assert proj_channels == 1, "downsampler branches are Conv3d(1, 1, k): proj must be 1-channel"
    assert len(ch_list) == 2, "fuser path implemented for L=2 (split into single-channel chunks)"

    def normal(k, shape, fan_in):
        return jax.random.normal(k, shape, jnp.float32) / jnp.sqrt(float(fan_in))

    def bn_default():   # eval-mode BatchNorm with default init (gamma, beta, mean, var)
        return (jnp.ones((1,), jnp.float32), jnp.zeros((1,), jnp.float32),
                jnp.zeros((1,), jnp.float32), jnp.ones((1,), jnp.float32))

    params = {"proj": [], "down": []}
    for ch, size in zip(ch_list, feat_sizes):
        key, kw, kb = jax.random.split(key, 3)
        params["proj"].append({
            "w": normal(kw, (ch,), ch),                      # Conv3d(ch,1,1) weight
            "b": 0.1 * jax.random.normal(kb, (1,), jnp.float32),
        })
        branches = []
        for kk in _KERNEL_SIZES:
            stages, cur = [], size
            while cur > min_size:
                key, kw2, kb2 = jax.random.split(key, 3)
                stages.append({
                    "w": normal(kw2, (kk, kk, kk), kk ** 3),  # Conv3d(1,1,kk,stride=2)
                    "b": 0.1 * jax.random.normal(kb2, (1,), jnp.float32),
                    "bn": bn_default(),
                })
                cur //= 2
            branches.append(stages)
        params["down"].append(branches)

    key, k1, k2, k3, k4, k5, k6 = jax.random.split(key, 7)
    lvl = len(ch_list)
    params["fuser"] = {
        "ca_w1": normal(k1, (lvl,), lvl),                    # Conv3d(L, L//2, 1, bias=False)
        "ca_w2": normal(k2, (lvl,), 1),                      # Conv3d(L//2, L, 1, bias=False)
        "sa_w": normal(k3, (2, 7, 7, 7), 2 * 7 ** 3),        # Conv3d(2, 1, 7) weight
        "sa_b": 0.1 * jax.random.normal(k4, (1,), jnp.float32),
        "ff_w": normal(k5, (3, 3, 3), 27),                   # Conv3d(1, 1, 3) weight
        "ff_b": 0.1 * jax.random.normal(k6, (1,), jnp.float32),
        "ff_bn": bn_default(),
    }
    return params


# ----------------------------------- forward ---------------------------------------
@functools.partial(jax.jit, static_argnames=("feat_sizes", "min_size"))
def dcla_forward(params, encoder_features, x, feat_sizes, min_size=8):
    batch = x.shape[0]
    m = min_size
    m2 = m * m

    processed = []
    for lvl, feat in enumerate(encoder_features):
        size = feat_sizes[lvl]
        # ChannelProjector (Pallas, lane-tiled) -> (B, S, S^2) plane-flattened volume.
        vol = _project_level(params["proj"][lvl], feat.astype(jnp.float32))

        branches = params["down"][lvl]
        n_stages = len(branches[0])
        assert n_stages >= 1

        cur = [vol]                              # stage 0: all branches share proj output
        for stage in range(n_stages):
            assert size % 2 == 0
            shared = (stage == 0)
            fuse_sum = (stage == n_stages - 1)
            res = _down_stage(cur, branches, stage, size, batch, shared, fuse_sum)
            cur = [res] if fuse_sum else list(res)
            size //= 2
        processed.append(cur[0])                 # (B, m, m^2) == compressed.squeeze(1)

    # torch.stack(processed, dim=1): the level axis becomes the channel axis.
    feats = jnp.stack(processed, axis=1)         # (B, L=2, m, m^2)
    x2 = x.astype(jnp.float32).reshape(batch, x.shape[1], m, m2)
    out = _run_fuser(params["fuser"], feats, x2, m)
    return out.reshape(x.shape)


# ------------------------------------ main ------------------------------------------
if __name__ == "__main__":
    ch_list = [4, 8]
    proj_channels = 1        # downsampler branches are Conv3d(1, 1, k, stride=2)
    feat_sizes = (16, 16)
    min_size = 8
    batch, x_channels = 2, 4

    root = jax.random.PRNGKey(0)
    kp, kf0, kf1, kx = jax.random.split(root, 4)
    params = init_params(kp, ch_list, proj_channels, feat_sizes, min_size)
    encoder_features = [
        jax.random.normal(kf0, (batch, ch_list[0],
                                feat_sizes[0], feat_sizes[0], feat_sizes[0]), jnp.float32),
        jax.random.normal(kf1, (batch, ch_list[1],
                                feat_sizes[1], feat_sizes[1], feat_sizes[1]), jnp.float32),
    ]
    x = jax.random.normal(kx, (batch, x_channels, min_size, min_size, min_size),
                          jnp.float32)

    out = dcla_forward(params, encoder_features, x,
                       feat_sizes=feat_sizes, min_size=min_size)
    jax.block_until_ready(out)
    assert out.shape == (batch, x_channels, min_size, min_size, min_size)
    assert bool(jnp.all(jnp.isfinite(out)))
    print("KERNEL_OK")
</pallas_src>

<mosaic_0001>
module attributes {stable_mosaic.version = 11 : i64} {
  func.func @kernel(%arg0: i32, %arg1: i32, %arg2: memref<1x4x2048xf32, #tpu.memory_space<vmem>>, %arg3: memref<4x1xf32, #tpu.memory_space<vmem>>, %arg4: memref<1xf32, #tpu.memory_space<smem>>, %arg5: memref<1x1x2048xf32, #tpu.memory_space<vmem>>) attributes {dimension_semantics = [#tpu.dimension_semantics<parallel>, #tpu.dimension_semantics<parallel>], iteration_bounds = array<i64: 2, 2>, scalar_prefetch = 0 : i64, scratch_operands = 0 : i64, tpu.core_type = #tpu.core_type<tc>, window_params = [{transform_indices = @transform_0, window_bounds = array<i64: 1, 4, 2048>}, {pipeline_mode = #tpu.pipeline_mode<synchronous>, transform_indices = @transform_1, window_bounds = array<i64: 4, 1>}, {transform_indices = @transform_2, window_bounds = array<i64: 1>}, {transform_indices = @transform_3, window_bounds = array<i64: 1, 1, 2048>}]} {
    %c0 = arith.constant 0 : index
    %c0_0 = arith.constant 0 : index
    %0 = vector.load %arg3[%c0, %c0_0] : memref<4x1xf32, #tpu.memory_space<vmem>>, vector<4x1xf32>
    %c0_1 = arith.constant 0 : index
    %c0_2 = arith.constant 0 : index
    %c0_3 = arith.constant 0 : index
    %1 = vector.load %arg2[%c0_1, %c0_2, %c0_3] : memref<1x4x2048xf32, #tpu.memory_space<vmem>>, vector<1x4x2048xf32>
    %2 = vector.shape_cast %1 : vector<1x4x2048xf32> to vector<4x2048xf32>
    %3 = vector.broadcast %0 : vector<4x1xf32> to vector<4x2048xf32>
    %4 = arith.mulf %3, %2 : vector<4x2048xf32>
    %cst = arith.constant dense<0.000000e+00> : vector<2048xf32>
    %5 = vector.multi_reduction <add>, %4, %cst [0] : vector<4x2048xf32> to vector<2048xf32>
    %6 = vector.shape_cast %5 : vector<2048xf32> to vector<1x2048xf32>
    %c0_4 = arith.constant 0 : index
    %7 = memref.load %arg4[%c0_4] : memref<1xf32, #tpu.memory_space<smem>>
    %8 = vector.broadcast %7 : f32 to vector<1x2048xf32>
    %9 = arith.addf %6, %8 : vector<1x2048xf32>
    %cst_5 = arith.constant 5.000000e-01 : f32
    %10 = vector.broadcast %cst_5 : f32 to vector<1x2048xf32>
    %11 = arith.mulf %10, %9 : vector<1x2048xf32>
    %cst_6 = arith.constant 0.707106769 : f32
    %12 = vector.broadcast %cst_6 : f32 to vector<1x2048xf32>
    %13 = arith.mulf %9, %12 : vector<1x2048xf32>
    %cst_7 = arith.constant 0.000000e+00 : f32
    %14 = vector.broadcast %cst_7 : f32 to vector<1x2048xf32>
    %15 = arith.cmpf oge, %13, %14 : vector<1x2048xf32>
    %cst_8 = arith.constant 1.000000e+00 : f32
    %cst_9 = arith.constant -1.000000e+00 : f32
    %16 = vector.broadcast %cst_8 : f32 to vector<1x2048xf32>
    %17 = vector.broadcast %cst_9 : f32 to vector<1x2048xf32>
    %18 = arith.select %15, %16, %17 : vector<1x2048xi1>, vector<1x2048xf32>
    %19 = math.absf %13 : vector<1x2048xf32>
    %cst_10 = arith.constant 0.327591091 : f32
    %20 = vector.broadcast %cst_10 : f32 to vector<1x2048xf32>
    %21 = arith.mulf %20, %19 : vector<1x2048xf32>
    %cst_11 = arith.constant 1.000000e+00 : f32
    %22 = vector.broadcast %cst_11 : f32 to vector<1x2048xf32>
    %23 = arith.addf %22, %21 : vector<1x2048xf32>
    %24 = tpu.reciprocal %23 {approx = true} : vector<1x2048xf32> -> vector<1x2048xf32>
    %cst_12 = arith.constant 1.06140542 : f32
    %25 = vector.broadcast %cst_12 : f32 to vector<1x2048xf32>
    %26 = arith.mulf %24, %25 : vector<1x2048xf32>
    %cst_13 = arith.constant -1.45315206 : f32
    %27 = vector.broadcast %cst_13 : f32 to vector<1x2048xf32>
    %28 = arith.addf %27, %26 : vector<1x2048xf32>
    %29 = arith.mulf %24, %28 : vector<1x2048xf32>
    %cst_14 = arith.constant 1.42141378 : f32
    %30 = vector.broadcast %cst_14 : f32 to vector<1x2048xf32>
    %31 = arith.addf %30, %29 : vector<1x2048xf32>
    %32 = arith.mulf %24, %31 : vector<1x2048xf32>
    %cst_15 = arith.constant -0.284496725 : f32
    %33 = vector.broadcast %cst_15 : f32 to vector<1x2048xf32>
    %34 = arith.addf %33, %32 : vector<1x2048xf32>
    %35 = arith.mulf %24, %34 : vector<1x2048xf32>
    %cst_16 = arith.constant 0.254829586 : f32
    %36 = vector.broadcast %cst_16 : f32 to vector<1x2048xf32>
    %37 = arith.addf %36, %35 : vector<1x2048xf32>
    %38 = arith.mulf %24, %37 : vector<1x2048xf32>
    %cst_17 = arith.constant 0.000000e+00 : f32
    %39 = vector.broadcast %cst_17 : f32 to vector<1x2048xf32>
    %40 = arith.subf %39, %19 : vector<1x2048xf32>
    %41 = arith.mulf %40, %19 : vector<1x2048xf32>
    %42 = math.exp %41 : vector<1x2048xf32>
    %43 = arith.mulf %38, %42 : vector<1x2048xf32>
    %cst_18 = arith.constant 1.000000e+00 : f32
    %44 = vector.broadcast %cst_18 : f32 to vector<1x2048xf32>
    %45 = arith.subf %44, %43 : vector<1x2048xf32>
    %46 = arith.mulf %18, %45 : vector<1x2048xf32>
    %cst_19 = arith.constant 1.000000e+00 : f32
    %47 = vector.broadcast %cst_19 : f32 to vector<1x2048xf32>
    %48 = arith.addf %47, %46 : vector<1x2048xf32>
    %49 = arith.mulf %11, %48 : vector<1x2048xf32>
    %c0_20 = arith.constant 0 : index
    %c0_21 = arith.constant 0 : index
    %c0_22 = arith.constant 0 : index
    %50 = vector.load %arg5[%c0_20, %c0_21, %c0_22] : memref<1x1x2048xf32, #tpu.memory_space<vmem>>, vector<1x1x2048xf32>
    %51 = vector.shape_cast %50 : vector<1x1x2048xf32> to vector<1x2048xf32>
    %52 = vector.shape_cast %49 : vector<1x2048xf32> to vector<1x1x2048xf32>
    tpu.vector_store %arg5[%c0_20, %c0_21, %c0_22], %52 {strides = array<i32>} : memref<1x1x2048xf32, #tpu.memory_space<vmem>>, vector<1x1x2048xf32>,
    return
  }
  func.func @transform_0(%arg0: i32, %arg1: i32) -> (i32, i32, i32) {
    %c0_i32 = arith.constant 0 : i32
    %c0_i32_0 = arith.constant 0 : i32
    return %arg0, %c0_i32, %arg1 : i32, i32, i32
  }
  func.func @transform_1(%arg0: i32, %arg1: i32) -> (i32, i32) {
    %c0_i32 = arith.constant 0 : i32
    %c0_i32_0 = arith.constant 0 : i32
    %c0_i32_1 = arith.constant 0 : i32
    return %c0_i32, %c0_i32_0 : i32, i32
  }
  func.func @transform_2(%arg0: i32, %arg1: i32) -> i32 {
    %c0_i32 = arith.constant 0 : i32
    %c0_i32_0 = arith.constant 0 : i32
    return %c0_i32 : i32
  }
  func.func @transform_3(%arg0: i32, %arg1: i32) -> (i32, i32, i32) {
    %c0_i32 = arith.constant 0 : i32
    %c0_i32_0 = arith.constant 0 : i32
    return %arg0, %c0_i32, %arg1 : i32, i32, i32
  }
}

module attributes {stable_mosaic.version = 11 : i64} {
  func.func @kernel(%arg0: i32, %arg1: i32, %arg2: memref<1x8x2048xf32, #tpu.memory_space<vmem>>, %arg3: memref<8x1xf32, #tpu.memory_space<vmem>>, %arg4: memref<1xf32, #tpu.memory_space<smem>>, %arg5: memref<1x1x2048xf32, #tpu.memory_space<vmem>>) attributes {dimension_semantics = [#tpu.dimension_semantics<parallel>, #tpu.dimension_semantics<parallel>], iteration_bounds = array<i64: 2, 2>, scalar_prefetch = 0 : i64, scratch_operands = 0 : i64, tpu.core_type = #tpu.core_type<tc>, window_params = [{transform_indices = @transform_0, window_bounds = array<i64: 1, 8, 2048>}, {pipeline_mode = #tpu.pipeline_mode<synchronous>, transform_indices = @transform_1, window_bounds = array<i64: 8, 1>}, {transform_indices = @transform_2, window_bounds = array<i64: 1>}, {transform_indices = @transform_3, window_bounds = array<i64: 1, 1, 2048>}]} {
    %c0 = arith.constant 0 : index
    %c0_0 = arith.constant 0 : index
    %0 = vector.load %arg3[%c0, %c0_0] : memref<8x1xf32, #tpu.memory_space<vmem>>, vector<8x1xf32>
    %c0_1 = arith.constant 0 : index
    %c0_2 = arith.constant 0 : index
    %c0_3 = arith.constant 0 : index
    %1 = vector.load %arg2[%c0_1, %c0_2, %c0_3] : memref<1x8x2048xf32, #tpu.memory_space<vmem>>, vector<1x8x2048xf32>
    %2 = vector.shape_cast %1 : vector<1x8x2048xf32> to vector<8x2048xf32>
    %3 = vector.broadcast %0 : vector<8x1xf32> to vector<8x2048xf32>
    %4 = arith.mulf %3, %2 : vector<8x2048xf32>
    %cst = arith.constant dense<0.000000e+00> : vector<2048xf32>
    %5 = vector.multi_reduction <add>, %4, %cst [0] : vector<8x2048xf32> to vector<2048xf32>
    %6 = vector.shape_cast %5 : vector<2048xf32> to vector<1x2048xf32>
    %c0_4 = arith.constant 0 : index
    %7 = memref.load %arg4[%c0_4] : memref<1xf32, #tpu.memory_space<smem>>
    %8 = vector.broadcast %7 : f32 to vector<1x2048xf32>
    %9 = arith.addf %6, %8 : vector<1x2048xf32>
    %cst_5 = arith.constant 5.000000e-01 : f32
    %10 = vector.broadcast %cst_5 : f32 to vector<1x2048xf32>
    %11 = arith.mulf %10, %9 : vector<1x2048xf32>
    %cst_6 = arith.constant 0.707106769 : f32
    %12 = vector.broadcast %cst_6 : f32 to vector<1x2048xf32>
    %13 = arith.mulf %9, %12 : vector<1x2048xf32>
    %cst_7 = arith.constant 0.000000e+00 : f32
    %14 = vector.broadcast %cst_7 : f32 to vector<1x2048xf32>
    %15 = arith.cmpf oge, %13, %14 : vector<1x2048xf32>
    %cst_8 = arith.constant 1.000000e+00 : f32
    %cst_9 = arith.constant -1.000000e+00 : f32
    %16 = vector.broadcast %cst_8 : f32 to vector<1x2048xf32>
    %17 = vector.broadcast %cst_9 : f32 to vector<1x2048xf32>
    %18 = arith.select %15, %16, %17 : vector<1x2048xi1>, vector<1x2048xf32>
    %19 = math.absf %13 : vector<1x2048xf32>
    %cst_10 = arith.constant 0.327591091 : f32
    %20 = vector.broadcast %cst_10 : f32 to vector<1x2048xf32>
    %21 = arith.mulf %20, %19 : vector<1x2048xf32>
    %cst_11 = arith.constant 1.000000e+00 : f32
    %22 = vector.broadcast %cst_11 : f32 to vector<1x2048xf32>
    %23 = arith.addf %22, %21 : vector<1x2048xf32>
    %24 = tpu.reciprocal %23 {approx = true} : vector<1x2048xf32> -> vector<1x2048xf32>
    %cst_12 = arith.constant 1.06140542 : f32
    %25 = vector.broadcast %cst_12 : f32 to vector<1x2048xf32>
    %26 = arith.mulf %24, %25 : vector<1x2048xf32>
    %cst_13 = arith.constant -1.45315206 : f32
    %27 = vector.broadcast %cst_13 : f32 to vector<1x2048xf32>
    %28 = arith.addf %27, %26 : vector<1x2048xf32>
    %29 = arith.mulf %24, %28 : vector<1x2048xf32>
    %cst_14 = arith.constant 1.42141378 : f32
    %30 = vector.broadcast %cst_14 : f32 to vector<1x2048xf32>
    %31 = arith.addf %30, %29 : vector<1x2048xf32>
    %32 = arith.mulf %24, %31 : vector<1x2048xf32>
    %cst_15 = arith.constant -0.284496725 : f32
    %33 = vector.broadcast %cst_15 : f32 to vector<1x2048xf32>
    %34 = arith.addf %33, %32 : vector<1x2048xf32>
    %35 = arith.mulf %24, %34 : vector<1x2048xf32>
    %cst_16 = arith.constant 0.254829586 : f32
    %36 = vector.broadcast %cst_16 : f32 to vector<1x2048xf32>
    %37 = arith.addf %36, %35 : vector<1x2048xf32>
    %38 = arith.mulf %24, %37 : vector<1x2048xf32>
    %cst_17 = arith.constant 0.000000e+00 : f32
    %39 = vector.broadcast %cst_17 : f32 to vector<1x2048xf32>
    %40 = arith.subf %39, %19 : vector<1x2048xf32>
    %41 = arith.mulf %40, %19 : vector<1x2048xf32>
    %42 = math.exp %41 : vector<1x2048xf32>
    %43 = arith.mulf %38, %42 : vector<1x2048xf32>
    %cst_18 = arith.constant 1.000000e+00 : f32
    %44 = vector.broadcast %cst_18 : f32 to vector<1x2048xf32>
    %45 = arith.subf %44, %43 : vector<1x2048xf32>
    %46 = arith.mulf %18, %45 : vector<1x2048xf32>
    %cst_19 = arith.constant 1.000000e+00 : f32
    %47 = vector.broadcast %cst_19 : f32 to vector<1x2048xf32>
    %48 = arith.addf %47, %46 : vector<1x2048xf32>
    %49 = arith.mulf %11, %48 : vector<1x2048xf32>
    %c0_20 = arith.constant 0 : index
    %c0_21 = arith.constant 0 : index
    %c0_22 = arith.constant 0 : index
    %50 = vector.load %arg5[%c0_20, %c0_21, %c0_22] : memref<1x1x2048xf32, #tpu.memory_space<vmem>>, vector<1x1x2048xf32>
    %51 = vector.shape_cast %50 : vector<1x1x2048xf32> to vector<1x2048xf32>
    %52 = vector.shape_cast %49 : vector<1x2048xf32> to vector<1x1x2048xf32>
    tpu.vector_store %arg5[%c0_20, %c0_21, %c0_22], %52 {strides = array<i32>} : memref<1x1x2048xf32, #tpu.memory_space<vmem>>, vector<1x1x2048xf32>,
    return
  }
  func.func @transform_0(%arg0: i32, %arg1: i32) -> (i32, i32, i32) {
    %c0_i32 = arith.constant 0 : i32
    %c0_i32_0 = arith.constant 0 : i32
    return %arg0, %c0_i32, %arg1 : i32, i32, i32
  }
  func.func @transform_1(%arg0: i32, %arg1: i32) -> (i32, i32) {
    %c0_i32 = arith.constant 0 : i32
    %c0_i32_0 = arith.constant 0 : i32
    %c0_i32_1 = arith.constant 0 : i32
    return %c0_i32, %c0_i32_0 : i32, i32
  }
  func.func @transform_2(%arg0: i32, %arg1: i32) -> i32 {
    %c0_i32 = arith.constant 0 : i32
    %c0_i32_0 = arith.constant 0 : i32
    return %c0_i32 : i32
  }
  func.func @transform_3(%arg0: i32, %arg1: i32) -> (i32, i32, i32) {
    %c0_i32 = arith.constant 0 : i32
    %c0_i32_0 = arith.constant 0 : i32
    return %arg0, %c0_i32, %arg1 : i32, i32, i32
  }
}

module attributes {stable_mosaic.version = 11 : i64} {
  func.func @kernel(%arg0: i32, %arg1: memref<1x2x11x256xf32, #tpu.memory_space<vmem>>, %arg2: memref<3x256x64xf32, #tpu.memory_space<vmem>>, %arg3: memref<5x256x64xf32, #tpu.memory_space<vmem>>, %arg4: memref<7x256x64xf32, #tpu.memory_space<vmem>>, %arg5: memref<9xf32, #tpu.memory_space<smem>>, %arg6: memref<1x8x64xf32, #tpu.memory_space<vmem>>) attributes {dimension_semantics = [#tpu.dimension_semantics<parallel>], iteration_bounds = array<i64: 2>, scalar_prefetch = 0 : i64, scratch_operands = 0 : i64, tpu.core_type = #tpu.core_type<tc>, window_params = [{transform_indices = @transform_0, window_bounds = array<i64: 1, 2, 11, 256>}, {pipeline_mode = #tpu.pipeline_mode<synchronous>, transform_indices = @transform_1, window_bounds = array<i64: 3, 256, 64>}, {pipeline_mode = #tpu.pipeline_mode<synchronous>, transform_indices = @transform_2, window_bounds = array<i64: 5, 256, 64>}, {pipeline_mode = #tpu.pipeline_mode<synchronous>, transform_indices = @transform_3, window_bounds = array<i64: 7, 256, 64>}, {transform_indices = @transform_4, window_bounds = array<i64: 9>}, {transform_indices = @transform_5, window_bounds = array<i64: 1, 8, 64>}]} {
    %cst = arith.constant 0.000000e+00 : f32
    %0 = vector.broadcast %cst : f32 to vector<8x64xf32>
    %c0 = arith.constant 0 : index
    %c0_0 = arith.constant 0 : index
    %c1 = arith.constant 1 : index
    %c0_1 = arith.constant 0 : index
    %1 = vector.load %arg1[%c0, %c0_0, %c1, %c0_1] : memref<1x2x11x256xf32, #tpu.memory_space<vmem>>, vector<1x1x8x256xf32>
    %2 = vector.shape_cast %1 : vector<1x1x8x256xf32> to vector<8x256xf32>
    %c0_2 = arith.constant 0 : index
    %c0_3 = arith.constant 0 : index
    %c0_4 = arith.constant 0 : index
    %3 = vector.load %arg2[%c0_2, %c0_3, %c0_4] : memref<3x256x64xf32, #tpu.memory_space<vmem>>, vector<1x256x64xf32>
    %4 = vector.shape_cast %3 : vector<1x256x64xf32> to vector<256x64xf32>
    %cst_5 = arith.constant dense<0.000000e+00> : vector<8x64xf32>
    %5 = tpu.matmul %2, %4, %cst_5 {dimension_numbers = #tpu.dot_dimension_numbers<[1], [0], [0], [1], [0, 0, 1, 1], [], []>} : vector<8x256xf32>, vector<256x64xf32>, vector<8x64xf32> -> vector<8x64xf32>
    %6 = arith.addf %0, %5 : vector<8x64xf32>
    %c0_6 = arith.constant 0 : index
    %c1_7 = arith.constant 1 : index
    %c1_8 = arith.constant 1 : index
    %c0_9 = arith.constant 0 : index
    %7 = vector.load %arg1[%c0_6, %c1_7, %c1_8, %c0_9] : memref<1x2x11x256xf32, #tpu.memory_space<vmem>>, vector<1x1x8x256xf32>
    %8 = vector.shape_cast %7 : vector<1x1x8x256xf32> to vector<8x256xf32>
    %c1_10 = arith.constant 1 : index
    %c0_11 = arith.constant 0 : index
    %c0_12 = arith.constant 0 : index
    %9 = vector.load %arg2[%c1_10, %c0_11, %c0_12] : memref<3x256x64xf32, #tpu.memory_space<vmem>>, vector<1x256x64xf32>
    %10 = vector.shape_cast %9 : vector<1x256x64xf32> to vector<256x64xf32>
    %cst_13 = arith.constant dense<0.000000e+00> : vector<8x64xf32>
    %11 = tpu.matmul %8, %10, %cst_13 {dimension_numbers = #tpu.dot_dimension_numbers<[1], [0], [0], [1], [0, 0, 1, 1], [], []>} : vector<8x256xf32>, vector<256x64xf32>, vector<8x64xf32> -> vector<8x64xf32>
    %12 = arith.addf %6, %11 : vector<8x64xf32>
    %c0_14 = arith.constant 0 : index
    %c0_15 = arith.constant 0 : index
    %c2 = arith.constant 2 : index
    %c0_16 = arith.constant 0 : index
    %13 = vector.load %arg1[%c0_14, %c0_15, %c2, %c0_16] : memref<1x2x11x256xf32, #tpu.memory_space<vmem>>, vector<1x1x8x256xf32>
    %14 = vector.shape_cast %13 : vector<1x1x8x256xf32> to vector<8x256xf32>
    %c2_17 = arith.constant 2 : index
    %c0_18 = arith.constant 0 : index
    %c0_19 = arith.constant 0 : index
    %15 = vector.load %arg2[%c2_17, %c0_18, %c0_19] : memref<3x256x64xf32, #tpu.memory_space<vmem>>, vector<1x256x64xf32>
    %16 = vector.shape_cast %15 : vector<1x256x64xf32> to vector<256x64xf32>
    %cst_20 = arith.constant dense<0.000000e+00> : vector<8x64xf32>
    %17 = tpu.matmul %14, %16, %cst_20 {dimension_numbers = #tpu.dot_dimension_numbers<[1], [0], [0], [1], [0, 0, 1, 1], [], []>} : vector<8x256xf32>, vector<256x64xf32>, vector<8x64xf32> -> vector<8x64xf32>
    %18 = arith.addf %12, %17 : vector<8x64xf32>
    %c0_21 = arith.constant 0 : index
    %19 = memref.load %arg5[%c0_21] : memref<9xf32, #tpu.memory_space<smem>>
    %20 = vector.broadcast %19 : f32 to vector<8x64xf32>
    %21 = arith.addf %18, %20 : vector<8x64xf32>
    %cst_22 = arith.constant 5.000000e-01 : f32
    %22 = vector.broadcast %cst_22 : f32 to vector<8x64xf32>
    %23 = arith.mulf %22, %21 : vector<8x64xf32>
    %cst_23 = arith.constant 0.707106769 : f32
    %24 = vector.broadcast %cst_23 : f32 to vector<8x64xf32>
    %25 = arith.mulf %21, %24 : vector<8x64xf32>
    %cst_24 = arith.constant 0.000000e+00 : f32
    %26 = vector.broadcast %cst_24 : f32 to vector<8x64xf32>
    %27 = arith.cmpf oge, %25, %26 : vector<8x64xf32>
    %cst_25 = arith.constant 1.000000e+00 : f32
    %cst_26 = arith.constant -1.000000e+00 : f32
    %28 = vector.broadcast %cst_25 : f32 to vector<8x64xf32>
    %29 = vector.broadcast %cst_26 : f32 to vector<8x64xf32>
    %30 = arith.select %27, %28, %29 : vector<8x64xi1>, vector<8x64xf32>
    %31 = math.absf %25 : vector<8x64xf32>
    %cst_27 = arith.constant 0.327591091 : f32
    %32 = vector.broadcast %cst_27 : f32 to vector<8x64xf32>
    %33 = arith.mulf %32, %31 : vector<8x64xf32>
    %cst_28 = arith.constant 1.000000e+00 : f32
    %34 = vector.broadcast %cst_28 : f32 to vector<8x64xf32>
    %35 = arith.addf %34, %33 : vector<8x64xf32>
    %36 = tpu.reciprocal %35 {approx = true} : vector<8x64xf32> -> vector<8x64xf32>
    %cst_29 = arith.constant 1.06140542 : f32
    %37 = vector.broadcast %cst_29 : f32 to vector<8x64xf32>
    %38 = arith.mulf %36, %37 : vector<8x64xf32>
    %cst_30 = arith.constant -1.45315206 : f32
    %39 = vector.broadcast %cst_30 : f32 to vector<8x64xf32>
    %40 = arith.addf %39, %38 : vector<8x64xf32>
    %41 = arith.mulf %36, %40 : vector<8x64xf32>
    %cst_31 = arith.constant 1.42141378 : f32
    %42 = vector.broadcast %cst_31 : f32 to vector<8x64xf32>
    %43 = arith.addf %42, %41 : vector<8x64xf32>
    %44 = arith.mulf %36, %43 : vector<8x64xf32>
    %cst_32 = arith.constant -0.284496725 : f32
    %45 = vector.broadcast %cst_32 : f32 to vector<8x64xf32>
    %46 = arith.addf %45, %44 : vector<8x64xf32>
    %47 = arith.mulf %36, %46 : vector<8x64xf32>
    %cst_33 = arith.constant 0.254829586 : f32
    %48 = vector.broadcast %cst_33 : f32 to vector<8x64xf32>
    %49 = arith.addf %48, %47 : vector<8x64xf32>
    %50 = arith.mulf %36, %49 : vector<8x64xf32>
    %cst_34 = arith.constant 0.000000e+00 : f32
    %51 = vector.broadcast %cst_34 : f32 to vector<8x64xf32>
    %52 = arith.subf %51, %31 : vector<8x64xf32>
    %53 = arith.mulf %52, %31 : vector<8x64xf32>
    %54 = math.exp %53 : vector<8x64xf32>
    %55 = arith.mulf %50, %54 : vector<8x64xf32>
    %cst_35 = arith.constant 1.000000e+00 : f32
    %56 = vector.broadcast %cst_35 : f32 to vector<8x64xf32>
    %57 = arith.subf %56, %55 : vector<8x64xf32>
    %58 = arith.mulf %30, %57 : vector<8x64xf32>
    %cst_36 = arith.constant 1.000000e+00 : f32
    %59 = vector.broadcast %cst_36 : f32 to vector<8x64xf32>
    %60 = arith.addf %59, %58 : vector<8x64xf32>
    %61 = arith.mulf %23, %60 : vector<8x64xf32>
    %c1_37 = arith.constant 1 : index
    %62 = memref.load %arg5[%c1_37] : memref<9xf32, #tpu.memory_space<smem>>
    %63 = vector.broadcast %62 : f32 to vector<8x64xf32>
    %64 = arith.mulf %61, %63 : vector<8x64xf32>
    %c2_38 = arith.constant 2 : index
    %65 = memref.load %arg5[%c2_38] : memref<9xf32, #tpu.memory_space<smem>>
    %66 = vector.broadcast %65 : f32 to vector<8x64xf32>
    %67 = arith.addf %64, %66 : vector<8x64xf32>
    %cst_39 = arith.constant 0.000000e+00 : f32
    %68 = vector.broadcast %cst_39 : f32 to vector<8x64xf32>
    %c0_40 = arith.constant 0 : index
    %c1_41 = arith.constant 1 : index
    %c0_42 = arith.constant 0 : index
    %c0_43 = arith.constant 0 : index
    %69 = vector.load %arg1[%c0_40, %c1_41, %c0_42, %c0_43] : memref<1x2x11x256xf32, #tpu.memory_space<vmem>>, vector<1x1x8x256xf32>
    %70 = vector.shape_cast %69 : vector<1x1x8x256xf32> to vector<8x256xf32>
    %c0_44 = arith.constant 0 : index
    %c0_45 = arith.constant 0 : index
    %c0_46 = arith.constant 0 : index
    %71 = vector.load %arg3[%c0_44, %c0_45, %c0_46] : memref<5x256x64xf32, #tpu.memory_space<vmem>>, vector<1x256x64xf32>
    %72 = vector.shape_cast %71 : vector<1x256x64xf32> to vector<256x64xf32>
    %cst_47 = arith.constant dense<0.000000e+00> : vector<8x64xf32>
    %73 = tpu.matmul %70, %72, %cst_47 {dimension_numbers = #tpu.dot_dimension_numbers<[1], [0], [0], [1], [0, 0, 1, 1], [], []>} : vector<8x256xf32>, vector<256x64xf32>, vector<8x64xf32> -> vector<8x64xf32>
    %74 = arith.addf %68, %73 : vector<8x64xf32>
    %c0_48 = arith.constant 0 : index
    %c0_49 = arith.constant 0 : index
    %c1_50 = arith.constant 1 : index
    %c0_51 = arith.constant 0 : index
    %75 = vector.load %arg1[%c0_48, %c0_49, %c1_50, %c0_51] : memref<1x2x11x256xf32, #tpu.memory_space<vmem>>, vector<1x1x8x256xf32>
    %76 = vector.shape_cast %75 : vector<1x1x8x256xf32> to vector<8x256xf32>
    %c1_52 = arith.constant 1 : index
    %c0_53 = arith.constant 0 : index
    %c0_54 = arith.constant 0 : index
    %77 = vector.load %arg3[%c1_52, %c0_53, %c0_54] : memref<5x256x64xf32, #tpu.memory_space<vmem>>, vector<1x256x64xf32>
    %78 = vector.shape_cast %77 : vector<1x256x64xf32> to vector<256x64xf32>
    %cst_55 = arith.constant dense<0.000000e+00> : vector<8x64xf32>
    %79 = tpu.matmul %76, %78, %cst_55 {dimension_numbers = #tpu.dot_dimension_numbers<[1], [0], [0], [1], [0, 0, 1, 1], [], []>} : vector<8x256xf32>, vector<256x64xf32>, vector<8x64xf32> -> vector<8x64xf32>
    %80 = arith.addf %74, %79 : vector<8x64xf32>
    %c0_56 = arith.constant 0 : index
    %c1_57 = arith.constant 1 : index
    %c1_58 = arith.constant 1 : index
    %c0_59 = arith.constant 0 : index
    %81 = vector.load %arg1[%c0_56, %c1_57, %c1_58, %c0_59] : memref<1x2x11x256xf32, #tpu.memory_space<vmem>>, vector<1x1x8x256xf32>
    %82 = vector.shape_cast %81 : vector<1x1x8x256xf32> to vector<8x256xf32>
    %c2_60 = arith.constant 2 : index
    %c0_61 = arith.constant 0 : index
    %c0_62 = arith.constant 0 : index
    %83 = vector.load %arg3[%c2_60, %c0_61, %c0_62] : memref<5x256x64xf32, #tpu.memory_space<vmem>>, vector<1x256x64xf32>
    %84 = vector.shape_cast %83 : vector<1x256x64xf32> to vector<256x64xf32>
    %cst_63 = arith.constant dense<0.000000e+00> : vector<8x64xf32>
    %85 = tpu.matmul %82, %84, %cst_63 {dimension_numbers = #tpu.dot_dimension_numbers<[1], [0], [0], [1], [0, 0, 1, 1], [], []>} : vector<8x256xf32>, vector<256x64xf32>, vector<8x64xf32> -> vector<8x64xf32>
    %86 = arith.addf %80, %85 : vector<8x64xf32>
    %c0_64 = arith.constant 0 : index
    %c0_65 = arith.constant 0 : index
    %c2_66 = arith.constant 2 : index
    %c0_67 = arith.constant 0 : index
    %87 = vector.load %arg1[%c0_64, %c0_65, %c2_66, %c0_67] : memref<1x2x11x256xf32, #tpu.memory_space<vmem>>, vector<1x1x8x256xf32>
    %88 = vector.shape_cast %87 : vector<1x1x8x256xf32> to vector<8x256xf32>
    %c3 = arith.constant 3 : index
    %c0_68 = arith.constant 0 : index
    %c0_69 = arith.constant 0 : index
    %89 = vector.load %arg3[%c3, %c0_68, %c0_69] : memref<5x256x64xf32, #tpu.memory_space<vmem>>, vector<1x256x64xf32>
    %90 = vector.shape_cast %89 : vector<1x256x64xf32> to vector<256x64xf32>
    %cst_70 = arith.constant dense<0.000000e+00> : vector<8x64xf32>
    %91 = tpu.matmul %88, %90, %cst_70 {dimension_numbers = #tpu.dot_dimension_numbers<[1], [0], [0], [1], [0, 0, 1, 1], [], []>} : vector<8x256xf32>, vector<256x64xf32>, vector<8x64xf32> -> vector<8x64xf32>
    %92 = arith.addf %86, %91 : vector<8x64xf32>
    %c0_71 = arith.constant 0 : index
    %c1_72 = arith.constant 1 : index
    %c2_73 = arith.constant 2 : index
    %c0_74 = arith.constant 0 : index
    %93 = vector.load %arg1[%c0_71, %c1_72, %c2_73, %c0_74] : memref<1x2x11x256xf32, #tpu.memory_space<vmem>>, vector<1x1x8x256xf32>
    %94 = vector.shape_cast %93 : vector<1x1x8x256xf32> to vector<8x256xf32>
    %c4 = arith.constant 4 : index
    %c0_75 = arith.constant 0 : index
    %c0_76 = arith.constant 0 : index
    %95 = vector.load %arg3[%c4, %c0_75, %c0_76] : memref<5x256x64xf32, #tpu.memory_space<vmem>>, vector<1x256x64xf32>
    %96 = vector.shape_cast %95 : vector<1x256x64xf32> to vector<256x64xf32>
    %cst_77 = arith.constant dense<0.000000e+00> : vector<8x64xf32>
    %97 = tpu.matmul %94, %96, %cst_77 {dimension_numbers = #tpu.dot_dimension_numbers<[1], [0], [0], [1], [0, 0, 1, 1], [], []>} : vector<8x256xf32>, vector<256x64xf32>, vector<8x64xf32> -> vector<8x64xf32>
    %98 = arith.addf %92, %97 : vector<8x64xf32>
    %c3_78 = arith.constant 3 : index
    %99 = memref.load %arg5[%c3_78] : memref<9xf32, #tpu.memory_space<smem>>
    %100 = vector.broadcast %99 : f32 to vector<8x64xf32>
    %101 = arith.addf %98, %100 : vector<8x64xf32>
    %cst_79 = arith.constant 5.000000e-01 : f32
    %102 = vector.broadcast %cst_79 : f32 to vector<8x64xf32>
    %103 = arith.mulf %102, %101 : vector<8x64xf32>
    %cst_80 = arith.constant 0.707106769 : f32
    %104 = vector.broadcast %cst_80 : f32 to vector<8x64xf32>
    %105 = arith.mulf %101, %104 : vector<8x64xf32>
    %cst_81 = arith.constant 0.000000e+00 : f32
    %106 = vector.broadcast %cst_81 : f32 to vector<8x64xf32>
    %107 = arith.cmpf oge, %105, %106 : vector<8x64xf32>
    %cst_82 = arith.constant 1.000000e+00 : f32
    %cst_83 = arith.constant -1.000000e+00 : f32
    %108 = vector.broadcast %cst_82 : f32 to vector<8x64xf32>
    %109 = vector.broadcast %cst_83 : f32 to vector<8x64xf32>
    %110 = arith.select %107, %108, %109 : vector<8x64xi1>, vector<8x64xf32>
    %111 = math.absf %105 : vector<8x64xf32>
    %cst_84 = arith.constant 0.327591091 : f32
    %112 = vector.broadcast %cst_84 : f32 to vector<8x64xf32>
    %113 = arith.mulf %112, %111 : vector<8x64xf32>
    %cst_85 = arith.constant 1.000000e+00 : f32
    %114 = vector.broadcast %cst_85 : f32 to vector<8x64xf32>
    %115 = arith.addf %114, %113 : vector<8x64xf32>
    %116 = tpu.reciprocal %115 {approx = true} : vector<8x64xf32> -> vector<8x64xf32>
    %cst_86 = arith.constant 1.06140542 : f32
    %117 = vector.broadcast %cst_86 : f32 to vector<8x64xf32>
    %118 = arith.mulf %116, %117 : vector<8x64xf32>
    %cst_87 = arith.constant -1.45315206 : f32
    %119 = vector.broadcast %cst_87 : f32 to vector<8x64xf32>
    %120 = arith.addf %119, %118 : vector<8x64xf32>
    %121 = arith.mulf %116, %120 : vector<8x64xf32>
    %cst_88 = arith.constant 1.42141378 : f32
    %122 = vector.broadcast %cst_88 : f32 to vector<8x64xf32>
    %123 = arith.addf %122, %121 : vector<8x64xf32>
    %124 = arith.mulf %116, %123 : vector<8x64xf32>
    %cst_89 = arith.constant -0.284496725 : f32
    %125 = vector.broadcast %cst_89 : f32 to vector<8x64xf32>
    %126 = arith.addf %125, %124 : vector<8x64xf32>
    %127 = arith.mulf %116, %126 : vector<8x64xf32>
    %cst_90 = arith.constant 0.254829586 : f32
    %128 = vector.broadcast %cst_90 : f32 to vector<8x64xf32>
    %129 = arith.addf %128, %127 : vector<8x64xf32>
    %130 = arith.mulf %116, %129 : vector<8x64xf32>
    %cst_91 = arith.constant 0.000000e+00 : f32
    %131 = vector.broadcast %cst_91 : f32 to vector<8x64xf32>
    %132 = arith.subf %131, %111 : vector<8x64xf32>
    %133 = arith.mulf %132, %111 : vector<8x64xf32>
    %134 = math.exp %133 : vector<8x64xf32>
    %135 = arith.mulf %130, %134 : vector<8x64xf32>
    %cst_92 = arith.constant 1.000000e+00 : f32
    %136 = vector.broadcast %cst_92 : f32 to vector<8x64xf32>
    %137 = arith.subf %136, %135 : vector<8x64xf32>
    %138 = arith.mulf %110, %137 : vector<8x64xf32>
    %cst_93 = arith.constant 1.000000e+00 : f32
    %139 = vector.broadcast %cst_93 : f32 to vector<8x64xf32>
    %140 = arith.addf %139, %138 : vector<8x64xf32>
    %141 = arith.mulf %103, %140 : vector<8x64xf32>
    %c4_94 = arith.constant 4 : index
    %142 = memref.load %arg5[%c4_94] : memref<9xf32, #tpu.memory_space<smem>>
    %143 = vector.broadcast %142 : f32 to vector<8x64xf32>
    %144 = arith.mulf %141, %143 : vector<8x64xf32>
    %c5 = arith.constant 5 : index
    %145 = memref.load %arg5[%c5] : memref<9xf32, #tpu.memory_space<smem>>
    %146 = vector.broadcast %145 : f32 to vector<8x64xf32>
    %147 = arith.addf %144, %146 : vector<8x64xf32>
    %cst_95 = arith.constant 0.000000e+00 : f32
    %148 = vector.broadcast %cst_95 : f32 to vector<8x64xf32>
    %c0_96 = arith.constant 0 : index
    %c0_97 = arith.constant 0 : index
    %c0_98 = arith.constant 0 : index
    %c0_99 = arith.constant 0 : index
    %149 = vector.load %arg1[%c0_96, %c0_97, %c0_98, %c0_99] : memref<1x2x11x256xf32, #tpu.memory_space<vmem>>, vector<1x1x8x256xf32>
    %150 = vector.shape_cast %149 : vector<1x1x8x256xf32> to vector<8x256xf32>
    %c0_100 = arith.constant 0 : index
    %c0_101 = arith.constant 0 : index
    %c0_102 = arith.constant 0 : index
    %151 = vector.load %arg4[%c0_100, %c0_101, %c0_102] : memref<7x256x64xf32, #tpu.memory_space<vmem>>, vector<1x256x64xf32>
    %152 = vector.shape_cast %151 : vector<1x256x64xf32> to vector<256x64xf32>
    %cst_103 = arith.constant dense<0.000000e+00> : vector<8x64xf32>
    %153 = tpu.matmul %150, %152, %cst_103 {dimension_numbers = #tpu.dot_dimension_numbers<[1], [0], [0], [1], [0, 0, 1, 1], [], []>} : vector<8x256xf32>, vector<256x64xf32>, vector<8x64xf32> -> vector<8x64xf32>
    %154 = arith.addf %148, %153 : vector<8x64xf32>
    %c0_104 = arith.constant 0 : index
    %c1_105 = arith.constant 1 : index
    %c0_106 = arith.constant 0 : index
    %c0_107 = arith.constant 0 : index
    %155 = vector.load %arg1[%c0_104, %c1_105, %c0_106, %c0_107] : memref<1x2x11x256xf32, #tpu.memory_space<vmem>>, vector<1x1x8x256xf32>
    %156 = vector.shape_cast %155 : vector<1x1x8x256xf32> to vector<8x256xf32>
    %c1_108 = arith.constant 1 : index
    %c0_109 = arith.constant 0 : index
    %c0_110 = arith.constant 0 : index
    %157 = vector.load %arg4[%c1_108, %c0_109, %c0_110] : memref<7x256x64xf32, #tpu.memory_space<vmem>>, vector<1x256x64xf32>
    %158 = vector.shape_cast %157 : vector<1x256x64xf32> to vector<256x64xf32>
    %cst_111 = arith.constant dense<0.000000e+00> : vector<8x64xf32>
    %159 = tpu.matmul %156, %158, %cst_111 {dimension_numbers = #tpu.dot_dimension_numbers<[1], [0], [0], [1], [0, 0, 1, 1], [], []>} : vector<8x256xf32>, vector<256x64xf32>, vector<8x64xf32> -> vector<8x64xf32>
    %160 = arith.addf %154, %159 : vector<8x64xf32>
    %c0_112 = arith.constant 0 : index
    %c0_113 = arith.constant 0 : index
    %c1_114 = arith.constant 1 : index
    %c0_115 = arith.constant 0 : index
    %161 = vector.load %arg1[%c0_112, %c0_113, %c1_114, %c0_115] : memref<1x2x11x256xf32, #tpu.memory_space<vmem>>, vector<1x1x8x256xf32>
    %162 = vector.shape_cast %161 : vector<1x1x8x256xf32> to vector<8x256xf32>
    %c2_116 = arith.constant 2 : index
    %c0_117 = arith.constant 0 : index
    %c0_118 = arith.constant 0 : index
    %163 = vector.load %arg4[%c2_116, %c0_117, %c0_118] : memref<7x256x64xf32, #tpu.memory_space<vmem>>, vector<1x256x64xf32>
    %164 = vector.shape_cast %163 : vector<1x256x64xf32> to vector<256x64xf32>
    %cst_119 = arith.constant dense<0.000000e+00> : vector<8x64xf32>
    %165 = tpu.matmul %162, %164, %cst_119 {dimension_numbers = #tpu.dot_dimension_numbers<[1], [0], [0], [1], [0, 0, 1, 1], [], []>} : vector<8x256xf32>, vector<256x64xf32>, vector<8x64xf32> -> vector<8x64xf32>
    %166 = arith.addf %160, %165 : vector<8x64xf32>
    %c0_120 = arith.constant 0 : index
    %c1_121 = arith.constant 1 : index
    %c1_122 = arith.constant 1 : index
    %c0_123 = arith.constant 0 : index
    %167 = vector.load %arg1[%c0_120, %c1_121, %c1_122, %c0_123] : memref<1x2x11x256xf32, #tpu.memory_space<vmem>>, vector<1x1x8x256xf32>
    %168 = vector.shape_cast %167 : vector<1x1x8x256xf32> to vector<8x256xf32>
    %c3_124 = arith.constant 3 : index
    %c0_125 = arith.constant 0 : index
    %c0_126 = arith.constant 0 : index
    %169 = vector.load %arg4[%c3_124, %c0_125, %c0_126] : memref<7x256x64xf32, #tpu.memory_space<vmem>>, vector<1x256x64xf32>
    %170 = vector.shape_cast %169 : vector<1x256x64xf32> to vector<256x64xf32>
    %cst_127 = arith.constant dense<0.000000e+00> : vector<8x64xf32>
    %171 = tpu.matmul %168, %170, %cst_127 {dimension_numbers = #tpu.dot_dimension_numbers<[1], [0], [0], [1], [0, 0, 1, 1], [], []>} : vector<8x256xf32>, vector<256x64xf32>, vector<8x64xf32> -> vector<8x64xf32>
    %172 = arith.addf %166, %171 : vector<8x64xf32>
    %c0_128 = arith.constant 0 : index
    %c0_129 = arith.constant 0 : index
    %c2_130 = arith.constant 2 : index
    %c0_131 = arith.constant 0 : index
    %173 = vector.load %arg1[%c0_128, %c0_129, %c2_130, %c0_131] : memref<1x2x11x256xf32, #tpu.memory_space<vmem>>, vector<1x1x8x256xf32>
    %174 = vector.shape_cast %173 : vector<1x1x8x256xf32> to vector<8x256xf32>
    %c4_132 = arith.constant 4 : index
    %c0_133 = arith.constant 0 : index
    %c0_134 = arith.constant 0 : index
    %175 = vector.load %arg4[%c4_132, %c0_133, %c0_134] : memref<7x256x64xf32, #tpu.memory_space<vmem>>, vector<1x256x64xf32>
    %176 = vector.shape_cast %175 : vector<1x256x64xf32> to vector<256x64xf32>
    %cst_135 = arith.constant dense<0.000000e+00> : vector<8x64xf32>
    %177 = tpu.matmul %174, %176, %cst_135 {dimension_numbers = #tpu.dot_dimension_numbers<[1], [0], [0], [1], [0, 0, 1, 1], [], []>} : vector<8x256xf32>, vector<256x64xf32>, vector<8x64xf32> -> vector<8x64xf32>
    %178 = arith.addf %172, %177 : vector<8x64xf32>
    %c0_136 = arith.constant 0 : index
    %c1_137 = arith.constant 1 : index
    %c2_138 = arith.constant 2 : index
    %c0_139 = arith.constant 0 : index
    %179 = vector.load %arg1[%c0_136, %c1_137, %c2_138, %c0_139] : memref<1x2x11x256xf32, #tpu.memory_space<vmem>>, vector<1x1x8x256xf32>
    %180 = vector.shape_cast %179 : vector<1x1x8x256xf32> to vector<8x256xf32>
    %c5_140 = arith.constant 5 : index
    %c0_141 = arith.constant 0 : index
    %c0_142 = arith.constant 0 : index
    %181 = vector.load %arg4[%c5_140, %c0_141, %c0_142] : memref<7x256x64xf32, #tpu.memory_space<vmem>>, vector<1x256x64xf32>
    %182 = vector.shape_cast %181 : vector<1x256x64xf32> to vector<256x64xf32>
    %cst_143 = arith.constant dense<0.000000e+00> : vector<8x64xf32>
    %183 = tpu.matmul %180, %182, %cst_143 {dimension_numbers = #tpu.dot_dimension_numbers<[1], [0], [0], [1], [0, 0, 1, 1], [], []>} : vector<8x256xf32>, vector<256x64xf32>, vector<8x64xf32> -> vector<8x64xf32>
    %184 = arith.addf %178, %183 : vector<8x64xf32>
    %c0_144 = arith.constant 0 : index
    %c0_145 = arith.constant 0 : index
    %c3_146 = arith.constant 3 : index
    %c0_147 = arith.constant 0 : index
    %185 = vector.load %arg1[%c0_144, %c0_145, %c3_146, %c0_147] : memref<1x2x11x256xf32, #tpu.memory_space<vmem>>, vector<1x1x8x256xf32>
    %186 = vector.shape_cast %185 : vector<1x1x8x256xf32> to vector<8x256xf32>
    %c6 = arith.constant 6 : index
    %c0_148 = arith.constant 0 : index
    %c0_149 = arith.constant 0 : index
    %187 = vector.load %arg4[%c6, %c0_148, %c0_149] : memref<7x256x64xf32, #tpu.memory_space<vmem>>, vector<1x256x64xf32>
    %188 = vector.shape_cast %187 : vector<1x256x64xf32> to vector<256x64xf32>
    %cst_150 = arith.constant dense<0.000000e+00> : vector<8x64xf32>
    %189 = tpu.matmul %186, %188, %cst_150 {dimension_numbers = #tpu.dot_dimension_numbers<[1], [0], [0], [1], [0, 0, 1, 1], [], []>} : vector<8x256xf32>, vector<256x64xf32>, vector<8x64xf32> -> vector<8x64xf32>
    %190 = arith.addf %184, %189 : vector<8x64xf32>
    %c6_151 = arith.constant 6 : index
    %191 = memref.load %arg5[%c6_151] : memref<9xf32, #tpu.memory_space<smem>>
    %192 = vector.broadcast %191 : f32 to vector<8x64xf32>
    %193 = arith.addf %190, %192 : vector<8x64xf32>
    %cst_152 = arith.constant 5.000000e-01 : f32
    %194 = vector.broadcast %cst_152 : f32 to vector<8x64xf32>
    %195 = arith.mulf %194, %193 : vector<8x64xf32>
    %cst_153 = arith.constant 0.707106769 : f32
    %196 = vector.broadcast %cst_153 : f32 to vector<8x64xf32>
    %197 = arith.mulf %193, %196 : vector<8x64xf32>
    %cst_154 = arith.constant 0.000000e+00 : f32
    %198 = vector.broadcast %cst_154 : f32 to vector<8x64xf32>
    %199 = arith.cmpf oge, %197, %198 : vector<8x64xf32>
    %cst_155 = arith.constant 1.000000e+00 : f32
    %cst_156 = arith.constant -1.000000e+00 : f32
    %200 = vector.broadcast %cst_155 : f32 to vector<8x64xf32>
    %201 = vector.broadcast %cst_156 : f32 to vector<8x64xf32>
    %202 = arith.select %199, %200, %201 : vector<8x64xi1>, vector<8x64xf32>
    %203 = math.absf %197 : vector<8x64xf32>
    %cst_157 = arith.constant 0.327591091 : f32
    %204 = vector.broadcast %cst_157 : f32 to vector<8x64xf32>
    %205 = arith.mulf %204, %203 : vector<8x64xf32>
    %cst_158 = arith.constant 1.000000e+00 : f32
    %206 = vector.broadcast %cst_158 : f32 to vector<8x64xf32>
    %207 = arith.addf %206, %205 : vector<8x64xf32>
    %208 = tpu.reciprocal %207 {approx = true} : vector<8x64xf32> -> vector<8x64xf32>
    %cst_159 = arith.constant 1.06140542 : f32
    %209 = vector.broadcast %cst_159 : f32 to vector<8x64xf32>
    %210 = arith.mulf %208, %209 : vector<8x64xf32>
    %cst_160 = arith.constant -1.45315206 : f32
    %211 = vector.broadcast %cst_160 : f32 to vector<8x64xf32>
    %212 = arith.addf %211, %210 : vector<8x64xf32>
    %213 = arith.mulf %208, %212 : vector<8x64xf32>
    %cst_161 = arith.constant 1.42141378 : f32
    %214 = vector.broadcast %cst_161 : f32 to vector<8x64xf32>
    %215 = arith.addf %214, %213 : vector<8x64xf32>
    %216 = arith.mulf %208, %215 : vector<8x64xf32>
    %cst_162 = arith.constant -0.284496725 : f32
    %217 = vector.broadcast %cst_162 : f32 to vector<8x64xf32>
    %218 = arith.addf %217, %216 : vector<8x64xf32>
    %219 = arith.mulf %208, %218 : vector<8x64xf32>
    %cst_163 = arith.constant 0.254829586 : f32
    %220 = vector.broadcast %cst_163 : f32 to vector<8x64xf32>
    %221 = arith.addf %220, %219 : vector<8x64xf32>
    %222 = arith.mulf %208, %221 : vector<8x64xf32>
    %cst_164 = arith.constant 0.000000e+00 : f32
    %223 = vector.broadcast %cst_164 : f32 to vector<8x64xf32>
    %224 = arith.subf %223, %203 : vector<8x64xf32>
    %225 = arith.mulf %224, %203 : vector<8x64xf32>
    %226 = math.exp %225 : vector<8x64xf32>
    %227 = arith.mulf %222, %226 : vector<8x64xf32>
    %cst_165 = arith.constant 1.000000e+00 : f32
    %228 = vector.broadcast %cst_165 : f32 to vector<8x64xf32>
    %229 = arith.subf %228, %227 : vector<8x64xf32>
    %230 = arith.mulf %202, %229 : vector<8x64xf32>
    %cst_166 = arith.constant 1.000000e+00 : f32
    %231 = vector.broadcast %cst_166 : f32 to vector<8x64xf32>
    %232 = arith.addf %231, %230 : vector<8x64xf32>
    %233 = arith.mulf %195, %232 : vector<8x64xf32>
    %c7 = arith.constant 7 : index
    %234 = memref.load %arg5[%c7] : memref<9xf32, #tpu.memory_space<smem>>
    %235 = vector.broadcast %234 : f32 to vector<8x64xf32>
    %236 = arith.mulf %233, %235 : vector<8x64xf32>
    %c8 = arith.constant 8 : index
    %237 = memref.load %arg5[%c8] : memref<9xf32, #tpu.memory_space<smem>>
    %238 = vector.broadcast %237 : f32 to vector<8x64xf32>
    %239 = arith.addf %236, %238 : vector<8x64xf32>
    %240 = arith.addf %67, %147 : vector<8x64xf32>
    %241 = arith.addf %240, %239 : vector<8x64xf32>
    %c0_167 = arith.constant 0 : index
    %c0_168 = arith.constant 0 : index
    %c0_169 = arith.constant 0 : index
    %242 = vector.load %arg6[%c0_167, %c0_168, %c0_169] : memref<1x8x64xf32, #tpu.memory_space<vmem>>, vector<1x8x64xf32>
    %243 = vector.shape_cast %242 : vector<1x8x64xf32> to vector<8x64xf32>
    %244 = vector.shape_cast %241 : vector<8x64xf32> to vector<1x8x64xf32>
    tpu.vector_store %arg6[%c0_167, %c0_168, %c0_169], %244 {strides = array<i32>} : memref<1x8x64xf32, #tpu.memory_space<vmem>>, vector<1x8x64xf32>,
    return
  }
  func.func @transform_0(%arg0: i32) -> (i32, i32, i32, i32) {
    %c0_i32 = arith.constant 0 : i32
    %c0_i32_0 = arith.constant 0 : i32
    %c0_i32_1 = arith.constant 0 : i32
    %c0_i32_2 = arith.constant 0 : i32
    return %arg0, %c0_i32, %c0_i32_0, %c0_i32_1 : i32, i32, i32, i32
  }
  func.func @transform_1(%arg0: i32) -> (i32, i32, i32) {
    %c0_i32 = arith.constant 0 : i32
    %c0_i32_0 = arith.constant 0 : i32
    %c0_i32_1 = arith.constant 0 : i32
    %c0_i32_2 = arith.constant 0 : i32
    return %c0_i32, %c0_i32_0, %c0_i32_1 : i32, i32, i32
  }
  func.func @transform_2(%arg0: i32) -> (i32, i32, i32) {
    %c0_i32 = arith.constant 0 : i32
    %c0_i32_0 = arith.constant 0 : i32
    %c0_i32_1 = arith.constant 0 : i32
    %c0_i32_2 = arith.constant 0 : i32
    return %c0_i32, %c0_i32_0, %c0_i32_1 : i32, i32, i32
  }
  func.func @transform_3(%arg0: i32) -> (i32, i32, i32) {
    %c0_i32 = arith.constant 0 : i32
    %c0_i32_0 = arith.constant 0 : i32
    %c0_i32_1 = arith.constant 0 : i32
    %c0_i32_2 = arith.constant 0 : i32
    return %c0_i32, %c0_i32_0, %c0_i32_1 : i32, i32, i32
  }
  func.func @transform_4(%arg0: i32) -> i32 {
    %c0_i32 = arith.constant 0 : i32
    %c0_i32_0 = arith.constant 0 : i32
    return %c0_i32 : i32
  }
  func.func @transform_5(%arg0: i32) -> (i32, i32, i32) {
    %c0_i32 = arith.constant 0 : i32
    %c0_i32_0 = arith.constant 0 : i32
    %c0_i32_1 = arith.constant 0 : i32
    return %arg0, %c0_i32, %c0_i32_0 : i32, i32, i32
  }
}

module attributes {stable_mosaic.version = 11 : i64} {
  func.func @kernel(%arg0: i32, %arg1: memref<1x2x8x64xf32, #tpu.memory_space<vmem>>, %arg2: memref<1x4x8x64xf32, #tpu.memory_space<vmem>>, %arg3: memref<2x7x64x64xf32, #tpu.memory_space<vmem>>, %arg4: memref<3x64x64xf32, #tpu.memory_space<vmem>>, %arg5: memref<4xf32, #tpu.memory_space<smem>>, %arg6: memref<4xf32, #tpu.memory_space<smem>>, %arg7: memref<1x4x8x64xf32, #tpu.memory_space<vmem>>) attributes {dimension_semantics = [#tpu.dimension_semantics<parallel>], iteration_bounds = array<i64: 2>, scalar_prefetch = 0 : i64, scratch_operands = 0 : i64, tpu.core_type = #tpu.core_type<tc>, window_params = [{transform_indices = @transform_0, window_bounds = array<i64: 1, 2, 8, 64>}, {transform_indices = @transform_1, window_bounds = array<i64: 1, 4, 8, 64>}, {pipeline_mode = #tpu.pipeline_mode<synchronous>, transform_indices = @transform_2, window_bounds = array<i64: 2, 7, 64, 64>}, {pipeline_mode = #tpu.pipeline_mode<synchronous>, transform_indices = @transform_3, window_bounds = array<i64: 3, 64, 64>}, {transform_indices = @transform_4, window_bounds = array<i64: 4>}, {transform_indices = @transform_5, window_bounds = array<i64: 4>}, {transform_indices = @transform_6, window_bounds = array<i64: 1, 4, 8, 64>}]} {
    %c0 = arith.constant 0 : index
    %c0_0 = arith.constant 0 : index
    %c0_1 = arith.constant 0 : index
    %c0_2 = arith.constant 0 : index
    %0 = vector.load %arg1[%c0, %c0_0, %c0_1, %c0_2] : memref<1x2x8x64xf32, #tpu.memory_space<vmem>>, vector<1x1x8x64xf32>
    %1 = vector.shape_cast %0 : vector<1x1x8x64xf32> to vector<8x64xf32>
    %c0_3 = arith.constant 0 : index
    %c1 = arith.constant 1 : index
    %c0_4 = arith.constant 0 : index
    %c0_5 = arith.constant 0 : index
    %2 = vector.load %arg1[%c0_3, %c1, %c0_4, %c0_5] : memref<1x2x8x64xf32, #tpu.memory_space<vmem>>, vector<1x1x8x64xf32>
    %3 = vector.shape_cast %2 : vector<1x1x8x64xf32> to vector<8x64xf32>
    %c0_6 = arith.constant 0 : index
    %4 = memref.load %arg5[%c0_6] : memref<4xf32, #tpu.memory_space<smem>>
    %5 = vector.broadcast %4 : f32 to vector<8x64xf32>
    %6 = arith.mulf %5, %1 : vector<8x64xf32>
    %c1_7 = arith.constant 1 : index
    %7 = memref.load %arg5[%c1_7] : memref<4xf32, #tpu.memory_space<smem>>
    %8 = vector.broadcast %7 : f32 to vector<8x64xf32>
    %9 = arith.mulf %8, %3 : vector<8x64xf32>
    %10 = arith.addf %6, %9 : vector<8x64xf32>
    %cst = arith.constant 5.000000e-01 : f32
    %11 = vector.broadcast %cst : f32 to vector<8x64xf32>
    %12 = arith.mulf %11, %10 : vector<8x64xf32>
    %cst_8 = arith.constant 0.707106769 : f32
    %13 = vector.broadcast %cst_8 : f32 to vector<8x64xf32>
    %14 = arith.mulf %10, %13 : vector<8x64xf32>
    %cst_9 = arith.constant 0.000000e+00 : f32
    %15 = vector.broadcast %cst_9 : f32 to vector<8x64xf32>
    %16 = arith.cmpf oge, %14, %15 : vector<8x64xf32>
    %cst_10 = arith.constant 1.000000e+00 : f32
    %cst_11 = arith.constant -1.000000e+00 : f32
    %17 = vector.broadcast %cst_10 : f32 to vector<8x64xf32>
    %18 = vector.broadcast %cst_11 : f32 to vector<8x64xf32>
    %19 = arith.select %16, %17, %18 : vector<8x64xi1>, vector<8x64xf32>
    %20 = math.absf %14 : vector<8x64xf32>
    %cst_12 = arith.constant 0.327591091 : f32
    %21 = vector.broadcast %cst_12 : f32 to vector<8x64xf32>
    %22 = arith.mulf %21, %20 : vector<8x64xf32>
    %cst_13 = arith.constant 1.000000e+00 : f32
    %23 = vector.broadcast %cst_13 : f32 to vector<8x64xf32>
    %24 = arith.addf %23, %22 : vector<8x64xf32>
    %25 = tpu.reciprocal %24 {approx = true} : vector<8x64xf32> -> vector<8x64xf32>
    %cst_14 = arith.constant 1.06140542 : f32
    %26 = vector.broadcast %cst_14 : f32 to vector<8x64xf32>
    %27 = arith.mulf %25, %26 : vector<8x64xf32>
    %cst_15 = arith.constant -1.45315206 : f32
    %28 = vector.broadcast %cst_15 : f32 to vector<8x64xf32>
    %29 = arith.addf %28, %27 : vector<8x64xf32>
    %30 = arith.mulf %25, %29 : vector<8x64xf32>
    %cst_16 = arith.constant 1.42141378 : f32
    %31 = vector.broadcast %cst_16 : f32 to vector<8x64xf32>
    %32 = arith.addf %31, %30 : vector<8x64xf32>
    %33 = arith.mulf %25, %32 : vector<8x64xf32>
    %cst_17 = arith.constant -0.284496725 : f32
    %34 = vector.broadcast %cst_17 : f32 to vector<8x64xf32>
    %35 = arith.addf %34, %33 : vector<8x64xf32>
    %36 = arith.mulf %25, %35 : vector<8x64xf32>
    %cst_18 = arith.constant 0.254829586 : f32
    %37 = vector.broadcast %cst_18 : f32 to vector<8x64xf32>
    %38 = arith.addf %37, %36 : vector<8x64xf32>
    %39 = arith.mulf %25, %38 : vector<8x64xf32>
    %cst_19 = arith.constant 0.000000e+00 : f32
    %40 = vector.broadcast %cst_19 : f32 to vector<8x64xf32>
    %41 = arith.subf %40, %20 : vector<8x64xf32>
    %42 = arith.mulf %41, %20 : vector<8x64xf32>
    %43 = math.exp %42 : vector<8x64xf32>
    %44 = arith.mulf %39, %43 : vector<8x64xf32>
    %cst_20 = arith.constant 1.000000e+00 : f32
    %45 = vector.broadcast %cst_20 : f32 to vector<8x64xf32>
    %46 = arith.subf %45, %44 : vector<8x64xf32>
    %47 = arith.mulf %19, %46 : vector<8x64xf32>
    %cst_21 = arith.constant 1.000000e+00 : f32
    %48 = vector.broadcast %cst_21 : f32 to vector<8x64xf32>
    %49 = arith.addf %48, %47 : vector<8x64xf32>
    %50 = arith.mulf %12, %49 : vector<8x64xf32>
    %c2 = arith.constant 2 : index
    %51 = memref.load %arg5[%c2] : memref<4xf32, #tpu.memory_space<smem>>
    %52 = vector.broadcast %51 : f32 to vector<8x64xf32>
    %53 = arith.mulf %52, %50 : vector<8x64xf32>
    %54 = arith.negf %53 : vector<8x64xf32>
    %55 = math.exp %54 : vector<8x64xf32>
    %cst_22 = arith.constant 1.000000e+00 : f32
    %56 = vector.broadcast %cst_22 : f32 to vector<8x64xf32>
    %57 = arith.addf %56, %55 : vector<8x64xf32>
    %58 = arith.divf %56, %57 : vector<8x64xf32>
    %59 = arith.mulf %58, %1 : vector<8x64xf32>
    %c3 = arith.constant 3 : index
    %60 = memref.load %arg5[%c3] : memref<4xf32, #tpu.memory_space<smem>>
    %61 = vector.broadcast %60 : f32 to vector<8x64xf32>
    %62 = arith.mulf %61, %50 : vector<8x64xf32>
    %63 = arith.negf %62 : vector<8x64xf32>
    %64 = math.exp %63 : vector<8x64xf32>
    %cst_23 = arith.constant 1.000000e+00 : f32
    %65 = vector.broadcast %cst_23 : f32 to vector<8x64xf32>
    %66 = arith.addf %65, %64 : vector<8x64xf32>
    %67 = arith.divf %65, %66 : vector<8x64xf32>
    %68 = arith.mulf %67, %3 : vector<8x64xf32>
    %69 = arith.addf %59, %68 : vector<8x64xf32>
    %cst_24 = arith.constant 5.000000e-01 : f32
    %70 = vector.broadcast %cst_24 : f32 to vector<8x64xf32>
    %71 = arith.mulf %70, %69 : vector<8x64xf32>
    %72 = arith.maximumf %59, %68 : vector<8x64xf32>
    %cst_25 = arith.constant 0.000000e+00 : f32
    %73 = vector.broadcast %cst_25 : f32 to vector<3x64xf32>
    %74 = tpu.concatenate %73, %71, %73 in 0 : vector<3x64xf32>, vector<8x64xf32>, vector<3x64xf32> -> vector<14x64xf32>
    %75 = tpu.concatenate %73, %72, %73 in 0 : vector<3x64xf32>, vector<8x64xf32>, vector<3x64xf32> -> vector<14x64xf32>
    %cst_26 = arith.constant 0.000000e+00 : f32
    %76 = vector.broadcast %cst_26 : f32 to vector<8x64xf32>
    %77 = vector.extract_strided_slice %74 {offsets = [0, 0], sizes = [8, 64], strides = [1, 1]} : vector<14x64xf32> to vector<8x64xf32>
    %c0_27 = arith.constant 0 : index
    %c0_28 = arith.constant 0 : index
    %c0_29 = arith.constant 0 : index
    %c0_30 = arith.constant 0 : index
    %78 = vector.load %arg3[%c0_27, %c0_28, %c0_29, %c0_30] : memref<2x7x64x64xf32, #tpu.memory_space<vmem>>, vector<1x1x64x64xf32>
    %79 = vector.shape_cast %78 : vector<1x1x64x64xf32> to vector<64x64xf32>
    %cst_31 = arith.constant dense<0.000000e+00> : vector<8x64xf32>
    %80 = tpu.matmul %77, %79, %cst_31 {dimension_numbers = #tpu.dot_dimension_numbers<[1], [0], [0], [1], [0, 0, 1, 1], [], []>} : vector<8x64xf32>, vector<64x64xf32>, vector<8x64xf32> -> vector<8x64xf32>
    %81 = arith.addf %76, %80 : vector<8x64xf32>
    %82 = vector.extract_strided_slice %74 {offsets = [1, 0], sizes = [8, 64], strides = [1, 1]} : vector<14x64xf32> to vector<8x64xf32>
    %c0_32 = arith.constant 0 : index
    %c1_33 = arith.constant 1 : index
    %c0_34 = arith.constant 0 : index
    %c0_35 = arith.constant 0 : index
    %83 = vector.load %arg3[%c0_32, %c1_33, %c0_34, %c0_35] : memref<2x7x64x64xf32, #tpu.memory_space<vmem>>, vector<1x1x64x64xf32>
    %84 = vector.shape_cast %83 : vector<1x1x64x64xf32> to vector<64x64xf32>
    %cst_36 = arith.constant dense<0.000000e+00> : vector<8x64xf32>
    %85 = tpu.matmul %82, %84, %cst_36 {dimension_numbers = #tpu.dot_dimension_numbers<[1], [0], [0], [1], [0, 0, 1, 1], [], []>} : vector<8x64xf32>, vector<64x64xf32>, vector<8x64xf32> -> vector<8x64xf32>
    %86 = arith.addf %81, %85 : vector<8x64xf32>
    %87 = vector.extract_strided_slice %74 {offsets = [2, 0], sizes = [8, 64], strides = [1, 1]} : vector<14x64xf32> to vector<8x64xf32>
    %c0_37 = arith.constant 0 : index
    %c2_38 = arith.constant 2 : index
    %c0_39 = arith.constant 0 : index
    %c0_40 = arith.constant 0 : index
    %88 = vector.load %arg3[%c0_37, %c2_38, %c0_39, %c0_40] : memref<2x7x64x64xf32, #tpu.memory_space<vmem>>, vector<1x1x64x64xf32>
    %89 = vector.shape_cast %88 : vector<1x1x64x64xf32> to vector<64x64xf32>
    %cst_41 = arith.constant dense<0.000000e+00> : vector<8x64xf32>
    %90 = tpu.matmul %87, %89, %cst_41 {dimension_numbers = #tpu.dot_dimension_numbers<[1], [0], [0], [1], [0, 0, 1, 1], [], []>} : vector<8x64xf32>, vector<64x64xf32>, vector<8x64xf32> -> vector<8x64xf32>
    %91 = arith.addf %86, %90 : vector<8x64xf32>
    %92 = vector.extract_strided_slice %74 {offsets = [3, 0], sizes = [8, 64], strides = [1, 1]} : vector<14x64xf32> to vector<8x64xf32>
    %c0_42 = arith.constant 0 : index
    %c3_43 = arith.constant 3 : index
    %c0_44 = arith.constant 0 : index
    %c0_45 = arith.constant 0 : index
    %93 = vector.load %arg3[%c0_42, %c3_43, %c0_44, %c0_45] : memref<2x7x64x64xf32, #tpu.memory_space<vmem>>, vector<1x1x64x64xf32>
    %94 = vector.shape_cast %93 : vector<1x1x64x64xf32> to vector<64x64xf32>
    %cst_46 = arith.constant dense<0.000000e+00> : vector<8x64xf32>
    %95 = tpu.matmul %92, %94, %cst_46 {dimension_numbers = #tpu.dot_dimension_numbers<[1], [0], [0], [1], [0, 0, 1, 1], [], []>} : vector<8x64xf32>, vector<64x64xf32>, vector<8x64xf32> -> vector<8x64xf32>
    %96 = arith.addf %91, %95 : vector<8x64xf32>
    %97 = vector.extract_strided_slice %74 {offsets = [4, 0], sizes = [8, 64], strides = [1, 1]} : vector<14x64xf32> to vector<8x64xf32>
    %c0_47 = arith.constant 0 : index
    %c4 = arith.constant 4 : index
    %c0_48 = arith.constant 0 : index
    %c0_49 = arith.constant 0 : index
    %98 = vector.load %arg3[%c0_47, %c4, %c0_48, %c0_49] : memref<2x7x64x64xf32, #tpu.memory_space<vmem>>, vector<1x1x64x64xf32>
    %99 = vector.shape_cast %98 : vector<1x1x64x64xf32> to vector<64x64xf32>
    %cst_50 = arith.constant dense<0.000000e+00> : vector<8x64xf32>
    %100 = tpu.matmul %97, %99, %cst_50 {dimension_numbers = #tpu.dot_dimension_numbers<[1], [0], [0], [1], [0, 0, 1, 1], [], []>} : vector<8x64xf32>, vector<64x64xf32>, vector<8x64xf32> -> vector<8x64xf32>
    %101 = arith.addf %96, %100 : vector<8x64xf32>
    %102 = vector.extract_strided_slice %74 {offsets = [5, 0], sizes = [8, 64], strides = [1, 1]} : vector<14x64xf32> to vector<8x64xf32>
    %c0_51 = arith.constant 0 : index
    %c5 = arith.constant 5 : index
    %c0_52 = arith.constant 0 : index
    %c0_53 = arith.constant 0 : index
    %103 = vector.load %arg3[%c0_51, %c5, %c0_52, %c0_53] : memref<2x7x64x64xf32, #tpu.memory_space<vmem>>, vector<1x1x64x64xf32>
    %104 = vector.shape_cast %103 : vector<1x1x64x64xf32> to vector<64x64xf32>
    %cst_54 = arith.constant dense<0.000000e+00> : vector<8x64xf32>
    %105 = tpu.matmul %102, %104, %cst_54 {dimension_numbers = #tpu.dot_dimension_numbers<[1], [0], [0], [1], [0, 0, 1, 1], [], []>} : vector<8x64xf32>, vector<64x64xf32>, vector<8x64xf32> -> vector<8x64xf32>
    %106 = arith.addf %101, %105 : vector<8x64xf32>
    %107 = vector.extract_strided_slice %74 {offsets = [6, 0], sizes = [8, 64], strides = [1, 1]} : vector<14x64xf32> to vector<8x64xf32>
    %c0_55 = arith.constant 0 : index
    %c6 = arith.constant 6 : index
    %c0_56 = arith.constant 0 : index
    %c0_57 = arith.constant 0 : index
    %108 = vector.load %arg3[%c0_55, %c6, %c0_56, %c0_57] : memref<2x7x64x64xf32, #tpu.memory_space<vmem>>, vector<1x1x64x64xf32>
    %109 = vector.shape_cast %108 : vector<1x1x64x64xf32> to vector<64x64xf32>
    %cst_58 = arith.constant dense<0.000000e+00> : vector<8x64xf32>
    %110 = tpu.matmul %107, %109, %cst_58 {dimension_numbers = #tpu.dot_dimension_numbers<[1], [0], [0], [1], [0, 0, 1, 1], [], []>} : vector<8x64xf32>, vector<64x64xf32>, vector<8x64xf32> -> vector<8x64xf32>
    %111 = arith.addf %106, %110 : vector<8x64xf32>
    %112 = vector.extract_strided_slice %75 {offsets = [0, 0], sizes = [8, 64], strides = [1, 1]} : vector<14x64xf32> to vector<8x64xf32>
    %c1_59 = arith.constant 1 : index
    %c0_60 = arith.constant 0 : index
    %c0_61 = arith.constant 0 : index
    %c0_62 = arith.constant 0 : index
    %113 = vector.load %arg3[%c1_59, %c0_60, %c0_61, %c0_62] : memref<2x7x64x64xf32, #tpu.memory_space<vmem>>, vector<1x1x64x64xf32>
    %114 = vector.shape_cast %113 : vector<1x1x64x64xf32> to vector<64x64xf32>
    %cst_63 = arith.constant dense<0.000000e+00> : vector<8x64xf32>
    %115 = tpu.matmul %112, %114, %cst_63 {dimension_numbers = #tpu.dot_dimension_numbers<[1], [0], [0], [1], [0, 0, 1, 1], [], []>} : vector<8x64xf32>, vector<64x64xf32>, vector<8x64xf32> -> vector<8x64xf32>
    %116 = arith.addf %111, %115 : vector<8x64xf32>
    %117 = vector.extract_strided_slice %75 {offsets = [1, 0], sizes = [8, 64], strides = [1, 1]} : vector<14x64xf32> to vector<8x64xf32>
    %c1_64 = arith.constant 1 : index
    %c1_65 = arith.constant 1 : index
    %c0_66 = arith.constant 0 : index
    %c0_67 = arith.constant 0 : index
    %118 = vector.load %arg3[%c1_64, %c1_65, %c0_66, %c0_67] : memref<2x7x64x64xf32, #tpu.memory_space<vmem>>, vector<1x1x64x64xf32>
    %119 = vector.shape_cast %118 : vector<1x1x64x64xf32> to vector<64x64xf32>
    %cst_68 = arith.constant dense<0.000000e+00> : vector<8x64xf32>
    %120 = tpu.matmul %117, %119, %cst_68 {dimension_numbers = #tpu.dot_dimension_numbers<[1], [0], [0], [1], [0, 0, 1, 1], [], []>} : vector<8x64xf32>, vector<64x64xf32>, vector<8x64xf32> -> vector<8x64xf32>
    %121 = arith.addf %116, %120 : vector<8x64xf32>
    %122 = vector.extract_strided_slice %75 {offsets = [2, 0], sizes = [8, 64], strides = [1, 1]} : vector<14x64xf32> to vector<8x64xf32>
    %c1_69 = arith.constant 1 : index
    %c2_70 = arith.constant 2 : index
    %c0_71 = arith.constant 0 : index
    %c0_72 = arith.constant 0 : index
    %123 = vector.load %arg3[%c1_69, %c2_70, %c0_71, %c0_72] : memref<2x7x64x64xf32, #tpu.memory_space<vmem>>, vector<1x1x64x64xf32>
    %124 = vector.shape_cast %123 : vector<1x1x64x64xf32> to vector<64x64xf32>
    %cst_73 = arith.constant dense<0.000000e+00> : vector<8x64xf32>
    %125 = tpu.matmul %122, %124, %cst_73 {dimension_numbers = #tpu.dot_dimension_numbers<[1], [0], [0], [1], [0, 0, 1, 1], [], []>} : vector<8x64xf32>, vector<64x64xf32>, vector<8x64xf32> -> vector<8x64xf32>
    %126 = arith.addf %121, %125 : vector<8x64xf32>
    %127 = vector.extract_strided_slice %75 {offsets = [3, 0], sizes = [8, 64], strides = [1, 1]} : vector<14x64xf32> to vector<8x64xf32>
    %c1_74 = arith.constant 1 : index
    %c3_75 = arith.constant 3 : index
    %c0_76 = arith.constant 0 : index
    %c0_77 = arith.constant 0 : index
    %128 = vector.load %arg3[%c1_74, %c3_75, %c0_76, %c0_77] : memref<2x7x64x64xf32, #tpu.memory_space<vmem>>, vector<1x1x64x64xf32>
    %129 = vector.shape_cast %128 : vector<1x1x64x64xf32> to vector<64x64xf32>
    %cst_78 = arith.constant dense<0.000000e+00> : vector<8x64xf32>
    %130 = tpu.matmul %127, %129, %cst_78 {dimension_numbers = #tpu.dot_dimension_numbers<[1], [0], [0], [1], [0, 0, 1, 1], [], []>} : vector<8x64xf32>, vector<64x64xf32>, vector<8x64xf32> -> vector<8x64xf32>
    %131 = arith.addf %126, %130 : vector<8x64xf32>
    %132 = vector.extract_strided_slice %75 {offsets = [4, 0], sizes = [8, 64], strides = [1, 1]} : vector<14x64xf32> to vector<8x64xf32>
    %c1_79 = arith.constant 1 : index
    %c4_80 = arith.constant 4 : index
    %c0_81 = arith.constant 0 : index
    %c0_82 = arith.constant 0 : index
    %133 = vector.load %arg3[%c1_79, %c4_80, %c0_81, %c0_82] : memref<2x7x64x64xf32, #tpu.memory_space<vmem>>, vector<1x1x64x64xf32>
    %134 = vector.shape_cast %133 : vector<1x1x64x64xf32> to vector<64x64xf32>
    %cst_83 = arith.constant dense<0.000000e+00> : vector<8x64xf32>
    %135 = tpu.matmul %132, %134, %cst_83 {dimension_numbers = #tpu.dot_dimension_numbers<[1], [0], [0], [1], [0, 0, 1, 1], [], []>} : vector<8x64xf32>, vector<64x64xf32>, vector<8x64xf32> -> vector<8x64xf32>
    %136 = arith.addf %131, %135 : vector<8x64xf32>
    %137 = vector.extract_strided_slice %75 {offsets = [5, 0], sizes = [8, 64], strides = [1, 1]} : vector<14x64xf32> to vector<8x64xf32>
    %c1_84 = arith.constant 1 : index
    %c5_85 = arith.constant 5 : index
    %c0_86 = arith.constant 0 : index
    %c0_87 = arith.constant 0 : index
    %138 = vector.load %arg3[%c1_84, %c5_85, %c0_86, %c0_87] : memref<2x7x64x64xf32, #tpu.memory_space<vmem>>, vector<1x1x64x64xf32>
    %139 = vector.shape_cast %138 : vector<1x1x64x64xf32> to vector<64x64xf32>
    %cst_88 = arith.constant dense<0.000000e+00> : vector<8x64xf32>
    %140 = tpu.matmul %137, %139, %cst_88 {dimension_numbers = #tpu.dot_dimension_numbers<[1], [0], [0], [1], [0, 0, 1, 1], [], []>} : vector<8x64xf32>, vector<64x64xf32>, vector<8x64xf32> -> vector<8x64xf32>
    %141 = arith.addf %136, %140 : vector<8x64xf32>
    %142 = vector.extract_strided_slice %75 {offsets = [6, 0], sizes = [8, 64], strides = [1, 1]} : vector<14x64xf32> to vector<8x64xf32>
    %c1_89 = arith.constant 1 : index
    %c6_90 = arith.constant 6 : index
    %c0_91 = arith.constant 0 : index
    %c0_92 = arith.constant 0 : index
    %143 = vector.load %arg3[%c1_89, %c6_90, %c0_91, %c0_92] : memref<2x7x64x64xf32, #tpu.memory_space<vmem>>, vector<1x1x64x64xf32>
    %144 = vector.shape_cast %143 : vector<1x1x64x64xf32> to vector<64x64xf32>
    %cst_93 = arith.constant dense<0.000000e+00> : vector<8x64xf32>
    %145 = tpu.matmul %142, %144, %cst_93 {dimension_numbers = #tpu.dot_dimension_numbers<[1], [0], [0], [1], [0, 0, 1, 1], [], []>} : vector<8x64xf32>, vector<64x64xf32>, vector<8x64xf32> -> vector<8x64xf32>
    %146 = arith.addf %141, %145 : vector<8x64xf32>
    %c0_94 = arith.constant 0 : index
    %147 = memref.load %arg6[%c0_94] : memref<4xf32, #tpu.memory_space<smem>>
    %148 = vector.broadcast %147 : f32 to vector<8x64xf32>
    %149 = arith.addf %146, %148 : vector<8x64xf32>
    %150 = arith.negf %149 : vector<8x64xf32>
    %151 = math.exp %150 : vector<8x64xf32>
    %cst_95 = arith.constant 1.000000e+00 : f32
    %152 = vector.broadcast %cst_95 : f32 to vector<8x64xf32>
    %153 = arith.addf %152, %151 : vector<8x64xf32>
    %154 = arith.divf %152, %153 : vector<8x64xf32>
    %155 = arith.mulf %154, %59 : vector<8x64xf32>
    %156 = arith.mulf %154, %68 : vector<8x64xf32>
    %cst_96 = arith.constant 0.000000e+00 : f32
    %157 = vector.broadcast %cst_96 : f32 to vector<1x64xf32>
    %158 = tpu.concatenate %157, %156, %157 in 0 : vector<1x64xf32>, vector<8x64xf32>, vector<1x64xf32> -> vector<10x64xf32>
    %cst_97 = arith.constant 0.000000e+00 : f32
    %159 = vector.broadcast %cst_97 : f32 to vector<8x64xf32>
    %160 = vector.extract_strided_slice %158 {offsets = [0, 0], sizes = [8, 64], strides = [1, 1]} : vector<10x64xf32> to vector<8x64xf32>
    %c0_98 = arith.constant 0 : index
    %c0_99 = arith.constant 0 : index
    %c0_100 = arith.constant 0 : index
    %161 = vector.load %arg4[%c0_98, %c0_99, %c0_100] : memref<3x64x64xf32, #tpu.memory_space<vmem>>, vector<1x64x64xf32>
    %162 = vector.shape_cast %161 : vector<1x64x64xf32> to vector<64x64xf32>
    %cst_101 = arith.constant dense<0.000000e+00> : vector<8x64xf32>
    %163 = tpu.matmul %160, %162, %cst_101 {dimension_numbers = #tpu.dot_dimension_numbers<[1], [0], [0], [1], [0, 0, 1, 1], [], []>} : vector<8x64xf32>, vector<64x64xf32>, vector<8x64xf32> -> vector<8x64xf32>
    %164 = arith.addf %159, %163 : vector<8x64xf32>
    %165 = vector.extract_strided_slice %158 {offsets = [1, 0], sizes = [8, 64], strides = [1, 1]} : vector<10x64xf32> to vector<8x64xf32>
    %c1_102 = arith.constant 1 : index
    %c0_103 = arith.constant 0 : index
    %c0_104 = arith.constant 0 : index
    %166 = vector.load %arg4[%c1_102, %c0_103, %c0_104] : memref<3x64x64xf32, #tpu.memory_space<vmem>>, vector<1x64x64xf32>
    %167 = vector.shape_cast %166 : vector<1x64x64xf32> to vector<64x64xf32>
    %cst_105 = arith.constant dense<0.000000e+00> : vector<8x64xf32>
    %168 = tpu.matmul %165, %167, %cst_105 {dimension_numbers = #tpu.dot_dimension_numbers<[1], [0], [0], [1], [0, 0, 1, 1], [], []>} : vector<8x64xf32>, vector<64x64xf32>, vector<8x64xf32> -> vector<8x64xf32>
    %169 = arith.addf %164, %168 : vector<8x64xf32>
    %170 = vector.extract_strided_slice %158 {offsets = [2, 0], sizes = [8, 64], strides = [1, 1]} : vector<10x64xf32> to vector<8x64xf32>
    %c2_106 = arith.constant 2 : index
    %c0_107 = arith.constant 0 : index
    %c0_108 = arith.constant 0 : index
    %171 = vector.load %arg4[%c2_106, %c0_107, %c0_108] : memref<3x64x64xf32, #tpu.memory_space<vmem>>, vector<1x64x64xf32>
    %172 = vector.shape_cast %171 : vector<1x64x64xf32> to vector<64x64xf32>
    %cst_109 = arith.constant dense<0.000000e+00> : vector<8x64xf32>
    %173 = tpu.matmul %170, %172, %cst_109 {dimension_numbers = #tpu.dot_dimension_numbers<[1], [0], [0], [1], [0, 0, 1, 1], [], []>} : vector<8x64xf32>, vector<64x64xf32>, vector<8x64xf32> -> vector<8x64xf32>
    %174 = arith.addf %169, %173 : vector<8x64xf32>
    %c1_110 = arith.constant 1 : index
    %175 = memref.load %arg6[%c1_110] : memref<4xf32, #tpu.memory_space<smem>>
    %176 = vector.broadcast %175 : f32 to vector<8x64xf32>
    %177 = arith.addf %174, %176 : vector<8x64xf32>
    %c2_111 = arith.constant 2 : index
    %178 = memref.load %arg6[%c2_111] : memref<4xf32, #tpu.memory_space<smem>>
    %179 = vector.broadcast %178 : f32 to vector<8x64xf32>
    %180 = arith.mulf %177, %179 : vector<8x64xf32>
    %c3_112 = arith.constant 3 : index
    %181 = memref.load %arg6[%c3_112] : memref<4xf32, #tpu.memory_space<smem>>
    %182 = vector.broadcast %181 : f32 to vector<8x64xf32>
    %183 = arith.addf %180, %182 : vector<8x64xf32>
    %cst_113 = arith.constant 5.000000e-01 : f32
    %184 = vector.broadcast %cst_113 : f32 to vector<8x64xf32>
    %185 = arith.mulf %184, %183 : vector<8x64xf32>
    %cst_114 = arith.constant 0.707106769 : f32
    %186 = vector.broadcast %cst_114 : f32 to vector<8x64xf32>
    %187 = arith.mulf %183, %186 : vector<8x64xf32>
    %cst_115 = arith.constant 0.000000e+00 : f32
    %188 = vector.broadcast %cst_115 : f32 to vector<8x64xf32>
    %189 = arith.cmpf oge, %187, %188 : vector<8x64xf32>
    %cst_116 = arith.constant 1.000000e+00 : f32
    %cst_117 = arith.constant -1.000000e+00 : f32
    %190 = vector.broadcast %cst_116 : f32 to vector<8x64xf32>
    %191 = vector.broadcast %cst_117 : f32 to vector<8x64xf32>
    %192 = arith.select %189, %190, %191 : vector<8x64xi1>, vector<8x64xf32>
    %193 = math.absf %187 : vector<8x64xf32>
    %cst_118 = arith.constant 0.327591091 : f32
    %194 = vector.broadcast %cst_118 : f32 to vector<8x64xf32>
    %195 = arith.mulf %194, %193 : vector<8x64xf32>
    %cst_119 = arith.constant 1.000000e+00 : f32
    %196 = vector.broadcast %cst_119 : f32 to vector<8x64xf32>
    %197 = arith.addf %196, %195 : vector<8x64xf32>
    %198 = tpu.reciprocal %197 {approx = true} : vector<8x64xf32> -> vector<8x64xf32>
    %cst_120 = arith.constant 1.06140542 : f32
    %199 = vector.broadcast %cst_120 : f32 to vector<8x64xf32>
    %200 = arith.mulf %198, %199 : vector<8x64xf32>
    %cst_121 = arith.constant -1.45315206 : f32
    %201 = vector.broadcast %cst_121 : f32 to vector<8x64xf32>
    %202 = arith.addf %201, %200 : vector<8x64xf32>
    %203 = arith.mulf %198, %202 : vector<8x64xf32>
    %cst_122 = arith.constant 1.42141378 : f32
    %204 = vector.broadcast %cst_122 : f32 to vector<8x64xf32>
    %205 = arith.addf %204, %203 : vector<8x64xf32>
    %206 = arith.mulf %198, %205 : vector<8x64xf32>
    %cst_123 = arith.constant -0.284496725 : f32
    %207 = vector.broadcast %cst_123 : f32 to vector<8x64xf32>
    %208 = arith.addf %207, %206 : vector<8x64xf32>
    %209 = arith.mulf %198, %208 : vector<8x64xf32>
    %cst_124 = arith.constant 0.254829586 : f32
    %210 = vector.broadcast %cst_124 : f32 to vector<8x64xf32>
    %211 = arith.addf %210, %209 : vector<8x64xf32>
    %212 = arith.mulf %198, %211 : vector<8x64xf32>
    %cst_125 = arith.constant 0.000000e+00 : f32
    %213 = vector.broadcast %cst_125 : f32 to vector<8x64xf32>
    %214 = arith.subf %213, %193 : vector<8x64xf32>
    %215 = arith.mulf %214, %193 : vector<8x64xf32>
    %216 = math.exp %215 : vector<8x64xf32>
    %217 = arith.mulf %212, %216 : vector<8x64xf32>
    %cst_126 = arith.constant 1.000000e+00 : f32
    %218 = vector.broadcast %cst_126 : f32 to vector<8x64xf32>
    %219 = arith.subf %218, %217 : vector<8x64xf32>
    %220 = arith.mulf %192, %219 : vector<8x64xf32>
    %cst_127 = arith.constant 1.000000e+00 : f32
    %221 = vector.broadcast %cst_127 : f32 to vector<8x64xf32>
    %222 = arith.addf %221, %220 : vector<8x64xf32>
    %223 = arith.mulf %185, %222 : vector<8x64xf32>
    %224 = arith.mulf %155, %223 : vector<8x64xf32>
    %225 = vector.shape_cast %224 : vector<8x64xf32> to vector<1x8x64xf32>
    %c0_128 = arith.constant 0 : index
    %c0_129 = arith.constant 0 : index
    %c0_130 = arith.constant 0 : index
    %c0_131 = arith.constant 0 : index
    %226 = vector.load %arg2[%c0_128, %c0_129, %c0_130, %c0_131] : memref<1x4x8x64xf32, #tpu.memory_space<vmem>>, vector<1x4x8x64xf32>
    %227 = vector.shape_cast %226 : vector<1x4x8x64xf32> to vector<4x8x64xf32>
    %228 = vector.broadcast %225 : vector<1x8x64xf32> to vector<4x8x64xf32>
    %229 = arith.mulf %228, %227 : vector<4x8x64xf32>
    %c0_132 = arith.constant 0 : index
    %c0_133 = arith.constant 0 : index
    %c0_134 = arith.constant 0 : index
    %c0_135 = arith.constant 0 : index
    %230 = vector.load %arg7[%c0_132, %c0_133, %c0_134, %c0_135] : memref<1x4x8x64xf32, #tpu.memory_space<vmem>>, vector<1x4x8x64xf32>
    %231 = vector.shape_cast %230 : vector<1x4x8x64xf32> to vector<4x8x64xf32>
    %232 = vector.shape_cast %229 : vector<4x8x64xf32> to vector<1x4x8x64xf32>
    tpu.vector_store %arg7[%c0_132, %c0_133, %c0_134, %c0_135], %232 {strides = array<i32>} : memref<1x4x8x64xf32, #tpu.memory_space<vmem>>, vector<1x4x8x64xf32>,
    return
  }
  func.func @transform_0(%arg0: i32) -> (i32, i32, i32, i32) {
    %c0_i32 = arith.constant 0 : i32
    %c0_i32_0 = arith.constant 0 : i32
    %c0_i32_1 = arith.constant 0 : i32
    %c0_i32_2 = arith.constant 0 : i32
    return %arg0, %c0_i32, %c0_i32_0, %c0_i32_1 : i32, i32, i32, i32
  }
  func.func @transform_1(%arg0: i32) -> (i32, i32, i32, i32) {
    %c0_i32 = arith.constant 0 : i32
    %c0_i32_0 = arith.constant 0 : i32
    %c0_i32_1 = arith.constant 0 : i32
    %c0_i32_2 = arith.constant 0 : i32
    return %arg0, %c0_i32, %c0_i32_0, %c0_i32_1 : i32, i32, i32, i32
  }
  func.func @transform_2(%arg0: i32) -> (i32, i32, i32, i32) {
    %c0_i32 = arith.constant 0 : i32
    %c0_i32_0 = arith.constant 0 : i32
    %c0_i32_1 = arith.constant 0 : i32
    %c0_i32_2 = arith.constant 0 : i32
    %c0_i32_3 = arith.constant 0 : i32
    return %c0_i32, %c0_i32_0, %c0_i32_1, %c0_i32_2 : i32, i32, i32, i32
  }
  func.func @transform_3(%arg0: i32) -> (i32, i32, i32) {
    %c0_i32 = arith.constant 0 : i32
    %c0_i32_0 = arith.constant 0 : i32
    %c0_i32_1 = arith.constant 0 : i32
    %c0_i32_2 = arith.constant 0 : i32
    return %c0_i32, %c0_i32_0, %c0_i32_1 : i32, i32, i32
  }
  func.func @transform_4(%arg0: i32) -> i32 {
    %c0_i32 = arith.constant 0 : i32
    %c0_i32_0 = arith.constant 0 : i32
    return %c0_i32 : i32
  }
  func.func @transform_5(%arg0: i32) -> i32 {
    %c0_i32 = arith.constant 0 : i32
    %c0_i32_0 = arith.constant 0 : i32
    return %c0_i32 : i32
  }
  func.func @transform_6(%arg0: i32) -> (i32, i32, i32, i32) {
    %c0_i32 = arith.constant 0 : i32
    %c0_i32_0 = arith.constant 0 : i32
    %c0_i32_1 = arith.constant 0 : i32
    %c0_i32_2 = arith.constant 0 : i32
    return %arg0, %c0_i32, %c0_i32_0, %c0_i32_1 : i32, i32, i32, i32
  }
}

</mosaic_0001>

<llo_original>
// kernel: dcla_forward.5
$region0: #{dcla_forward.5}
  #allocation0 [shape = 'u32[]', space=smem, size = 0x4, offset = 0x4, fixed_abs, tag = 'smem constant byte address 0x4 - core index']
  #allocation1 [shape = 'u32[144,128]{1,0:T(1,128)}', space=vmem, size = 0x12000, scoped, tag = 'internal scratch']
  #allocation2 [shape = 'f32[1]{0:T(128)S(6)}', space=smem, size = 0x200, scoped, tag = 'scoped memory for dcla_forward.5']
  %s0 = inlined_call_operand.vmem [shape: f32[2,4,4096], index: 0, kind: input, shape index: {}]
  %s1 = inlined_call_operand.vmem [shape: f32[4,1], index: 1, kind: input, shape index: {}]
  %s2 = inlined_call_operand.<no memory space> [shape: f32[1], index: 2, kind: input, shape index: {}]
  %s3 = inlined_call_operand.vmem [shape: f32[2,1,4096], index: 3, kind: output, shape index: {}]
  %s4 = sld [smem:[#allocation0]]
  $region45: #{dcla_forward.5} parent=0
    _
  %s6 = ssub.s32 1, %s4
  %s7 = scalar_select 0, %s6, %s4
  %8 = sst [smem:[#allocation2]] %s2
  loop: start=0, step=1, limit=6
  $region2: #{dcla_forward.5} parent=0 // loop_pre_header
    _
  $region3: #{dcla_forward.5} parent=0 // loop_header
    %s10 = sphi 0, %s14
    %p11 = scmp.ge.s32.totalorder %s10, 6
    %s17 = sphi 0, %s29
    %s18 = sphi 0, %s25
    %s19 = sphi 0, %s17
    %s20 = sphi 0, %s18
    %s21 = sphi 0, %s19
    %s22 = sphi 0, %s20
    %s34 = sphi 0, %s36
    %s37 = sphi 0, %s34
    %s38 = sphi 0, %s37
    %s54 = sphi 0, %s38
    %s58 = sphi 0, %s58
    %s60 = sphi 0, %s58
    %s61 = sphi 0, %s60
    %s75 = sphi 0, %s61
    %s79 = sphi 0, %s79
    %s81 = sphi 0, %s79
    %s82 = sphi 0, %s81
    %s96 = sphi 0, %s82
    %s104 = sphi 0, %s106
    %s107 = sphi 0, %s104
    %s108 = sphi 0, %s107
    %s124 = sphi 0, %s108
  $region4: #{dcla_forward.5} parent=0 // loop_header_branch
    %13 = sbr.rel (%p11) target = $region8
  $region5: #{dcla_forward.5} parent=0 // loop_body
    %s15 = ssub.s32 %s10, 1
    %s16 = ssub.s32 %s10, 2
    %s23 = sadd.s32 1, %s18
    %p24 = scmp.ge.s32.totalorder %s23, 2
    %s25 = scalar_select %p24, 0, %s23
    %s26 = sadd.s32 1, %s17
    %s27 = scalar_select %p24, %s26, %s17
    %p28 = scmp.ge.s32.totalorder %s27, 2
    %s29 = scalar_select %p28, 0, %s27
    %s30 = ssub.s32 %s17, %s29
    %s31 = ssub.s32 %s18, %s25
    %s32 = sor.u32 %s30, %s31
    %p33 = scmp.eq.s32.totalorder %s32, 0
    %s35 = sadd.s32 %s34, 1
    %s36 = scalar_select %p33, %s34, %s35
    %p39 = pneg %p33
    %p40 = scmp.eq.s32.totalorder %s10, 3
    %p41 = por %p39, %p40
    %p42 = scmp.ne.s32.totalorder %s34, %s37
    %p43 = scmp.eq.s32.totalorder %s10, 0
    %p44 = por %p42, %p43
    %p45 = scmp.ne.s32.totalorder %s34, %s37
    %p46 = scmp.eq.s32.totalorder %s15, 3
    %p47 = por %p45, %p46
    %p48 = scmp.ne.s32.totalorder %s37, %s38
    %p49 = scmp.eq.s32.totalorder %s15, 0
    %p50 = por %p48, %p49
    %p51 = scmp.ne.s32.totalorder %s37, %s38
    %p52 = scmp.eq.s32.totalorder %s16, 3
    %p53 = por %p51, %p52
    %p55 = scmp.ne.s32.totalorder %s38, %s54
    %p56 = scmp.eq.s32.totalorder %s16, 0
    %p57 = por %p55, %p56
    %s59 = sadd.s32 %s58, 1
    %p62 = scmp.eq.s32.totalorder %s10, 3
    %p63 = scmp.ne.s32.totalorder %s58, %s60
    %p64 = scmp.eq.s32.totalorder %s10, 0
    %p65 = por %p63, %p64
    %p66 = scmp.ne.s32.totalorder %s58, %s60
    %p67 = scmp.eq.s32.totalorder %s15, 3
    %p68 = por %p66, %p67
    %p69 = scmp.ne.s32.totalorder %s60, %s61
    %p70 = scmp.eq.s32.totalorder %s15, 0
    %p71 = por %p69, %p70
    %p72 = scmp.ne.s32.totalorder %s60, %s61
    %p73 = scmp.eq.s32.totalorder %s16, 3
    %p74 = por %p72, %p73
    %p76 = scmp.ne.s32.totalorder %s61, %s75
    %p77 = scmp.eq.s32.totalorder %s16, 0
    %p78 = por %p76, %p77
    %s80 = sadd.s32 %s79, 1
    %p83 = scmp.eq.s32.totalorder %s10, 3
    %p84 = scmp.ne.s32.totalorder %s79, %s81
    %p85 = scmp.eq.s32.totalorder %s10, 0
    %p86 = por %p84, %p85
    %p87 = scmp.ne.s32.totalorder %s79, %s81
    %p88 = scmp.eq.s32.totalorder %s15, 3
    %p89 = por %p87, %p88
    %p90 = scmp.ne.s32.totalorder %s81, %s82
    %p91 = scmp.eq.s32.totalorder %s15, 0
    %p92 = por %p90, %p91
    %p93 = scmp.ne.s32.totalorder %s81, %s82
    %p94 = scmp.eq.s32.totalorder %s16, 3
    %p95 = por %p93, %p94
    %p97 = scmp.ne.s32.totalorder %s82, %s96
    %p98 = scmp.eq.s32.totalorder %s16, 0
    %p99 = por %p97, %p98
    %s100 = ssub.s32 %s17, %s29
    %s101 = ssub.s32 %s18, %s25
    %s102 = sor.u32 %s100, %s101
    %p103 = scmp.eq.s32.totalorder %s102, 0
    %s105 = sadd.s32 %s104, 1
    %s106 = scalar_select %p103, %s104, %s105
    %p109 = pneg %p103
    %p110 = scmp.eq.s32.totalorder %s10, 3
    %p111 = por %p109, %p110
    %p112 = scmp.ne.s32.totalorder %s104, %s107
    %p113 = scmp.eq.s32.totalorder %s10, 0
    %p114 = por %p112, %p113
    %p115 = scmp.ne.s32.totalorder %s104, %s107
    %p116 = scmp.eq.s32.totalorder %s15, 3
    %p117 = por %p115, %p116
    %p118 = scmp.ne.s32.totalorder %s107, %s108
    %p119 = scmp.eq.s32.totalorder %s15, 0
    %p120 = por %p118, %p119
    %p121 = scmp.ne.s32.totalorder %s107, %s108
    %p122 = scmp.eq.s32.totalorder %s16, 3
    %p123 = por %p121, %p122
    %p125 = scmp.ne.s32.totalorder %s108, %s124
    %p126 = scmp.eq.s32.totalorder %s16, 0
    %p127 = por %p125, %p126
    %p128 = scmp.le.s32.totalorder 1, %s10
    %p129 = scmp.lt.s32.totalorder %s10, 5
    %p130 = pnand %p128, %p129
    %p131 = pneg %p130
    // Predicated region
    $region9: #{dcla_forward.5} parent=5 // pred_check
      _
    $region10: #{dcla_forward.5} parent=5 // pred_check_branch
      %133 = sbr.rel (%p130) target = $region12
    $region11: #{dcla_forward.5} parent=5 // pred_region
      %s134 = ssub.s32 %s10, 1
      // Predicated region
      $region13: #{dcla_forward.5} parent=11 // pred_check
        %p135 = pneg %p71
      $region14: #{dcla_forward.5} parent=11 // pred_check_branch
        %137 = sbr.rel (%p135) target = $region16
      $region15: #{dcla_forward.5} parent=11 // pred_region
        _
      $region16: #{dcla_forward.5} parent=11 // pred_fallthru
        _
      // Predicated region
      $region17: #{dcla_forward.5} parent=11 // pred_check
        %p138 = pneg %p92
      $region18: #{dcla_forward.5} parent=11 // pred_check_branch
        %140 = sbr.rel (%p138) target = $region20
      $region19: #{dcla_forward.5} parent=11 // pred_region
        _
      $region20: #{dcla_forward.5} parent=11 // pred_fallthru
        _
    $region12: #{dcla_forward.5} parent=5 // pred_fallthru
      _
    %p141 = scmp.lt.s32.totalorder %s10, 4
    // Predicated region
    $region21: #{dcla_forward.5} parent=5 // pred_check
      %p142 = pneg %p141
    $region22: #{dcla_forward.5} parent=5 // pred_check_branch
      %144 = sbr.rel (%p142) target = $region24
    $region23: #{dcla_forward.5} parent=5 // pred_region
      // Predicated region
      $region25: #{dcla_forward.5} parent=23 // pred_check
        %p145 = pneg %p44
      $region26: #{dcla_forward.5} parent=23 // pred_check_branch
        %147 = sbr.rel (%p145) target = $region28
      $region27: #{dcla_forward.5} parent=23 // pred_region
        %s148 = smul.u32 16, %s18
        %p149 = scmp.lt.s32.totalorder %s17, 1
        %s150 = scalar_select %p149, %s17, 1
        %p151 = scmp.lt.s32.totalorder %s148, 31
        %s152 = scalar_select %p151, %s148, 31
        %s153 = smul.addr %s150, 32
        %s154 = sadd.s32 %s152, %s153
        %s155 = smul.addr %s154, 4
        %s156 = scalar_lea.vmem %s0, %s155
        %s157 = smul.u32 16, %s18
      $region28: #{dcla_forward.5} parent=23 // pred_fallthru
        _
    $region24: #{dcla_forward.5} parent=5 // pred_fallthru
      _
    %p158 = scmp.le.s32.totalorder 1, %s10
    %p159 = scmp.lt.s32.totalorder %s10, 5
    %p160 = pnand %p158, %p159
    %p161 = pneg %p160
    // Predicated region
    $region29: #{dcla_forward.5} parent=5 // pred_check
      _
    $region30: #{dcla_forward.5} parent=5 // pred_check_branch
      %163 = sbr.rel (%p160) target = $region32
    $region31: #{dcla_forward.5} parent=5 // pred_region
      %s164 = ssub.s32 %s10, 1
      %s165 = smul.u32 16, %s20
      %p166 = scmp.lt.s32.totalorder %s19, 1
      %s167 = scalar_select %p166, %s19, 1
      %p168 = scmp.lt.s32.totalorder %s165, 31
      %s169 = scalar_select %p168, %s165, 31
      %s170 = smul.addr %s167, 32
      %s171 = sadd.s32 %s169, %s170
      %s172 = smul.addr %s171, 4
      %s173 = scalar_lea.vmem %s0, %s172
      %p174 = pneg %p50
      %p175 = pneg %p47
      %p176 = pneg %p71
      %p177 = pneg %p68
      %p178 = pneg %p92
      %p179 = pneg %p89
      %p180 = pneg %p120
      %p181 = pneg %p117
      %s182 = smul.u32 16, %s20
      %p183 = scmp.lt.s32.totalorder %s19, 1
      %s184 = scalar_select %p183, %s19, 1
      %p185 = scmp.lt.s32.totalorder %s182, 31
      %s186 = scalar_select %p185, %s182, 31
      %s187 = smul.addr %s184, 32
      %s188 = sadd.s32 %s186, %s187
      %s189 = scalar_lea.vmem %s3, %s188
      %s190 = smul.u32 16, %s20
      %p191 = scmp.lt.s32.totalorder %s19, 1
      %s192 = scalar_select %p191, %s19, 1
      %p193 = scmp.lt.s32.totalorder %s190, 31
      %s194 = scalar_select %p193, %s190, 31
      %s195 = smul.addr %s192, 32
      %s196 = sadd.s32 %s194, %s195
      %s197 = smul.addr %s196, 4
      %s198 = scalar_lea.vmem %s0, %s197
      %s199 = smul.u32 16, %s20
      %s200 = smul.u32 16, %s20
      %p201 = scmp.lt.s32.totalorder %s19, 1
      %s202 = scalar_select %p201, %s19, 1
      %p203 = scmp.lt.s32.totalorder %s200, 31
      %s204 = scalar_select %p203, %s200, 31
      %s205 = smul.addr %s202, 32
      %s206 = sadd.s32 %s204, %s205
      %s207 = scalar_lea.vmem %s3, %s206
      %s208 = smul.u32 16, %s20
      %v209 = vld [vmem:[%s1] sm:$0xf]
      %v210 = vld [vmem:[%s198] sm:$0xff]
      %v211 = vld [vmem:[%s198 + $0x8] sm:$0xff]
      %v212 = vld [vmem:[%s198 + $0x10] sm:$0xff]
      %v213 = vld [vmem:[%s198 + $0x18] sm:$0xff]
      %v214 = vld [vmem:[%s198 + $0x20] sm:$0xff]
      %v215 = vld [vmem:[%s198 + $0x28] sm:$0xff]
      %v216 = vld [vmem:[%s198 + $0x30] sm:$0xff]
      %v217 = vld [vmem:[%s198 + $0x38] sm:$0xff]
      %219 = vset.pattern.permute.xlu0 0
      %220 = vperm.xlu0 %219, %v209
      %v221 = vpop.permute.xlu0 %220
      %v231 = vcombine.high %v210, %v210
      %v232 = vcombine.high %v211, %v211
      %v233 = vcombine.high %v212, %v212
      %v234 = vcombine.high %v213, %v213
      %v235 = vcombine.high %v214, %v214
      %v236 = vcombine.high %v215, %v215
      %v237 = vcombine.high %v216, %v216
      %v238 = vcombine.high %v217, %v217
      %v247 = vmul.f32 %v221, %v210
      %v248 = vmul.f32 %v221, %v231
      %v249 = vmul.f32 %v221, %v211
      %v250 = vmul.f32 %v221, %v232
      %v251 = vmul.f32 %v221, %v212
      %v252 = vmul.f32 %v221, %v233
      %v253 = vmul.f32 %v221, %v213
      %v254 = vmul.f32 %v221, %v234
      %v255 = vmul.f32 %v221, %v214
      %v256 = vmul.f32 %v221, %v235
      %v257 = vmul.f32 %v221, %v215
      %v258 = vmul.f32 %v221, %v236
      %v259 = vmul.f32 %v221, %v216
      %v260 = vmul.f32 %v221, %v237
      %v261 = vmul.f32 %v221, %v217
      %v262 = vmul.f32 %v221, %v238
      %vm263 = vcmask 1043456
      %v264 = vsel %vm263, %v247, 0.0
      %v265 = vrot.slane %v264, 4
      %v266 = vadd.f32 %v264, %v265
      %v267 = vrot.slane %v266, 2
      %v268 = vadd.f32 %v266, %v267
      %v269 = vrot.slane %v268, 1
      %v270 = vadd.f32 %v268, %v269
      %v271 = vsel %vm263, %v248, 0.0
      %v272 = vrot.slane %v271, 4
      %v273 = vadd.f32 %v271, %v272
      %v274 = vrot.slane %v273, 2
      %v275 = vadd.f32 %v273, %v274
      %v276 = vrot.slane %v275, 1
      %v277 = vadd.f32 %v275, %v276
      %v278 = vsel %vm263, %v249, 0.0
      %v279 = vrot.slane %v278, 4
      %v280 = vadd.f32 %v278, %v279
      %v281 = vrot.slane %v280, 2
      %v282 = vadd.f32 %v280, %v281
      %v283 = vrot.slane %v282, 1
      %v284 = vadd.f32 %v282, %v283
      %v285 = vsel %vm263, %v250, 0.0
      %v286 = vrot.slane %v285, 4
      %v287 = vadd.f32 %v285, %v286
      %v288 = vrot.slane %v287, 2
      %v289 = vadd.f32 %v287, %v288
      %v290 = vrot.slane %v289, 1
      %v291 = vadd.f32 %v289, %v290
      %v292 = vsel %vm263, %v251, 0.0
      %v293 = vrot.slane %v292, 4
      %v294 = vadd.f32 %v292, %v293
      %v295 = vrot.slane %v294, 2
      %v296 = vadd.f32 %v294, %v295
      %v297 = vrot.slane %v296, 1
      %v298 = vadd.f32 %v296, %v297
      %v299 = vsel %vm263, %v252, 0.0
      %v300 = vrot.slane %v299, 4
      %v301 = vadd.f32 %v299, %v300
      %v302 = vrot.slane %v301, 2
      %v303 = vadd.f32 %v301, %v302
      %v304 = vrot.slane %v303, 1
      %v305 = vadd.f32 %v303, %v304
      %v306 = vsel %vm263, %v253, 0.0
      %v307 = vrot.slane %v306, 4
      %v308 = vadd.f32 %v306, %v307
      %v309 = vrot.slane %v308, 2
      %v310 = vadd.f32 %v308, %v309
      %v311 = vrot.slane %v310, 1
      %v312 = vadd.f32 %v310, %v311
      %v313 = vsel %vm263, %v254, 0.0
      %v314 = vrot.slane %v313, 4
      %v315 = vadd.f32 %v313, %v314
      %v316 = vrot.slane %v315, 2
      %v317 = vadd.f32 %v315, %v316
      %v318 = vrot.slane %v317, 1
      %v319 = vadd.f32 %v317, %v318
      %v320 = vsel %vm263, %v255, 0.0
      %v321 = vrot.slane %v320, 4
      %v322 = vadd.f32 %v320, %v321
      %v323 = vrot.slane %v322, 2
      %v324 = vadd.f32 %v322, %v323
      %v325 = vrot.slane %v324, 1
      %v326 = vadd.f32 %v324, %v325
      %v327 = vsel %vm263, %v256, 0.0
      %v328 = vrot.slane %v327, 4
      %v329 = vadd.f32 %v327, %v328
      %v330 = vrot.slane %v329, 2
      %v331 = vadd.f32 %v329, %v330
      %v332 = vrot.slane %v331, 1
      %v333 = vadd.f32 %v331, %v332
      %v334 = vsel %vm263, %v257, 0.0
      %v335 = vrot.slane %v334, 4
      %v336 = vadd.f32 %v334, %v335
      %v337 = vrot.slane %v336, 2
      %v338 = vadd.f32 %v336, %v337
      %v339 = vrot.slane %v338, 1
      %v340 = vadd.f32 %v338, %v339
      %v341 = vsel %vm263, %v258, 0.0
      %v342 = vrot.slane %v341, 4
      %v343 = vadd.f32 %v341, %v342
      %v344 = vrot.slane %v343, 2
      %v345 = vadd.f32 %v343, %v344
      %v346 = vrot.slane %v345, 1
      %v347 = vadd.f32 %v345, %v346
      %v348 = vsel %vm263, %v259, 0.0
      %v349 = vrot.slane %v348, 4
      %v350 = vadd.f32 %v348, %v349
      %v351 = vrot.slane %v350, 2
      %v352 = vadd.f32 %v350, %v351
      %v353 = vrot.slane %v352, 1
      %v354 = vadd.f32 %v352, %v353
      %v355 = vsel %vm263, %v260, 0.0
      %v356 = vrot.slane %v355, 4
      %v357 = vadd.f32 %v355, %v356
      %v358 = vrot.slane %v357, 2
      %v359 = vadd.f32 %v357, %v358
      %v360 = vrot.slane %v359, 1
      %v361 = vadd.f32 %v359, %v360
      %v362 = vsel %vm263, %v261, 0.0
      %v363 = vrot.slane %v362, 4
      %v364 = vadd.f32 %v362, %v363
      %v365 = vrot.slane %v364, 2
      %v366 = vadd.f32 %v364, %v365
      %v367 = vrot.slane %v366, 1
      %v368 = vadd.f32 %v366, %v367
      %v369 = vsel %vm263, %v262, 0.0
      %v370 = vrot.slane %v369, 4
      %v371 = vadd.f32 %v369, %v370
      %v372 = vrot.slane %v371, 2
      %v373 = vadd.f32 %v371, %v372
      %v374 = vrot.slane %v373, 1
      %v375 = vadd.f32 %v373, %v374
      %s376 = sld [smem:[#allocation2]]
      %v377 = vstv %s376
      %v378 = vadd.f32 %v270, %v377
      %v379 = vadd.f32 %v277, %v377
      %v380 = vadd.f32 %v284, %v377
      %v381 = vadd.f32 %v291, %v377
      %v382 = vadd.f32 %v298, %v377
      %v383 = vadd.f32 %v305, %v377
      %v384 = vadd.f32 %v312, %v377
      %v385 = vadd.f32 %v319, %v377
      %v386 = vadd.f32 %v326, %v377
      %v387 = vadd.f32 %v333, %v377
      %v388 = vadd.f32 %v340, %v377
      %v389 = vadd.f32 %v347, %v377
      %v390 = vadd.f32 %v354, %v377
      %v391 = vadd.f32 %v361, %v377
      %v392 = vadd.f32 %v368, %v377
      %v393 = vadd.f32 %v375, %v377
      %v394 = vmul.f32 %v378, 0.5
      %v395 = vmul.f32 %v379, 0.5
      %v396 = vmul.f32 %v380, 0.5
      %v397 = vmul.f32 %v381, 0.5
      %v398 = vmul.f32 %v382, 0.5
      %v399 = vmul.f32 %v383, 0.5
      %v400 = vmul.f32 %v384, 0.5
      %v401 = vmul.f32 %v385, 0.5
      %v402 = vmul.f32 %v386, 0.5
      %v403 = vmul.f32 %v387, 0.5
      %v404 = vmul.f32 %v388, 0.5
      %v405 = vmul.f32 %v389, 0.5
      %v406 = vmul.f32 %v390, 0.5
      %v407 = vmul.f32 %v391, 0.5
      %v408 = vmul.f32 %v392, 0.5
      %v409 = vmul.f32 %v393, 0.5
      %v410 = vmul.f32 %v378, 0.70710677
      %v411 = vmul.f32 %v379, 0.70710677
      %v412 = vmul.f32 %v380, 0.70710677
      %v413 = vmul.f32 %v381, 0.70710677
      %v414 = vmul.f32 %v382, 0.70710677
      %v415 = vmul.f32 %v383, 0.70710677
      %v416 = vmul.f32 %v384, 0.70710677
      %v417 = vmul.f32 %v385, 0.70710677
      %v418 = vmul.f32 %v386, 0.70710677
      %v419 = vmul.f32 %v387, 0.70710677
      %v420 = vmul.f32 %v388, 0.70710677
      %v421 = vmul.f32 %v389, 0.70710677
      %v422 = vmul.f32 %v390, 0.70710677
      %v423 = vmul.f32 %v391, 0.70710677
      %v424 = vmul.f32 %v392, 0.70710677
      %v425 = vmul.f32 %v393, 0.70710677
      %vm426 = vcmp.ge.f32.partialorder %v410, 0.0
      %vm427 = vcmp.ge.f32.partialorder %v411, 0.0
      %vm428 = vcmp.ge.f32.partialorder %v412, 0.0
      %vm429 = vcmp.ge.f32.partialorder %v413, 0.0
      %vm430 = vcmp.ge.f32.partialorder %v414, 0.0
      %vm431 = vcmp.ge.f32.partialorder %v415, 0.0
      %vm432 = vcmp.ge.f32.partialorder %v416, 0.0
      %vm433 = vcmp.ge.f32.partialorder %v417, 0.0
      %vm434 = vcmp.ge.f32.partialorder %v418, 0.0
      %vm435 = vcmp.ge.f32.partialorder %v419, 0.0
      %vm436 = vcmp.ge.f32.partialorder %v420, 0.0
      %vm437 = vcmp.ge.f32.partialorder %v421, 0.0
      %vm438 = vcmp.ge.f32.partialorder %v422, 0.0
      %vm439 = vcmp.ge.f32.partialorder %v423, 0.0
      %vm440 = vcmp.ge.f32.partialorder %v424, 0.0
      %vm441 = vcmp.ge.f32.partialorder %v425, 0.0
      %v442 = vsel %vm426, 1.0, -1.0
      %v443 = vsel %vm427, 1.0, -1.0
      %v444 = vsel %vm428, 1.0, -1.0
      %v445 = vsel %vm429, 1.0, -1.0
      %v446 = vsel %vm430, 1.0, -1.0
      %v447 = vsel %vm431, 1.0, -1.0
      %v448 = vsel %vm432, 1.0, -1.0
      %v449 = vsel %vm433, 1.0, -1.0
      %v450 = vsel %vm434, 1.0, -1.0
      %v451 = vsel %vm435, 1.0, -1.0
      %v452 = vsel %vm436, 1.0, -1.0
      %v453 = vsel %vm437, 1.0, -1.0
      %v454 = vsel %vm438, 1.0, -1.0
      %v455 = vsel %vm439, 1.0, -1.0
      %v456 = vsel %vm440, 1.0, -1.0
      %v457 = vsel %vm441, 1.0, -1.0
      %v458 = vand.u32 2147483647, %v410
      %v459 = vand.u32 2147483647, %v411
      %v460 = vand.u32 2147483647, %v412
      %v461 = vand.u32 2147483647, %v413
      %v462 = vand.u32 2147483647, %v414
      %v463 = vand.u32 2147483647, %v415
      %v464 = vand.u32 2147483647, %v416
      %v465 = vand.u32 2147483647, %v417
      %v466 = vand.u32 2147483647, %v418
      %v467 = vand.u32 2147483647, %v419
      %v468 = vand.u32 2147483647, %v420
      %v469 = vand.u32 2147483647, %v421
      %v470 = vand.u32 2147483647, %v422
      %v471 = vand.u32 2147483647, %v423
      %v472 = vand.u32 2147483647, %v424
      %v473 = vand.u32 2147483647, %v425
      %v474 = vmul.f32 %v458, 0.3275911
      %v475 = vmul.f32 %v459, 0.3275911
      %v476 = vmul.f32 %v460, 0.3275911
      %v477 = vmul.f32 %v461, 0.3275911
      %v478 = vmul.f32 %v462, 0.3275911
      %v479 = vmul.f32 %v463, 0.3275911
      %v480 = vmul.f32 %v464, 0.3275911
      %v481 = vmul.f32 %v465, 0.3275911
      %v482 = vmul.f32 %v466, 0.3275911
      %v483 = vmul.f32 %v467, 0.3275911
      %v484 = vmul.f32 %v468, 0.3275911
      %v485 = vmul.f32 %v469, 0.3275911
      %v486 = vmul.f32 %v470, 0.3275911
      %v487 = vmul.f32 %v471, 0.3275911
      %v488 = vmul.f32 %v472, 0.3275911
      %v489 = vmul.f32 %v473, 0.3275911
      %v490 = vadd.f32 %v474, 1.0
      %v491 = vadd.f32 %v475, 1.0
      %v492 = vadd.f32 %v476, 1.0
      %v493 = vadd.f32 %v477, 1.0
      %v494 = vadd.f32 %v478, 1.0
      %v495 = vadd.f32 %v479, 1.0
      %v496 = vadd.f32 %v480, 1.0
      %v497 = vadd.f32 %v481, 1.0
      %v498 = vadd.f32 %v482, 1.0
      %v499 = vadd.f32 %v483, 1.0
      %v500 = vadd.f32 %v484, 1.0
      %v501 = vadd.f32 %v485, 1.0
      %v502 = vadd.f32 %v486, 1.0
      %v503 = vadd.f32 %v487, 1.0
      %v504 = vadd.f32 %v488, 1.0
      %v505 = vadd.f32 %v489, 1.0
      %v506 = vrcp.pop %v490
      %v507 = vrcp.pop %v491
      %v508 = vrcp.pop %v492
      %v509 = vrcp.pop %v493
      %v510 = vrcp.pop %v494
      %v511 = vrcp.pop %v495
      %v512 = vrcp.pop %v496
      %v513 = vrcp.pop %v497
      %v514 = vrcp.pop %v498
      %v515 = vrcp.pop %v499
      %v516 = vrcp.pop %v500
      %v517 = vrcp.pop %v501
      %v518 = vrcp.pop %v502
      %v519 = vrcp.pop %v503
      %v520 = vrcp.pop %v504
      %v521 = vrcp.pop %v505
      %v522 = vmul.f32 %v506, 1.0614054
      %v523 = vmul.f32 %v507, 1.0614054
      %v524 = vmul.f32 %v508, 1.0614054
      %v525 = vmul.f32 %v509, 1.0614054
      %v526 = vmul.f32 %v510, 1.0614054
      %v527 = vmul.f32 %v511, 1.0614054
      %v528 = vmul.f32 %v512, 1.0614054
      %v529 = vmul.f32 %v513, 1.0614054
      %v530 = vmul.f32 %v514, 1.0614054
      %v531 = vmul.f32 %v515, 1.0614054
      %v532 = vmul.f32 %v516, 1.0614054
      %v533 = vmul.f32 %v517, 1.0614054
      %v534 = vmul.f32 %v518, 1.0614054
      %v535 = vmul.f32 %v519, 1.0614054
      %v536 = vmul.f32 %v520, 1.0614054
      %v537 = vmul.f32 %v521, 1.0614054
      %v538 = vadd.f32 %v522, -1.4531521
      %v539 = vadd.f32 %v523, -1.4531521
      %v540 = vadd.f32 %v524, -1.4531521
      %v541 = vadd.f32 %v525, -1.4531521
      %v542 = vadd.f32 %v526, -1.4531521
      %v543 = vadd.f32 %v527, -1.4531521
      %v544 = vadd.f32 %v528, -1.4531521
      %v545 = vadd.f32 %v529, -1.4531521
      %v546 = vadd.f32 %v530, -1.4531521
      %v547 = vadd.f32 %v531, -1.4531521
      %v548 = vadd.f32 %v532, -1.4531521
      %v549 = vadd.f32 %v533, -1.4531521
      %v550 = vadd.f32 %v534, -1.4531521
      %v551 = vadd.f32 %v535, -1.4531521
      %v552 = vadd.f32 %v536, -1.4531521
      %v553 = vadd.f32 %v537, -1.4531521
      %v554 = vmul.f32 %v506, %v538
      %v555 = vmul.f32 %v507, %v539
      %v556 = vmul.f32 %v508, %v540
      %v557 = vmul.f32 %v509, %v541
      %v558 = vmul.f32 %v510, %v542
      %v559 = vmul.f32 %v511, %v543
      %v560 = vmul.f32 %v512, %v544
      %v561 = vmul.f32 %v513, %v545
      %v562 = vmul.f32 %v514, %v546
      %v563 = vmul.f32 %v515, %v547
      %v564 = vmul.f32 %v516, %v548
      %v565 = vmul.f32 %v517, %v549
      %v566 = vmul.f32 %v518, %v550
      %v567 = vmul.f32 %v519, %v551
      %v568 = vmul.f32 %v520, %v552
      %v569 = vmul.f32 %v521, %v553
      %v570 = vadd.f32 %v554, 1.4214138
      %v571 = vadd.f32 %v555, 1.4214138
      %v572 = vadd.f32 %v556, 1.4214138
      %v573 = vadd.f32 %v557, 1.4214138
      %v574 = vadd.f32 %v558, 1.4214138
      %v575 = vadd.f32 %v559, 1.4214138
      %v576 = vadd.f32 %v560, 1.4214138
      %v577 = vadd.f32 %v561, 1.4214138
      %v578 = vadd.f32 %v562, 1.4214138
      %v579 = vadd.f32 %v563, 1.4214138
      %v580 = vadd.f32 %v564, 1.4214138
      %v581 = vadd.f32 %v565, 1.4214138
      %v582 = vadd.f32 %v566, 1.4214138
      %v583 = vadd.f32 %v567, 1.4214138
      %v584 = vadd.f32 %v568, 1.4214138
      %v585 = vadd.f32 %v569, 1.4214138
      %v586 = vmul.f32 %v506, %v570
      %v587 = vmul.f32 %v507, %v571
      %v588 = vmul.f32 %v508, %v572
      %v589 = vmul.f32 %v509, %v573
      %v590 = vmul.f32 %v510, %v574
      %v591 = vmul.f32 %v511, %v575
      %v592 = vmul.f32 %v512, %v576
      %v593 = vmul.f32 %v513, %v577
      %v594 = vmul.f32 %v514, %v578
      %v595 = vmul.f32 %v515, %v579
      %v596 = vmul.f32 %v516, %v580
      %v597 = vmul.f32 %v517, %v581
      %v598 = vmul.f32 %v518, %v582
      %v599 = vmul.f32 %v519, %v583
      %v600 = vmul.f32 %v520, %v584
      %v601 = vmul.f32 %v521, %v585
      %v602 = vadd.f32 %v586, -0.28449672
      %v603 = vadd.f32 %v587, -0.28449672
      %v604 = vadd.f32 %v588, -0.28449672
      %v605 = vadd.f32 %v589, -0.28449672
      %v606 = vadd.f32 %v590, -0.28449672
      %v607 = vadd.f32 %v591, -0.28449672
      %v608 = vadd.f32 %v592, -0.28449672
      %v609 = vadd.f32 %v593, -0.28449672
      %v610 = vadd.f32 %v594, -0.28449672
      %v611 = vadd.f32 %v595, -0.28449672
      %v612 = vadd.f32 %v596, -0.28449672
      %v613 = vadd.f32 %v597, -0.28449672
      %v614 = vadd.f32 %v598, -0.28449672
      %v615 = vadd.f32 %v599, -0.28449672
      %v616 = vadd.f32 %v600, -0.28449672
      %v617 = vadd.f32 %v601, -0.28449672
      %v618 = vmul.f32 %v506, %v602
      %v619 = vmul.f32 %v507, %v603
      %v620 = vmul.f32 %v508, %v604
      %v621 = vmul.f32 %v509, %v605
      %v622 = vmul.f32 %v510, %v606
      %v623 = vmul.f32 %v511, %v607
      %v624 = vmul.f32 %v512, %v608
      %v625 = vmul.f32 %v513, %v609
      %v626 = vmul.f32 %v514, %v610
      %v627 = vmul.f32 %v515, %v611
      %v628 = vmul.f32 %v516, %v612
      %v629 = vmul.f32 %v517, %v613
      %v630 = vmul.f32 %v518, %v614
      %v631 = vmul.f32 %v519, %v615
      %v632 = vmul.f32 %v520, %v616
      %v633 = vmul.f32 %v521, %v617
      %v634 = vadd.f32 %v618, 0.2548296
      %v635 = vadd.f32 %v619, 0.2548296
      %v636 = vadd.f32 %v620, 0.2548296
      %v637 = vadd.f32 %v621, 0.2548296
      %v638 = vadd.f32 %v622, 0.2548296
      %v639 = vadd.f32 %v623, 0.2548296
      %v640 = vadd.f32 %v624, 0.2548296
      %v641 = vadd.f32 %v625, 0.2548296
      %v642 = vadd.f32 %v626, 0.2548296
      %v643 = vadd.f32 %v627, 0.2548296
      %v644 = vadd.f32 %v628, 0.2548296
      %v645 = vadd.f32 %v629, 0.2548296
      %v646 = vadd.f32 %v630, 0.2548296
      %v647 = vadd.f32 %v631, 0.2548296
      %v648 = vadd.f32 %v632, 0.2548296
      %v649 = vadd.f32 %v633, 0.2548296
      %v650 = vmul.f32 %v506, %v634
      %v651 = vmul.f32 %v507, %v635
      %v652 = vmul.f32 %v508, %v636
      %v653 = vmul.f32 %v509, %v637
      %v654 = vmul.f32 %v510, %v638
      %v655 = vmul.f32 %v511, %v639
      %v656 = vmul.f32 %v512, %v640
      %v657 = vmul.f32 %v513, %v641
      %v658 = vmul.f32 %v514, %v642
      %v659 = vmul.f32 %v515, %v643
      %v660 = vmul.f32 %v516, %v644
      %v661 = vmul.f32 %v517, %v645
      %v662 = vmul.f32 %v518, %v646
      %v663 = vmul.f32 %v519, %v647
      %v664 = vmul.f32 %v520, %v648
      %v665 = vmul.f32 %v521, %v649
      %v666 = vsub.f32 0.0, %v458
      %v667 = vsub.f32 0.0, %v459
      %v668 = vsub.f32 0.0, %v460
      %v669 = vsub.f32 0.0, %v461
      %v670 = vsub.f32 0.0, %v462
      %v671 = vsub.f32 0.0, %v463
      %v672 = vsub.f32 0.0, %v464
      %v673 = vsub.f32 0.0, %v465
      %v674 = vsub.f32 0.0, %v466
      %v675 = vsub.f32 0.0, %v467
      %v676 = vsub.f32 0.0, %v468
      %v677 = vsub.f32 0.0, %v469
      %v678 = vsub.f32 0.0, %v470
      %v679 = vsub.f32 0.0, %v471
      %v680 = vsub.f32 0.0, %v472
      %v681 = vsub.f32 0.0, %v473
      %v682 = vmul.f32 %v666, %v458
      %v683 = vmul.f32 %v667, %v459
      %v684 = vmul.f32 %v668, %v460
      %v685 = vmul.f32 %v669, %v461
      %v686 = vmul.f32 %v670, %v462
      %v687 = vmul.f32 %v671, %v463
      %v688 = vmul.f32 %v672, %v464
      %v689 = vmul.f32 %v673, %v465
      %v690 = vmul.f32 %v674, %v466
      %v691 = vmul.f32 %v675, %v467
      %v692 = vmul.f32 %v676, %v468
      %v693 = vmul.f32 %v677, %v469
      %v694 = vmul.f32 %v678, %v470
      %v695 = vmul.f32 %v679, %v471
      %v696 = vmul.f32 %v680, %v472
      %v697 = vmul.f32 %v681, %v473
      %v698 = vmul.f32 %v682, 1.442695
      %v699 = vpow.pop %v698
      %v700 = vmul.f32 %v683, 1.442695
      %v701 = vpow.pop %v700
      %v702 = vmul.f32 %v684, 1.442695
      %v703 = vpow.pop %v702
      %v704 = vmul.f32 %v685, 1.442695
      %v705 = vpow.pop %v704
      %v706 = vmul.f32 %v686, 1.442695
      %v707 = vpow.pop %v706
      %v708 = vmul.f32 %v687, 1.442695
      %v709 = vpow.pop %v708
      %v710 = vmul.f32 %v688, 1.442695
      %v711 = vpow.pop %v710
      %v712 = vmul.f32 %v689, 1.442695
      %v713 = vpow.pop %v712
      %v714 = vmul.f32 %v690, 1.442695
      %v715 = vpow.pop %v714
      %v716 = vmul.f32 %v691, 1.442695
      %v717 = vpow.pop %v716
      %v718 = vmul.f32 %v692, 1.442695
      %v719 = vpow.pop %v718
      %v720 = vmul.f32 %v693, 1.442695
      %v721 = vpow.pop %v720
      %v722 = vmul.f32 %v694, 1.442695
      %v723 = vpow.pop %v722
      %v724 = vmul.f32 %v695, 1.442695
      %v725 = vpow.pop %v724
      %v726 = vmul.f32 %v696, 1.442695
      %v727 = vpow.pop %v726
      %v728 = vmul.f32 %v697, 1.442695
      %v729 = vpow.pop %v728
      %v730 = vmul.f32 %v650, %v699
      %v731 = vmul.f32 %v651, %v701
      %v732 = vmul.f32 %v652, %v703
      %v733 = vmul.f32 %v653, %v705
      %v734 = vmul.f32 %v654, %v707
      %v735 = vmul.f32 %v655, %v709
      %v736 = vmul.f32 %v656, %v711
      %v737 = vmul.f32 %v657, %v713
      %v738 = vmul.f32 %v658, %v715
      %v739 = vmul.f32 %v659, %v717
      %v740 = vmul.f32 %v660, %v719
      %v741 = vmul.f32 %v661, %v721
      %v742 = vmul.f32 %v662, %v723
      %v743 = vmul.f32 %v663, %v725
      %v744 = vmul.f32 %v664, %v727
      %v745 = vmul.f32 %v665, %v729
      %v746 = vsub.f32 1.0, %v730
      %v747 = vsub.f32 1.0, %v731
      %v748 = vsub.f32 1.0, %v732
      %v749 = vsub.f32 1.0, %v733
      %v750 = vsub.f32 1.0, %v734
      %v751 = vsub.f32 1.0, %v735
      %v752 = vsub.f32 1.0, %v736
      %v753 = vsub.f32 1.0, %v737
      %v754 = vsub.f32 1.0, %v738
      %v755 = vsub.f32 1.0, %v739
      %v756 = vsub.f32 1.0, %v740
      %v757 = vsub.f32 1.0, %v741
      %v758 = vsub.f32 1.0, %v742
      %v759 = vsub.f32 1.0, %v743
      %v760 = vsub.f32 1.0, %v744
      %v761 = vsub.f32 1.0, %v745
      %v762 = vmul.f32 %v442, %v746
      %v763 = vmul.f32 %v443, %v747
      %v764 = vmul.f32 %v444, %v748
      %v765 = vmul.f32 %v445, %v749
      %v766 = vmul.f32 %v446, %v750
      %v767 = vmul.f32 %v447, %v751
      %v768 = vmul.f32 %v448, %v752
      %v769 = vmul.f32 %v449, %v753
      %v770 = vmul.f32 %v450, %v754
      %v771 = vmul.f32 %v451, %v755
      %v772 = vmul.f32 %v452, %v756
      %v773 = vmul.f32 %v453, %v757
      %v774 = vmul.f32 %v454, %v758
      %v775 = vmul.f32 %v455, %v759
      %v776 = vmul.f32 %v456, %v760
      %v777 = vmul.f32 %v457, %v761
      %v778 = vadd.f32 %v762, 1.0
      %v779 = vadd.f32 %v763, 1.0
      %v780 = vadd.f32 %v764, 1.0
      %v781 = vadd.f32 %v765, 1.0
      %v782 = vadd.f32 %v766, 1.0
      %v783 = vadd.f32 %v767, 1.0
      %v784 = vadd.f32 %v768, 1.0
      %v785 = vadd.f32 %v769, 1.0
      %v786 = vadd.f32 %v770, 1.0
      %v787 = vadd.f32 %v771, 1.0
      %v788 = vadd.f32 %v772, 1.0
      %v789 = vadd.f32 %v773, 1.0
      %v790 = vadd.f32 %v774, 1.0
      %v791 = vadd.f32 %v775, 1.0
      %v792 = vadd.f32 %v776, 1.0
      %v793 = vadd.f32 %v777, 1.0
      %v794 = vmul.f32 %v394, %v778
      %v795 = vmul.f32 %v395, %v779
      %v796 = vmul.f32 %v396, %v780
      %v797 = vmul.f32 %v397, %v781
      %v798 = vmul.f32 %v398, %v782
      %v799 = vmul.f32 %v399, %v783
      %v800 = vmul.f32 %v400, %v784
      %v801 = vmul.f32 %v401, %v785
      %v802 = vmul.f32 %v402, %v786
      %v803 = vmul.f32 %v403, %v787
      %v804 = vmul.f32 %v404, %v788
      %v805 = vmul.f32 %v405, %v789
      %v806 = vmul.f32 %v406, %v790
      %v807 = vmul.f32 %v407, %v791
      %v808 = vmul.f32 %v408, %v792
      %v809 = vmul.f32 %v409, %v793
      %v826 = vcombine.low %v794, %v795
      %v827 = vcombine.low %v796, %v797
      %v828 = vcombine.low %v798, %v799
      %v829 = vcombine.low %v800, %v801
      %v831 = vunpack.c.l.s4 1966171168
      %v832 = vunpack.c.0.s8 %v831
      %v833 = vlaneseq
      %v834 = vshrl.u32 %v833, 7
      %v835 = vsub.s32 %v832, %v834
      %v836 = vrot.slane %v826, %v835
      %v838 = vunpack.c.l.s4 1966171168
      %v839 = vunpack.c.0.s8 %v838
      %v840 = vlaneseq
      %v841 = vshrl.u32 %v840, 7
      %v842 = vsub.s32 %v839, %v841
      %v843 = vrot.slane %v827, %v842
      %v845 = vunpack.c.l.s4 1966171168
      %v846 = vunpack.c.0.s8 %v845
      %v847 = vlaneseq
      %v848 = vshrl.u32 %v847, 7
      %v849 = vsub.s32 %v846, %v848
      %v850 = vrot.slane %v828, %v849
      %v852 = vunpack.c.l.s4 1966171168
      %v853 = vunpack.c.0.s8 %v852
      %v854 = vlaneseq
      %v855 = vshrl.u32 %v854, 7
      %v856 = vsub.s32 %v853, %v855
      %v857 = vrot.slane %v829, %v856
      %v858 = vcombine.low %v836, %v843
      %v859 = vcombine.low %v850, %v857
      %v861 = vunpack.c.l.s4 1966171168
      %v862 = vunpack.c.0.s8 %v861
      %v863 = vlaneseq
      %v864 = vshrl.u32 %v863, 7
      %v865 = vsub.s32 %v862, %v864
      %v866 = vrot.slane %v858, %v865
      %v868 = vunpack.c.l.s4 1966171168
      %v869 = vunpack.c.0.s8 %v868
      %v870 = vlaneseq
      %v871 = vshrl.u32 %v870, 7
      %v872 = vsub.s32 %v869, %v871
      %v873 = vrot.slane %v859, %v872
      %v874 = vcombine.low %v866, %v873
      %v875 = vcombine.low %v802, %v803
      %v876 = vcombine.low %v804, %v805
      %v877 = vcombine.low %v806, %v807
      %v878 = vcombine.low %v808, %v809
      %v880 = vunpack.c.l.s4 1966171168
      %v881 = vunpack.c.0.s8 %v880
      %v882 = vlaneseq
      %v883 = vshrl.u32 %v882, 7
      %v884 = vsub.s32 %v881, %v883
      %v885 = vrot.slane %v875, %v884
      %v887 = vunpack.c.l.s4 1966171168
      %v888 = vunpack.c.0.s8 %v887
      %v889 = vlaneseq
      %v890 = vshrl.u32 %v889, 7
      %v891 = vsub.s32 %v888, %v890
      %v892 = vrot.slane %v876, %v891
      %v894 = vunpack.c.l.s4 1966171168
      %v895 = vunpack.c.0.s8 %v894
      %v896 = vlaneseq
      %v897 = vshrl.u32 %v896, 7
      %v898 = vsub.s32 %v895, %v897
      %v899 = vrot.slane %v877, %v898
      %v901 = vunpack.c.l.s4 1966171168
      %v902 = vunpack.c.0.s8 %v901
      %v903 = vlaneseq
      %v904 = vshrl.u32 %v903, 7
      %v905 = vsub.s32 %v902, %v904
      %v906 = vrot.slane %v878, %v905
      %v907 = vcombine.low %v885, %v892
      %v908 = vcombine.low %v899, %v906
      %v910 = vunpack.c.l.s4 1966171168
      %v911 = vunpack.c.0.s8 %v910
      %v912 = vlaneseq
      %v913 = vshrl.u32 %v912, 7
      %v914 = vsub.s32 %v911, %v913
      %v915 = vrot.slane %v907, %v914
      %v917 = vunpack.c.l.s4 1966171168
      %v918 = vunpack.c.0.s8 %v917
      %v919 = vlaneseq
      %v920 = vshrl.u32 %v919, 7
      %v921 = vsub.s32 %v918, %v920
      %v922 = vrot.slane %v908, %v921
      %v923 = vcombine.low %v915, %v922
      %926 = vst [vmem:[%s207] sm:$0xff] %v874
      %927 = vst [vmem:[%s207 + $0x8] sm:$0xff] %v923
      %s928 = smul.u32 16, %s20
      %p929 = scmp.lt.s32.totalorder %s19, 1
      %s930 = scalar_select %p929, %s19, 1
      %p931 = scmp.lt.s32.totalorder %s928, 31
      %s932 = scalar_select %p931, %s928, 31
      %s933 = smul.addr %s930, 32
      %s934 = sadd.s32 %s932, %s933
      %s935 = scalar_lea.vmem %s3, %s934
      // Predicated region
      $region33: #{dcla_forward.5} parent=31 // pred_check
        %p936 = pneg %p117
      $region34: #{dcla_forward.5} parent=31 // pred_check_branch
        %938 = sbr.rel (%p936) target = $region36
      $region35: #{dcla_forward.5} parent=31 // pred_region
        %s939 = smul.u32 16, %s20
      $region36: #{dcla_forward.5} parent=31 // pred_fallthru
        _
    $region32: #{dcla_forward.5} parent=5 // pred_fallthru
      _
    %p940 = scmp.le.s32.totalorder 2, %s10
    // Predicated region
    $region37: #{dcla_forward.5} parent=5 // pred_check
      %p941 = pneg %p940
    $region38: #{dcla_forward.5} parent=5 // pred_check_branch
      %943 = sbr.rel (%p941) target = $region40
    $region39: #{dcla_forward.5} parent=5 // pred_region
      %s944 = ssub.s32 %s10, 2
      // Predicated region
      $region41: #{dcla_forward.5} parent=39 // pred_check
        %p945 = pneg %p123
      $region42: #{dcla_forward.5} parent=39 // pred_check_branch
        %947 = sbr.rel (%p945) target = $region44
      $region43: #{dcla_forward.5} parent=39 // pred_region
        %s948 = smul.u32 16, %s22
        %p949 = scmp.lt.s32.totalorder %s21, 1
        %s950 = scalar_select %p949, %s21, 1
        %p951 = scmp.lt.s32.totalorder %s948, 31
        %s952 = scalar_select %p951, %s948, 31
        %s953 = smul.addr %s950, 32
        %s954 = sadd.s32 %s952, %s953
        %s955 = scalar_lea.vmem %s3, %s954
      $region44: #{dcla_forward.5} parent=39 // pred_fallthru
        _
    $region40: #{dcla_forward.5} parent=5 // pred_fallthru
      _
  $region6: #{dcla_forward.5} parent=0 // loop_footer
    %s14 = sadd.s32 1, %s10
  $region7: #{dcla_forward.5} parent=0 // loop_footer_branch
    %9 = sbr.rel target = $region3
  $region8: #{dcla_forward.5} parent=0 // loop_exit
    _

// kernel: dcla_forward.7
$region0: #{dcla_forward.7}
  #allocation0 [shape = 'u32[]', space=smem, size = 0x4, offset = 0x4, fixed_abs, tag = 'smem constant byte address 0x4 - core index']
  #allocation1 [shape = 'u32[144,128]{1,0:T(1,128)}', space=vmem, size = 0x12000, scoped, tag = 'internal scratch']
  #allocation2 [shape = 'f32[1]{0:T(128)S(6)}', space=smem, size = 0x200, scoped, tag = 'scoped memory for dcla_forward.7']
  %s0 = inlined_call_operand.vmem [shape: f32[2,8,4096], index: 0, kind: input, shape index: {}]
  %s1 = inlined_call_operand.vmem [shape: f32[8,1], index: 1, kind: input, shape index: {}]
  %s2 = inlined_call_operand.<no memory space> [shape: f32[1], index: 2, kind: input, shape index: {}]
  %s3 = inlined_call_operand.vmem [shape: f32[2,1,4096], index: 3, kind: output, shape index: {}]
  %s4 = sld [smem:[#allocation0]]
  $region45: #{dcla_forward.7} parent=0
    _
  %s6 = ssub.s32 1, %s4
  %s7 = scalar_select 0, %s6, %s4
  %8 = sst [smem:[#allocation2]] %s2
  loop: start=0, step=1, limit=6
  $region2: #{dcla_forward.7} parent=0 // loop_pre_header
    _
  $region3: #{dcla_forward.7} parent=0 // loop_header
    %s10 = sphi 0, %s14
    %p11 = scmp.ge.s32.totalorder %s10, 6
    %s17 = sphi 0, %s29
    %s18 = sphi 0, %s25
    %s19 = sphi 0, %s17
    %s20 = sphi 0, %s18
    %s21 = sphi 0, %s19
    %s22 = sphi 0, %s20
    %s34 = sphi 0, %s36
    %s37 = sphi 0, %s34
    %s38 = sphi 0, %s37
    %s54 = sphi 0, %s38
    %s58 = sphi 0, %s58
    %s60 = sphi 0, %s58
    %s61 = sphi 0, %s60
    %s75 = sphi 0, %s61
    %s79 = sphi 0, %s79
    %s81 = sphi 0, %s79
    %s82 = sphi 0, %s81
    %s96 = sphi 0, %s82
    %s104 = sphi 0, %s106
    %s107 = sphi 0, %s104
    %s108 = sphi 0, %s107
    %s124 = sphi 0, %s108
  $region4: #{dcla_forward.7} parent=0 // loop_header_branch
    %13 = sbr.rel (%p11) target = $region8
  $region5: #{dcla_forward.7} parent=0 // loop_body
    %s15 = ssub.s32 %s10, 1
    %s16 = ssub.s32 %s10, 2
    %s23 = sadd.s32 1, %s18
    %p24 = scmp.ge.s32.totalorder %s23, 2
    %s25 = scalar_select %p24, 0, %s23
    %s26 = sadd.s32 1, %s17
    %s27 = scalar_select %p24, %s26, %s17
    %p28 = scmp.ge.s32.totalorder %s27, 2
    %s29 = scalar_select %p28, 0, %s27
    %s30 = ssub.s32 %s17, %s29
    %s31 = ssub.s32 %s18, %s25
    %s32 = sor.u32 %s30, %s31
    %p33 = scmp.eq.s32.totalorder %s32, 0
    %s35 = sadd.s32 %s34, 1
    %s36 = scalar_select %p33, %s34, %s35
    %p39 = pneg %p33
    %p40 = scmp.eq.s32.totalorder %s10, 3
    %p41 = por %p39, %p40
    %p42 = scmp.ne.s32.totalorder %s34, %s37
    %p43 = scmp.eq.s32.totalorder %s10, 0
    %p44 = por %p42, %p43
    %p45 = scmp.ne.s32.totalorder %s34, %s37
    %p46 = scmp.eq.s32.totalorder %s15, 3
    %p47 = por %p45, %p46
    %p48 = scmp.ne.s32.totalorder %s37, %s38
    %p49 = scmp.eq.s32.totalorder %s15, 0
    %p50 = por %p48, %p49
    %p51 = scmp.ne.s32.totalorder %s37, %s38
    %p52 = scmp.eq.s32.totalorder %s16, 3
    %p53 = por %p51, %p52
    %p55 = scmp.ne.s32.totalorder %s38, %s54
    %p56 = scmp.eq.s32.totalorder %s16, 0
    %p57 = por %p55, %p56
    %s59 = sadd.s32 %s58, 1
    %p62 = scmp.eq.s32.totalorder %s10, 3
    %p63 = scmp.ne.s32.totalorder %s58, %s60
    %p64 = scmp.eq.s32.totalorder %s10, 0
    %p65 = por %p63, %p64
    %p66 = scmp.ne.s32.totalorder %s58, %s60
    %p67 = scmp.eq.s32.totalorder %s15, 3
    %p68 = por %p66, %p67
    %p69 = scmp.ne.s32.totalorder %s60, %s61
    %p70 = scmp.eq.s32.totalorder %s15, 0
    %p71 = por %p69, %p70
    %p72 = scmp.ne.s32.totalorder %s60, %s61
    %p73 = scmp.eq.s32.totalorder %s16, 3
    %p74 = por %p72, %p73
    %p76 = scmp.ne.s32.totalorder %s61, %s75
    %p77 = scmp.eq.s32.totalorder %s16, 0
    %p78 = por %p76, %p77
    %s80 = sadd.s32 %s79, 1
    %p83 = scmp.eq.s32.totalorder %s10, 3
    %p84 = scmp.ne.s32.totalorder %s79, %s81
    %p85 = scmp.eq.s32.totalorder %s10, 0
    %p86 = por %p84, %p85
    %p87 = scmp.ne.s32.totalorder %s79, %s81
    %p88 = scmp.eq.s32.totalorder %s15, 3
    %p89 = por %p87, %p88
    %p90 = scmp.ne.s32.totalorder %s81, %s82
    %p91 = scmp.eq.s32.totalorder %s15, 0
    %p92 = por %p90, %p91
    %p93 = scmp.ne.s32.totalorder %s81, %s82
    %p94 = scmp.eq.s32.totalorder %s16, 3
    %p95 = por %p93, %p94
    %p97 = scmp.ne.s32.totalorder %s82, %s96
    %p98 = scmp.eq.s32.totalorder %s16, 0
    %p99 = por %p97, %p98
    %s100 = ssub.s32 %s17, %s29
    %s101 = ssub.s32 %s18, %s25
    %s102 = sor.u32 %s100, %s101
    %p103 = scmp.eq.s32.totalorder %s102, 0
    %s105 = sadd.s32 %s104, 1
    %s106 = scalar_select %p103, %s104, %s105
    %p109 = pneg %p103
    %p110 = scmp.eq.s32.totalorder %s10, 3
    %p111 = por %p109, %p110
    %p112 = scmp.ne.s32.totalorder %s104, %s107
    %p113 = scmp.eq.s32.totalorder %s10, 0
    %p114 = por %p112, %p113
    %p115 = scmp.ne.s32.totalorder %s104, %s107
    %p116 = scmp.eq.s32.totalorder %s15, 3
    %p117 = por %p115, %p116
    %p118 = scmp.ne.s32.totalorder %s107, %s108
    %p119 = scmp.eq.s32.totalorder %s15, 0
    %p120 = por %p118, %p119
    %p121 = scmp.ne.s32.totalorder %s107, %s108
    %p122 = scmp.eq.s32.totalorder %s16, 3
    %p123 = por %p121, %p122
    %p125 = scmp.ne.s32.totalorder %s108, %s124
    %p126 = scmp.eq.s32.totalorder %s16, 0
    %p127 = por %p125, %p126
    %p128 = scmp.le.s32.totalorder 1, %s10
    %p129 = scmp.lt.s32.totalorder %s10, 5
    %p130 = pnand %p128, %p129
    %p131 = pneg %p130
    // Predicated region
    $region9: #{dcla_forward.7} parent=5 // pred_check
      _
    $region10: #{dcla_forward.7} parent=5 // pred_check_branch
      %133 = sbr.rel (%p130) target = $region12
    $region11: #{dcla_forward.7} parent=5 // pred_region
      %s134 = ssub.s32 %s10, 1
      // Predicated region
      $region13: #{dcla_forward.7} parent=11 // pred_check
        %p135 = pneg %p71
      $region14: #{dcla_forward.7} parent=11 // pred_check_branch
        %137 = sbr.rel (%p135) target = $region16
      $region15: #{dcla_forward.7} parent=11 // pred_region
        _
      $region16: #{dcla_forward.7} parent=11 // pred_fallthru
        _
      // Predicated region
      $region17: #{dcla_forward.7} parent=11 // pred_check
        %p138 = pneg %p92
      $region18: #{dcla_forward.7} parent=11 // pred_check_branch
        %140 = sbr.rel (%p138) target = $region20
      $region19: #{dcla_forward.7} parent=11 // pred_region
        _
      $region20: #{dcla_forward.7} parent=11 // pred_fallthru
        _
    $region12: #{dcla_forward.7} parent=5 // pred_fallthru
      _
    %p141 = scmp.lt.s32.totalorder %s10, 4
    // Predicated region
    $region21: #{dcla_forward.7} parent=5 // pred_check
      %p142 = pneg %p141
    $region22: #{dcla_forward.7} parent=5 // pred_check_branch
      %144 = sbr.rel (%p142) target = $region24
    $region23: #{dcla_forward.7} parent=5 // pred_region
      // Predicated region
      $region25: #{dcla_forward.7} parent=23 // pred_check
        %p145 = pneg %p44
      $region26: #{dcla_forward.7} parent=23 // pred_check_branch
        %147 = sbr.rel (%p145) target = $region28
      $region27: #{dcla_forward.7} parent=23 // pred_region
        %s148 = smul.u32 16, %s18
        %p149 = scmp.lt.s32.totalorder %s17, 1
        %s150 = scalar_select %p149, %s17, 1
        %p151 = scmp.lt.s32.totalorder %s148, 31
        %s152 = scalar_select %p151, %s148, 31
        %s153 = smul.addr %s150, 32
        %s154 = sadd.s32 %s152, %s153
        %s155 = smul.addr %s154, 8
        %s156 = scalar_lea.vmem %s0, %s155
        %s157 = smul.u32 16, %s18
      $region28: #{dcla_forward.7} parent=23 // pred_fallthru
        _
    $region24: #{dcla_forward.7} parent=5 // pred_fallthru
      _
    %p158 = scmp.le.s32.totalorder 1, %s10
    %p159 = scmp.lt.s32.totalorder %s10, 5
    %p160 = pnand %p158, %p159
    %p161 = pneg %p160
    // Predicated region
    $region29: #{dcla_forward.7} parent=5 // pred_check
      _
    $region30: #{dcla_forward.7} parent=5 // pred_check_branch
      %163 = sbr.rel (%p160) target = $region32
    $region31: #{dcla_forward.7} parent=5 // pred_region
      %s164 = ssub.s32 %s10, 1
      %s165 = smul.u32 16, %s20
      %p166 = scmp.lt.s32.totalorder %s19, 1
      %s167 = scalar_select %p166, %s19, 1
      %p168 = scmp.lt.s32.totalorder %s165, 31
      %s169 = scalar_select %p168, %s165, 31
      %s170 = smul.addr %s167, 32
      %s171 = sadd.s32 %s169, %s170
      %s172 = smul.addr %s171, 8
      %s173 = scalar_lea.vmem %s0, %s172
      %p174 = pneg %p50
      %p175 = pneg %p47
      %p176 = pneg %p71
      %p177 = pneg %p68
      %p178 = pneg %p92
      %p179 = pneg %p89
      %p180 = pneg %p120
      %p181 = pneg %p117
      %s182 = smul.u32 16, %s20
      %p183 = scmp.lt.s32.totalorder %s19, 1
      %s184 = scalar_select %p183, %s19, 1
      %p185 = scmp.lt.s32.totalorder %s182, 31
      %s186 = scalar_select %p185, %s182, 31
      %s187 = smul.addr %s184, 32
      %s188 = sadd.s32 %s186, %s187
      %s189 = scalar_lea.vmem %s3, %s188
      %s190 = smul.u32 16, %s20
      %p191 = scmp.lt.s32.totalorder %s19, 1
      %s192 = scalar_select %p191, %s19, 1
      %p193 = scmp.lt.s32.totalorder %s190, 31
      %s194 = scalar_select %p193, %s190, 31
      %s195 = smul.addr %s192, 32
      %s196 = sadd.s32 %s194, %s195
      %s197 = smul.addr %s196, 8
      %s198 = scalar_lea.vmem %s0, %s197
      %s199 = smul.u32 16, %s20
      %s200 = smul.u32 16, %s20
      %p201 = scmp.lt.s32.totalorder %s19, 1
      %s202 = scalar_select %p201, %s19, 1
      %p203 = scmp.lt.s32.totalorder %s200, 31
      %s204 = scalar_select %p203, %s200, 31
      %s205 = smul.addr %s202, 32
      %s206 = sadd.s32 %s204, %s205
      %s207 = scalar_lea.vmem %s3, %s206
      %s208 = smul.u32 16, %s20
      %v209 = vld [vmem:[%s1] sm:$0xff]
      %v210 = vld [vmem:[%s198] sm:$0xff]
      %v211 = vld [vmem:[%s198 + $0x8] sm:$0xff]
      %v212 = vld [vmem:[%s198 + $0x10] sm:$0xff]
      %v213 = vld [vmem:[%s198 + $0x18] sm:$0xff]
      %v214 = vld [vmem:[%s198 + $0x20] sm:$0xff]
      %v215 = vld [vmem:[%s198 + $0x28] sm:$0xff]
      %v216 = vld [vmem:[%s198 + $0x30] sm:$0xff]
      %v217 = vld [vmem:[%s198 + $0x38] sm:$0xff]
      %v218 = vld [vmem:[%s198 + $0x40] sm:$0xff]
      %v219 = vld [vmem:[%s198 + $0x48] sm:$0xff]
      %v220 = vld [vmem:[%s198 + $0x50] sm:$0xff]
      %v221 = vld [vmem:[%s198 + $0x58] sm:$0xff]
      %v222 = vld [vmem:[%s198 + $0x60] sm:$0xff]
      %v223 = vld [vmem:[%s198 + $0x68] sm:$0xff]
      %v224 = vld [vmem:[%s198 + $0x70] sm:$0xff]
      %v225 = vld [vmem:[%s198 + $0x78] sm:$0xff]
      %227 = vset.pattern.permute.xlu0 0
      %228 = vperm.xlu0 %227, %v209
      %v229 = vpop.permute.xlu0 %228
      %v231 = vmul.f32 %v229, %v210
      %v232 = vmul.f32 %v229, %v211
      %v233 = vmul.f32 %v229, %v212
      %v234 = vmul.f32 %v229, %v213
      %v235 = vmul.f32 %v229, %v214
      %v236 = vmul.f32 %v229, %v215
      %v237 = vmul.f32 %v229, %v216
      %v238 = vmul.f32 %v229, %v217
      %v239 = vmul.f32 %v229, %v218
      %v240 = vmul.f32 %v229, %v219
      %v241 = vmul.f32 %v229, %v220
      %v242 = vmul.f32 %v229, %v221
      %v243 = vmul.f32 %v229, %v222
      %v244 = vmul.f32 %v229, %v223
      %v245 = vmul.f32 %v229, %v224
      %v246 = vmul.f32 %v229, %v225
      %v247 = vrot.slane %v231, 4
      %v248 = vadd.f32 %v231, %v247
      %v249 = vrot.slane %v248, 2
      %v250 = vadd.f32 %v248, %v249
      %v251 = vrot.slane %v250, 1
      %v252 = vadd.f32 %v250, %v251
      %v253 = vrot.slane %v232, 4
      %v254 = vadd.f32 %v232, %v253
      %v255 = vrot.slane %v254, 2
      %v256 = vadd.f32 %v254, %v255
      %v257 = vrot.slane %v256, 1
      %v258 = vadd.f32 %v256, %v257
      %v259 = vrot.slane %v233, 4
      %v260 = vadd.f32 %v233, %v259
      %v261 = vrot.slane %v260, 2
      %v262 = vadd.f32 %v260, %v261
      %v263 = vrot.slane %v262, 1
      %v264 = vadd.f32 %v262, %v263
      %v265 = vrot.slane %v234, 4
      %v266 = vadd.f32 %v234, %v265
      %v267 = vrot.slane %v266, 2
      %v268 = vadd.f32 %v266, %v267
      %v269 = vrot.slane %v268, 1
      %v270 = vadd.f32 %v268, %v269
      %v271 = vrot.slane %v235, 4
      %v272 = vadd.f32 %v235, %v271
      %v273 = vrot.slane %v272, 2
      %v274 = vadd.f32 %v272, %v273
      %v275 = vrot.slane %v274, 1
      %v276 = vadd.f32 %v274, %v275
      %v277 = vrot.slane %v236, 4
      %v278 = vadd.f32 %v236, %v277
      %v279 = vrot.slane %v278, 2
      %v280 = vadd.f32 %v278, %v279
      %v281 = vrot.slane %v280, 1
      %v282 = vadd.f32 %v280, %v281
      %v283 = vrot.slane %v237, 4
      %v284 = vadd.f32 %v237, %v283
      %v285 = vrot.slane %v284, 2
      %v286 = vadd.f32 %v284, %v285
      %v287 = vrot.slane %v286, 1
      %v288 = vadd.f32 %v286, %v287
      %v289 = vrot.slane %v238, 4
      %v290 = vadd.f32 %v238, %v289
      %v291 = vrot.slane %v290, 2
      %v292 = vadd.f32 %v290, %v291
      %v293 = vrot.slane %v292, 1
      %v294 = vadd.f32 %v292, %v293
      %v295 = vrot.slane %v239, 4
      %v296 = vadd.f32 %v239, %v295
      %v297 = vrot.slane %v296, 2
      %v298 = vadd.f32 %v296, %v297
      %v299 = vrot.slane %v298, 1
      %v300 = vadd.f32 %v298, %v299
      %v301 = vrot.slane %v240, 4
      %v302 = vadd.f32 %v240, %v301
      %v303 = vrot.slane %v302, 2
      %v304 = vadd.f32 %v302, %v303
      %v305 = vrot.slane %v304, 1
      %v306 = vadd.f32 %v304, %v305
      %v307 = vrot.slane %v241, 4
      %v308 = vadd.f32 %v241, %v307
      %v309 = vrot.slane %v308, 2
      %v310 = vadd.f32 %v308, %v309
      %v311 = vrot.slane %v310, 1
      %v312 = vadd.f32 %v310, %v311
      %v313 = vrot.slane %v242, 4
      %v314 = vadd.f32 %v242, %v313
      %v315 = vrot.slane %v314, 2
      %v316 = vadd.f32 %v314, %v315
      %v317 = vrot.slane %v316, 1
      %v318 = vadd.f32 %v316, %v317
      %v319 = vrot.slane %v243, 4
      %v320 = vadd.f32 %v243, %v319
      %v321 = vrot.slane %v320, 2
      %v322 = vadd.f32 %v320, %v321
      %v323 = vrot.slane %v322, 1
      %v324 = vadd.f32 %v322, %v323
      %v325 = vrot.slane %v244, 4
      %v326 = vadd.f32 %v244, %v325
      %v327 = vrot.slane %v326, 2
      %v328 = vadd.f32 %v326, %v327
      %v329 = vrot.slane %v328, 1
      %v330 = vadd.f32 %v328, %v329
      %v331 = vrot.slane %v245, 4
      %v332 = vadd.f32 %v245, %v331
      %v333 = vrot.slane %v332, 2
      %v334 = vadd.f32 %v332, %v333
      %v335 = vrot.slane %v334, 1
      %v336 = vadd.f32 %v334, %v335
      %v337 = vrot.slane %v246, 4
      %v338 = vadd.f32 %v246, %v337
      %v339 = vrot.slane %v338, 2
      %v340 = vadd.f32 %v338, %v339
      %v341 = vrot.slane %v340, 1
      %v342 = vadd.f32 %v340, %v341
      %s343 = sld [smem:[#allocation2]]
      %v344 = vstv %s343
      %v345 = vadd.f32 %v252, %v344
      %v346 = vadd.f32 %v258, %v344
      %v347 = vadd.f32 %v264, %v344
      %v348 = vadd.f32 %v270, %v344
      %v349 = vadd.f32 %v276, %v344
      %v350 = vadd.f32 %v282, %v344
      %v351 = vadd.f32 %v288, %v344
      %v352 = vadd.f32 %v294, %v344
      %v353 = vadd.f32 %v300, %v344
      %v354 = vadd.f32 %v306, %v344
      %v355 = vadd.f32 %v312, %v344
      %v356 = vadd.f32 %v318, %v344
      %v357 = vadd.f32 %v324, %v344
      %v358 = vadd.f32 %v330, %v344
      %v359 = vadd.f32 %v336, %v344
      %v360 = vadd.f32 %v342, %v344
      %v361 = vmul.f32 %v345, 0.5
      %v362 = vmul.f32 %v346, 0.5
      %v363 = vmul.f32 %v347, 0.5
      %v364 = vmul.f32 %v348, 0.5
      %v365 = vmul.f32 %v349, 0.5
      %v366 = vmul.f32 %v350, 0.5
      %v367 = vmul.f32 %v351, 0.5
      %v368 = vmul.f32 %v352, 0.5
      %v369 = vmul.f32 %v353, 0.5
      %v370 = vmul.f32 %v354, 0.5
      %v371 = vmul.f32 %v355, 0.5
      %v372 = vmul.f32 %v356, 0.5
      %v373 = vmul.f32 %v357, 0.5
      %v374 = vmul.f32 %v358, 0.5
      %v375 = vmul.f32 %v359, 0.5
      %v376 = vmul.f32 %v360, 0.5
      %v377 = vmul.f32 %v345, 0.70710677
      %v378 = vmul.f32 %v346, 0.70710677
      %v379 = vmul.f32 %v347, 0.70710677
      %v380 = vmul.f32 %v348, 0.70710677
      %v381 = vmul.f32 %v349, 0.70710677
      %v382 = vmul.f32 %v350, 0.70710677
      %v383 = vmul.f32 %v351, 0.70710677
      %v384 = vmul.f32 %v352, 0.70710677
      %v385 = vmul.f32 %v353, 0.70710677
      %v386 = vmul.f32 %v354, 0.70710677
      %v387 = vmul.f32 %v355, 0.70710677
      %v388 = vmul.f32 %v356, 0.70710677
      %v389 = vmul.f32 %v357, 0.70710677
      %v390 = vmul.f32 %v358, 0.70710677
      %v391 = vmul.f32 %v359, 0.70710677
      %v392 = vmul.f32 %v360, 0.70710677
      %vm393 = vcmp.ge.f32.partialorder %v377, 0.0
      %vm394 = vcmp.ge.f32.partialorder %v378, 0.0
      %vm395 = vcmp.ge.f32.partialorder %v379, 0.0
      %vm396 = vcmp.ge.f32.partialorder %v380, 0.0
      %vm397 = vcmp.ge.f32.partialorder %v381, 0.0
      %vm398 = vcmp.ge.f32.partialorder %v382, 0.0
      %vm399 = vcmp.ge.f32.partialorder %v383, 0.0
      %vm400 = vcmp.ge.f32.partialorder %v384, 0.0
      %vm401 = vcmp.ge.f32.partialorder %v385, 0.0
      %vm402 = vcmp.ge.f32.partialorder %v386, 0.0
      %vm403 = vcmp.ge.f32.partialorder %v387, 0.0
      %vm404 = vcmp.ge.f32.partialorder %v388, 0.0
      %vm405 = vcmp.ge.f32.partialorder %v389, 0.0
      %vm406 = vcmp.ge.f32.partialorder %v390, 0.0
      %vm407 = vcmp.ge.f32.partialorder %v391, 0.0
      %vm408 = vcmp.ge.f32.partialorder %v392, 0.0
      %v409 = vsel %vm393, 1.0, -1.0
      %v410 = vsel %vm394, 1.0, -1.0
      %v411 = vsel %vm395, 1.0, -1.0
      %v412 = vsel %vm396, 1.0, -1.0
      %v413 = vsel %vm397, 1.0, -1.0
      %v414 = vsel %vm398, 1.0, -1.0
      %v415 = vsel %vm399, 1.0, -1.0
      %v416 = vsel %vm400, 1.0, -1.0
      %v417 = vsel %vm401, 1.0, -1.0
      %v418 = vsel %vm402, 1.0, -1.0
      %v419 = vsel %vm403, 1.0, -1.0
      %v420 = vsel %vm404, 1.0, -1.0
      %v421 = vsel %vm405, 1.0, -1.0
      %v422 = vsel %vm406, 1.0, -1.0
      %v423 = vsel %vm407, 1.0, -1.0
      %v424 = vsel %vm408, 1.0, -1.0
      %v425 = vand.u32 2147483647, %v377
      %v426 = vand.u32 2147483647, %v378
      %v427 = vand.u32 2147483647, %v379
      %v428 = vand.u32 2147483647, %v380
      %v429 = vand.u32 2147483647, %v381
      %v430 = vand.u32 2147483647, %v382
      %v431 = vand.u32 2147483647, %v383
      %v432 = vand.u32 2147483647, %v384
      %v433 = vand.u32 2147483647, %v385
      %v434 = vand.u32 2147483647, %v386
      %v435 = vand.u32 2147483647, %v387
      %v436 = vand.u32 2147483647, %v388
      %v437 = vand.u32 2147483647, %v389
      %v438 = vand.u32 2147483647, %v390
      %v439 = vand.u32 2147483647, %v391
      %v440 = vand.u32 2147483647, %v392
      %v441 = vmul.f32 %v425, 0.3275911
      %v442 = vmul.f32 %v426, 0.3275911
      %v443 = vmul.f32 %v427, 0.3275911
      %v444 = vmul.f32 %v428, 0.3275911
      %v445 = vmul.f32 %v429, 0.3275911
      %v446 = vmul.f32 %v430, 0.3275911
      %v447 = vmul.f32 %v431, 0.3275911
      %v448 = vmul.f32 %v432, 0.3275911
      %v449 = vmul.f32 %v433, 0.3275911
      %v450 = vmul.f32 %v434, 0.3275911
      %v451 = vmul.f32 %v435, 0.3275911
      %v452 = vmul.f32 %v436, 0.3275911
      %v453 = vmul.f32 %v437, 0.3275911
      %v454 = vmul.f32 %v438, 0.3275911
      %v455 = vmul.f32 %v439, 0.3275911
      %v456 = vmul.f32 %v440, 0.3275911
      %v457 = vadd.f32 %v441, 1.0
      %v458 = vadd.f32 %v442, 1.0
      %v459 = vadd.f32 %v443, 1.0
      %v460 = vadd.f32 %v444, 1.0
      %v461 = vadd.f32 %v445, 1.0
      %v462 = vadd.f32 %v446, 1.0
      %v463 = vadd.f32 %v447, 1.0
      %v464 = vadd.f32 %v448, 1.0
      %v465 = vadd.f32 %v449, 1.0
      %v466 = vadd.f32 %v450, 1.0
      %v467 = vadd.f32 %v451, 1.0
      %v468 = vadd.f32 %v452, 1.0
      %v469 = vadd.f32 %v453, 1.0
      %v470 = vadd.f32 %v454, 1.0
      %v471 = vadd.f32 %v455, 1.0
      %v472 = vadd.f32 %v456, 1.0
      %v473 = vrcp.pop %v457
      %v474 = vrcp.pop %v458
      %v475 = vrcp.pop %v459
      %v476 = vrcp.pop %v460
      %v477 = vrcp.pop %v461
      %v478 = vrcp.pop %v462
      %v479 = vrcp.pop %v463
      %v480 = vrcp.pop %v464
      %v481 = vrcp.pop %v465
      %v482 = vrcp.pop %v466
      %v483 = vrcp.pop %v467
      %v484 = vrcp.pop %v468
      %v485 = vrcp.pop %v469
      %v486 = vrcp.pop %v470
      %v487 = vrcp.pop %v471
      %v488 = vrcp.pop %v472
      %v489 = vmul.f32 %v473, 1.0614054
      %v490 = vmul.f32 %v474, 1.0614054
      %v491 = vmul.f32 %v475, 1.0614054
      %v492 = vmul.f32 %v476, 1.0614054
      %v493 = vmul.f32 %v477, 1.0614054
      %v494 = vmul.f32 %v478, 1.0614054
      %v495 = vmul.f32 %v479, 1.0614054
      %v496 = vmul.f32 %v480, 1.0614054
      %v497 = vmul.f32 %v481, 1.0614054
      %v498 = vmul.f32 %v482, 1.0614054
      %v499 = vmul.f32 %v483, 1.0614054
      %v500 = vmul.f32 %v484, 1.0614054
      %v501 = vmul.f32 %v485, 1.0614054
      %v502 = vmul.f32 %v486, 1.0614054
      %v503 = vmul.f32 %v487, 1.0614054
      %v504 = vmul.f32 %v488, 1.0614054
      %v505 = vadd.f32 %v489, -1.4531521
      %v506 = vadd.f32 %v490, -1.4531521
      %v507 = vadd.f32 %v491, -1.4531521
      %v508 = vadd.f32 %v492, -1.4531521
      %v509 = vadd.f32 %v493, -1.4531521
      %v510 = vadd.f32 %v494, -1.4531521
      %v511 = vadd.f32 %v495, -1.4531521
      %v512 = vadd.f32 %v496, -1.4531521
      %v513 = vadd.f32 %v497, -1.4531521
      %v514 = vadd.f32 %v498, -1.4531521
      %v515 = vadd.f32 %v499, -1.4531521
      %v516 = vadd.f32 %v500, -1.4531521
      %v517 = vadd.f32 %v501, -1.4531521
      %v518 = vadd.f32 %v502, -1.4531521
      %v519 = vadd.f32 %v503, -1.4531521
      %v520 = vadd.f32 %v504, -1.4531521
      %v521 = vmul.f32 %v473, %v505
      %v522 = vmul.f32 %v474, %v506
      %v523 = vmul.f32 %v475, %v507
      %v524 = vmul.f32 %v476, %v508
      %v525 = vmul.f32 %v477, %v509
      %v526 = vmul.f32 %v478, %v510
      %v527 = vmul.f32 %v479, %v511
      %v528 = vmul.f32 %v480, %v512
      %v529 = vmul.f32 %v481, %v513
      %v530 = vmul.f32 %v482, %v514
      %v531 = vmul.f32 %v483, %v515
      %v532 = vmul.f32 %v484, %v516
      %v533 = vmul.f32 %v485, %v517
      %v534 = vmul.f32 %v486, %v518
      %v535 = vmul.f32 %v487, %v519
      %v536 = vmul.f32 %v488, %v520
      %v537 = vadd.f32 %v521, 1.4214138
      %v538 = vadd.f32 %v522, 1.4214138
      %v539 = vadd.f32 %v523, 1.4214138
      %v540 = vadd.f32 %v524, 1.4214138
      %v541 = vadd.f32 %v525, 1.4214138
      %v542 = vadd.f32 %v526, 1.4214138
      %v543 = vadd.f32 %v527, 1.4214138
      %v544 = vadd.f32 %v528, 1.4214138
      %v545 = vadd.f32 %v529, 1.4214138
      %v546 = vadd.f32 %v530, 1.4214138
      %v547 = vadd.f32 %v531, 1.4214138
      %v548 = vadd.f32 %v532, 1.4214138
      %v549 = vadd.f32 %v533, 1.4214138
      %v550 = vadd.f32 %v534, 1.4214138
      %v551 = vadd.f32 %v535, 1.4214138
      %v552 = vadd.f32 %v536, 1.4214138
      %v553 = vmul.f32 %v473, %v537
      %v554 = vmul.f32 %v474, %v538
      %v555 = vmul.f32 %v475, %v539
      %v556 = vmul.f32 %v476, %v540
      %v557 = vmul.f32 %v477, %v541
      %v558 = vmul.f32 %v478, %v542
      %v559 = vmul.f32 %v479, %v543
      %v560 = vmul.f32 %v480, %v544
      %v561 = vmul.f32 %v481, %v545
      %v562 = vmul.f32 %v482, %v546
      %v563 = vmul.f32 %v483, %v547
      %v564 = vmul.f32 %v484, %v548
      %v565 = vmul.f32 %v485, %v549
      %v566 = vmul.f32 %v486, %v550
      %v567 = vmul.f32 %v487, %v551
      %v568 = vmul.f32 %v488, %v552
      %v569 = vadd.f32 %v553, -0.28449672
      %v570 = vadd.f32 %v554, -0.28449672
      %v571 = vadd.f32 %v555, -0.28449672
      %v572 = vadd.f32 %v556, -0.28449672
      %v573 = vadd.f32 %v557, -0.28449672
      %v574 = vadd.f32 %v558, -0.28449672
      %v575 = vadd.f32 %v559, -0.28449672
      %v576 = vadd.f32 %v560, -0.28449672
      %v577 = vadd.f32 %v561, -0.28449672
      %v578 = vadd.f32 %v562, -0.28449672
      %v579 = vadd.f32 %v563, -0.28449672
      %v580 = vadd.f32 %v564, -0.28449672
      %v581 = vadd.f32 %v565, -0.28449672
      %v582 = vadd.f32 %v566, -0.28449672
      %v583 = vadd.f32 %v567, -0.28449672
      %v584 = vadd.f32 %v568, -0.28449672
      %v585 = vmul.f32 %v473, %v569
      %v586 = vmul.f32 %v474, %v570
      %v587 = vmul.f32 %v475, %v571
      %v588 = vmul.f32 %v476, %v572
      %v589 = vmul.f32 %v477, %v573
      %v590 = vmul.f32 %v478, %v574
      %v591 = vmul.f32 %v479, %v575
      %v592 = vmul.f32 %v480, %v576
      %v593 = vmul.f32 %v481, %v577
      %v594 = vmul.f32 %v482, %v578
      %v595 = vmul.f32 %v483, %v579
      %v596 = vmul.f32 %v484, %v580
      %v597 = vmul.f32 %v485, %v581
      %v598 = vmul.f32 %v486, %v582
      %v599 = vmul.f32 %v487, %v583
      %v600 = vmul.f32 %v488, %v584
      %v601 = vadd.f32 %v585, 0.2548296
      %v602 = vadd.f32 %v586, 0.2548296
      %v603 = vadd.f32 %v587, 0.2548296
      %v604 = vadd.f32 %v588, 0.2548296
      %v605 = vadd.f32 %v589, 0.2548296
      %v606 = vadd.f32 %v590, 0.2548296
      %v607 = vadd.f32 %v591, 0.2548296
      %v608 = vadd.f32 %v592, 0.2548296
      %v609 = vadd.f32 %v593, 0.2548296
      %v610 = vadd.f32 %v594, 0.2548296
      %v611 = vadd.f32 %v595, 0.2548296
      %v612 = vadd.f32 %v596, 0.2548296
      %v613 = vadd.f32 %v597, 0.2548296
      %v614 = vadd.f32 %v598, 0.2548296
      %v615 = vadd.f32 %v599, 0.2548296
      %v616 = vadd.f32 %v600, 0.2548296
      %v617 = vmul.f32 %v473, %v601
      %v618 = vmul.f32 %v474, %v602
      %v619 = vmul.f32 %v475, %v603
      %v620 = vmul.f32 %v476, %v604
      %v621 = vmul.f32 %v477, %v605
      %v622 = vmul.f32 %v478, %v606
      %v623 = vmul.f32 %v479, %v607
      %v624 = vmul.f32 %v480, %v608
      %v625 = vmul.f32 %v481, %v609
      %v626 = vmul.f32 %v482, %v610
      %v627 = vmul.f32 %v483, %v611
      %v628 = vmul.f32 %v484, %v612
      %v629 = vmul.f32 %v485, %v613
      %v630 = vmul.f32 %v486, %v614
      %v631 = vmul.f32 %v487, %v615
      %v632 = vmul.f32 %v488, %v616
      %v633 = vsub.f32 0.0, %v425
      %v634 = vsub.f32 0.0, %v426
      %v635 = vsub.f32 0.0, %v427
      %v636 = vsub.f32 0.0, %v428
      %v637 = vsub.f32 0.0, %v429
      %v638 = vsub.f32 0.0, %v430
      %v639 = vsub.f32 0.0, %v431
      %v640 = vsub.f32 0.0, %v432
      %v641 = vsub.f32 0.0, %v433
      %v642 = vsub.f32 0.0, %v434
      %v643 = vsub.f32 0.0, %v435
      %v644 = vsub.f32 0.0, %v436
      %v645 = vsub.f32 0.0, %v437
      %v646 = vsub.f32 0.0, %v438
      %v647 = vsub.f32 0.0, %v439
      %v648 = vsub.f32 0.0, %v440
      %v649 = vmul.f32 %v633, %v425
      %v650 = vmul.f32 %v634, %v426
      %v651 = vmul.f32 %v635, %v427
      %v652 = vmul.f32 %v636, %v428
      %v653 = vmul.f32 %v637, %v429
      %v654 = vmul.f32 %v638, %v430
      %v655 = vmul.f32 %v639, %v431
      %v656 = vmul.f32 %v640, %v432
      %v657 = vmul.f32 %v641, %v433
      %v658 = vmul.f32 %v642, %v434
      %v659 = vmul.f32 %v643, %v435
      %v660 = vmul.f32 %v644, %v436
      %v661 = vmul.f32 %v645, %v437
      %v662 = vmul.f32 %v646, %v438
      %v663 = vmul.f32 %v647, %v439
      %v664 = vmul.f32 %v648, %v440
      %v665 = vmul.f32 %v649, 1.442695
      %v666 = vpow.pop %v665
      %v667 = vmul.f32 %v650, 1.442695
      %v668 = vpow.pop %v667
      %v669 = vmul.f32 %v651, 1.442695
      %v670 = vpow.pop %v669
      %v671 = vmul.f32 %v652, 1.442695
      %v672 = vpow.pop %v671
      %v673 = vmul.f32 %v653, 1.442695
      %v674 = vpow.pop %v673
      %v675 = vmul.f32 %v654, 1.442695
      %v676 = vpow.pop %v675
      %v677 = vmul.f32 %v655, 1.442695
      %v678 = vpow.pop %v677
      %v679 = vmul.f32 %v656, 1.442695
      %v680 = vpow.pop %v679
      %v681 = vmul.f32 %v657, 1.442695
      %v682 = vpow.pop %v681
      %v683 = vmul.f32 %v658, 1.442695
      %v684 = vpow.pop %v683
      %v685 = vmul.f32 %v659, 1.442695
      %v686 = vpow.pop %v685
      %v687 = vmul.f32 %v660, 1.442695
      %v688 = vpow.pop %v687
      %v689 = vmul.f32 %v661, 1.442695
      %v690 = vpow.pop %v689
      %v691 = vmul.f32 %v662, 1.442695
      %v692 = vpow.pop %v691
      %v693 = vmul.f32 %v663, 1.442695
      %v694 = vpow.pop %v693
      %v695 = vmul.f32 %v664, 1.442695
      %v696 = vpow.pop %v695
      %v697 = vmul.f32 %v617, %v666
      %v698 = vmul.f32 %v618, %v668
      %v699 = vmul.f32 %v619, %v670
      %v700 = vmul.f32 %v620, %v672
      %v701 = vmul.f32 %v621, %v674
      %v702 = vmul.f32 %v622, %v676
      %v703 = vmul.f32 %v623, %v678
      %v704 = vmul.f32 %v624, %v680
      %v705 = vmul.f32 %v625, %v682
      %v706 = vmul.f32 %v626, %v684
      %v707 = vmul.f32 %v627, %v686
      %v708 = vmul.f32 %v628, %v688
      %v709 = vmul.f32 %v629, %v690
      %v710 = vmul.f32 %v630, %v692
      %v711 = vmul.f32 %v631, %v694
      %v712 = vmul.f32 %v632, %v696
      %v713 = vsub.f32 1.0, %v697
      %v714 = vsub.f32 1.0, %v698
      %v715 = vsub.f32 1.0, %v699
      %v716 = vsub.f32 1.0, %v700
      %v717 = vsub.f32 1.0, %v701
      %v718 = vsub.f32 1.0, %v702
      %v719 = vsub.f32 1.0, %v703
      %v720 = vsub.f32 1.0, %v704
      %v721 = vsub.f32 1.0, %v705
      %v722 = vsub.f32 1.0, %v706
      %v723 = vsub.f32 1.0, %v707
      %v724 = vsub.f32 1.0, %v708
      %v725 = vsub.f32 1.0, %v709
      %v726 = vsub.f32 1.0, %v710
      %v727 = vsub.f32 1.0, %v711
      %v728 = vsub.f32 1.0, %v712
      %v729 = vmul.f32 %v409, %v713
      %v730 = vmul.f32 %v410, %v714
      %v731 = vmul.f32 %v411, %v715
      %v732 = vmul.f32 %v412, %v716
      %v733 = vmul.f32 %v413, %v717
      %v734 = vmul.f32 %v414, %v718
      %v735 = vmul.f32 %v415, %v719
      %v736 = vmul.f32 %v416, %v720
      %v737 = vmul.f32 %v417, %v721
      %v738 = vmul.f32 %v418, %v722
      %v739 = vmul.f32 %v419, %v723
      %v740 = vmul.f32 %v420, %v724
      %v741 = vmul.f32 %v421, %v725
      %v742 = vmul.f32 %v422, %v726
      %v743 = vmul.f32 %v423, %v727
      %v744 = vmul.f32 %v424, %v728
      %v745 = vadd.f32 %v729, 1.0
      %v746 = vadd.f32 %v730, 1.0
      %v747 = vadd.f32 %v731, 1.0
      %v748 = vadd.f32 %v732, 1.0
      %v749 = vadd.f32 %v733, 1.0
      %v750 = vadd.f32 %v734, 1.0
      %v751 = vadd.f32 %v735, 1.0
      %v752 = vadd.f32 %v736, 1.0
      %v753 = vadd.f32 %v737, 1.0
      %v754 = vadd.f32 %v738, 1.0
      %v755 = vadd.f32 %v739, 1.0
      %v756 = vadd.f32 %v740, 1.0
      %v757 = vadd.f32 %v741, 1.0
      %v758 = vadd.f32 %v742, 1.0
      %v759 = vadd.f32 %v743, 1.0
      %v760 = vadd.f32 %v744, 1.0
      %v761 = vmul.f32 %v361, %v745
      %v762 = vmul.f32 %v362, %v746
      %v763 = vmul.f32 %v363, %v747
      %v764 = vmul.f32 %v364, %v748
      %v765 = vmul.f32 %v365, %v749
      %v766 = vmul.f32 %v366, %v750
      %v767 = vmul.f32 %v367, %v751
      %v768 = vmul.f32 %v368, %v752
      %v769 = vmul.f32 %v369, %v753
      %v770 = vmul.f32 %v370, %v754
      %v771 = vmul.f32 %v371, %v755
      %v772 = vmul.f32 %v372, %v756
      %v773 = vmul.f32 %v373, %v757
      %v774 = vmul.f32 %v374, %v758
      %v775 = vmul.f32 %v375, %v759
      %v776 = vmul.f32 %v376, %v760
      %v793 = vcombine.low %v761, %v762
      %v794 = vcombine.low %v763, %v764
      %v795 = vcombine.low %v765, %v766
      %v796 = vcombine.low %v767, %v768
      %v798 = vunpack.c.l.s4 1966171168
      %v799 = vunpack.c.0.s8 %v798
      %v800 = vlaneseq
      %v801 = vshrl.u32 %v800, 7
      %v802 = vsub.s32 %v799, %v801
      %v803 = vrot.slane %v793, %v802
      %v805 = vunpack.c.l.s4 1966171168
      %v806 = vunpack.c.0.s8 %v805
      %v807 = vlaneseq
      %v808 = vshrl.u32 %v807, 7
      %v809 = vsub.s32 %v806, %v808
      %v810 = vrot.slane %v794, %v809
      %v812 = vunpack.c.l.s4 1966171168
      %v813 = vunpack.c.0.s8 %v812
      %v814 = vlaneseq
      %v815 = vshrl.u32 %v814, 7
      %v816 = vsub.s32 %v813, %v815
      %v817 = vrot.slane %v795, %v816
      %v819 = vunpack.c.l.s4 1966171168
      %v820 = vunpack.c.0.s8 %v819
      %v821 = vlaneseq
      %v822 = vshrl.u32 %v821, 7
      %v823 = vsub.s32 %v820, %v822
      %v824 = vrot.slane %v796, %v823
      %v825 = vcombine.low %v803, %v810
      %v826 = vcombine.low %v817, %v824
      %v828 = vunpack.c.l.s4 1966171168
      %v829 = vunpack.c.0.s8 %v828
      %v830 = vlaneseq
      %v831 = vshrl.u32 %v830, 7
      %v832 = vsub.s32 %v829, %v831
      %v833 = vrot.slane %v825, %v832
      %v835 = vunpack.c.l.s4 1966171168
      %v836 = vunpack.c.0.s8 %v835
      %v837 = vlaneseq
      %v838 = vshrl.u32 %v837, 7
      %v839 = vsub.s32 %v836, %v838
      %v840 = vrot.slane %v826, %v839
      %v841 = vcombine.low %v833, %v840
      %v842 = vcombine.low %v769, %v770
      %v843 = vcombine.low %v771, %v772
      %v844 = vcombine.low %v773, %v774
      %v845 = vcombine.low %v775, %v776
      %v847 = vunpack.c.l.s4 1966171168
      %v848 = vunpack.c.0.s8 %v847
      %v849 = vlaneseq
      %v850 = vshrl.u32 %v849, 7
      %v851 = vsub.s32 %v848, %v850
      %v852 = vrot.slane %v842, %v851
      %v854 = vunpack.c.l.s4 1966171168
      %v855 = vunpack.c.0.s8 %v854
      %v856 = vlaneseq
      %v857 = vshrl.u32 %v856, 7
      %v858 = vsub.s32 %v855, %v857
      %v859 = vrot.slane %v843, %v858
      %v861 = vunpack.c.l.s4 1966171168
      %v862 = vunpack.c.0.s8 %v861
      %v863 = vlaneseq
      %v864 = vshrl.u32 %v863, 7
      %v865 = vsub.s32 %v862, %v864
      %v866 = vrot.slane %v844, %v865
      %v868 = vunpack.c.l.s4 1966171168
      %v869 = vunpack.c.0.s8 %v868
      %v870 = vlaneseq
      %v871 = vshrl.u32 %v870, 7
      %v872 = vsub.s32 %v869, %v871
      %v873 = vrot.slane %v845, %v872
      %v874 = vcombine.low %v852, %v859
      %v875 = vcombine.low %v866, %v873
      %v877 = vunpack.c.l.s4 1966171168
      %v878 = vunpack.c.0.s8 %v877
      %v879 = vlaneseq
      %v880 = vshrl.u32 %v879, 7
      %v881 = vsub.s32 %v878, %v880
      %v882 = vrot.slane %v874, %v881
      %v884 = vunpack.c.l.s4 1966171168
      %v885 = vunpack.c.0.s8 %v884
      %v886 = vlaneseq
      %v887 = vshrl.u32 %v886, 7
      %v888 = vsub.s32 %v885, %v887
      %v889 = vrot.slane %v875, %v888
      %v890 = vcombine.low %v882, %v889
      %893 = vst [vmem:[%s207] sm:$0xff] %v841
      %894 = vst [vmem:[%s207 + $0x8] sm:$0xff] %v890
      %s895 = smul.u32 16, %s20
      %p896 = scmp.lt.s32.totalorder %s19, 1
      %s897 = scalar_select %p896, %s19, 1
      %p898 = scmp.lt.s32.totalorder %s895, 31
      %s899 = scalar_select %p898, %s895, 31
      %s900 = smul.addr %s897, 32
      %s901 = sadd.s32 %s899, %s900
      %s902 = scalar_lea.vmem %s3, %s901
      // Predicated region
      $region33: #{dcla_forward.7} parent=31 // pred_check
        %p903 = pneg %p117
      $region34: #{dcla_forward.7} parent=31 // pred_check_branch
        %905 = sbr.rel (%p903) target = $region36
      $region35: #{dcla_forward.7} parent=31 // pred_region
        %s906 = smul.u32 16, %s20
      $region36: #{dcla_forward.7} parent=31 // pred_fallthru
        _
    $region32: #{dcla_forward.7} parent=5 // pred_fallthru
      _
    %p907 = scmp.le.s32.totalorder 2, %s10
    // Predicated region
    $region37: #{dcla_forward.7} parent=5 // pred_check
      %p908 = pneg %p907
    $region38: #{dcla_forward.7} parent=5 // pred_check_branch
      %910 = sbr.rel (%p908) target = $region40
    $region39: #{dcla_forward.7} parent=5 // pred_region
      %s911 = ssub.s32 %s10, 2
      // Predicated region
      $region41: #{dcla_forward.7} parent=39 // pred_check
        %p912 = pneg %p123
      $region42: #{dcla_forward.7} parent=39 // pred_check_branch
        %914 = sbr.rel (%p912) target = $region44
      $region43: #{dcla_forward.7} parent=39 // pred_region
        %s915 = smul.u32 16, %s22
        %p916 = scmp.lt.s32.totalorder %s21, 1
        %s917 = scalar_select %p916, %s21, 1
        %p918 = scmp.lt.s32.totalorder %s915, 31
        %s919 = scalar_select %p918, %s915, 31
        %s920 = smul.addr %s917, 32
        %s921 = sadd.s32 %s919, %s920
        %s922 = scalar_lea.vmem %s3, %s921
      $region44: #{dcla_forward.7} parent=39 // pred_fallthru
        _
    $region40: #{dcla_forward.7} parent=5 // pred_fallthru
      _
  $region6: #{dcla_forward.7} parent=0 // loop_footer
    %s14 = sadd.s32 1, %s10
  $region7: #{dcla_forward.7} parent=0 // loop_footer_branch
    %9 = sbr.rel target = $region3
  $region8: #{dcla_forward.7} parent=0 // loop_exit
    _

// kernel: dcla_forward.6
$region0: #{dcla_forward.6}
  #allocation0 [shape = 'u32[]', space=smem, size = 0x4, offset = 0x4, fixed_abs, tag = 'smem constant byte address 0x4 - core index']
  #allocation1 [shape = 'u32[144,128]{1,0:T(1,128)}', space=vmem, size = 0x12000, scoped, tag = 'internal scratch']
  %s0 = inlined_call_operand.vmem [shape: f32[2,2,11,256], index: 0, kind: input, shape index: {}]
  %s1 = inlined_call_operand.vmem [shape: f32[3,256,64], index: 1, kind: input, shape index: {}]
  %s2 = inlined_call_operand.vmem [shape: f32[5,256,64], index: 2, kind: input, shape index: {}]
  %s3 = inlined_call_operand.vmem [shape: f32[7,256,64], index: 3, kind: input, shape index: {}]
  %s4 = inlined_call_operand.vmem [shape: f32[9], index: 4, kind: input, shape index: {}]
  %s5 = inlined_call_operand.vmem [shape: f32[2,8,64], index: 5, kind: output, shape index: {}]
  %s6 = sld [smem:[#allocation0]]
  $region57: #{dcla_forward.6} parent=0
    _
  %s8 = ssub.s32 1, %s6
  %s9 = scalar_select 0, %s8, %s6
  $region1: #{dcla_forward.6} parent=0
    #allocation2 [shape = 'u8[512]{0}', space=smem, size = 0x200, scoped, tag = 'input window, operand 4, single buffered']
    #allocation3 [shape = 's32[2]{0}', space=sflag, size = 0x8, scoped, tag = 'scoped memory for dcla_forward.6']
    %10 = vsyncpa [#allocation3], 0
    loop: start=0, step=1, limit=4
    $region2: #{dcla_forward.6} parent=1 // loop_pre_header
      _
    $region3: #{dcla_forward.6} parent=1 // loop_header
      %s12 = sphi 0, %s16
      %p13 = scmp.ge.s32.totalorder %s12, 4
      %s22 = sphi 0, %s24
      %s25 = sphi 0, %s22
      %s26 = sphi 0, %s25
      %s42 = sphi 0, %s26
      %s46 = sphi 0, %s46
      %s48 = sphi 0, %s46
      %s49 = sphi 0, %s48
      %s63 = sphi 0, %s49
      %s67 = sphi 0, %s67
      %s69 = sphi 0, %s67
      %s70 = sphi 0, %s69
      %s84 = sphi 0, %s70
      %s88 = sphi 0, %s88
      %s90 = sphi 0, %s88
      %s91 = sphi 0, %s90
      %s105 = sphi 0, %s91
      %s109 = sphi 0, %s109
      %s111 = sphi 0, %s109
      %s112 = sphi 0, %s111
      %s126 = sphi 0, %s112
      %s132 = sphi 0, %s134
      %s135 = sphi 0, %s132
      %s136 = sphi 0, %s135
      %s152 = sphi 0, %s136
    $region4: #{dcla_forward.6} parent=1 // loop_header_branch
      %15 = sbr.rel (%p13) target = $region8
    $region5: #{dcla_forward.6} parent=1 // loop_body
      %s17 = ssub.s32 %s12, 1
      %s18 = ssub.s32 %s12, 2
      %s19 = sadd.s32 %s12, 1
      %s20 = ssub.s32 %s12, %s19
      %p21 = scmp.eq.s32.totalorder %s20, 0
      %s23 = sadd.s32 %s22, 1
      %s24 = scalar_select %p21, %s22, %s23
      %p27 = pneg %p21
      %p28 = scmp.eq.s32.totalorder %s12, 1
      %p29 = por %p27, %p28
      %p30 = scmp.ne.s32.totalorder %s22, %s25
      %p31 = scmp.eq.s32.totalorder %s12, 0
      %p32 = por %p30, %p31
      %p33 = scmp.ne.s32.totalorder %s22, %s25
      %p34 = scmp.eq.s32.totalorder %s17, 1
      %p35 = por %p33, %p34
      %p36 = scmp.ne.s32.totalorder %s25, %s26
      %p37 = scmp.eq.s32.totalorder %s17, 0
      %p38 = por %p36, %p37
      %p39 = scmp.ne.s32.totalorder %s25, %s26
      %p40 = scmp.eq.s32.totalorder %s18, 1
      %p41 = por %p39, %p40
      %p43 = scmp.ne.s32.totalorder %s26, %s42
      %p44 = scmp.eq.s32.totalorder %s18, 0
      %p45 = por %p43, %p44
      %s47 = sadd.s32 %s46, 1
      %p50 = scmp.eq.s32.totalorder %s12, 1
      %p51 = scmp.ne.s32.totalorder %s46, %s48
      %p52 = scmp.eq.s32.totalorder %s12, 0
      %p53 = por %p51, %p52
      %p54 = scmp.ne.s32.totalorder %s46, %s48
      %p55 = scmp.eq.s32.totalorder %s17, 1
      %p56 = por %p54, %p55
      %p57 = scmp.ne.s32.totalorder %s48, %s49
      %p58 = scmp.eq.s32.totalorder %s17, 0
      %p59 = por %p57, %p58
      %p60 = scmp.ne.s32.totalorder %s48, %s49
      %p61 = scmp.eq.s32.totalorder %s18, 1
      %p62 = por %p60, %p61
      %p64 = scmp.ne.s32.totalorder %s49, %s63
      %p65 = scmp.eq.s32.totalorder %s18, 0
      %p66 = por %p64, %p65
      %s68 = sadd.s32 %s67, 1
      %p71 = scmp.eq.s32.totalorder %s12, 1
      %p72 = scmp.ne.s32.totalorder %s67, %s69
      %p73 = scmp.eq.s32.totalorder %s12, 0
      %p74 = por %p72, %p73
      %p75 = scmp.ne.s32.totalorder %s67, %s69
      %p76 = scmp.eq.s32.totalorder %s17, 1
      %p77 = por %p75, %p76
      %p78 = scmp.ne.s32.totalorder %s69, %s70
      %p79 = scmp.eq.s32.totalorder %s17, 0
      %p80 = por %p78, %p79
      %p81 = scmp.ne.s32.totalorder %s69, %s70
      %p82 = scmp.eq.s32.totalorder %s18, 1
      %p83 = por %p81, %p82
      %p85 = scmp.ne.s32.totalorder %s70, %s84
      %p86 = scmp.eq.s32.totalorder %s18, 0
      %p87 = por %p85, %p86
      %s89 = sadd.s32 %s88, 1
      %p92 = scmp.eq.s32.totalorder %s12, 1
      %p93 = scmp.ne.s32.totalorder %s88, %s90
      %p94 = scmp.eq.s32.totalorder %s12, 0
      %p95 = por %p93, %p94
      %p96 = scmp.ne.s32.totalorder %s88, %s90
      %p97 = scmp.eq.s32.totalorder %s17, 1
      %p98 = por %p96, %p97
      %p99 = scmp.ne.s32.totalorder %s90, %s91
      %p100 = scmp.eq.s32.totalorder %s17, 0
      %p101 = por %p99, %p100
      %p102 = scmp.ne.s32.totalorder %s90, %s91
      %p103 = scmp.eq.s32.totalorder %s18, 1
      %p104 = por %p102, %p103
      %p106 = scmp.ne.s32.totalorder %s91, %s105
      %p107 = scmp.eq.s32.totalorder %s18, 0
      %p108 = por %p106, %p107
      %s110 = sadd.s32 %s109, 1
      %p113 = scmp.eq.s32.totalorder %s12, 1
      %p114 = scmp.ne.s32.totalorder %s109, %s111
      %p115 = scmp.eq.s32.totalorder %s12, 0
      %p116 = por %p114, %p115
      %p117 = scmp.ne.s32.totalorder %s109, %s111
      %p118 = scmp.eq.s32.totalorder %s17, 1
      %p119 = por %p117, %p118
      %p120 = scmp.ne.s32.totalorder %s111, %s112
      %p121 = scmp.eq.s32.totalorder %s17, 0
      %p122 = por %p120, %p121
      %p123 = scmp.ne.s32.totalorder %s111, %s112
      %p124 = scmp.eq.s32.totalorder %s18, 1
      %p125 = por %p123, %p124
      %p127 = scmp.ne.s32.totalorder %s112, %s126
      %p128 = scmp.eq.s32.totalorder %s18, 0
      %p129 = por %p127, %p128
      %s130 = ssub.s32 %s12, %s19
      %p131 = scmp.eq.s32.totalorder %s130, 0
      %s133 = sadd.s32 %s132, 1
      %s134 = scalar_select %p131, %s132, %s133
      %p137 = pneg %p131
      %p138 = scmp.eq.s32.totalorder %s12, 1
      %p139 = por %p137, %p138
      %p140 = scmp.ne.s32.totalorder %s132, %s135
      %p141 = scmp.eq.s32.totalorder %s12, 0
      %p142 = por %p140, %p141
      %p143 = scmp.ne.s32.totalorder %s132, %s135
      %p144 = scmp.eq.s32.totalorder %s17, 1
      %p145 = por %p143, %p144
      %p146 = scmp.ne.s32.totalorder %s135, %s136
      %p147 = scmp.eq.s32.totalorder %s17, 0
      %p148 = por %p146, %p147
      %p149 = scmp.ne.s32.totalorder %s135, %s136
      %p150 = scmp.eq.s32.totalorder %s18, 1
      %p151 = por %p149, %p150
      %p153 = scmp.ne.s32.totalorder %s136, %s152
      %p154 = scmp.eq.s32.totalorder %s18, 0
      %p155 = por %p153, %p154
      %p156 = scmp.le.s32.totalorder 1, %s12
      %p157 = scmp.lt.s32.totalorder %s12, 3
      %p158 = pnand %p156, %p157
      %p159 = pneg %p158
      // Predicated region
      $region9: #{dcla_forward.6} parent=5 // pred_check
        _
      $region10: #{dcla_forward.6} parent=5 // pred_check_branch
        %161 = sbr.rel (%p158) target = $region12
      $region11: #{dcla_forward.6} parent=5 // pred_region
        %s162 = ssub.s32 %s12, 1
        // Predicated region
        $region13: #{dcla_forward.6} parent=11 // pred_check
          %p163 = pneg %p59
        $region14: #{dcla_forward.6} parent=11 // pred_check_branch
          %165 = sbr.rel (%p163) target = $region16
        $region15: #{dcla_forward.6} parent=11 // pred_region
          _
        $region16: #{dcla_forward.6} parent=11 // pred_fallthru
          _
        // Predicated region
        $region17: #{dcla_forward.6} parent=11 // pred_check
          %p166 = pneg %p80
        $region18: #{dcla_forward.6} parent=11 // pred_check_branch
          %168 = sbr.rel (%p166) target = $region20
        $region19: #{dcla_forward.6} parent=11 // pred_region
          _
        $region20: #{dcla_forward.6} parent=11 // pred_fallthru
          _
        // Predicated region
        $region21: #{dcla_forward.6} parent=11 // pred_check
          %p169 = pneg %p101
        $region22: #{dcla_forward.6} parent=11 // pred_check_branch
          %171 = sbr.rel (%p169) target = $region24
        $region23: #{dcla_forward.6} parent=11 // pred_region
          _
        $region24: #{dcla_forward.6} parent=11 // pred_fallthru
          _
        // Predicated region
        $region25: #{dcla_forward.6} parent=11 // pred_check
          %p172 = pneg %p122
        $region26: #{dcla_forward.6} parent=11 // pred_check_branch
          %174 = sbr.rel (%p172) target = $region28
        $region27: #{dcla_forward.6} parent=11 // pred_region
          %s176 = ssub.s32 16, 16
          %177 = vsyncadd [#allocation3], %s176
          %s179 = sshll.u32 %s4, 4
          %s180 = int_to_ptr.vmem [resolvable:$true] %s179
          %182 = dma.vmem_to_smem %s180, 16, [#allocation2], [#allocation3]
        $region28: #{dcla_forward.6} parent=11 // pred_fallthru
          _
      $region12: #{dcla_forward.6} parent=5 // pred_fallthru
        _
      %p183 = scmp.lt.s32.totalorder %s12, 2
      // Predicated region
      $region29: #{dcla_forward.6} parent=5 // pred_check
        %p184 = pneg %p183
      $region30: #{dcla_forward.6} parent=5 // pred_check_branch
        %186 = sbr.rel (%p184) target = $region32
      $region31: #{dcla_forward.6} parent=5 // pred_region
        // Predicated region
        $region33: #{dcla_forward.6} parent=31 // pred_check
          %p187 = pneg %p32
        $region34: #{dcla_forward.6} parent=31 // pred_check_branch
          %189 = sbr.rel (%p187) target = $region36
        $region35: #{dcla_forward.6} parent=31 // pred_region
          %p190 = scmp.lt.s32.totalorder %s12, 1
          %s191 = scalar_select %p190, %s12, 1
          %s192 = smul.addr %s191, 8
          %s193 = smul.addr %s192, 8
          %s194 = scalar_lea.vmem %s0, %s193
        $region36: #{dcla_forward.6} parent=31 // pred_fallthru
          _
      $region32: #{dcla_forward.6} parent=5 // pred_fallthru
        _
      %p195 = scmp.le.s32.totalorder 1, %s12
      %p196 = scmp.lt.s32.totalorder %s12, 3
      %p197 = pnand %p195, %p196
      %p198 = pneg %p197
      // Predicated region
      $region37: #{dcla_forward.6} parent=5 // pred_check
        _
      $region38: #{dcla_forward.6} parent=5 // pred_check_branch
        %200 = sbr.rel (%p197) target = $region40
      $region39: #{dcla_forward.6} parent=5 // pred_region
        %s201 = ssub.s32 %s12, 1
        // Predicated region
        $region41: #{dcla_forward.6} parent=39 // pred_check
          %p202 = pneg %p122
        $region42: #{dcla_forward.6} parent=39 // pred_check_branch
          %204 = sbr.rel (%p202) target = $region44
        $region43: #{dcla_forward.6} parent=39 // pred_region
          %205 = dma.done [#allocation3], 16
        $region44: #{dcla_forward.6} parent=39 // pred_fallthru
          _
        %206 = sfence
        %p207 = scmp.lt.s32.totalorder %s17, 1
        %s208 = scalar_select %p207, %s17, 1
        %s209 = smul.addr %s208, 8
        %s210 = smul.addr %s209, 8
        %s211 = scalar_lea.vmem %s0, %s210
        %p212 = pneg %p38
        %p213 = pneg %p35
        %p214 = pneg %p59
        %p215 = pneg %p56
        %p216 = pneg %p80
        %p217 = pneg %p77
        %p218 = pneg %p101
        %p219 = pneg %p98
        %p220 = pneg %p122
        %p221 = pneg %p119
        %p222 = pneg %p148
        %p223 = pneg %p145
        %p224 = scmp.lt.s32.totalorder %s17, 1
        %s225 = scalar_select %p224, %s17, 1
        %s226 = smul.addr %s225, 8
        %s227 = scalar_lea.vmem %s5, %s226
        %p228 = scmp.lt.s32.totalorder %s17, 1
        %s229 = scalar_select %p228, %s17, 1
        %s230 = smul.addr %s229, 8
        %s231 = smul.addr %s230, 8
        %s232 = scalar_lea.vmem %s0, %s231
        %p233 = scmp.lt.s32.totalorder %s17, 1
        %s234 = scalar_select %p233, %s17, 1
        %s235 = smul.addr %s234, 8
        %s236 = scalar_lea.vmem %s5, %s235
        %v237 = vld [vmem:[%s232] sm:$0xfe]
        %v238 = vld [vmem:[%s232 + $0x8] sm:$0xfe]
        %v239 = vld [vmem:[%s232 + $0x10] sm:$0x1]
        %v240 = vld [vmem:[%s232 + $0x18] sm:$0x1]
        %v241 = vld [vmem:[%s1] sm:$0xff]
        %v242 = vld [vmem:[%s1 + $0x8] sm:$0xff]
        %v243 = vld [vmem:[%s1 + $0x10] sm:$0xff]
        %v244 = vld [vmem:[%s1 + $0x18] sm:$0xff]
        %v245 = vld [vmem:[%s1 + $0x20] sm:$0xff]
        %v246 = vld [vmem:[%s1 + $0x28] sm:$0xff]
        %v247 = vld [vmem:[%s1 + $0x30] sm:$0xff]
        %v248 = vld [vmem:[%s1 + $0x38] sm:$0xff]
        %v249 = vld [vmem:[%s1 + $0x40] sm:$0xff]
        %v250 = vld [vmem:[%s1 + $0x48] sm:$0xff]
        %v251 = vld [vmem:[%s1 + $0x50] sm:$0xff]
        %v252 = vld [vmem:[%s1 + $0x58] sm:$0xff]
        %v253 = vld [vmem:[%s1 + $0x60] sm:$0xff]
        %v254 = vld [vmem:[%s1 + $0x68] sm:$0xff]
        %v255 = vld [vmem:[%s1 + $0x70] sm:$0xff]
        %v256 = vld [vmem:[%s1 + $0x78] sm:$0xff]
        %v257 = vld [vmem:[%s1 + $0x80] sm:$0xff]
        %v258 = vld [vmem:[%s1 + $0x88] sm:$0xff]
        %v259 = vld [vmem:[%s1 + $0x90] sm:$0xff]
        %v260 = vld [vmem:[%s1 + $0x98] sm:$0xff]
        %v261 = vld [vmem:[%s1 + $0xa0] sm:$0xff]
        %v262 = vld [vmem:[%s1 + $0xa8] sm:$0xff]
        %v263 = vld [vmem:[%s1 + $0xb0] sm:$0xff]
        %v264 = vld [vmem:[%s1 + $0xb8] sm:$0xff]
        %v265 = vld [vmem:[%s1 + $0xc0] sm:$0xff]
        %v266 = vld [vmem:[%s1 + $0xc8] sm:$0xff]
        %v267 = vld [vmem:[%s1 + $0xd0] sm:$0xff]
        %v268 = vld [vmem:[%s1 + $0xd8] sm:$0xff]
        %v269 = vld [vmem:[%s1 + $0xe0] sm:$0xff]
        %v270 = vld [vmem:[%s1 + $0xe8] sm:$0xff]
        %v271 = vld [vmem:[%s1 + $0xf0] sm:$0xff]
        %v272 = vld [vmem:[%s1 + $0xf8] sm:$0xff]
        %s273 = scalar_lea.vmem %s232, 32
        %v274 = vld [vmem:[%s273] sm:$0xfe]
        %v275 = vld [vmem:[%s273 + $0x8] sm:$0xfe]
        %v276 = vld [vmem:[%s273 + $0x10] sm:$0x1]
        %v277 = vld [vmem:[%s273 + $0x18] sm:$0x1]
        %s278 = scalar_lea.vmem %s1, 256
        %v279 = vld [vmem:[%s278] sm:$0xff]
        %v280 = vld [vmem:[%s278 + $0x8] sm:$0xff]
        %v281 = vld [vmem:[%s278 + $0x10] sm:$0xff]
        %v282 = vld [vmem:[%s278 + $0x18] sm:$0xff]
        %v283 = vld [vmem:[%s278 + $0x20] sm:$0xff]
        %v284 = vld [vmem:[%s278 + $0x28] sm:$0xff]
        %v285 = vld [vmem:[%s278 + $0x30] sm:$0xff]
        %v286 = vld [vmem:[%s278 + $0x38] sm:$0xff]
        %v287 = vld [vmem:[%s278 + $0x40] sm:$0xff]
        %v288 = vld [vmem:[%s278 + $0x48] sm:$0xff]
        %v289 = vld [vmem:[%s278 + $0x50] sm:$0xff]
        %v290 = vld [vmem:[%s278 + $0x58] sm:$0xff]
        %v291 = vld [vmem:[%s278 + $0x60] sm:$0xff]
        %v292 = vld [vmem:[%s278 + $0x68] sm:$0xff]
        %v293 = vld [vmem:[%s278 + $0x70] sm:$0xff]
        %v294 = vld [vmem:[%s278 + $0x78] sm:$0xff]
        %v295 = vld [vmem:[%s278 + $0x80] sm:$0xff]
        %v296 = vld [vmem:[%s278 + $0x88] sm:$0xff]
        %v297 = vld [vmem:[%s278 + $0x90] sm:$0xff]
        %v298 = vld [vmem:[%s278 + $0x98] sm:$0xff]
        %v299 = vld [vmem:[%s278 + $0xa0] sm:$0xff]
        %v300 = vld [vmem:[%s278 + $0xa8] sm:$0xff]
        %v301 = vld [vmem:[%s278 + $0xb0] sm:$0xff]
        %v302 = vld [vmem:[%s278 + $0xb8] sm:$0xff]
        %v303 = vld [vmem:[%s278 + $0xc0] sm:$0xff]
        %v304 = vld [vmem:[%s278 + $0xc8] sm:$0xff]
        %v305 = vld [vmem:[%s278 + $0xd0] sm:$0xff]
        %v306 = vld [vmem:[%s278 + $0xd8] sm:$0xff]
        %v307 = vld [vmem:[%s278 + $0xe0] sm:$0xff]
        %v308 = vld [vmem:[%s278 + $0xe8] sm:$0xff]
        %v309 = vld [vmem:[%s278 + $0xf0] sm:$0xff]
        %v310 = vld [vmem:[%s278 + $0xf8] sm:$0xff]
        %vm315 = vcmask 1046528
        %v316 = vrot.slane %v274, 1
        %v317 = vrot.slane %v276, 1
        %v318 = vsel %vm315, %v316, %v317
        %v319 = vrot.slane %v275, 1
        %v320 = vrot.slane %v277, 1
        %v321 = vsel %vm315, %v319, %v320
        %324 = vmatprep.subr.mxu0 0.0
        %325 = vmatpush1.msra.mxu0 %v279
        %326 = vmatprep.subr.mxu0 0.0
        %327 = vmatpush1.msra.mxu0 %v280
        %328 = vmatprep.subr.mxu0 0.0
        %329 = vmatpush1.msra.mxu0 %v281
        %330 = vmatprep.subr.mxu0 0.0
        %331 = vmatpush1.msra.mxu0 %v282
        %332 = vmatprep.subr.mxu0 0.0
        %333 = vmatpush1.msra.mxu0 %v283
        %334 = vmatprep.subr.mxu0 0.0
        %335 = vmatpush1.msra.mxu0 %v284
        %336 = vmatprep.subr.mxu0 0.0
        %337 = vmatpush1.msra.mxu0 %v285
        %338 = vmatprep.subr.mxu0 0.0
        %339 = vmatpush1.msra.mxu0 %v286
        %340 = vmatprep.subr.mxu0 0.0
        %341 = vmatpush1.msra.mxu0 %v287
        %342 = vmatprep.subr.mxu0 0.0
        %343 = vmatpush1.msra.mxu0 %v288
        %344 = vmatprep.subr.mxu0 0.0
        %345 = vmatpush1.msra.mxu0 %v289
        %346 = vmatprep.subr.mxu0 0.0
        %347 = vmatpush1.msra.mxu0 %v290
        %348 = vmatprep.subr.mxu0 0.0
        %349 = vmatpush1.msra.mxu0 %v291
        %350 = vmatprep.subr.mxu0 0.0
        %351 = vmatpush1.msra.mxu0 %v292
        %352 = vmatprep.subr.mxu0 0.0
        %353 = vmatpush1.msra.mxu0 %v293
        %354 = vmatprep.subr.mxu0 0.0
        %355 = vmatpush1.msra.mxu0 %v294
        %356 = vmatprep.subr.mxu0 0.0
        %357 = vmatpush1.msra.mxu0 %v295
        %358 = vmatprep.subr.mxu0 0.0
        %359 = vmatpush1.msra.mxu0 %v296
        %360 = vmatprep.subr.mxu0 0.0
        %361 = vmatpush1.msra.mxu0 %v297
        %362 = vmatprep.subr.mxu0 0.0
        %363 = vmatpush1.msra.mxu0 %v298
        %364 = vmatprep.subr.mxu0 0.0
        %365 = vmatpush1.msra.mxu0 %v299
        %366 = vmatprep.subr.mxu0 0.0
        %367 = vmatpush1.msra.mxu0 %v300
        %368 = vmatprep.subr.mxu0 0.0
        %369 = vmatpush1.msra.mxu0 %v301
        %370 = vmatprep.subr.mxu0 0.0
        %371 = vmatpush1.msra.mxu0 %v302
        %372 = vmatprep.subr.mxu0 0.0
        %373 = vmatpush1.msra.mxu0 %v303
        %374 = vmatprep.subr.mxu0 0.0
        %375 = vmatpush1.msra.mxu0 %v304
        %376 = vmatprep.subr.mxu0 0.0
        %377 = vmatpush1.msra.mxu0 %v305
        %378 = vmatprep.subr.mxu0 0.0
        %379 = vmatpush1.msra.mxu0 %v306
        %380 = vmatprep.subr.mxu0 0.0
        %381 = vmatpush1.msra.mxu0 %v307
        %382 = vmatprep.subr.mxu0 0.0
        %383 = vmatpush1.msra.mxu0 %v308
        %384 = vmatprep.subr.mxu0 0.0
        %385 = vmatpush1.msra.mxu0 %v309
        %386 = vmatprep.subr.mxu0 0.0
        %387 = vmatpush1.msra.mxu0 %v310
        %388 = vmatprep.mubr.f32.mxu0 %v321
        %389 = vmatmul.mubr.f32.gmra.mrb[0].mxu0 %v318
        %v390 = vpop.f32.mrb[0].mxu0
        %v391 = vadd.f32 0.0, %v390
        %v392 = vpop.f32.mrb[0].mxu0
        %393 = vdwg.mxu0
        %v398 = vrot.slane %v237, 1
        %v399 = vrot.slane %v239, 1
        %v400 = vsel %vm315, %v398, %v399
        %v401 = vrot.slane %v238, 1
        %v402 = vrot.slane %v240, 1
        %v403 = vsel %vm315, %v401, %v402
        %406 = vmatprep.subr.mxu0 0.0
        %407 = vmatpush1.msra.mxu0 %v241
        %408 = vmatprep.subr.mxu0 0.0
        %409 = vmatpush1.msra.mxu0 %v242
        %410 = vmatprep.subr.mxu0 0.0
        %411 = vmatpush1.msra.mxu0 %v243
        %412 = vmatprep.subr.mxu0 0.0
        %413 = vmatpush1.msra.mxu0 %v244
        %414 = vmatprep.subr.mxu0 0.0
        %415 = vmatpush1.msra.mxu0 %v245
        %416 = vmatprep.subr.mxu0 0.0
        %417 = vmatpush1.msra.mxu0 %v246
        %418 = vmatprep.subr.mxu0 0.0
        %419 = vmatpush1.msra.mxu0 %v247
        %420 = vmatprep.subr.mxu0 0.0
        %421 = vmatpush1.msra.mxu0 %v248
        %422 = vmatprep.subr.mxu0 0.0
        %423 = vmatpush1.msra.mxu0 %v249
        %424 = vmatprep.subr.mxu0 0.0
        %425 = vmatpush1.msra.mxu0 %v250
        %426 = vmatprep.subr.mxu0 0.0
        %427 = vmatpush1.msra.mxu0 %v251
        %428 = vmatprep.subr.mxu0 0.0
        %429 = vmatpush1.msra.mxu0 %v252
        %430 = vmatprep.subr.mxu0 0.0
        %431 = vmatpush1.msra.mxu0 %v253
        %432 = vmatprep.subr.mxu0 0.0
        %433 = vmatpush1.msra.mxu0 %v254
        %434 = vmatprep.subr.mxu0 0.0
        %435 = vmatpush1.msra.mxu0 %v255
        %436 = vmatprep.subr.mxu0 0.0
        %437 = vmatpush1.msra.mxu0 %v256
        %438 = vmatprep.subr.mxu0 0.0
        %439 = vmatpush1.msra.mxu0 %v257
        %440 = vmatprep.subr.mxu0 0.0
        %441 = vmatpush1.msra.mxu0 %v258
        %442 = vmatprep.subr.mxu0 0.0
        %443 = vmatpush1.msra.mxu0 %v259
        %444 = vmatprep.subr.mxu0 0.0
        %445 = vmatpush1.msra.mxu0 %v260
        %446 = vmatprep.subr.mxu0 0.0
        %447 = vmatpush1.msra.mxu0 %v261
        %448 = vmatprep.subr.mxu0 0.0
        %449 = vmatpush1.msra.mxu0 %v262
        %450 = vmatprep.subr.mxu0 0.0
        %451 = vmatpush1.msra.mxu0 %v263
        %452 = vmatprep.subr.mxu0 0.0
        %453 = vmatpush1.msra.mxu0 %v264
        %454 = vmatprep.subr.mxu0 0.0
        %455 = vmatpush1.msra.mxu0 %v265
        %456 = vmatprep.subr.mxu0 0.0
        %457 = vmatpush1.msra.mxu0 %v266
        %458 = vmatprep.subr.mxu0 0.0
        %459 = vmatpush1.msra.mxu0 %v267
        %460 = vmatprep.subr.mxu0 0.0
        %461 = vmatpush1.msra.mxu0 %v268
        %462 = vmatprep.subr.mxu0 0.0
        %463 = vmatpush1.msra.mxu0 %v269
        %464 = vmatprep.subr.mxu0 0.0
        %465 = vmatpush1.msra.mxu0 %v270
        %466 = vmatprep.subr.mxu0 0.0
        %467 = vmatpush1.msra.mxu0 %v271
        %468 = vmatprep.subr.mxu0 0.0
        %469 = vmatpush1.msra.mxu0 %v272
        %470 = vmatprep.mubr.f32.mxu0 %v403
        %471 = vmatmul.mubr.f32.gmra.mrb[0].mxu0 %v400
        %v472 = vpop.f32.mrb[0].mxu0
        %v473 = vadd.f32 %v391, %v472
        %v474 = vpop.f32.mrb[0].mxu0
        %475 = vdwg.mxu0
        %v476 = vld [vmem:[%s232] sm:$0xfc]
        %v477 = vld [vmem:[%s232 + $0x8] sm:$0xfc]
        %v478 = vld [vmem:[%s232 + $0x10] sm:$0x3]
        %v479 = vld [vmem:[%s232 + $0x18] sm:$0x3]
        %s480 = scalar_lea.vmem %s1, 512
        %v481 = vld [vmem:[%s480] sm:$0xff]
        %v482 = vld [vmem:[%s480 + $0x8] sm:$0xff]
        %v483 = vld [vmem:[%s480 + $0x10] sm:$0xff]
        %v484 = vld [vmem:[%s480 + $0x18] sm:$0xff]
        %v485 = vld [vmem:[%s480 + $0x20] sm:$0xff]
        %v486 = vld [vmem:[%s480 + $0x28] sm:$0xff]
        %v487 = vld [vmem:[%s480 + $0x30] sm:$0xff]
        %v488 = vld [vmem:[%s480 + $0x38] sm:$0xff]
        %v489 = vld [vmem:[%s480 + $0x40] sm:$0xff]
        %v490 = vld [vmem:[%s480 + $0x48] sm:$0xff]
        %v491 = vld [vmem:[%s480 + $0x50] sm:$0xff]
        %v492 = vld [vmem:[%s480 + $0x58] sm:$0xff]
        %v493 = vld [vmem:[%s480 + $0x60] sm:$0xff]
        %v494 = vld [vmem:[%s480 + $0x68] sm:$0xff]
        %v495 = vld [vmem:[%s480 + $0x70] sm:$0xff]
        %v496 = vld [vmem:[%s480 + $0x78] sm:$0xff]
        %v497 = vld [vmem:[%s480 + $0x80] sm:$0xff]
        %v498 = vld [vmem:[%s480 + $0x88] sm:$0xff]
        %v499 = vld [vmem:[%s480 + $0x90] sm:$0xff]
        %v500 = vld [vmem:[%s480 + $0x98] sm:$0xff]
        %v501 = vld [vmem:[%s480 + $0xa0] sm:$0xff]
        %v502 = vld [vmem:[%s480 + $0xa8] sm:$0xff]
        %v503 = vld [vmem:[%s480 + $0xb0] sm:$0xff]
        %v504 = vld [vmem:[%s480 + $0xb8] sm:$0xff]
        %v505 = vld [vmem:[%s480 + $0xc0] sm:$0xff]
        %v506 = vld [vmem:[%s480 + $0xc8] sm:$0xff]
        %v507 = vld [vmem:[%s480 + $0xd0] sm:$0xff]
        %v508 = vld [vmem:[%s480 + $0xd8] sm:$0xff]
        %v509 = vld [vmem:[%s480 + $0xe0] sm:$0xff]
        %v510 = vld [vmem:[%s480 + $0xe8] sm:$0xff]
        %v511 = vld [vmem:[%s480 + $0xf0] sm:$0xff]
        %v512 = vld [vmem:[%s480 + $0xf8] sm:$0xff]
        %vm517 = vcmask 1045504
        %v518 = vrot.slane %v476, 2
        %v519 = vrot.slane %v478, 2
        %v520 = vsel %vm517, %v518, %v519
        %v521 = vrot.slane %v477, 2
        %v522 = vrot.slane %v479, 2
        %v523 = vsel %vm517, %v521, %v522
        %526 = vmatprep.subr.mxu0 0.0
        %527 = vmatpush1.msra.mxu0 %v481
        %528 = vmatprep.subr.mxu0 0.0
        %529 = vmatpush1.msra.mxu0 %v482
        %530 = vmatprep.subr.mxu0 0.0
        %531 = vmatpush1.msra.mxu0 %v483
        %532 = vmatprep.subr.mxu0 0.0
        %533 = vmatpush1.msra.mxu0 %v484
        %534 = vmatprep.subr.mxu0 0.0
        %535 = vmatpush1.msra.mxu0 %v485
        %536 = vmatprep.subr.mxu0 0.0
        %537 = vmatpush1.msra.mxu0 %v486
        %538 = vmatprep.subr.mxu0 0.0
        %539 = vmatpush1.msra.mxu0 %v487
        %540 = vmatprep.subr.mxu0 0.0
        %541 = vmatpush1.msra.mxu0 %v488
        %542 = vmatprep.subr.mxu0 0.0
        %543 = vmatpush1.msra.mxu0 %v489
        %544 = vmatprep.subr.mxu0 0.0
        %545 = vmatpush1.msra.mxu0 %v490
        %546 = vmatprep.subr.mxu0 0.0
        %547 = vmatpush1.msra.mxu0 %v491
        %548 = vmatprep.subr.mxu0 0.0
        %549 = vmatpush1.msra.mxu0 %v492
        %550 = vmatprep.subr.mxu0 0.0
        %551 = vmatpush1.msra.mxu0 %v493
        %552 = vmatprep.subr.mxu0 0.0
        %553 = vmatpush1.msra.mxu0 %v494
        %554 = vmatprep.subr.mxu0 0.0
        %555 = vmatpush1.msra.mxu0 %v495
        %556 = vmatprep.subr.mxu0 0.0
        %557 = vmatpush1.msra.mxu0 %v496
        %558 = vmatprep.subr.mxu0 0.0
        %559 = vmatpush1.msra.mxu0 %v497
        %560 = vmatprep.subr.mxu0 0.0
        %561 = vmatpush1.msra.mxu0 %v498
        %562 = vmatprep.subr.mxu0 0.0
        %563 = vmatpush1.msra.mxu0 %v499
        %564 = vmatprep.subr.mxu0 0.0
        %565 = vmatpush1.msra.mxu0 %v500
        %566 = vmatprep.subr.mxu0 0.0
        %567 = vmatpush1.msra.mxu0 %v501
        %568 = vmatprep.subr.mxu0 0.0
        %569 = vmatpush1.msra.mxu0 %v502
        %570 = vmatprep.subr.mxu0 0.0
        %571 = vmatpush1.msra.mxu0 %v503
        %572 = vmatprep.subr.mxu0 0.0
        %573 = vmatpush1.msra.mxu0 %v504
        %574 = vmatprep.subr.mxu0 0.0
        %575 = vmatpush1.msra.mxu0 %v505
        %576 = vmatprep.subr.mxu0 0.0
        %577 = vmatpush1.msra.mxu0 %v506
        %578 = vmatprep.subr.mxu0 0.0
        %579 = vmatpush1.msra.mxu0 %v507
        %580 = vmatprep.subr.mxu0 0.0
        %581 = vmatpush1.msra.mxu0 %v508
        %582 = vmatprep.subr.mxu0 0.0
        %583 = vmatpush1.msra.mxu0 %v509
        %584 = vmatprep.subr.mxu0 0.0
        %585 = vmatpush1.msra.mxu0 %v510
        %586 = vmatprep.subr.mxu0 0.0
        %587 = vmatpush1.msra.mxu0 %v511
        %588 = vmatprep.subr.mxu0 0.0
        %589 = vmatpush1.msra.mxu0 %v512
        %590 = vmatprep.mubr.f32.mxu0 %v523
        %591 = vmatmul.mubr.f32.gmra.mrb[0].mxu0 %v520
        %v592 = vpop.f32.mrb[0].mxu0
        %v593 = vadd.f32 0.0, %v592
        %v594 = vpop.f32.mrb[0].mxu0
        %595 = vdwg.mxu0
        %v596 = vadd.f32 %v473, %v593
        %s597 = sld [smem:[#allocation2]]
        %v598 = vstv %s597
        %v599 = vadd.f32 %v596, %v598
        %v600 = vmul.f32 %v599, 0.5
        %v601 = vmul.f32 %v599, 0.70710677
        %vm602 = vcmp.ge.f32.partialorder %v601, 0.0
        %v603 = vsel %vm602, 1.0, -1.0
        %v604 = vand.u32 2147483647, %v601
        %v605 = vmul.f32 %v604, 0.3275911
        %v606 = vadd.f32 %v605, 1.0
        %v607 = vrcp.pop %v606
        %v608 = vmul.f32 %v607, 1.0614054
        %v609 = vadd.f32 %v608, -1.4531521
        %v610 = vmul.f32 %v607, %v609
        %v611 = vadd.f32 %v610, 1.4214138
        %v612 = vmul.f32 %v607, %v611
        %v613 = vadd.f32 %v612, -0.28449672
        %v614 = vmul.f32 %v607, %v613
        %v615 = vadd.f32 %v614, 0.2548296
        %v616 = vmul.f32 %v607, %v615
        %v617 = vsub.f32 0.0, %v604
        %v618 = vmul.f32 %v617, %v604
        %v619 = vmul.f32 %v618, 1.442695
        %v620 = vpow.pop %v619
        %v621 = vmul.f32 %v616, %v620
        %v622 = vsub.f32 1.0, %v621
        %v623 = vmul.f32 %v603, %v622
        %v624 = vadd.f32 %v623, 1.0
        %v625 = vmul.f32 %v600, %v624
        %s626 = sld [smem:[#allocation2 + $0x1]]
        %v627 = vstv %s626
        %v628 = vmul.f32 %v625, %v627
        %s629 = sld [smem:[#allocation2 + $0x2]]
        %v630 = vstv %s629
        %v631 = vadd.f32 %v628, %v630
        %v632 = vld [vmem:[%s273] sm:$0xff]
        %v633 = vld [vmem:[%s273 + $0x8] sm:$0xff]
        %v634 = vld [vmem:[%s2] sm:$0xff]
        %v635 = vld [vmem:[%s2 + $0x8] sm:$0xff]
        %v636 = vld [vmem:[%s2 + $0x10] sm:$0xff]
        %v637 = vld [vmem:[%s2 + $0x18] sm:$0xff]
        %v638 = vld [vmem:[%s2 + $0x20] sm:$0xff]
        %v639 = vld [vmem:[%s2 + $0x28] sm:$0xff]
        %v640 = vld [vmem:[%s2 + $0x30] sm:$0xff]
        %v641 = vld [vmem:[%s2 + $0x38] sm:$0xff]
        %v642 = vld [vmem:[%s2 + $0x40] sm:$0xff]
        %v643 = vld [vmem:[%s2 + $0x48] sm:$0xff]
        %v644 = vld [vmem:[%s2 + $0x50] sm:$0xff]
        %v645 = vld [vmem:[%s2 + $0x58] sm:$0xff]
        %v646 = vld [vmem:[%s2 + $0x60] sm:$0xff]
        %v647 = vld [vmem:[%s2 + $0x68] sm:$0xff]
        %v648 = vld [vmem:[%s2 + $0x70] sm:$0xff]
        %v649 = vld [vmem:[%s2 + $0x78] sm:$0xff]
        %v650 = vld [vmem:[%s2 + $0x80] sm:$0xff]
        %v651 = vld [vmem:[%s2 + $0x88] sm:$0xff]
        %v652 = vld [vmem:[%s2 + $0x90] sm:$0xff]
        %v653 = vld [vmem:[%s2 + $0x98] sm:$0xff]
        %v654 = vld [vmem:[%s2 + $0xa0] sm:$0xff]
        %v655 = vld [vmem:[%s2 + $0xa8] sm:$0xff]
        %v656 = vld [vmem:[%s2 + $0xb0] sm:$0xff]
        %v657 = vld [vmem:[%s2 + $0xb8] sm:$0xff]
        %v658 = vld [vmem:[%s2 + $0xc0] sm:$0xff]
        %v659 = vld [vmem:[%s2 + $0xc8] sm:$0xff]
        %v660 = vld [vmem:[%s2 + $0xd0] sm:$0xff]
        %v661 = vld [vmem:[%s2 + $0xd8] sm:$0xff]
        %v662 = vld [vmem:[%s2 + $0xe0] sm:$0xff]
        %v663 = vld [vmem:[%s2 + $0xe8] sm:$0xff]
        %v664 = vld [vmem:[%s2 + $0xf0] sm:$0xff]
        %v665 = vld [vmem:[%s2 + $0xf8] sm:$0xff]
        %s666 = scalar_lea.vmem %s2, 256
        %v667 = vld [vmem:[%s666] sm:$0xff]
        %v668 = vld [vmem:[%s666 + $0x8] sm:$0xff]
        %v669 = vld [vmem:[%s666 + $0x10] sm:$0xff]
        %v670 = vld [vmem:[%s666 + $0x18] sm:$0xff]
        %v671 = vld [vmem:[%s666 + $0x20] sm:$0xff]
        %v672 = vld [vmem:[%s666 + $0x28] sm:$0xff]
        %v673 = vld [vmem:[%s666 + $0x30] sm:$0xff]
        %v674 = vld [vmem:[%s666 + $0x38] sm:$0xff]
        %v675 = vld [vmem:[%s666 + $0x40] sm:$0xff]
        %v676 = vld [vmem:[%s666 + $0x48] sm:$0xff]
        %v677 = vld [vmem:[%s666 + $0x50] sm:$0xff]
        %v678 = vld [vmem:[%s666 + $0x58] sm:$0xff]
        %v679 = vld [vmem:[%s666 + $0x60] sm:$0xff]
        %v680 = vld [vmem:[%s666 + $0x68] sm:$0xff]
        %v681 = vld [vmem:[%s666 + $0x70] sm:$0xff]
        %v682 = vld [vmem:[%s666 + $0x78] sm:$0xff]
        %v683 = vld [vmem:[%s666 + $0x80] sm:$0xff]
        %v684 = vld [vmem:[%s666 + $0x88] sm:$0xff]
        %v685 = vld [vmem:[%s666 + $0x90] sm:$0xff]
        %v686 = vld [vmem:[%s666 + $0x98] sm:$0xff]
        %v687 = vld [vmem:[%s666 + $0xa0] sm:$0xff]
        %v688 = vld [vmem:[%s666 + $0xa8] sm:$0xff]
        %v689 = vld [vmem:[%s666 + $0xb0] sm:$0xff]
        %v690 = vld [vmem:[%s666 + $0xb8] sm:$0xff]
        %v691 = vld [vmem:[%s666 + $0xc0] sm:$0xff]
        %v692 = vld [vmem:[%s666 + $0xc8] sm:$0xff]
        %v693 = vld [vmem:[%s666 + $0xd0] sm:$0xff]
        %v694 = vld [vmem:[%s666 + $0xd8] sm:$0xff]
        %v695 = vld [vmem:[%s666 + $0xe0] sm:$0xff]
        %v696 = vld [vmem:[%s666 + $0xe8] sm:$0xff]
        %v697 = vld [vmem:[%s666 + $0xf0] sm:$0xff]
        %v698 = vld [vmem:[%s666 + $0xf8] sm:$0xff]
        %699 = vmatprep.subr.mxu0 0.0
        %700 = vmatpush1.msra.mxu0 %v667
        %701 = vmatprep.subr.mxu0 0.0
        %702 = vmatpush1.msra.mxu0 %v668
        %703 = vmatprep.subr.mxu0 0.0
        %704 = vmatpush1.msra.mxu0 %v669
        %705 = vmatprep.subr.mxu0 0.0
        %706 = vmatpush1.msra.mxu0 %v670
        %707 = vmatprep.subr.mxu0 0.0
        %708 = vmatpush1.msra.mxu0 %v671
        %709 = vmatprep.subr.mxu0 0.0
        %710 = vmatpush1.msra.mxu0 %v672
        %711 = vmatprep.subr.mxu0 0.0
        %712 = vmatpush1.msra.mxu0 %v673
        %713 = vmatprep.subr.mxu0 0.0
        %714 = vmatpush1.msra.mxu0 %v674
        %715 = vmatprep.subr.mxu0 0.0
        %716 = vmatpush1.msra.mxu0 %v675
        %717 = vmatprep.subr.mxu0 0.0
        %718 = vmatpush1.msra.mxu0 %v676
        %719 = vmatprep.subr.mxu0 0.0
        %720 = vmatpush1.msra.mxu0 %v677
        %721 = vmatprep.subr.mxu0 0.0
        %722 = vmatpush1.msra.mxu0 %v678
        %723 = vmatprep.subr.mxu0 0.0
        %724 = vmatpush1.msra.mxu0 %v679
        %725 = vmatprep.subr.mxu0 0.0
        %726 = vmatpush1.msra.mxu0 %v680
        %727 = vmatprep.subr.mxu0 0.0
        %728 = vmatpush1.msra.mxu0 %v681
        %729 = vmatprep.subr.mxu0 0.0
        %730 = vmatpush1.msra.mxu0 %v682
        %731 = vmatprep.subr.mxu0 0.0
        %732 = vmatpush1.msra.mxu0 %v683
        %733 = vmatprep.subr.mxu0 0.0
        %734 = vmatpush1.msra.mxu0 %v684
        %735 = vmatprep.subr.mxu0 0.0
        %736 = vmatpush1.msra.mxu0 %v685
        %737 = vmatprep.subr.mxu0 0.0
        %738 = vmatpush1.msra.mxu0 %v686
        %739 = vmatprep.subr.mxu0 0.0
        %740 = vmatpush1.msra.mxu0 %v687
        %741 = vmatprep.subr.mxu0 0.0
        %742 = vmatpush1.msra.mxu0 %v688
        %743 = vmatprep.subr.mxu0 0.0
        %744 = vmatpush1.msra.mxu0 %v689
        %745 = vmatprep.subr.mxu0 0.0
        %746 = vmatpush1.msra.mxu0 %v690
        %747 = vmatprep.subr.mxu0 0.0
        %748 = vmatpush1.msra.mxu0 %v691
        %749 = vmatprep.subr.mxu0 0.0
        %750 = vmatpush1.msra.mxu0 %v692
        %751 = vmatprep.subr.mxu0 0.0
        %752 = vmatpush1.msra.mxu0 %v693
        %753 = vmatprep.subr.mxu0 0.0
        %754 = vmatpush1.msra.mxu0 %v694
        %755 = vmatprep.subr.mxu0 0.0
        %756 = vmatpush1.msra.mxu0 %v695
        %757 = vmatprep.subr.mxu0 0.0
        %758 = vmatpush1.msra.mxu0 %v696
        %759 = vmatprep.subr.mxu0 0.0
        %760 = vmatpush1.msra.mxu0 %v697
        %761 = vmatprep.subr.mxu0 0.0
        %762 = vmatpush1.msra.mxu0 %v698
        %763 = vmatprep.mubr.f32.mxu0 %v403
        %764 = vmatmul.mubr.f32.gmra.mrb[0].mxu0 %v400
        %v765 = vpop.f32.mrb[0].mxu0
        %v766 = vadd.f32 0.0, %v765
        %v767 = vpop.f32.mrb[0].mxu0
        %768 = vdwg.mxu0
        %769 = vmatprep.subr.mxu0 0.0
        %770 = vmatpush1.msra.mxu0 %v634
        %771 = vmatprep.subr.mxu0 0.0
        %772 = vmatpush1.msra.mxu0 %v635
        %773 = vmatprep.subr.mxu0 0.0
        %774 = vmatpush1.msra.mxu0 %v636
        %775 = vmatprep.subr.mxu0 0.0
        %776 = vmatpush1.msra.mxu0 %v637
        %777 = vmatprep.subr.mxu0 0.0
        %778 = vmatpush1.msra.mxu0 %v638
        %779 = vmatprep.subr.mxu0 0.0
        %780 = vmatpush1.msra.mxu0 %v639
        %781 = vmatprep.subr.mxu0 0.0
        %782 = vmatpush1.msra.mxu0 %v640
        %783 = vmatprep.subr.mxu0 0.0
        %784 = vmatpush1.msra.mxu0 %v641
        %785 = vmatprep.subr.mxu0 0.0
        %786 = vmatpush1.msra.mxu0 %v642
        %787 = vmatprep.subr.mxu0 0.0
        %788 = vmatpush1.msra.mxu0 %v643
        %789 = vmatprep.subr.mxu0 0.0
        %790 = vmatpush1.msra.mxu0 %v644
        %791 = vmatprep.subr.mxu0 0.0
        %792 = vmatpush1.msra.mxu0 %v645
        %793 = vmatprep.subr.mxu0 0.0
        %794 = vmatpush1.msra.mxu0 %v646
        %795 = vmatprep.subr.mxu0 0.0
        %796 = vmatpush1.msra.mxu0 %v647
        %797 = vmatprep.subr.mxu0 0.0
        %798 = vmatpush1.msra.mxu0 %v648
        %799 = vmatprep.subr.mxu0 0.0
        %800 = vmatpush1.msra.mxu0 %v649
        %801 = vmatprep.subr.mxu0 0.0
        %802 = vmatpush1.msra.mxu0 %v650
        %803 = vmatprep.subr.mxu0 0.0
        %804 = vmatpush1.msra.mxu0 %v651
        %805 = vmatprep.subr.mxu0 0.0
        %806 = vmatpush1.msra.mxu0 %v652
        %807 = vmatprep.subr.mxu0 0.0
        %808 = vmatpush1.msra.mxu0 %v653
        %809 = vmatprep.subr.mxu0 0.0
        %810 = vmatpush1.msra.mxu0 %v654
        %811 = vmatprep.subr.mxu0 0.0
        %812 = vmatpush1.msra.mxu0 %v655
        %813 = vmatprep.subr.mxu0 0.0
        %814 = vmatpush1.msra.mxu0 %v656
        %815 = vmatprep.subr.mxu0 0.0
        %816 = vmatpush1.msra.mxu0 %v657
        %817 = vmatprep.subr.mxu0 0.0
        %818 = vmatpush1.msra.mxu0 %v658
        %819 = vmatprep.subr.mxu0 0.0
        %820 = vmatpush1.msra.mxu0 %v659
        %821 = vmatprep.subr.mxu0 0.0
        %822 = vmatpush1.msra.mxu0 %v660
        %823 = vmatprep.subr.mxu0 0.0
        %824 = vmatpush1.msra.mxu0 %v661
        %825 = vmatprep.subr.mxu0 0.0
        %826 = vmatpush1.msra.mxu0 %v662
        %827 = vmatprep.subr.mxu0 0.0
        %828 = vmatpush1.msra.mxu0 %v663
        %829 = vmatprep.subr.mxu0 0.0
        %830 = vmatpush1.msra.mxu0 %v664
        %831 = vmatprep.subr.mxu0 0.0
        %832 = vmatpush1.msra.mxu0 %v665
        %833 = vmatprep.mubr.f32.mxu0 %v633
        %834 = vmatmul.mubr.f32.gmra.mrb[0].mxu0 %v632
        %v835 = vpop.f32.mrb[0].mxu0
        %v836 = vadd.f32 %v766, %v835
        %v837 = vpop.f32.mrb[0].mxu0
        %838 = vdwg.mxu0
        %s839 = scalar_lea.vmem %s2, 512
        %v840 = vld [vmem:[%s839] sm:$0xff]
        %v841 = vld [vmem:[%s839 + $0x8] sm:$0xff]
        %v842 = vld [vmem:[%s839 + $0x10] sm:$0xff]
        %v843 = vld [vmem:[%s839 + $0x18] sm:$0xff]
        %v844 = vld [vmem:[%s839 + $0x20] sm:$0xff]
        %v845 = vld [vmem:[%s839 + $0x28] sm:$0xff]
        %v846 = vld [vmem:[%s839 + $0x30] sm:$0xff]
        %v847 = vld [vmem:[%s839 + $0x38] sm:$0xff]
        %v848 = vld [vmem:[%s839 + $0x40] sm:$0xff]
        %v849 = vld [vmem:[%s839 + $0x48] sm:$0xff]
        %v850 = vld [vmem:[%s839 + $0x50] sm:$0xff]
        %v851 = vld [vmem:[%s839 + $0x58] sm:$0xff]
        %v852 = vld [vmem:[%s839 + $0x60] sm:$0xff]
        %v853 = vld [vmem:[%s839 + $0x68] sm:$0xff]
        %v854 = vld [vmem:[%s839 + $0x70] sm:$0xff]
        %v855 = vld [vmem:[%s839 + $0x78] sm:$0xff]
        %v856 = vld [vmem:[%s839 + $0x80] sm:$0xff]
        %v857 = vld [vmem:[%s839 + $0x88] sm:$0xff]
        %v858 = vld [vmem:[%s839 + $0x90] sm:$0xff]
        %v859 = vld [vmem:[%s839 + $0x98] sm:$0xff]
        %v860 = vld [vmem:[%s839 + $0xa0] sm:$0xff]
        %v861 = vld [vmem:[%s839 + $0xa8] sm:$0xff]
        %v862 = vld [vmem:[%s839 + $0xb0] sm:$0xff]
        %v863 = vld [vmem:[%s839 + $0xb8] sm:$0xff]
        %v864 = vld [vmem:[%s839 + $0xc0] sm:$0xff]
        %v865 = vld [vmem:[%s839 + $0xc8] sm:$0xff]
        %v866 = vld [vmem:[%s839 + $0xd0] sm:$0xff]
        %v867 = vld [vmem:[%s839 + $0xd8] sm:$0xff]
        %v868 = vld [vmem:[%s839 + $0xe0] sm:$0xff]
        %v869 = vld [vmem:[%s839 + $0xe8] sm:$0xff]
        %v870 = vld [vmem:[%s839 + $0xf0] sm:$0xff]
        %v871 = vld [vmem:[%s839 + $0xf8] sm:$0xff]
        %872 = vmatprep.subr.mxu0 0.0
        %873 = vmatpush1.msra.mxu0 %v840
        %874 = vmatprep.subr.mxu0 0.0
        %875 = vmatpush1.msra.mxu0 %v841
        %876 = vmatprep.subr.mxu0 0.0
        %877 = vmatpush1.msra.mxu0 %v842
        %878 = vmatprep.subr.mxu0 0.0
        %879 = vmatpush1.msra.mxu0 %v843
        %880 = vmatprep.subr.mxu0 0.0
        %881 = vmatpush1.msra.mxu0 %v844
        %882 = vmatprep.subr.mxu0 0.0
        %883 = vmatpush1.msra.mxu0 %v845
        %884 = vmatprep.subr.mxu0 0.0
        %885 = vmatpush1.msra.mxu0 %v846
        %886 = vmatprep.subr.mxu0 0.0
        %887 = vmatpush1.msra.mxu0 %v847
        %888 = vmatprep.subr.mxu0 0.0
        %889 = vmatpush1.msra.mxu0 %v848
        %890 = vmatprep.subr.mxu0 0.0
        %891 = vmatpush1.msra.mxu0 %v849
        %892 = vmatprep.subr.mxu0 0.0
        %893 = vmatpush1.msra.mxu0 %v850
        %894 = vmatprep.subr.mxu0 0.0
        %895 = vmatpush1.msra.mxu0 %v851
        %896 = vmatprep.subr.mxu0 0.0
        %897 = vmatpush1.msra.mxu0 %v852
        %898 = vmatprep.subr.mxu0 0.0
        %899 = vmatpush1.msra.mxu0 %v853
        %900 = vmatprep.subr.mxu0 0.0
        %901 = vmatpush1.msra.mxu0 %v854
        %902 = vmatprep.subr.mxu0 0.0
        %903 = vmatpush1.msra.mxu0 %v855
        %904 = vmatprep.subr.mxu0 0.0
        %905 = vmatpush1.msra.mxu0 %v856
        %906 = vmatprep.subr.mxu0 0.0
        %907 = vmatpush1.msra.mxu0 %v857
        %908 = vmatprep.subr.mxu0 0.0
        %909 = vmatpush1.msra.mxu0 %v858
        %910 = vmatprep.subr.mxu0 0.0
        %911 = vmatpush1.msra.mxu0 %v859
        %912 = vmatprep.subr.mxu0 0.0
        %913 = vmatpush1.msra.mxu0 %v860
        %914 = vmatprep.subr.mxu0 0.0
        %915 = vmatpush1.msra.mxu0 %v861
        %916 = vmatprep.subr.mxu0 0.0
        %917 = vmatpush1.msra.mxu0 %v862
        %918 = vmatprep.subr.mxu0 0.0
        %919 = vmatpush1.msra.mxu0 %v863
        %920 = vmatprep.subr.mxu0 0.0
        %921 = vmatpush1.msra.mxu0 %v864
        %922 = vmatprep.subr.mxu0 0.0
        %923 = vmatpush1.msra.mxu0 %v865
        %924 = vmatprep.subr.mxu0 0.0
        %925 = vmatpush1.msra.mxu0 %v866
        %926 = vmatprep.subr.mxu0 0.0
        %927 = vmatpush1.msra.mxu0 %v867
        %928 = vmatprep.subr.mxu0 0.0
        %929 = vmatpush1.msra.mxu0 %v868
        %930 = vmatprep.subr.mxu0 0.0
        %931 = vmatpush1.msra.mxu0 %v869
        %932 = vmatprep.subr.mxu0 0.0
        %933 = vmatpush1.msra.mxu0 %v870
        %934 = vmatprep.subr.mxu0 0.0
        %935 = vmatpush1.msra.mxu0 %v871
        %936 = vmatprep.mubr.f32.mxu0 %v321
        %937 = vmatmul.mubr.f32.gmra.mrb[0].mxu0 %v318
        %v938 = vpop.f32.mrb[0].mxu0
        %v939 = vadd.f32 0.0, %v938
        %v940 = vpop.f32.mrb[0].mxu0
        %941 = vdwg.mxu0
        %v942 = vadd.f32 %v836, %v939
        %s943 = scalar_lea.vmem %s2, 768
        %v944 = vld [vmem:[%s943] sm:$0xff]
        %v945 = vld [vmem:[%s943 + $0x8] sm:$0xff]
        %v946 = vld [vmem:[%s943 + $0x10] sm:$0xff]
        %v947 = vld [vmem:[%s943 + $0x18] sm:$0xff]
        %v948 = vld [vmem:[%s943 + $0x20] sm:$0xff]
        %v949 = vld [vmem:[%s943 + $0x28] sm:$0xff]
        %v950 = vld [vmem:[%s943 + $0x30] sm:$0xff]
        %v951 = vld [vmem:[%s943 + $0x38] sm:$0xff]
        %v952 = vld [vmem:[%s943 + $0x40] sm:$0xff]
        %v953 = vld [vmem:[%s943 + $0x48] sm:$0xff]
        %v954 = vld [vmem:[%s943 + $0x50] sm:$0xff]
        %v955 = vld [vmem:[%s943 + $0x58] sm:$0xff]
        %v956 = vld [vmem:[%s943 + $0x60] sm:$0xff]
        %v957 = vld [vmem:[%s943 + $0x68] sm:$0xff]
        %v958 = vld [vmem:[%s943 + $0x70] sm:$0xff]
        %v959 = vld [vmem:[%s943 + $0x78] sm:$0xff]
        %v960 = vld [vmem:[%s943 + $0x80] sm:$0xff]
        %v961 = vld [vmem:[%s943 + $0x88] sm:$0xff]
        %v962 = vld [vmem:[%s943 + $0x90] sm:$0xff]
        %v963 = vld [vmem:[%s943 + $0x98] sm:$0xff]
        %v964 = vld [vmem:[%s943 + $0xa0] sm:$0xff]
        %v965 = vld [vmem:[%s943 + $0xa8] sm:$0xff]
        %v966 = vld [vmem:[%s943 + $0xb0] sm:$0xff]
        %v967 = vld [vmem:[%s943 + $0xb8] sm:$0xff]
        %v968 = vld [vmem:[%s943 + $0xc0] sm:$0xff]
        %v969 = vld [vmem:[%s943 + $0xc8] sm:$0xff]
        %v970 = vld [vmem:[%s943 + $0xd0] sm:$0xff]
        %v971 = vld [vmem:[%s943 + $0xd8] sm:$0xff]
        %v972 = vld [vmem:[%s943 + $0xe0] sm:$0xff]
        %v973 = vld [vmem:[%s943 + $0xe8] sm:$0xff]
        %v974 = vld [vmem:[%s943 + $0xf0] sm:$0xff]
        %v975 = vld [vmem:[%s943 + $0xf8] sm:$0xff]
        %976 = vmatprep.subr.mxu0 0.0
        %977 = vmatpush1.msra.mxu0 %v944
        %978 = vmatprep.subr.mxu0 0.0
        %979 = vmatpush1.msra.mxu0 %v945
        %980 = vmatprep.subr.mxu0 0.0
        %981 = vmatpush1.msra.mxu0 %v946
        %982 = vmatprep.subr.mxu0 0.0
        %983 = vmatpush1.msra.mxu0 %v947
        %984 = vmatprep.subr.mxu0 0.0
        %985 = vmatpush1.msra.mxu0 %v948
        %986 = vmatprep.subr.mxu0 0.0
        %987 = vmatpush1.msra.mxu0 %v949
        %988 = vmatprep.subr.mxu0 0.0
        %989 = vmatpush1.msra.mxu0 %v950
        %990 = vmatprep.subr.mxu0 0.0
        %991 = vmatpush1.msra.mxu0 %v951
        %992 = vmatprep.subr.mxu0 0.0
        %993 = vmatpush1.msra.mxu0 %v952
        %994 = vmatprep.subr.mxu0 0.0
        %995 = vmatpush1.msra.mxu0 %v953
        %996 = vmatprep.subr.mxu0 0.0
        %997 = vmatpush1.msra.mxu0 %v954
        %998 = vmatprep.subr.mxu0 0.0
        %999 = vmatpush1.msra.mxu0 %v955
        %1000 = vmatprep.subr.mxu0 0.0
        %1001 = vmatpush1.msra.mxu0 %v956
        %1002 = vmatprep.subr.mxu0 0.0
        %1003 = vmatpush1.msra.mxu0 %v957
        %1004 = vmatprep.subr.mxu0 0.0
        %1005 = vmatpush1.msra.mxu0 %v958
        %1006 = vmatprep.subr.mxu0 0.0
        %1007 = vmatpush1.msra.mxu0 %v959
        %1008 = vmatprep.subr.mxu0 0.0
        %1009 = vmatpush1.msra.mxu0 %v960
        %1010 = vmatprep.subr.mxu0 0.0
        %1011 = vmatpush1.msra.mxu0 %v961
        %1012 = vmatprep.subr.mxu0 0.0
        %1013 = vmatpush1.msra.mxu0 %v962
        %1014 = vmatprep.subr.mxu0 0.0
        %1015 = vmatpush1.msra.mxu0 %v963
        %1016 = vmatprep.subr.mxu0 0.0
        %1017 = vmatpush1.msra.mxu0 %v964
        %1018 = vmatprep.subr.mxu0 0.0
        %1019 = vmatpush1.msra.mxu0 %v965
        %1020 = vmatprep.subr.mxu0 0.0
        %1021 = vmatpush1.msra.mxu0 %v966
        %1022 = vmatprep.subr.mxu0 0.0
        %1023 = vmatpush1.msra.mxu0 %v967
        %1024 = vmatprep.subr.mxu0 0.0
        %1025 = vmatpush1.msra.mxu0 %v968
        %1026 = vmatprep.subr.mxu0 0.0
        %1027 = vmatpush1.msra.mxu0 %v969
        %1028 = vmatprep.subr.mxu0 0.0
        %1029 = vmatpush1.msra.mxu0 %v970
        %1030 = vmatprep.subr.mxu0 0.0
        %1031 = vmatpush1.msra.mxu0 %v971
        %1032 = vmatprep.subr.mxu0 0.0
        %1033 = vmatpush1.msra.mxu0 %v972
        %1034 = vmatprep.subr.mxu0 0.0
        %1035 = vmatpush1.msra.mxu0 %v973
        %1036 = vmatprep.subr.mxu0 0.0
        %1037 = vmatpush1.msra.mxu0 %v974
        %1038 = vmatprep.subr.mxu0 0.0
        %1039 = vmatpush1.msra.mxu0 %v975
        %1040 = vmatprep.mubr.f32.mxu0 %v523
        %1041 = vmatmul.mubr.f32.gmra.mrb[0].mxu0 %v520
        %v1042 = vpop.f32.mrb[0].mxu0
        %v1043 = vadd.f32 0.0, %v1042
        %v1044 = vpop.f32.mrb[0].mxu0
        %1045 = vdwg.mxu0
        %v1046 = vadd.f32 %v942, %v1043
        %v1047 = vld [vmem:[%s273] sm:$0xfc]
        %v1048 = vld [vmem:[%s273 + $0x8] sm:$0xfc]
        %v1049 = vld [vmem:[%s273 + $0x10] sm:$0x3]
        %v1050 = vld [vmem:[%s273 + $0x18] sm:$0x3]
        %s1051 = scalar_lea.vmem %s2, 1024
        %v1052 = vld [vmem:[%s1051] sm:$0xff]
        %v1053 = vld [vmem:[%s1051 + $0x8] sm:$0xff]
        %v1054 = vld [vmem:[%s1051 + $0x10] sm:$0xff]
        %v1055 = vld [vmem:[%s1051 + $0x18] sm:$0xff]
        %v1056 = vld [vmem:[%s1051 + $0x20] sm:$0xff]
        %v1057 = vld [vmem:[%s1051 + $0x28] sm:$0xff]
        %v1058 = vld [vmem:[%s1051 + $0x30] sm:$0xff]
        %v1059 = vld [vmem:[%s1051 + $0x38] sm:$0xff]
        %v1060 = vld [vmem:[%s1051 + $0x40] sm:$0xff]
        %v1061 = vld [vmem:[%s1051 + $0x48] sm:$0xff]
        %v1062 = vld [vmem:[%s1051 + $0x50] sm:$0xff]
        %v1063 = vld [vmem:[%s1051 + $0x58] sm:$0xff]
        %v1064 = vld [vmem:[%s1051 + $0x60] sm:$0xff]
        %v1065 = vld [vmem:[%s1051 + $0x68] sm:$0xff]
        %v1066 = vld [vmem:[%s1051 + $0x70] sm:$0xff]
        %v1067 = vld [vmem:[%s1051 + $0x78] sm:$0xff]
        %v1068 = vld [vmem:[%s1051 + $0x80] sm:$0xff]
        %v1069 = vld [vmem:[%s1051 + $0x88] sm:$0xff]
        %v1070 = vld [vmem:[%s1051 + $0x90] sm:$0xff]
        %v1071 = vld [vmem:[%s1051 + $0x98] sm:$0xff]
        %v1072 = vld [vmem:[%s1051 + $0xa0] sm:$0xff]
        %v1073 = vld [vmem:[%s1051 + $0xa8] sm:$0xff]
        %v1074 = vld [vmem:[%s1051 + $0xb0] sm:$0xff]
        %v1075 = vld [vmem:[%s1051 + $0xb8] sm:$0xff]
        %v1076 = vld [vmem:[%s1051 + $0xc0] sm:$0xff]
        %v1077 = vld [vmem:[%s1051 + $0xc8] sm:$0xff]
        %v1078 = vld [vmem:[%s1051 + $0xd0] sm:$0xff]
        %v1079 = vld [vmem:[%s1051 + $0xd8] sm:$0xff]
        %v1080 = vld [vmem:[%s1051 + $0xe0] sm:$0xff]
        %v1081 = vld [vmem:[%s1051 + $0xe8] sm:$0xff]
        %v1082 = vld [vmem:[%s1051 + $0xf0] sm:$0xff]
        %v1083 = vld [vmem:[%s1051 + $0xf8] sm:$0xff]
        %v1088 = vrot.slane %v1047, 2
        %v1089 = vrot.slane %v1049, 2
        %v1090 = vsel %vm517, %v1088, %v1089
        %v1091 = vrot.slane %v1048, 2
        %v1092 = vrot.slane %v1050, 2
        %v1093 = vsel %vm517, %v1091, %v1092
        %1096 = vmatprep.subr.mxu0 0.0
        %1097 = vmatpush1.msra.mxu0 %v1052
        %1098 = vmatprep.subr.mxu0 0.0
        %1099 = vmatpush1.msra.mxu0 %v1053
        %1100 = vmatprep.subr.mxu0 0.0
        %1101 = vmatpush1.msra.mxu0 %v1054
        %1102 = vmatprep.subr.mxu0 0.0
        %1103 = vmatpush1.msra.mxu0 %v1055
        %1104 = vmatprep.subr.mxu0 0.0
        %1105 = vmatpush1.msra.mxu0 %v1056
        %1106 = vmatprep.subr.mxu0 0.0
        %1107 = vmatpush1.msra.mxu0 %v1057
        %1108 = vmatprep.subr.mxu0 0.0
        %1109 = vmatpush1.msra.mxu0 %v1058
        %1110 = vmatprep.subr.mxu0 0.0
        %1111 = vmatpush1.msra.mxu0 %v1059
        %1112 = vmatprep.subr.mxu0 0.0
        %1113 = vmatpush1.msra.mxu0 %v1060
        %1114 = vmatprep.subr.mxu0 0.0
        %1115 = vmatpush1.msra.mxu0 %v1061
        %1116 = vmatprep.subr.mxu0 0.0
        %1117 = vmatpush1.msra.mxu0 %v1062
        %1118 = vmatprep.subr.mxu0 0.0
        %1119 = vmatpush1.msra.mxu0 %v1063
        %1120 = vmatprep.subr.mxu0 0.0
        %1121 = vmatpush1.msra.mxu0 %v1064
        %1122 = vmatprep.subr.mxu0 0.0
        %1123 = vmatpush1.msra.mxu0 %v1065
        %1124 = vmatprep.subr.mxu0 0.0
        %1125 = vmatpush1.msra.mxu0 %v1066
        %1126 = vmatprep.subr.mxu0 0.0
        %1127 = vmatpush1.msra.mxu0 %v1067
        %1128 = vmatprep.subr.mxu0 0.0
        %1129 = vmatpush1.msra.mxu0 %v1068
        %1130 = vmatprep.subr.mxu0 0.0
        %1131 = vmatpush1.msra.mxu0 %v1069
        %1132 = vmatprep.subr.mxu0 0.0
        %1133 = vmatpush1.msra.mxu0 %v1070
        %1134 = vmatprep.subr.mxu0 0.0
        %1135 = vmatpush1.msra.mxu0 %v1071
        %1136 = vmatprep.subr.mxu0 0.0
        %1137 = vmatpush1.msra.mxu0 %v1072
        %1138 = vmatprep.subr.mxu0 0.0
        %1139 = vmatpush1.msra.mxu0 %v1073
        %1140 = vmatprep.subr.mxu0 0.0
        %1141 = vmatpush1.msra.mxu0 %v1074
        %1142 = vmatprep.subr.mxu0 0.0
        %1143 = vmatpush1.msra.mxu0 %v1075
        %1144 = vmatprep.subr.mxu0 0.0
        %1145 = vmatpush1.msra.mxu0 %v1076
        %1146 = vmatprep.subr.mxu0 0.0
        %1147 = vmatpush1.msra.mxu0 %v1077
        %1148 = vmatprep.subr.mxu0 0.0
        %1149 = vmatpush1.msra.mxu0 %v1078
        %1150 = vmatprep.subr.mxu0 0.0
        %1151 = vmatpush1.msra.mxu0 %v1079
        %1152 = vmatprep.subr.mxu0 0.0
        %1153 = vmatpush1.msra.mxu0 %v1080
        %1154 = vmatprep.subr.mxu0 0.0
        %1155 = vmatpush1.msra.mxu0 %v1081
        %1156 = vmatprep.subr.mxu0 0.0
        %1157 = vmatpush1.msra.mxu0 %v1082
        %1158 = vmatprep.subr.mxu0 0.0
        %1159 = vmatpush1.msra.mxu0 %v1083
        %1160 = vmatprep.mubr.f32.mxu0 %v1093
        %1161 = vmatmul.mubr.f32.gmra.mrb[0].mxu0 %v1090
        %v1162 = vpop.f32.mrb[0].mxu0
        %v1163 = vadd.f32 0.0, %v1162
        %v1164 = vpop.f32.mrb[0].mxu0
        %1165 = vdwg.mxu0
        %v1166 = vadd.f32 %v1046, %v1163
        %s1167 = sld [smem:[#allocation2 + $0x3]]
        %v1168 = vstv %s1167
        %v1169 = vadd.f32 %v1166, %v1168
        %v1170 = vmul.f32 %v1169, 0.5
        %v1171 = vmul.f32 %v1169, 0.70710677
        %vm1172 = vcmp.ge.f32.partialorder %v1171, 0.0
        %v1173 = vsel %vm1172, 1.0, -1.0
        %v1174 = vand.u32 2147483647, %v1171
        %v1175 = vmul.f32 %v1174, 0.3275911
        %v1176 = vadd.f32 %v1175, 1.0
        %v1177 = vrcp.pop %v1176
        %v1178 = vmul.f32 %v1177, 1.0614054
        %v1179 = vadd.f32 %v1178, -1.4531521
        %v1180 = vmul.f32 %v1177, %v1179
        %v1181 = vadd.f32 %v1180, 1.4214138
        %v1182 = vmul.f32 %v1177, %v1181
        %v1183 = vadd.f32 %v1182, -0.28449672
        %v1184 = vmul.f32 %v1177, %v1183
        %v1185 = vadd.f32 %v1184, 0.2548296
        %v1186 = vmul.f32 %v1177, %v1185
        %v1187 = vsub.f32 0.0, %v1174
        %v1188 = vmul.f32 %v1187, %v1174
        %v1189 = vmul.f32 %v1188, 1.442695
        %v1190 = vpow.pop %v1189
        %v1191 = vmul.f32 %v1186, %v1190
        %v1192 = vsub.f32 1.0, %v1191
        %v1193 = vmul.f32 %v1173, %v1192
        %v1194 = vadd.f32 %v1193, 1.0
        %v1195 = vmul.f32 %v1170, %v1194
        %s1196 = sld [smem:[#allocation2 + $0x4]]
        %v1197 = vstv %s1196
        %v1198 = vmul.f32 %v1195, %v1197
        %s1199 = sld [smem:[#allocation2 + $0x5]]
        %v1200 = vstv %s1199
        %v1201 = vadd.f32 %v1198, %v1200
        %v1202 = vld [vmem:[%s232] sm:$0xff]
        %v1203 = vld [vmem:[%s232 + $0x8] sm:$0xff]
        %v1204 = vld [vmem:[%s3] sm:$0xff]
        %v1205 = vld [vmem:[%s3 + $0x8] sm:$0xff]
        %v1206 = vld [vmem:[%s3 + $0x10] sm:$0xff]
        %v1207 = vld [vmem:[%s3 + $0x18] sm:$0xff]
        %v1208 = vld [vmem:[%s3 + $0x20] sm:$0xff]
        %v1209 = vld [vmem:[%s3 + $0x28] sm:$0xff]
        %v1210 = vld [vmem:[%s3 + $0x30] sm:$0xff]
        %v1211 = vld [vmem:[%s3 + $0x38] sm:$0xff]
        %v1212 = vld [vmem:[%s3 + $0x40] sm:$0xff]
        %v1213 = vld [vmem:[%s3 + $0x48] sm:$0xff]
        %v1214 = vld [vmem:[%s3 + $0x50] sm:$0xff]
        %v1215 = vld [vmem:[%s3 + $0x58] sm:$0xff]
        %v1216 = vld [vmem:[%s3 + $0x60] sm:$0xff]
        %v1217 = vld [vmem:[%s3 + $0x68] sm:$0xff]
        %v1218 = vld [vmem:[%s3 + $0x70] sm:$0xff]
        %v1219 = vld [vmem:[%s3 + $0x78] sm:$0xff]
        %v1220 = vld [vmem:[%s3 + $0x80] sm:$0xff]
        %v1221 = vld [vmem:[%s3 + $0x88] sm:$0xff]
        %v1222 = vld [vmem:[%s3 + $0x90] sm:$0xff]
        %v1223 = vld [vmem:[%s3 + $0x98] sm:$0xff]
        %v1224 = vld [vmem:[%s3 + $0xa0] sm:$0xff]
        %v1225 = vld [vmem:[%s3 + $0xa8] sm:$0xff]
        %v1226 = vld [vmem:[%s3 + $0xb0] sm:$0xff]
        %v1227 = vld [vmem:[%s3 + $0xb8] sm:$0xff]
        %v1228 = vld [vmem:[%s3 + $0xc0] sm:$0xff]
        %v1229 = vld [vmem:[%s3 + $0xc8] sm:$0xff]
        %v1230 = vld [vmem:[%s3 + $0xd0] sm:$0xff]
        %v1231 = vld [vmem:[%s3 + $0xd8] sm:$0xff]
        %v1232 = vld [vmem:[%s3 + $0xe0] sm:$0xff]
        %v1233 = vld [vmem:[%s3 + $0xe8] sm:$0xff]
        %v1234 = vld [vmem:[%s3 + $0xf0] sm:$0xff]
        %v1235 = vld [vmem:[%s3 + $0xf8] sm:$0xff]
        %s1236 = scalar_lea.vmem %s3, 256
        %v1237 = vld [vmem:[%s1236] sm:$0xff]
        %v1238 = vld [vmem:[%s1236 + $0x8] sm:$0xff]
        %v1239 = vld [vmem:[%s1236 + $0x10] sm:$0xff]
        %v1240 = vld [vmem:[%s1236 + $0x18] sm:$0xff]
        %v1241 = vld [vmem:[%s1236 + $0x20] sm:$0xff]
        %v1242 = vld [vmem:[%s1236 + $0x28] sm:$0xff]
        %v1243 = vld [vmem:[%s1236 + $0x30] sm:$0xff]
        %v1244 = vld [vmem:[%s1236 + $0x38] sm:$0xff]
        %v1245 = vld [vmem:[%s1236 + $0x40] sm:$0xff]
        %v1246 = vld [vmem:[%s1236 + $0x48] sm:$0xff]
        %v1247 = vld [vmem:[%s1236 + $0x50] sm:$0xff]
        %v1248 = vld [vmem:[%s1236 + $0x58] sm:$0xff]
        %v1249 = vld [vmem:[%s1236 + $0x60] sm:$0xff]
        %v1250 = vld [vmem:[%s1236 + $0x68] sm:$0xff]
        %v1251 = vld [vmem:[%s1236 + $0x70] sm:$0xff]
        %v1252 = vld [vmem:[%s1236 + $0x78] sm:$0xff]
        %v1253 = vld [vmem:[%s1236 + $0x80] sm:$0xff]
        %v1254 = vld [vmem:[%s1236 + $0x88] sm:$0xff]
        %v1255 = vld [vmem:[%s1236 + $0x90] sm:$0xff]
        %v1256 = vld [vmem:[%s1236 + $0x98] sm:$0xff]
        %v1257 = vld [vmem:[%s1236 + $0xa0] sm:$0xff]
        %v1258 = vld [vmem:[%s1236 + $0xa8] sm:$0xff]
        %v1259 = vld [vmem:[%s1236 + $0xb0] sm:$0xff]
        %v1260 = vld [vmem:[%s1236 + $0xb8] sm:$0xff]
        %v1261 = vld [vmem:[%s1236 + $0xc0] sm:$0xff]
        %v1262 = vld [vmem:[%s1236 + $0xc8] sm:$0xff]
        %v1263 = vld [vmem:[%s1236 + $0xd0] sm:$0xff]
        %v1264 = vld [vmem:[%s1236 + $0xd8] sm:$0xff]
        %v1265 = vld [vmem:[%s1236 + $0xe0] sm:$0xff]
        %v1266 = vld [vmem:[%s1236 + $0xe8] sm:$0xff]
        %v1267 = vld [vmem:[%s1236 + $0xf0] sm:$0xff]
        %v1268 = vld [vmem:[%s1236 + $0xf8] sm:$0xff]
        %1269 = vmatprep.subr.mxu0 0.0
        %1270 = vmatpush1.msra.mxu0 %v1237
        %1271 = vmatprep.subr.mxu0 0.0
        %1272 = vmatpush1.msra.mxu0 %v1238
        %1273 = vmatprep.subr.mxu0 0.0
        %1274 = vmatpush1.msra.mxu0 %v1239
        %1275 = vmatprep.subr.mxu0 0.0
        %1276 = vmatpush1.msra.mxu0 %v1240
        %1277 = vmatprep.subr.mxu0 0.0
        %1278 = vmatpush1.msra.mxu0 %v1241
        %1279 = vmatprep.subr.mxu0 0.0
        %1280 = vmatpush1.msra.mxu0 %v1242
        %1281 = vmatprep.subr.mxu0 0.0
        %1282 = vmatpush1.msra.mxu0 %v1243
        %1283 = vmatprep.subr.mxu0 0.0
        %1284 = vmatpush1.msra.mxu0 %v1244
        %1285 = vmatprep.subr.mxu0 0.0
        %1286 = vmatpush1.msra.mxu0 %v1245
        %1287 = vmatprep.subr.mxu0 0.0
        %1288 = vmatpush1.msra.mxu0 %v1246
        %1289 = vmatprep.subr.mxu0 0.0
        %1290 = vmatpush1.msra.mxu0 %v1247
        %1291 = vmatprep.subr.mxu0 0.0
        %1292 = vmatpush1.msra.mxu0 %v1248
        %1293 = vmatprep.subr.mxu0 0.0
        %1294 = vmatpush1.msra.mxu0 %v1249
        %1295 = vmatprep.subr.mxu0 0.0
        %1296 = vmatpush1.msra.mxu0 %v1250
        %1297 = vmatprep.subr.mxu0 0.0
        %1298 = vmatpush1.msra.mxu0 %v1251
        %1299 = vmatprep.subr.mxu0 0.0
        %1300 = vmatpush1.msra.mxu0 %v1252
        %1301 = vmatprep.subr.mxu0 0.0
        %1302 = vmatpush1.msra.mxu0 %v1253
        %1303 = vmatprep.subr.mxu0 0.0
        %1304 = vmatpush1.msra.mxu0 %v1254
        %1305 = vmatprep.subr.mxu0 0.0
        %1306 = vmatpush1.msra.mxu0 %v1255
        %1307 = vmatprep.subr.mxu0 0.0
        %1308 = vmatpush1.msra.mxu0 %v1256
        %1309 = vmatprep.subr.mxu0 0.0
        %1310 = vmatpush1.msra.mxu0 %v1257
        %1311 = vmatprep.subr.mxu0 0.0
        %1312 = vmatpush1.msra.mxu0 %v1258
        %1313 = vmatprep.subr.mxu0 0.0
        %1314 = vmatpush1.msra.mxu0 %v1259
        %1315 = vmatprep.subr.mxu0 0.0
        %1316 = vmatpush1.msra.mxu0 %v1260
        %1317 = vmatprep.subr.mxu0 0.0
        %1318 = vmatpush1.msra.mxu0 %v1261
        %1319 = vmatprep.subr.mxu0 0.0
        %1320 = vmatpush1.msra.mxu0 %v1262
        %1321 = vmatprep.subr.mxu0 0.0
        %1322 = vmatpush1.msra.mxu0 %v1263
        %1323 = vmatprep.subr.mxu0 0.0
        %1324 = vmatpush1.msra.mxu0 %v1264
        %1325 = vmatprep.subr.mxu0 0.0
        %1326 = vmatpush1.msra.mxu0 %v1265
        %1327 = vmatprep.subr.mxu0 0.0
        %1328 = vmatpush1.msra.mxu0 %v1266
        %1329 = vmatprep.subr.mxu0 0.0
        %1330 = vmatpush1.msra.mxu0 %v1267
        %1331 = vmatprep.subr.mxu0 0.0
        %1332 = vmatpush1.msra.mxu0 %v1268
        %1333 = vmatprep.mubr.f32.mxu0 %v633
        %1334 = vmatmul.mubr.f32.gmra.mrb[0].mxu0 %v632
        %v1335 = vpop.f32.mrb[0].mxu0
        %v1336 = vadd.f32 0.0, %v1335
        %v1337 = vpop.f32.mrb[0].mxu0
        %1338 = vdwg.mxu0
        %1339 = vmatprep.subr.mxu0 0.0
        %1340 = vmatpush1.msra.mxu0 %v1204
        %1341 = vmatprep.subr.mxu0 0.0
        %1342 = vmatpush1.msra.mxu0 %v1205
        %1343 = vmatprep.subr.mxu0 0.0
        %1344 = vmatpush1.msra.mxu0 %v1206
        %1345 = vmatprep.subr.mxu0 0.0
        %1346 = vmatpush1.msra.mxu0 %v1207
        %1347 = vmatprep.subr.mxu0 0.0
        %1348 = vmatpush1.msra.mxu0 %v1208
        %1349 = vmatprep.subr.mxu0 0.0
        %1350 = vmatpush1.msra.mxu0 %v1209
        %1351 = vmatprep.subr.mxu0 0.0
        %1352 = vmatpush1.msra.mxu0 %v1210
        %1353 = vmatprep.subr.mxu0 0.0
        %1354 = vmatpush1.msra.mxu0 %v1211
        %1355 = vmatprep.subr.mxu0 0.0
        %1356 = vmatpush1.msra.mxu0 %v1212
        %1357 = vmatprep.subr.mxu0 0.0
        %1358 = vmatpush1.msra.mxu0 %v1213
        %1359 = vmatprep.subr.mxu0 0.0
        %1360 = vmatpush1.msra.mxu0 %v1214
        %1361 = vmatprep.subr.mxu0 0.0
        %1362 = vmatpush1.msra.mxu0 %v1215
        %1363 = vmatprep.subr.mxu0 0.0
        %1364 = vmatpush1.msra.mxu0 %v1216
        %1365 = vmatprep.subr.mxu0 0.0
        %1366 = vmatpush1.msra.mxu0 %v1217
        %1367 = vmatprep.subr.mxu0 0.0
        %1368 = vmatpush1.msra.mxu0 %v1218
        %1369 = vmatprep.subr.mxu0 0.0
        %1370 = vmatpush1.msra.mxu0 %v1219
        %1371 = vmatprep.subr.mxu0 0.0
        %1372 = vmatpush1.msra.mxu0 %v1220
        %1373 = vmatprep.subr.mxu0 0.0
        %1374 = vmatpush1.msra.mxu0 %v1221
        %1375 = vmatprep.subr.mxu0 0.0
        %1376 = vmatpush1.msra.mxu0 %v1222
        %1377 = vmatprep.subr.mxu0 0.0
        %1378 = vmatpush1.msra.mxu0 %v1223
        %1379 = vmatprep.subr.mxu0 0.0
        %1380 = vmatpush1.msra.mxu0 %v1224
        %1381 = vmatprep.subr.mxu0 0.0
        %1382 = vmatpush1.msra.mxu0 %v1225
        %1383 = vmatprep.subr.mxu0 0.0
        %1384 = vmatpush1.msra.mxu0 %v1226
        %1385 = vmatprep.subr.mxu0 0.0
        %1386 = vmatpush1.msra.mxu0 %v1227
        %1387 = vmatprep.subr.mxu0 0.0
        %1388 = vmatpush1.msra.mxu0 %v1228
        %1389 = vmatprep.subr.mxu0 0.0
        %1390 = vmatpush1.msra.mxu0 %v1229
        %1391 = vmatprep.subr.mxu0 0.0
        %1392 = vmatpush1.msra.mxu0 %v1230
        %1393 = vmatprep.subr.mxu0 0.0
        %1394 = vmatpush1.msra.mxu0 %v1231
        %1395 = vmatprep.subr.mxu0 0.0
        %1396 = vmatpush1.msra.mxu0 %v1232
        %1397 = vmatprep.subr.mxu0 0.0
        %1398 = vmatpush1.msra.mxu0 %v1233
        %1399 = vmatprep.subr.mxu0 0.0
        %1400 = vmatpush1.msra.mxu0 %v1234
        %1401 = vmatprep.subr.mxu0 0.0
        %1402 = vmatpush1.msra.mxu0 %v1235
        %1403 = vmatprep.mubr.f32.mxu0 %v1203
        %1404 = vmatmul.mubr.f32.gmra.mrb[0].mxu0 %v1202
        %v1405 = vpop.f32.mrb[0].mxu0
        %v1406 = vadd.f32 %v1336, %v1405
        %v1407 = vpop.f32.mrb[0].mxu0
        %1408 = vdwg.mxu0
        %s1409 = scalar_lea.vmem %s3, 512
        %v1410 = vld [vmem:[%s1409] sm:$0xff]
        %v1411 = vld [vmem:[%s1409 + $0x8] sm:$0xff]
        %v1412 = vld [vmem:[%s1409 + $0x10] sm:$0xff]
        %v1413 = vld [vmem:[%s1409 + $0x18] sm:$0xff]
        %v1414 = vld [vmem:[%s1409 + $0x20] sm:$0xff]
        %v1415 = vld [vmem:[%s1409 + $0x28] sm:$0xff]
        %v1416 = vld [vmem:[%s1409 + $0x30] sm:$0xff]
        %v1417 = vld [vmem:[%s1409 + $0x38] sm:$0xff]
        %v1418 = vld [vmem:[%s1409 + $0x40] sm:$0xff]
        %v1419 = vld [vmem:[%s1409 + $0x48] sm:$0xff]
        %v1420 = vld [vmem:[%s1409 + $0x50] sm:$0xff]
        %v1421 = vld [vmem:[%s1409 + $0x58] sm:$0xff]
        %v1422 = vld [vmem:[%s1409 + $0x60] sm:$0xff]
        %v1423 = vld [vmem:[%s1409 + $0x68] sm:$0xff]
        %v1424 = vld [vmem:[%s1409 + $0x70] sm:$0xff]
        %v1425 = vld [vmem:[%s1409 + $0x78] sm:$0xff]
        %v1426 = vld [vmem:[%s1409 + $0x80] sm:$0xff]
        %v1427 = vld [vmem:[%s1409 + $0x88] sm:$0xff]
        %v1428 = vld [vmem:[%s1409 + $0x90] sm:$0xff]
        %v1429 = vld [vmem:[%s1409 + $0x98] sm:$0xff]
        %v1430 = vld [vmem:[%s1409 + $0xa0] sm:$0xff]
        %v1431 = vld [vmem:[%s1409 + $0xa8] sm:$0xff]
        %v1432 = vld [vmem:[%s1409 + $0xb0] sm:$0xff]
        %v1433 = vld [vmem:[%s1409 + $0xb8] sm:$0xff]
        %v1434 = vld [vmem:[%s1409 + $0xc0] sm:$0xff]
        %v1435 = vld [vmem:[%s1409 + $0xc8] sm:$0xff]
        %v1436 = vld [vmem:[%s1409 + $0xd0] sm:$0xff]
        %v1437 = vld [vmem:[%s1409 + $0xd8] sm:$0xff]
        %v1438 = vld [vmem:[%s1409 + $0xe0] sm:$0xff]
        %v1439 = vld [vmem:[%s1409 + $0xe8] sm:$0xff]
        %v1440 = vld [vmem:[%s1409 + $0xf0] sm:$0xff]
        %v1441 = vld [vmem:[%s1409 + $0xf8] sm:$0xff]
        %1442 = vmatprep.subr.mxu0 0.0
        %1443 = vmatpush1.msra.mxu0 %v1410
        %1444 = vmatprep.subr.mxu0 0.0
        %1445 = vmatpush1.msra.mxu0 %v1411
        %1446 = vmatprep.subr.mxu0 0.0
        %1447 = vmatpush1.msra.mxu0 %v1412
        %1448 = vmatprep.subr.mxu0 0.0
        %1449 = vmatpush1.msra.mxu0 %v1413
        %1450 = vmatprep.subr.mxu0 0.0
        %1451 = vmatpush1.msra.mxu0 %v1414
        %1452 = vmatprep.subr.mxu0 0.0
        %1453 = vmatpush1.msra.mxu0 %v1415
        %1454 = vmatprep.subr.mxu0 0.0
        %1455 = vmatpush1.msra.mxu0 %v1416
        %1456 = vmatprep.subr.mxu0 0.0
        %1457 = vmatpush1.msra.mxu0 %v1417
        %1458 = vmatprep.subr.mxu0 0.0
        %1459 = vmatpush1.msra.mxu0 %v1418
        %1460 = vmatprep.subr.mxu0 0.0
        %1461 = vmatpush1.msra.mxu0 %v1419
        %1462 = vmatprep.subr.mxu0 0.0
        %1463 = vmatpush1.msra.mxu0 %v1420
        %1464 = vmatprep.subr.mxu0 0.0
        %1465 = vmatpush1.msra.mxu0 %v1421
        %1466 = vmatprep.subr.mxu0 0.0
        %1467 = vmatpush1.msra.mxu0 %v1422
        %1468 = vmatprep.subr.mxu0 0.0
        %1469 = vmatpush1.msra.mxu0 %v1423
        %1470 = vmatprep.subr.mxu0 0.0
        %1471 = vmatpush1.msra.mxu0 %v1424
        %1472 = vmatprep.subr.mxu0 0.0
        %1473 = vmatpush1.msra.mxu0 %v1425
        %1474 = vmatprep.subr.mxu0 0.0
        %1475 = vmatpush1.msra.mxu0 %v1426
        %1476 = vmatprep.subr.mxu0 0.0
        %1477 = vmatpush1.msra.mxu0 %v1427
        %1478 = vmatprep.subr.mxu0 0.0
        %1479 = vmatpush1.msra.mxu0 %v1428
        %1480 = vmatprep.subr.mxu0 0.0
        %1481 = vmatpush1.msra.mxu0 %v1429
        %1482 = vmatprep.subr.mxu0 0.0
        %1483 = vmatpush1.msra.mxu0 %v1430
        %1484 = vmatprep.subr.mxu0 0.0
        %1485 = vmatpush1.msra.mxu0 %v1431
        %1486 = vmatprep.subr.mxu0 0.0
        %1487 = vmatpush1.msra.mxu0 %v1432
        %1488 = vmatprep.subr.mxu0 0.0
        %1489 = vmatpush1.msra.mxu0 %v1433
        %1490 = vmatprep.subr.mxu0 0.0
        %1491 = vmatpush1.msra.mxu0 %v1434
        %1492 = vmatprep.subr.mxu0 0.0
        %1493 = vmatpush1.msra.mxu0 %v1435
        %1494 = vmatprep.subr.mxu0 0.0
        %1495 = vmatpush1.msra.mxu0 %v1436
        %1496 = vmatprep.subr.mxu0 0.0
        %1497 = vmatpush1.msra.mxu0 %v1437
        %1498 = vmatprep.subr.mxu0 0.0
        %1499 = vmatpush1.msra.mxu0 %v1438
        %1500 = vmatprep.subr.mxu0 0.0
        %1501 = vmatpush1.msra.mxu0 %v1439
        %1502 = vmatprep.subr.mxu0 0.0
        %1503 = vmatpush1.msra.mxu0 %v1440
        %1504 = vmatprep.subr.mxu0 0.0
        %1505 = vmatpush1.msra.mxu0 %v1441
        %1506 = vmatprep.mubr.f32.mxu0 %v403
        %1507 = vmatmul.mubr.f32.gmra.mrb[0].mxu0 %v400
        %v1508 = vpop.f32.mrb[0].mxu0
        %v1509 = vadd.f32 0.0, %v1508
        %v1510 = vpop.f32.mrb[0].mxu0
        %1511 = vdwg.mxu0
        %v1512 = vadd.f32 %v1406, %v1509
        %s1513 = scalar_lea.vmem %s3, 768
        %v1514 = vld [vmem:[%s1513] sm:$0xff]
        %v1515 = vld [vmem:[%s1513 + $0x8] sm:$0xff]
        %v1516 = vld [vmem:[%s1513 + $0x10] sm:$0xff]
        %v1517 = vld [vmem:[%s1513 + $0x18] sm:$0xff]
        %v1518 = vld [vmem:[%s1513 + $0x20] sm:$0xff]
        %v1519 = vld [vmem:[%s1513 + $0x28] sm:$0xff]
        %v1520 = vld [vmem:[%s1513 + $0x30] sm:$0xff]
        %v1521 = vld [vmem:[%s1513 + $0x38] sm:$0xff]
        %v1522 = vld [vmem:[%s1513 + $0x40] sm:$0xff]
        %v1523 = vld [vmem:[%s1513 + $0x48] sm:$0xff]
        %v1524 = vld [vmem:[%s1513 + $0x50] sm:$0xff]
        %v1525 = vld [vmem:[%s1513 + $0x58] sm:$0xff]
        %v1526 = vld [vmem:[%s1513 + $0x60] sm:$0xff]
        %v1527 = vld [vmem:[%s1513 + $0x68] sm:$0xff]
        %v1528 = vld [vmem:[%s1513 + $0x70] sm:$0xff]
        %v1529 = vld [vmem:[%s1513 + $0x78] sm:$0xff]
        %v1530 = vld [vmem:[%s1513 + $0x80] sm:$0xff]
        %v1531 = vld [vmem:[%s1513 + $0x88] sm:$0xff]
        %v1532 = vld [vmem:[%s1513 + $0x90] sm:$0xff]
        %v1533 = vld [vmem:[%s1513 + $0x98] sm:$0xff]
        %v1534 = vld [vmem:[%s1513 + $0xa0] sm:$0xff]
        %v1535 = vld [vmem:[%s1513 + $0xa8] sm:$0xff]
        %v1536 = vld [vmem:[%s1513 + $0xb0] sm:$0xff]
        %v1537 = vld [vmem:[%s1513 + $0xb8] sm:$0xff]
        %v1538 = vld [vmem:[%s1513 + $0xc0] sm:$0xff]
        %v1539 = vld [vmem:[%s1513 + $0xc8] sm:$0xff]
        %v1540 = vld [vmem:[%s1513 + $0xd0] sm:$0xff]
        %v1541 = vld [vmem:[%s1513 + $0xd8] sm:$0xff]
        %v1542 = vld [vmem:[%s1513 + $0xe0] sm:$0xff]
        %v1543 = vld [vmem:[%s1513 + $0xe8] sm:$0xff]
        %v1544 = vld [vmem:[%s1513 + $0xf0] sm:$0xff]
        %v1545 = vld [vmem:[%s1513 + $0xf8] sm:$0xff]
        %1546 = vmatprep.subr.mxu0 0.0
        %1547 = vmatpush1.msra.mxu0 %v1514
        %1548 = vmatprep.subr.mxu0 0.0
        %1549 = vmatpush1.msra.mxu0 %v1515
        %1550 = vmatprep.subr.mxu0 0.0
        %1551 = vmatpush1.msra.mxu0 %v1516
        %1552 = vmatprep.subr.mxu0 0.0
        %1553 = vmatpush1.msra.mxu0 %v1517
        %1554 = vmatprep.subr.mxu0 0.0
        %1555 = vmatpush1.msra.mxu0 %v1518
        %1556 = vmatprep.subr.mxu0 0.0
        %1557 = vmatpush1.msra.mxu0 %v1519
        %1558 = vmatprep.subr.mxu0 0.0
        %1559 = vmatpush1.msra.mxu0 %v1520
        %1560 = vmatprep.subr.mxu0 0.0
        %1561 = vmatpush1.msra.mxu0 %v1521
        %1562 = vmatprep.subr.mxu0 0.0
        %1563 = vmatpush1.msra.mxu0 %v1522
        %1564 = vmatprep.subr.mxu0 0.0
        %1565 = vmatpush1.msra.mxu0 %v1523
        %1566 = vmatprep.subr.mxu0 0.0
        %1567 = vmatpush1.msra.mxu0 %v1524
        %1568 = vmatprep.subr.mxu0 0.0
        %1569 = vmatpush1.msra.mxu0 %v1525
        %1570 = vmatprep.subr.mxu0 0.0
        %1571 = vmatpush1.msra.mxu0 %v1526
        %1572 = vmatprep.subr.mxu0 0.0
        %1573 = vmatpush1.msra.mxu0 %v1527
        %1574 = vmatprep.subr.mxu0 0.0
        %1575 = vmatpush1.msra.mxu0 %v1528
        %1576 = vmatprep.subr.mxu0 0.0
        %1577 = vmatpush1.msra.mxu0 %v1529
        %1578 = vmatprep.subr.mxu0 0.0
        %1579 = vmatpush1.msra.mxu0 %v1530
        %1580 = vmatprep.subr.mxu0 0.0
        %1581 = vmatpush1.msra.mxu0 %v1531
        %1582 = vmatprep.subr.mxu0 0.0
        %1583 = vmatpush1.msra.mxu0 %v1532
        %1584 = vmatprep.subr.mxu0 0.0
        %1585 = vmatpush1.msra.mxu0 %v1533
        %1586 = vmatprep.subr.mxu0 0.0
        %1587 = vmatpush1.msra.mxu0 %v1534
        %1588 = vmatprep.subr.mxu0 0.0
        %1589 = vmatpush1.msra.mxu0 %v1535
        %1590 = vmatprep.subr.mxu0 0.0
        %1591 = vmatpush1.msra.mxu0 %v1536
        %1592 = vmatprep.subr.mxu0 0.0
        %1593 = vmatpush1.msra.mxu0 %v1537
        %1594 = vmatprep.subr.mxu0 0.0
        %1595 = vmatpush1.msra.mxu0 %v1538
        %1596 = vmatprep.subr.mxu0 0.0
        %1597 = vmatpush1.msra.mxu0 %v1539
        %1598 = vmatprep.subr.mxu0 0.0
        %1599 = vmatpush1.msra.mxu0 %v1540
        %1600 = vmatprep.subr.mxu0 0.0
        %1601 = vmatpush1.msra.mxu0 %v1541
        %1602 = vmatprep.subr.mxu0 0.0
        %1603 = vmatpush1.msra.mxu0 %v1542
        %1604 = vmatprep.subr.mxu0 0.0
        %1605 = vmatpush1.msra.mxu0 %v1543
        %1606 = vmatprep.subr.mxu0 0.0
        %1607 = vmatpush1.msra.mxu0 %v1544
        %1608 = vmatprep.subr.mxu0 0.0
        %1609 = vmatpush1.msra.mxu0 %v1545
        %1610 = vmatprep.mubr.f32.mxu0 %v321
        %1611 = vmatmul.mubr.f32.gmra.mrb[0].mxu0 %v318
        %v1612 = vpop.f32.mrb[0].mxu0
        %v1613 = vadd.f32 0.0, %v1612
        %v1614 = vpop.f32.mrb[0].mxu0
        %1615 = vdwg.mxu0
        %v1616 = vadd.f32 %v1512, %v1613
        %s1617 = scalar_lea.vmem %s3, 1024
        %v1618 = vld [vmem:[%s1617] sm:$0xff]
        %v1619 = vld [vmem:[%s1617 + $0x8] sm:$0xff]
        %v1620 = vld [vmem:[%s1617 + $0x10] sm:$0xff]
        %v1621 = vld [vmem:[%s1617 + $0x18] sm:$0xff]
        %v1622 = vld [vmem:[%s1617 + $0x20] sm:$0xff]
        %v1623 = vld [vmem:[%s1617 + $0x28] sm:$0xff]
        %v1624 = vld [vmem:[%s1617 + $0x30] sm:$0xff]
        %v1625 = vld [vmem:[%s1617 + $0x38] sm:$0xff]
        %v1626 = vld [vmem:[%s1617 + $0x40] sm:$0xff]
        %v1627 = vld [vmem:[%s1617 + $0x48] sm:$0xff]
        %v1628 = vld [vmem:[%s1617 + $0x50] sm:$0xff]
        %v1629 = vld [vmem:[%s1617 + $0x58] sm:$0xff]
        %v1630 = vld [vmem:[%s1617 + $0x60] sm:$0xff]
        %v1631 = vld [vmem:[%s1617 + $0x68] sm:$0xff]
        %v1632 = vld [vmem:[%s1617 + $0x70] sm:$0xff]
        %v1633 = vld [vmem:[%s1617 + $0x78] sm:$0xff]
        %v1634 = vld [vmem:[%s1617 + $0x80] sm:$0xff]
        %v1635 = vld [vmem:[%s1617 + $0x88] sm:$0xff]
        %v1636 = vld [vmem:[%s1617 + $0x90] sm:$0xff]
        %v1637 = vld [vmem:[%s1617 + $0x98] sm:$0xff]
        %v1638 = vld [vmem:[%s1617 + $0xa0] sm:$0xff]
        %v1639 = vld [vmem:[%s1617 + $0xa8] sm:$0xff]
        %v1640 = vld [vmem:[%s1617 + $0xb0] sm:$0xff]
        %v1641 = vld [vmem:[%s1617 + $0xb8] sm:$0xff]
        %v1642 = vld [vmem:[%s1617 + $0xc0] sm:$0xff]
        %v1643 = vld [vmem:[%s1617 + $0xc8] sm:$0xff]
        %v1644 = vld [vmem:[%s1617 + $0xd0] sm:$0xff]
        %v1645 = vld [vmem:[%s1617 + $0xd8] sm:$0xff]
        %v1646 = vld [vmem:[%s1617 + $0xe0] sm:$0xff]
        %v1647 = vld [vmem:[%s1617 + $0xe8] sm:$0xff]
        %v1648 = vld [vmem:[%s1617 + $0xf0] sm:$0xff]
        %v1649 = vld [vmem:[%s1617 + $0xf8] sm:$0xff]
        %1650 = vmatprep.subr.mxu0 0.0
        %1651 = vmatpush1.msra.mxu0 %v1618
        %1652 = vmatprep.subr.mxu0 0.0
        %1653 = vmatpush1.msra.mxu0 %v1619
        %1654 = vmatprep.subr.mxu0 0.0
        %1655 = vmatpush1.msra.mxu0 %v1620
        %1656 = vmatprep.subr.mxu0 0.0
        %1657 = vmatpush1.msra.mxu0 %v1621
        %1658 = vmatprep.subr.mxu0 0.0
        %1659 = vmatpush1.msra.mxu0 %v1622
        %1660 = vmatprep.subr.mxu0 0.0
        %1661 = vmatpush1.msra.mxu0 %v1623
        %1662 = vmatprep.subr.mxu0 0.0
        %1663 = vmatpush1.msra.mxu0 %v1624
        %1664 = vmatprep.subr.mxu0 0.0
        %1665 = vmatpush1.msra.mxu0 %v1625
        %1666 = vmatprep.subr.mxu0 0.0
        %1667 = vmatpush1.msra.mxu0 %v1626
        %1668 = vmatprep.subr.mxu0 0.0
        %1669 = vmatpush1.msra.mxu0 %v1627
        %1670 = vmatprep.subr.mxu0 0.0
        %1671 = vmatpush1.msra.mxu0 %v1628
        %1672 = vmatprep.subr.mxu0 0.0
        %1673 = vmatpush1.msra.mxu0 %v1629
        %1674 = vmatprep.subr.mxu0 0.0
        %1675 = vmatpush1.msra.mxu0 %v1630
        %1676 = vmatprep.subr.mxu0 0.0
        %1677 = vmatpush1.msra.mxu0 %v1631
        %1678 = vmatprep.subr.mxu0 0.0
        %1679 = vmatpush1.msra.mxu0 %v1632
        %1680 = vmatprep.subr.mxu0 0.0
        %1681 = vmatpush1.msra.mxu0 %v1633
        %1682 = vmatprep.subr.mxu0 0.0
        %1683 = vmatpush1.msra.mxu0 %v1634
        %1684 = vmatprep.subr.mxu0 0.0
        %1685 = vmatpush1.msra.mxu0 %v1635
        %1686 = vmatprep.subr.mxu0 0.0
        %1687 = vmatpush1.msra.mxu0 %v1636
        %1688 = vmatprep.subr.mxu0 0.0
        %1689 = vmatpush1.msra.mxu0 %v1637
        %1690 = vmatprep.subr.mxu0 0.0
        %1691 = vmatpush1.msra.mxu0 %v1638
        %1692 = vmatprep.subr.mxu0 0.0
        %1693 = vmatpush1.msra.mxu0 %v1639
        %1694 = vmatprep.subr.mxu0 0.0
        %1695 = vmatpush1.msra.mxu0 %v1640
        %1696 = vmatprep.subr.mxu0 0.0
        %1697 = vmatpush1.msra.mxu0 %v1641
        %1698 = vmatprep.subr.mxu0 0.0
        %1699 = vmatpush1.msra.mxu0 %v1642
        %1700 = vmatprep.subr.mxu0 0.0
        %1701 = vmatpush1.msra.mxu0 %v1643
        %1702 = vmatprep.subr.mxu0 0.0
        %1703 = vmatpush1.msra.mxu0 %v1644
        %1704 = vmatprep.subr.mxu0 0.0
        %1705 = vmatpush1.msra.mxu0 %v1645
        %1706 = vmatprep.subr.mxu0 0.0
        %1707 = vmatpush1.msra.mxu0 %v1646
        %1708 = vmatprep.subr.mxu0 0.0
        %1709 = vmatpush1.msra.mxu0 %v1647
        %1710 = vmatprep.subr.mxu0 0.0
        %1711 = vmatpush1.msra.mxu0 %v1648
        %1712 = vmatprep.subr.mxu0 0.0
        %1713 = vmatpush1.msra.mxu0 %v1649
        %1714 = vmatprep.mubr.f32.mxu0 %v523
        %1715 = vmatmul.mubr.f32.gmra.mrb[0].mxu0 %v520
        %v1716 = vpop.f32.mrb[0].mxu0
        %v1717 = vadd.f32 0.0, %v1716
        %v1718 = vpop.f32.mrb[0].mxu0
        %1719 = vdwg.mxu0
        %v1720 = vadd.f32 %v1616, %v1717
        %s1721 = scalar_lea.vmem %s3, 1280
        %v1722 = vld [vmem:[%s1721] sm:$0xff]
        %v1723 = vld [vmem:[%s1721 + $0x8] sm:$0xff]
        %v1724 = vld [vmem:[%s1721 + $0x10] sm:$0xff]
        %v1725 = vld [vmem:[%s1721 + $0x18] sm:$0xff]
        %v1726 = vld [vmem:[%s1721 + $0x20] sm:$0xff]
        %v1727 = vld [vmem:[%s1721 + $0x28] sm:$0xff]
        %v1728 = vld [vmem:[%s1721 + $0x30] sm:$0xff]
        %v1729 = vld [vmem:[%s1721 + $0x38] sm:$0xff]
        %v1730 = vld [vmem:[%s1721 + $0x40] sm:$0xff]
        %v1731 = vld [vmem:[%s1721 + $0x48] sm:$0xff]
        %v1732 = vld [vmem:[%s1721 + $0x50] sm:$0xff]
        %v1733 = vld [vmem:[%s1721 + $0x58] sm:$0xff]
        %v1734 = vld [vmem:[%s1721 + $0x60] sm:$0xff]
        %v1735 = vld [vmem:[%s1721 + $0x68] sm:$0xff]
        %v1736 = vld [vmem:[%s1721 + $0x70] sm:$0xff]
        %v1737 = vld [vmem:[%s1721 + $0x78] sm:$0xff]
        %v1738 = vld [vmem:[%s1721 + $0x80] sm:$0xff]
        %v1739 = vld [vmem:[%s1721 + $0x88] sm:$0xff]
        %v1740 = vld [vmem:[%s1721 + $0x90] sm:$0xff]
        %v1741 = vld [vmem:[%s1721 + $0x98] sm:$0xff]
        %v1742 = vld [vmem:[%s1721 + $0xa0] sm:$0xff]
        %v1743 = vld [vmem:[%s1721 + $0xa8] sm:$0xff]
        %v1744 = vld [vmem:[%s1721 + $0xb0] sm:$0xff]
        %v1745 = vld [vmem:[%s1721 + $0xb8] sm:$0xff]
        %v1746 = vld [vmem:[%s1721 + $0xc0] sm:$0xff]
        %v1747 = vld [vmem:[%s1721 + $0xc8] sm:$0xff]
        %v1748 = vld [vmem:[%s1721 + $0xd0] sm:$0xff]
        %v1749 = vld [vmem:[%s1721 + $0xd8] sm:$0xff]
        %v1750 = vld [vmem:[%s1721 + $0xe0] sm:$0xff]
        %v1751 = vld [vmem:[%s1721 + $0xe8] sm:$0xff]
        %v1752 = vld [vmem:[%s1721 + $0xf0] sm:$0xff]
        %v1753 = vld [vmem:[%s1721 + $0xf8] sm:$0xff]
        %1754 = vmatprep.subr.mxu0 0.0
        %1755 = vmatpush1.msra.mxu0 %v1722
        %1756 = vmatprep.subr.mxu0 0.0
        %1757 = vmatpush1.msra.mxu0 %v1723
        %1758 = vmatprep.subr.mxu0 0.0
        %1759 = vmatpush1.msra.mxu0 %v1724
        %1760 = vmatprep.subr.mxu0 0.0
        %1761 = vmatpush1.msra.mxu0 %v1725
        %1762 = vmatprep.subr.mxu0 0.0
        %1763 = vmatpush1.msra.mxu0 %v1726
        %1764 = vmatprep.subr.mxu0 0.0
        %1765 = vmatpush1.msra.mxu0 %v1727
        %1766 = vmatprep.subr.mxu0 0.0
        %1767 = vmatpush1.msra.mxu0 %v1728
        %1768 = vmatprep.subr.mxu0 0.0
        %1769 = vmatpush1.msra.mxu0 %v1729
        %1770 = vmatprep.subr.mxu0 0.0
        %1771 = vmatpush1.msra.mxu0 %v1730
        %1772 = vmatprep.subr.mxu0 0.0
        %1773 = vmatpush1.msra.mxu0 %v1731
        %1774 = vmatprep.subr.mxu0 0.0
        %1775 = vmatpush1.msra.mxu0 %v1732
        %1776 = vmatprep.subr.mxu0 0.0
        %1777 = vmatpush1.msra.mxu0 %v1733
        %1778 = vmatprep.subr.mxu0 0.0
        %1779 = vmatpush1.msra.mxu0 %v1734
        %1780 = vmatprep.subr.mxu0 0.0
        %1781 = vmatpush1.msra.mxu0 %v1735
        %1782 = vmatprep.subr.mxu0 0.0
        %1783 = vmatpush1.msra.mxu0 %v1736
        %1784 = vmatprep.subr.mxu0 0.0
        %1785 = vmatpush1.msra.mxu0 %v1737
        %1786 = vmatprep.subr.mxu0 0.0
        %1787 = vmatpush1.msra.mxu0 %v1738
        %1788 = vmatprep.subr.mxu0 0.0
        %1789 = vmatpush1.msra.mxu0 %v1739
        %1790 = vmatprep.subr.mxu0 0.0
        %1791 = vmatpush1.msra.mxu0 %v1740
        %1792 = vmatprep.subr.mxu0 0.0
        %1793 = vmatpush1.msra.mxu0 %v1741
        %1794 = vmatprep.subr.mxu0 0.0
        %1795 = vmatpush1.msra.mxu0 %v1742
        %1796 = vmatprep.subr.mxu0 0.0
        %1797 = vmatpush1.msra.mxu0 %v1743
        %1798 = vmatprep.subr.mxu0 0.0
        %1799 = vmatpush1.msra.mxu0 %v1744
        %1800 = vmatprep.subr.mxu0 0.0
        %1801 = vmatpush1.msra.mxu0 %v1745
        %1802 = vmatprep.subr.mxu0 0.0
        %1803 = vmatpush1.msra.mxu0 %v1746
        %1804 = vmatprep.subr.mxu0 0.0
        %1805 = vmatpush1.msra.mxu0 %v1747
        %1806 = vmatprep.subr.mxu0 0.0
        %1807 = vmatpush1.msra.mxu0 %v1748
        %1808 = vmatprep.subr.mxu0 0.0
        %1809 = vmatpush1.msra.mxu0 %v1749
        %1810 = vmatprep.subr.mxu0 0.0
        %1811 = vmatpush1.msra.mxu0 %v1750
        %1812 = vmatprep.subr.mxu0 0.0
        %1813 = vmatpush1.msra.mxu0 %v1751
        %1814 = vmatprep.subr.mxu0 0.0
        %1815 = vmatpush1.msra.mxu0 %v1752
        %1816 = vmatprep.subr.mxu0 0.0
        %1817 = vmatpush1.msra.mxu0 %v1753
        %1818 = vmatprep.mubr.f32.mxu0 %v1093
        %1819 = vmatmul.mubr.f32.gmra.mrb[0].mxu0 %v1090
        %v1820 = vpop.f32.mrb[0].mxu0
        %v1821 = vadd.f32 0.0, %v1820
        %v1822 = vpop.f32.mrb[0].mxu0
        %1823 = vdwg.mxu0
        %v1824 = vadd.f32 %v1720, %v1821
        %v1825 = vld [vmem:[%s232] sm:$0xf8]
        %v1826 = vld [vmem:[%s232 + $0x8] sm:$0xf8]
        %v1827 = vld [vmem:[%s232 + $0x10] sm:$0x7]
        %v1828 = vld [vmem:[%s232 + $0x18] sm:$0x7]
        %s1829 = scalar_lea.vmem %s3, 1536
        %v1830 = vld [vmem:[%s1829] sm:$0xff]
        %v1831 = vld [vmem:[%s1829 + $0x8] sm:$0xff]
        %v1832 = vld [vmem:[%s1829 + $0x10] sm:$0xff]
        %v1833 = vld [vmem:[%s1829 + $0x18] sm:$0xff]
        %v1834 = vld [vmem:[%s1829 + $0x20] sm:$0xff]
        %v1835 = vld [vmem:[%s1829 + $0x28] sm:$0xff]
        %v1836 = vld [vmem:[%s1829 + $0x30] sm:$0xff]
        %v1837 = vld [vmem:[%s1829 + $0x38] sm:$0xff]
        %v1838 = vld [vmem:[%s1829 + $0x40] sm:$0xff]
        %v1839 = vld [vmem:[%s1829 + $0x48] sm:$0xff]
        %v1840 = vld [vmem:[%s1829 + $0x50] sm:$0xff]
        %v1841 = vld [vmem:[%s1829 + $0x58] sm:$0xff]
        %v1842 = vld [vmem:[%s1829 + $0x60] sm:$0xff]
        %v1843 = vld [vmem:[%s1829 + $0x68] sm:$0xff]
        %v1844 = vld [vmem:[%s1829 + $0x70] sm:$0xff]
        %v1845 = vld [vmem:[%s1829 + $0x78] sm:$0xff]
        %v1846 = vld [vmem:[%s1829 + $0x80] sm:$0xff]
        %v1847 = vld [vmem:[%s1829 + $0x88] sm:$0xff]
        %v1848 = vld [vmem:[%s1829 + $0x90] sm:$0xff]
        %v1849 = vld [vmem:[%s1829 + $0x98] sm:$0xff]
        %v1850 = vld [vmem:[%s1829 + $0xa0] sm:$0xff]
        %v1851 = vld [vmem:[%s1829 + $0xa8] sm:$0xff]
        %v1852 = vld [vmem:[%s1829 + $0xb0] sm:$0xff]
        %v1853 = vld [vmem:[%s1829 + $0xb8] sm:$0xff]
        %v1854 = vld [vmem:[%s1829 + $0xc0] sm:$0xff]
        %v1855 = vld [vmem:[%s1829 + $0xc8] sm:$0xff]
        %v1856 = vld [vmem:[%s1829 + $0xd0] sm:$0xff]
        %v1857 = vld [vmem:[%s1829 + $0xd8] sm:$0xff]
        %v1858 = vld [vmem:[%s1829 + $0xe0] sm:$0xff]
        %v1859 = vld [vmem:[%s1829 + $0xe8] sm:$0xff]
        %v1860 = vld [vmem:[%s1829 + $0xf0] sm:$0xff]
        %v1861 = vld [vmem:[%s1829 + $0xf8] sm:$0xff]
        %vm1866 = vcmask 1044480
        %v1867 = vrot.slane %v1825, 3
        %v1868 = vrot.slane %v1827, 3
        %v1869 = vsel %vm1866, %v1867, %v1868
        %v1870 = vrot.slane %v1826, 3
        %v1871 = vrot.slane %v1828, 3
        %v1872 = vsel %vm1866, %v1870, %v1871
        %1875 = vmatprep.subr.mxu0 0.0
        %1876 = vmatpush1.msra.mxu0 %v1830
        %1877 = vmatprep.subr.mxu0 0.0
        %1878 = vmatpush1.msra.mxu0 %v1831
        %1879 = vmatprep.subr.mxu0 0.0
        %1880 = vmatpush1.msra.mxu0 %v1832
        %1881 = vmatprep.subr.mxu0 0.0
        %1882 = vmatpush1.msra.mxu0 %v1833
        %1883 = vmatprep.subr.mxu0 0.0
        %1884 = vmatpush1.msra.mxu0 %v1834
        %1885 = vmatprep.subr.mxu0 0.0
        %1886 = vmatpush1.msra.mxu0 %v1835
        %1887 = vmatprep.subr.mxu0 0.0
        %1888 = vmatpush1.msra.mxu0 %v1836
        %1889 = vmatprep.subr.mxu0 0.0
        %1890 = vmatpush1.msra.mxu0 %v1837
        %1891 = vmatprep.subr.mxu0 0.0
        %1892 = vmatpush1.msra.mxu0 %v1838
        %1893 = vmatprep.subr.mxu0 0.0
        %1894 = vmatpush1.msra.mxu0 %v1839
        %1895 = vmatprep.subr.mxu0 0.0
        %1896 = vmatpush1.msra.mxu0 %v1840
        %1897 = vmatprep.subr.mxu0 0.0
        %1898 = vmatpush1.msra.mxu0 %v1841
        %1899 = vmatprep.subr.mxu0 0.0
        %1900 = vmatpush1.msra.mxu0 %v1842
        %1901 = vmatprep.subr.mxu0 0.0
        %1902 = vmatpush1.msra.mxu0 %v1843
        %1903 = vmatprep.subr.mxu0 0.0
        %1904 = vmatpush1.msra.mxu0 %v1844
        %1905 = vmatprep.subr.mxu0 0.0
        %1906 = vmatpush1.msra.mxu0 %v1845
        %1907 = vmatprep.subr.mxu0 0.0
        %1908 = vmatpush1.msra.mxu0 %v1846
        %1909 = vmatprep.subr.mxu0 0.0
        %1910 = vmatpush1.msra.mxu0 %v1847
        %1911 = vmatprep.subr.mxu0 0.0
        %1912 = vmatpush1.msra.mxu0 %v1848
        %1913 = vmatprep.subr.mxu0 0.0
        %1914 = vmatpush1.msra.mxu0 %v1849
        %1915 = vmatprep.subr.mxu0 0.0
        %1916 = vmatpush1.msra.mxu0 %v1850
        %1917 = vmatprep.subr.mxu0 0.0
        %1918 = vmatpush1.msra.mxu0 %v1851
        %1919 = vmatprep.subr.mxu0 0.0
        %1920 = vmatpush1.msra.mxu0 %v1852
        %1921 = vmatprep.subr.mxu0 0.0
        %1922 = vmatpush1.msra.mxu0 %v1853
        %1923 = vmatprep.subr.mxu0 0.0
        %1924 = vmatpush1.msra.mxu0 %v1854
        %1925 = vmatprep.subr.mxu0 0.0
        %1926 = vmatpush1.msra.mxu0 %v1855
        %1927 = vmatprep.subr.mxu0 0.0
        %1928 = vmatpush1.msra.mxu0 %v1856
        %1929 = vmatprep.subr.mxu0 0.0
        %1930 = vmatpush1.msra.mxu0 %v1857
        %1931 = vmatprep.subr.mxu0 0.0
        %1932 = vmatpush1.msra.mxu0 %v1858
        %1933 = vmatprep.subr.mxu0 0.0
        %1934 = vmatpush1.msra.mxu0 %v1859
        %1935 = vmatprep.subr.mxu0 0.0
        %1936 = vmatpush1.msra.mxu0 %v1860
        %1937 = vmatprep.subr.mxu0 0.0
        %1938 = vmatpush1.msra.mxu0 %v1861
        %1939 = vmatprep.mubr.f32.mxu0 %v1872
        %1940 = vmatmul.mubr.f32.gmra.mrb[0].mxu0 %v1869
        %v1941 = vpop.f32.mrb[0].mxu0
        %v1942 = vadd.f32 0.0, %v1941
        %v1943 = vpop.f32.mrb[0].mxu0
        %1944 = vdwg.mxu0
        %v1945 = vadd.f32 %v1824, %v1942
        %s1946 = sld [smem:[#allocation2 + $0x6]]
        %v1947 = vstv %s1946
        %v1948 = vadd.f32 %v1945, %v1947
        %v1949 = vmul.f32 %v1948, 0.5
        %v1950 = vmul.f32 %v1948, 0.70710677
        %vm1951 = vcmp.ge.f32.partialorder %v1950, 0.0
        %v1952 = vsel %vm1951, 1.0, -1.0
        %v1953 = vand.u32 2147483647, %v1950
        %v1954 = vmul.f32 %v1953, 0.3275911
        %v1955 = vadd.f32 %v1954, 1.0
        %v1956 = vrcp.pop %v1955
        %v1957 = vmul.f32 %v1956, 1.0614054
        %v1958 = vadd.f32 %v1957, -1.4531521
        %v1959 = vmul.f32 %v1956, %v1958
        %v1960 = vadd.f32 %v1959, 1.4214138
        %v1961 = vmul.f32 %v1956, %v1960
        %v1962 = vadd.f32 %v1961, -0.28449672
        %v1963 = vmul.f32 %v1956, %v1962
        %v1964 = vadd.f32 %v1963, 0.2548296
        %v1965 = vmul.f32 %v1956, %v1964
        %v1966 = vsub.f32 0.0, %v1953
        %v1967 = vmul.f32 %v1966, %v1953
        %v1968 = vmul.f32 %v1967, 1.442695
        %v1969 = vpow.pop %v1968
        %v1970 = vmul.f32 %v1965, %v1969
        %v1971 = vsub.f32 1.0, %v1970
        %v1972 = vmul.f32 %v1952, %v1971
        %v1973 = vadd.f32 %v1972, 1.0
        %v1974 = vmul.f32 %v1949, %v1973
        %s1975 = sld [smem:[#allocation2 + $0x7]]
        %v1976 = vstv %s1975
        %v1977 = vmul.f32 %v1974, %v1976
        %s1978 = sld [smem:[#allocation2 + $0x8]]
        %v1979 = vstv %s1978
        %v1980 = vadd.f32 %v1977, %v1979
        %v1981 = vadd.f32 %v631, %v1201
        %v1982 = vadd.f32 %v1981, %v1980
        %vm1983 = vcmask 523264
        %1984 = vst.msk [vmem:[%s236] sm:$0xff] %vm1983, %v1982
        %p1985 = scmp.lt.s32.totalorder %s17, 1
        %s1986 = scalar_select %p1985, %s17, 1
        %s1987 = smul.addr %s1986, 8
        %s1988 = scalar_lea.vmem %s5, %s1987
        // Predicated region
        $region45: #{dcla_forward.6} parent=39 // pred_check
          %p1989 = pneg %p145
        $region46: #{dcla_forward.6} parent=39 // pred_check_branch
          %1991 = sbr.rel (%p1989) target = $region48
        $region47: #{dcla_forward.6} parent=39 // pred_region
          _
        $region48: #{dcla_forward.6} parent=39 // pred_fallthru
          _
      $region40: #{dcla_forward.6} parent=5 // pred_fallthru
        _
      %p1992 = scmp.le.s32.totalorder 2, %s12
      // Predicated region
      $region49: #{dcla_forward.6} parent=5 // pred_check
        %p1993 = pneg %p1992
      $region50: #{dcla_forward.6} parent=5 // pred_check_branch
        %1995 = sbr.rel (%p1993) target = $region52
      $region51: #{dcla_forward.6} parent=5 // pred_region
        %s1996 = ssub.s32 %s12, 2
        // Predicated region
        $region53: #{dcla_forward.6} parent=51 // pred_check
          %p1997 = pneg %p151
        $region54: #{dcla_forward.6} parent=51 // pred_check_branch
          %1999 = sbr.rel (%p1997) target = $region56
        $region55: #{dcla_forward.6} parent=51 // pred_region
          %p2000 = scmp.lt.s32.totalorder %s18, 1
          %s2001 = scalar_select %p2000, %s18, 1
          %s2002 = smul.addr %s2001, 8
          %s2003 = scalar_lea.vmem %s5, %s2002
        $region56: #{dcla_forward.6} parent=51 // pred_fallthru
          _
      $region52: #{dcla_forward.6} parent=5 // pred_fallthru
        _
    $region6: #{dcla_forward.6} parent=1 // loop_footer
      %s16 = sadd.s32 1, %s12
    $region7: #{dcla_forward.6} parent=1 // loop_footer_branch
      %11 = sbr.rel target = $region3
    $region8: #{dcla_forward.6} parent=1 // loop_exit
      _
    %2004 = vsyncpa [#allocation3], 1
    %s2005 = scalar_lea.sflag [#allocation3], 1
    %2006 = vsyncpa %s2005, 1

// kernel: dcla_forward.9
$region0: #{dcla_forward.9}
  #allocation0 [shape = 'u32[]', space=smem, size = 0x4, offset = 0x4, fixed_abs, tag = 'smem constant byte address 0x4 - core index']
  #allocation1 [shape = 'u32[144,128]{1,0:T(1,128)}', space=vmem, size = 0x12000, scoped, tag = 'internal scratch']
  %s0 = inlined_call_operand.vmem [shape: f32[2,2,8,64], index: 0, kind: input, shape index: {}]
  %s1 = inlined_call_operand.vmem [shape: f32[2,4,8,64], index: 1, kind: input, shape index: {}]
  %s2 = inlined_call_operand.vmem [shape: f32[2,7,64,64], index: 2, kind: input, shape index: {}]
  %s3 = inlined_call_operand.vmem [shape: f32[3,64,64], index: 3, kind: input, shape index: {}]
  %s4 = inlined_call_operand.vmem [shape: f32[4], index: 4, kind: input, shape index: {}]
  %s5 = inlined_call_operand.vmem [shape: f32[4], index: 5, kind: input, shape index: {}]
  %s6 = inlined_call_operand.vmem [shape: f32[2,4,8,64], index: 6, kind: output, shape index: {}]
  %s7 = sld [smem:[#allocation0]]
  $region65: #{dcla_forward.9} parent=0
    _
  %s9 = ssub.s32 1, %s7
  %s10 = scalar_select 0, %s9, %s7
  $region1: #{dcla_forward.9} parent=0
    #allocation2 [shape = 'u8[512]{0}', space=smem, size = 0x200, scoped, tag = 'input window, operand 4, single buffered']
    #allocation3 [shape = 's32[2]{0}', space=sflag, size = 0x8, scoped, tag = 'scoped memory for dcla_forward.9']
    #allocation4 [shape = 'u8[512]{0}', space=smem, size = 0x200, scoped, tag = 'input window, operand 5, single buffered']
    #allocation5 [shape = 's32[1]{0}', space=sflag, size = 0x4, scoped, tag = 'scoped memory for dcla_forward.9']
    %11 = vsyncpa [#allocation3], 0
    %12 = vsyncpa [#allocation5], 0
    loop: start=0, step=1, limit=4
    $region2: #{dcla_forward.9} parent=1 // loop_pre_header
      _
    $region3: #{dcla_forward.9} parent=1 // loop_header
      %s14 = sphi 0, %s18
      %p15 = scmp.ge.s32.totalorder %s14, 4
      %s24 = sphi 0, %s26
      %s27 = sphi 0, %s24
      %s28 = sphi 0, %s27
      %s44 = sphi 0, %s28
      %s50 = sphi 0, %s52
      %s53 = sphi 0, %s50
      %s54 = sphi 0, %s53
      %s70 = sphi 0, %s54
      %s74 = sphi 0, %s74
      %s76 = sphi 0, %s74
      %s77 = sphi 0, %s76
      %s91 = sphi 0, %s77
      %s95 = sphi 0, %s95
      %s97 = sphi 0, %s95
      %s98 = sphi 0, %s97
      %s112 = sphi 0, %s98
      %s116 = sphi 0, %s116
      %s118 = sphi 0, %s116
      %s119 = sphi 0, %s118
      %s133 = sphi 0, %s119
      %s137 = sphi 0, %s137
      %s139 = sphi 0, %s137
      %s140 = sphi 0, %s139
      %s154 = sphi 0, %s140
      %s160 = sphi 0, %s162
      %s163 = sphi 0, %s160
      %s164 = sphi 0, %s163
      %s180 = sphi 0, %s164
    $region4: #{dcla_forward.9} parent=1 // loop_header_branch
      %17 = sbr.rel (%p15) target = $region8
    $region5: #{dcla_forward.9} parent=1 // loop_body
      %s19 = ssub.s32 %s14, 1
      %s20 = ssub.s32 %s14, 2
      %s21 = sadd.s32 %s14, 1
      %s22 = ssub.s32 %s14, %s21
      %p23 = scmp.eq.s32.totalorder %s22, 0
      %s25 = sadd.s32 %s24, 1
      %s26 = scalar_select %p23, %s24, %s25
      %p29 = pneg %p23
      %p30 = scmp.eq.s32.totalorder %s14, 1
      %p31 = por %p29, %p30
      %p32 = scmp.ne.s32.totalorder %s24, %s27
      %p33 = scmp.eq.s32.totalorder %s14, 0
      %p34 = por %p32, %p33
      %p35 = scmp.ne.s32.totalorder %s24, %s27
      %p36 = scmp.eq.s32.totalorder %s19, 1
      %p37 = por %p35, %p36
      %p38 = scmp.ne.s32.totalorder %s27, %s28
      %p39 = scmp.eq.s32.totalorder %s19, 0
      %p40 = por %p38, %p39
      %p41 = scmp.ne.s32.totalorder %s27, %s28
      %p42 = scmp.eq.s32.totalorder %s20, 1
      %p43 = por %p41, %p42
      %p45 = scmp.ne.s32.totalorder %s28, %s44
      %p46 = scmp.eq.s32.totalorder %s20, 0
      %p47 = por %p45, %p46
      %s48 = ssub.s32 %s14, %s21
      %p49 = scmp.eq.s32.totalorder %s48, 0
      %s51 = sadd.s32 %s50, 1
      %s52 = scalar_select %p49, %s50, %s51
      %p55 = pneg %p49
      %p56 = scmp.eq.s32.totalorder %s14, 1
      %p57 = por %p55, %p56
      %p58 = scmp.ne.s32.totalorder %s50, %s53
      %p59 = scmp.eq.s32.totalorder %s14, 0
      %p60 = por %p58, %p59
      %p61 = scmp.ne.s32.totalorder %s50, %s53
      %p62 = scmp.eq.s32.totalorder %s19, 1
      %p63 = por %p61, %p62
      %p64 = scmp.ne.s32.totalorder %s53, %s54
      %p65 = scmp.eq.s32.totalorder %s19, 0
      %p66 = por %p64, %p65
      %p67 = scmp.ne.s32.totalorder %s53, %s54
      %p68 = scmp.eq.s32.totalorder %s20, 1
      %p69 = por %p67, %p68
      %p71 = scmp.ne.s32.totalorder %s54, %s70
      %p72 = scmp.eq.s32.totalorder %s20, 0
      %p73 = por %p71, %p72
      %s75 = sadd.s32 %s74, 1
      %p78 = scmp.eq.s32.totalorder %s14, 1
      %p79 = scmp.ne.s32.totalorder %s74, %s76
      %p80 = scmp.eq.s32.totalorder %s14, 0
      %p81 = por %p79, %p80
      %p82 = scmp.ne.s32.totalorder %s74, %s76
      %p83 = scmp.eq.s32.totalorder %s19, 1
      %p84 = por %p82, %p83
      %p85 = scmp.ne.s32.totalorder %s76, %s77
      %p86 = scmp.eq.s32.totalorder %s19, 0
      %p87 = por %p85, %p86
      %p88 = scmp.ne.s32.totalorder %s76, %s77
      %p89 = scmp.eq.s32.totalorder %s20, 1
      %p90 = por %p88, %p89
      %p92 = scmp.ne.s32.totalorder %s77, %s91
      %p93 = scmp.eq.s32.totalorder %s20, 0
      %p94 = por %p92, %p93
      %s96 = sadd.s32 %s95, 1
      %p99 = scmp.eq.s32.totalorder %s14, 1
      %p100 = scmp.ne.s32.totalorder %s95, %s97
      %p101 = scmp.eq.s32.totalorder %s14, 0
      %p102 = por %p100, %p101
      %p103 = scmp.ne.s32.totalorder %s95, %s97
      %p104 = scmp.eq.s32.totalorder %s19, 1
      %p105 = por %p103, %p104
      %p106 = scmp.ne.s32.totalorder %s97, %s98
      %p107 = scmp.eq.s32.totalorder %s19, 0
      %p108 = por %p106, %p107
      %p109 = scmp.ne.s32.totalorder %s97, %s98
      %p110 = scmp.eq.s32.totalorder %s20, 1
      %p111 = por %p109, %p110
      %p113 = scmp.ne.s32.totalorder %s98, %s112
      %p114 = scmp.eq.s32.totalorder %s20, 0
      %p115 = por %p113, %p114
      %s117 = sadd.s32 %s116, 1
      %p120 = scmp.eq.s32.totalorder %s14, 1
      %p121 = scmp.ne.s32.totalorder %s116, %s118
      %p122 = scmp.eq.s32.totalorder %s14, 0
      %p123 = por %p121, %p122
      %p124 = scmp.ne.s32.totalorder %s116, %s118
      %p125 = scmp.eq.s32.totalorder %s19, 1
      %p126 = por %p124, %p125
      %p127 = scmp.ne.s32.totalorder %s118, %s119
      %p128 = scmp.eq.s32.totalorder %s19, 0
      %p129 = por %p127, %p128
      %p130 = scmp.ne.s32.totalorder %s118, %s119
      %p131 = scmp.eq.s32.totalorder %s20, 1
      %p132 = por %p130, %p131
      %p134 = scmp.ne.s32.totalorder %s119, %s133
      %p135 = scmp.eq.s32.totalorder %s20, 0
      %p136 = por %p134, %p135
      %s138 = sadd.s32 %s137, 1
      %p141 = scmp.eq.s32.totalorder %s14, 1
      %p142 = scmp.ne.s32.totalorder %s137, %s139
      %p143 = scmp.eq.s32.totalorder %s14, 0
      %p144 = por %p142, %p143
      %p145 = scmp.ne.s32.totalorder %s137, %s139
      %p146 = scmp.eq.s32.totalorder %s19, 1
      %p147 = por %p145, %p146
      %p148 = scmp.ne.s32.totalorder %s139, %s140
      %p149 = scmp.eq.s32.totalorder %s19, 0
      %p150 = por %p148, %p149
      %p151 = scmp.ne.s32.totalorder %s139, %s140
      %p152 = scmp.eq.s32.totalorder %s20, 1
      %p153 = por %p151, %p152
      %p155 = scmp.ne.s32.totalorder %s140, %s154
      %p156 = scmp.eq.s32.totalorder %s20, 0
      %p157 = por %p155, %p156
      %s158 = ssub.s32 %s14, %s21
      %p159 = scmp.eq.s32.totalorder %s158, 0
      %s161 = sadd.s32 %s160, 1
      %s162 = scalar_select %p159, %s160, %s161
      %p165 = pneg %p159
      %p166 = scmp.eq.s32.totalorder %s14, 1
      %p167 = por %p165, %p166
      %p168 = scmp.ne.s32.totalorder %s160, %s163
      %p169 = scmp.eq.s32.totalorder %s14, 0
      %p170 = por %p168, %p169
      %p171 = scmp.ne.s32.totalorder %s160, %s163
      %p172 = scmp.eq.s32.totalorder %s19, 1
      %p173 = por %p171, %p172
      %p174 = scmp.ne.s32.totalorder %s163, %s164
      %p175 = scmp.eq.s32.totalorder %s19, 0
      %p176 = por %p174, %p175
      %p177 = scmp.ne.s32.totalorder %s163, %s164
      %p178 = scmp.eq.s32.totalorder %s20, 1
      %p179 = por %p177, %p178
      %p181 = scmp.ne.s32.totalorder %s164, %s180
      %p182 = scmp.eq.s32.totalorder %s20, 0
      %p183 = por %p181, %p182
      %p184 = scmp.le.s32.totalorder 1, %s14
      %p185 = scmp.lt.s32.totalorder %s14, 3
      %p186 = pnand %p184, %p185
      %p187 = pneg %p186
      // Predicated region
      $region9: #{dcla_forward.9} parent=5 // pred_check
        _
      $region10: #{dcla_forward.9} parent=5 // pred_check_branch
        %189 = sbr.rel (%p186) target = $region12
      $region11: #{dcla_forward.9} parent=5 // pred_region
        %s190 = ssub.s32 %s14, 1
        // Predicated region
        $region13: #{dcla_forward.9} parent=11 // pred_check
          %p191 = pneg %p87
        $region14: #{dcla_forward.9} parent=11 // pred_check_branch
          %193 = sbr.rel (%p191) target = $region16
        $region15: #{dcla_forward.9} parent=11 // pred_region
          _
        $region16: #{dcla_forward.9} parent=11 // pred_fallthru
          _
        // Predicated region
        $region17: #{dcla_forward.9} parent=11 // pred_check
          %p194 = pneg %p108
        $region18: #{dcla_forward.9} parent=11 // pred_check_branch
          %196 = sbr.rel (%p194) target = $region20
        $region19: #{dcla_forward.9} parent=11 // pred_region
          _
        $region20: #{dcla_forward.9} parent=11 // pred_fallthru
          _
        // Predicated region
        $region21: #{dcla_forward.9} parent=11 // pred_check
          %p197 = pneg %p129
        $region22: #{dcla_forward.9} parent=11 // pred_check_branch
          %199 = sbr.rel (%p197) target = $region24
        $region23: #{dcla_forward.9} parent=11 // pred_region
          %s201 = ssub.s32 16, 16
          %202 = vsyncadd [#allocation3], %s201
          %s204 = sshll.u32 %s4, 4
          %s205 = int_to_ptr.vmem [resolvable:$true] %s204
          %207 = dma.vmem_to_smem %s205, 16, [#allocation2], [#allocation3]
        $region24: #{dcla_forward.9} parent=11 // pred_fallthru
          _
        // Predicated region
        $region25: #{dcla_forward.9} parent=11 // pred_check
          %p208 = pneg %p150
        $region26: #{dcla_forward.9} parent=11 // pred_check_branch
          %210 = sbr.rel (%p208) target = $region28
        $region27: #{dcla_forward.9} parent=11 // pred_region
          %s212 = ssub.s32 16, 16
          %213 = vsyncadd [#allocation5], %s212
          %s215 = sshll.u32 %s5, 4
          %s216 = int_to_ptr.vmem [resolvable:$true] %s215
          %218 = dma.vmem_to_smem %s216, 16, [#allocation4], [#allocation5]
        $region28: #{dcla_forward.9} parent=11 // pred_fallthru
          _
      $region12: #{dcla_forward.9} parent=5 // pred_fallthru
        _
      %p219 = scmp.lt.s32.totalorder %s14, 2
      // Predicated region
      $region29: #{dcla_forward.9} parent=5 // pred_check
        %p220 = pneg %p219
      $region30: #{dcla_forward.9} parent=5 // pred_check_branch
        %222 = sbr.rel (%p220) target = $region32
      $region31: #{dcla_forward.9} parent=5 // pred_region
        // Predicated region
        $region33: #{dcla_forward.9} parent=31 // pred_check
          %p223 = pneg %p34
        $region34: #{dcla_forward.9} parent=31 // pred_check_branch
          %225 = sbr.rel (%p223) target = $region36
        $region35: #{dcla_forward.9} parent=31 // pred_region
          %p226 = scmp.lt.s32.totalorder %s14, 1
          %s227 = scalar_select %p226, %s14, 1
          %s228 = smul.addr %s227, 2
          %s229 = smul.addr %s228, 8
          %s230 = scalar_lea.vmem %s0, %s229
        $region36: #{dcla_forward.9} parent=31 // pred_fallthru
          _
        // Predicated region
        $region37: #{dcla_forward.9} parent=31 // pred_check
          %p231 = pneg %p60
        $region38: #{dcla_forward.9} parent=31 // pred_check_branch
          %233 = sbr.rel (%p231) target = $region40
        $region39: #{dcla_forward.9} parent=31 // pred_region
          %p234 = scmp.lt.s32.totalorder %s14, 1
          %s235 = scalar_select %p234, %s14, 1
          %s236 = smul.addr %s235, 4
          %s237 = smul.addr %s236, 8
          %s238 = scalar_lea.vmem %s1, %s237
        $region40: #{dcla_forward.9} parent=31 // pred_fallthru
          _
      $region32: #{dcla_forward.9} parent=5 // pred_fallthru
        _
      %p239 = scmp.le.s32.totalorder 1, %s14
      %p240 = scmp.lt.s32.totalorder %s14, 3
      %p241 = pnand %p239, %p240
      %p242 = pneg %p241
      // Predicated region
      $region41: #{dcla_forward.9} parent=5 // pred_check
        _
      $region42: #{dcla_forward.9} parent=5 // pred_check_branch
        %244 = sbr.rel (%p241) target = $region44
      $region43: #{dcla_forward.9} parent=5 // pred_region
        %s245 = ssub.s32 %s14, 1
        // Predicated region
        $region45: #{dcla_forward.9} parent=43 // pred_check
          %p246 = pneg %p129
        $region46: #{dcla_forward.9} parent=43 // pred_check_branch
          %248 = sbr.rel (%p246) target = $region48
        $region47: #{dcla_forward.9} parent=43 // pred_region
          %249 = dma.done [#allocation3], 16
        $region48: #{dcla_forward.9} parent=43 // pred_fallthru
          _
        // Predicated region
        $region49: #{dcla_forward.9} parent=43 // pred_check
          %p250 = pneg %p150
        $region50: #{dcla_forward.9} parent=43 // pred_check_branch
          %252 = sbr.rel (%p250) target = $region52
        $region51: #{dcla_forward.9} parent=43 // pred_region
          %253 = dma.done [#allocation5], 16
        $region52: #{dcla_forward.9} parent=43 // pred_fallthru
          _
        %254 = sfence
        %p255 = scmp.lt.s32.totalorder %s19, 1
        %s256 = scalar_select %p255, %s19, 1
        %s257 = smul.addr %s256, 2
        %s258 = smul.addr %s257, 8
        %s259 = scalar_lea.vmem %s0, %s258
        %p260 = pneg %p40
        %p261 = pneg %p37
        %p262 = scmp.lt.s32.totalorder %s19, 1
        %s263 = scalar_select %p262, %s19, 1
        %s264 = smul.addr %s263, 4
        %s265 = smul.addr %s264, 8
        %s266 = scalar_lea.vmem %s1, %s265
        %p267 = pneg %p66
        %p268 = pneg %p63
        %p269 = pneg %p87
        %p270 = pneg %p84
        %p271 = pneg %p108
        %p272 = pneg %p105
        %p273 = pneg %p129
        %p274 = pneg %p126
        %p275 = pneg %p150
        %p276 = pneg %p147
        %p277 = pneg %p176
        %p278 = pneg %p173
        %p279 = scmp.lt.s32.totalorder %s19, 1
        %s280 = scalar_select %p279, %s19, 1
        %s281 = smul.addr %s280, 4
        %s282 = smul.addr %s281, 8
        %s283 = scalar_lea.vmem %s6, %s282
        %p284 = scmp.lt.s32.totalorder %s19, 1
        %s285 = scalar_select %p284, %s19, 1
        %s286 = smul.addr %s285, 2
        %s287 = smul.addr %s286, 8
        %s288 = scalar_lea.vmem %s0, %s287
        %p289 = scmp.lt.s32.totalorder %s19, 1
        %s290 = scalar_select %p289, %s19, 1
        %s291 = smul.addr %s290, 4
        %s292 = smul.addr %s291, 8
        %s293 = scalar_lea.vmem %s1, %s292
        %p294 = scmp.lt.s32.totalorder %s19, 1
        %s295 = scalar_select %p294, %s19, 1
        %s296 = smul.addr %s295, 4
        %s297 = smul.addr %s296, 8
        %s298 = scalar_lea.vmem %s6, %s297
        %v299 = vld [vmem:[%s288] sm:$0xff]
        %s300 = scalar_lea.vmem %s288, 8
        %v301 = vld [vmem:[%s300] sm:$0xff]
        %s302 = sld [smem:[#allocation2]]
        %v303 = vstv %s302
        %v304 = vmul.f32 %v303, %v299
        %s305 = sld [smem:[#allocation2 + $0x1]]
        %v306 = vstv %s305
        %v307 = vmul.f32 %v306, %v301
        %v308 = vadd.f32 %v304, %v307
        %v309 = vmul.f32 %v308, 0.5
        %v310 = vmul.f32 %v308, 0.70710677
        %vm311 = vcmp.ge.f32.partialorder %v310, 0.0
        %v312 = vsel %vm311, 1.0, -1.0
        %v313 = vand.u32 2147483647, %v310
        %v314 = vmul.f32 %v313, 0.3275911
        %v315 = vadd.f32 %v314, 1.0
        %v316 = vrcp.pop %v315
        %v317 = vmul.f32 %v316, 1.0614054
        %v318 = vadd.f32 %v317, -1.4531521
        %v319 = vmul.f32 %v316, %v318
        %v320 = vadd.f32 %v319, 1.4214138
        %v321 = vmul.f32 %v316, %v320
        %v322 = vadd.f32 %v321, -0.28449672
        %v323 = vmul.f32 %v316, %v322
        %v324 = vadd.f32 %v323, 0.2548296
        %v325 = vmul.f32 %v316, %v324
        %v326 = vsub.f32 0.0, %v313
        %v327 = vmul.f32 %v326, %v313
        %v328 = vmul.f32 %v327, 1.442695
        %v329 = vpow.pop %v328
        %v330 = vmul.f32 %v325, %v329
        %v331 = vsub.f32 1.0, %v330
        %v332 = vmul.f32 %v312, %v331
        %v333 = vadd.f32 %v332, 1.0
        %v334 = vmul.f32 %v309, %v333
        %s335 = sld [smem:[#allocation2 + $0x2]]
        %v336 = vstv %s335
        %v337 = vmul.f32 %v336, %v334
        %v338 = vxor.u32 %v337, 2147483648
        %v339 = vmul.f32 %v338, 1.442695
        %v340 = vpow.pop %v339
        %v341 = vadd.f32 %v340, 1.0
        %v342 = vrcp.pop %v341
        %v343 = vmul.f32 1.0, %v342
        %v344 = vmul.f32 %v343, %v299
        %s345 = sld [smem:[#allocation2 + $0x3]]
        %v346 = vstv %s345
        %v347 = vmul.f32 %v346, %v334
        %v348 = vxor.u32 %v347, 2147483648
        %v349 = vmul.f32 %v348, 1.442695
        %v350 = vpow.pop %v349
        %v351 = vadd.f32 %v350, 1.0
        %v352 = vrcp.pop %v351
        %v353 = vmul.f32 1.0, %v352
        %v354 = vmul.f32 %v353, %v301
        %v355 = vadd.f32 %v344, %v354
        %v356 = vmul.f32 %v355, 0.5
        %v357 = vmax.f32 %v344, %v354
        %v359 = vrot.slane %v356, 5
        %vm361 = vcmask 1042432
        %v362 = vsel %vm361, 0.0, %v359
        %v363 = vsel %vm361, %v359, 0.0
        %v365 = vrot.slane %v357, 5
        %v367 = vsel %vm361, 0.0, %v365
        %v368 = vsel %vm361, %v365, 0.0
        %v369 = vld [vmem:[%s2] sm:$0xff]
        %v370 = vld [vmem:[%s2 + $0x8] sm:$0xff]
        %v371 = vld [vmem:[%s2 + $0x10] sm:$0xff]
        %v372 = vld [vmem:[%s2 + $0x18] sm:$0xff]
        %v373 = vld [vmem:[%s2 + $0x20] sm:$0xff]
        %v374 = vld [vmem:[%s2 + $0x28] sm:$0xff]
        %v375 = vld [vmem:[%s2 + $0x30] sm:$0xff]
        %v376 = vld [vmem:[%s2 + $0x38] sm:$0xff]
        %s377 = scalar_lea.vmem %s2, 64
        %v378 = vld [vmem:[%s377] sm:$0xff]
        %v379 = vld [vmem:[%s377 + $0x8] sm:$0xff]
        %v380 = vld [vmem:[%s377 + $0x10] sm:$0xff]
        %v381 = vld [vmem:[%s377 + $0x18] sm:$0xff]
        %v382 = vld [vmem:[%s377 + $0x20] sm:$0xff]
        %v383 = vld [vmem:[%s377 + $0x28] sm:$0xff]
        %v384 = vld [vmem:[%s377 + $0x30] sm:$0xff]
        %v385 = vld [vmem:[%s377 + $0x38] sm:$0xff]
        %vm388 = vcmask 1046528
        %v389 = vrot.slane %v362, 1
        %v390 = vrot.slane %v363, 1
        %v391 = vsel %vm388, %v389, %v390
        %vm392 = vcmask 523264
        %v393 = vsel %vm392, %v391, 0
        %395 = vmatprep.subr.mxu0 0.0
        %396 = vmatpush1.msra.mxu0 %v378
        %397 = vmatprep.subr.mxu0 0.0
        %398 = vmatpush1.msra.mxu0 %v379
        %399 = vmatprep.subr.mxu0 0.0
        %400 = vmatpush1.msra.mxu0 %v380
        %401 = vmatprep.subr.mxu0 0.0
        %402 = vmatpush1.msra.mxu0 %v381
        %403 = vmatprep.subr.mxu0 0.0
        %404 = vmatpush1.msra.mxu0 %v382
        %405 = vmatprep.subr.mxu0 0.0
        %406 = vmatpush1.msra.mxu0 %v383
        %407 = vmatprep.subr.mxu0 0.0
        %408 = vmatpush1.msra.mxu0 %v384
        %409 = vmatprep.subr.mxu0 0.0
        %410 = vmatpush1.msra.mxu0 %v385
        %411 = vmatprep.subr.mxu0 0.0
        %412 = vmatpush1.msra.mxu0 0.0
        %413 = vmatprep.subr.mxu0 0.0
        %414 = vmatpush1.msra.mxu0 0.0
        %415 = vmatprep.subr.mxu0 0.0
        %416 = vmatpush1.msra.mxu0 0.0
        %417 = vmatprep.subr.mxu0 0.0
        %418 = vmatpush1.msra.mxu0 0.0
        %419 = vmatprep.subr.mxu0 0.0
        %420 = vmatpush1.msra.mxu0 0.0
        %421 = vmatprep.subr.mxu0 0.0
        %422 = vmatpush1.msra.mxu0 0.0
        %423 = vmatprep.subr.mxu0 0.0
        %424 = vmatpush1.msra.mxu0 0.0
        %425 = vmatprep.subr.mxu0 0.0
        %426 = vmatpush1.msra.mxu0 0.0
        %427 = vmatprep.subr.mxu0 0.0
        %428 = vmatpush1.msra.mxu0 0.0
        %429 = vmatprep.subr.mxu0 0.0
        %430 = vmatpush1.msra.mxu0 0.0
        %431 = vmatprep.subr.mxu0 0.0
        %432 = vmatpush1.msra.mxu0 0.0
        %433 = vmatprep.subr.mxu0 0.0
        %434 = vmatpush1.msra.mxu0 0.0
        %435 = vmatprep.subr.mxu0 0.0
        %436 = vmatpush1.msra.mxu0 0.0
        %437 = vmatprep.subr.mxu0 0.0
        %438 = vmatpush1.msra.mxu0 0.0
        %439 = vmatprep.subr.mxu0 0.0
        %440 = vmatpush1.msra.mxu0 0.0
        %441 = vmatprep.subr.mxu0 0.0
        %442 = vmatpush1.msra.mxu0 0.0
        %443 = vmatprep.subr.mxu0 0.0
        %444 = vmatpush1.msra.mxu0 0.0
        %445 = vmatprep.subr.mxu0 0.0
        %446 = vmatpush1.msra.mxu0 0.0
        %447 = vmatprep.subr.mxu0 0.0
        %448 = vmatpush1.msra.mxu0 0.0
        %449 = vmatprep.subr.mxu0 0.0
        %450 = vmatpush1.msra.mxu0 0.0
        %451 = vmatprep.subr.mxu0 0.0
        %452 = vmatpush1.msra.mxu0 0.0
        %453 = vmatprep.subr.mxu0 0.0
        %454 = vmatpush1.msra.mxu0 0.0
        %455 = vmatprep.subr.mxu0 0.0
        %456 = vmatpush1.msra.mxu0 0.0
        %457 = vmatprep.subr.mxu0 0.0
        %458 = vmatpush1.msra.mxu0 0.0
        %459 = vmatprep.mubr.f32.mxu0 0.0
        %460 = vmatmul.mubr.f32.gmra.mrb[0].mxu0 %v393
        %v461 = vpop.f32.mrb[0].mxu0
        %v462 = vadd.f32 0.0, %v461
        %v463 = vpop.f32.mrb[0].mxu0
        %464 = vdwg.mxu0
        %v465 = vsel %vm392, %v362, 0
        %467 = vmatprep.subr.mxu0 0.0
        %468 = vmatpush1.msra.mxu0 %v369
        %469 = vmatprep.subr.mxu0 0.0
        %470 = vmatpush1.msra.mxu0 %v370
        %471 = vmatprep.subr.mxu0 0.0
        %472 = vmatpush1.msra.mxu0 %v371
        %473 = vmatprep.subr.mxu0 0.0
        %474 = vmatpush1.msra.mxu0 %v372
        %475 = vmatprep.subr.mxu0 0.0
        %476 = vmatpush1.msra.mxu0 %v373
        %477 = vmatprep.subr.mxu0 0.0
        %478 = vmatpush1.msra.mxu0 %v374
        %479 = vmatprep.subr.mxu0 0.0
        %480 = vmatpush1.msra.mxu0 %v375
        %481 = vmatprep.subr.mxu0 0.0
        %482 = vmatpush1.msra.mxu0 %v376
        %483 = vmatprep.subr.mxu0 0.0
        %484 = vmatpush1.msra.mxu0 0.0
        %485 = vmatprep.subr.mxu0 0.0
        %486 = vmatpush1.msra.mxu0 0.0
        %487 = vmatprep.subr.mxu0 0.0
        %488 = vmatpush1.msra.mxu0 0.0
        %489 = vmatprep.subr.mxu0 0.0
        %490 = vmatpush1.msra.mxu0 0.0
        %491 = vmatprep.subr.mxu0 0.0
        %492 = vmatpush1.msra.mxu0 0.0
        %493 = vmatprep.subr.mxu0 0.0
        %494 = vmatpush1.msra.mxu0 0.0
        %495 = vmatprep.subr.mxu0 0.0
        %496 = vmatpush1.msra.mxu0 0.0
        %497 = vmatprep.subr.mxu0 0.0
        %498 = vmatpush1.msra.mxu0 0.0
        %499 = vmatprep.subr.mxu0 0.0
        %500 = vmatpush1.msra.mxu0 0.0
        %501 = vmatprep.subr.mxu0 0.0
        %502 = vmatpush1.msra.mxu0 0.0
        %503 = vmatprep.subr.mxu0 0.0
        %504 = vmatpush1.msra.mxu0 0.0
        %505 = vmatprep.subr.mxu0 0.0
        %506 = vmatpush1.msra.mxu0 0.0
        %507 = vmatprep.subr.mxu0 0.0
        %508 = vmatpush1.msra.mxu0 0.0
        %509 = vmatprep.subr.mxu0 0.0
        %510 = vmatpush1.msra.mxu0 0.0
        %511 = vmatprep.subr.mxu0 0.0
        %512 = vmatpush1.msra.mxu0 0.0
        %513 = vmatprep.subr.mxu0 0.0
        %514 = vmatpush1.msra.mxu0 0.0
        %515 = vmatprep.subr.mxu0 0.0
        %516 = vmatpush1.msra.mxu0 0.0
        %517 = vmatprep.subr.mxu0 0.0
        %518 = vmatpush1.msra.mxu0 0.0
        %519 = vmatprep.subr.mxu0 0.0
        %520 = vmatpush1.msra.mxu0 0.0
        %521 = vmatprep.subr.mxu0 0.0
        %522 = vmatpush1.msra.mxu0 0.0
        %523 = vmatprep.subr.mxu0 0.0
        %524 = vmatpush1.msra.mxu0 0.0
        %525 = vmatprep.subr.mxu0 0.0
        %526 = vmatpush1.msra.mxu0 0.0
        %527 = vmatprep.subr.mxu0 0.0
        %528 = vmatpush1.msra.mxu0 0.0
        %529 = vmatprep.subr.mxu0 0.0
        %530 = vmatpush1.msra.mxu0 0.0
        %531 = vmatprep.mubr.f32.mxu0 0.0
        %532 = vmatmul.mubr.f32.gmra.mrb[0].mxu0 %v465
        %v533 = vpop.f32.mrb[0].mxu0
        %v534 = vadd.f32 %v462, %v533
        %v535 = vpop.f32.mrb[0].mxu0
        %536 = vdwg.mxu0
        %s537 = scalar_lea.vmem %s2, 128
        %v538 = vld [vmem:[%s537] sm:$0xff]
        %v539 = vld [vmem:[%s537 + $0x8] sm:$0xff]
        %v540 = vld [vmem:[%s537 + $0x10] sm:$0xff]
        %v541 = vld [vmem:[%s537 + $0x18] sm:$0xff]
        %v542 = vld [vmem:[%s537 + $0x20] sm:$0xff]
        %v543 = vld [vmem:[%s537 + $0x28] sm:$0xff]
        %v544 = vld [vmem:[%s537 + $0x30] sm:$0xff]
        %v545 = vld [vmem:[%s537 + $0x38] sm:$0xff]
        %vm546 = vcmask 1045504
        %v547 = vrot.slane %v362, 2
        %v548 = vrot.slane %v363, 2
        %v549 = vsel %vm546, %v547, %v548
        %v550 = vsel %vm392, %v549, 0
        %552 = vmatprep.subr.mxu0 0.0
        %553 = vmatpush1.msra.mxu0 %v538
        %554 = vmatprep.subr.mxu0 0.0
        %555 = vmatpush1.msra.mxu0 %v539
        %556 = vmatprep.subr.mxu0 0.0
        %557 = vmatpush1.msra.mxu0 %v540
        %558 = vmatprep.subr.mxu0 0.0
        %559 = vmatpush1.msra.mxu0 %v541
        %560 = vmatprep.subr.mxu0 0.0
        %561 = vmatpush1.msra.mxu0 %v542
        %562 = vmatprep.subr.mxu0 0.0
        %563 = vmatpush1.msra.mxu0 %v543
        %564 = vmatprep.subr.mxu0 0.0
        %565 = vmatpush1.msra.mxu0 %v544
        %566 = vmatprep.subr.mxu0 0.0
        %567 = vmatpush1.msra.mxu0 %v545
        %568 = vmatprep.subr.mxu0 0.0
        %569 = vmatpush1.msra.mxu0 0.0
        %570 = vmatprep.subr.mxu0 0.0
        %571 = vmatpush1.msra.mxu0 0.0
        %572 = vmatprep.subr.mxu0 0.0
        %573 = vmatpush1.msra.mxu0 0.0
        %574 = vmatprep.subr.mxu0 0.0
        %575 = vmatpush1.msra.mxu0 0.0
        %576 = vmatprep.subr.mxu0 0.0
        %577 = vmatpush1.msra.mxu0 0.0
        %578 = vmatprep.subr.mxu0 0.0
        %579 = vmatpush1.msra.mxu0 0.0
        %580 = vmatprep.subr.mxu0 0.0
        %581 = vmatpush1.msra.mxu0 0.0
        %582 = vmatprep.subr.mxu0 0.0
        %583 = vmatpush1.msra.mxu0 0.0
        %584 = vmatprep.subr.mxu0 0.0
        %585 = vmatpush1.msra.mxu0 0.0
        %586 = vmatprep.subr.mxu0 0.0
        %587 = vmatpush1.msra.mxu0 0.0
        %588 = vmatprep.subr.mxu0 0.0
        %589 = vmatpush1.msra.mxu0 0.0
        %590 = vmatprep.subr.mxu0 0.0
        %591 = vmatpush1.msra.mxu0 0.0
        %592 = vmatprep.subr.mxu0 0.0
        %593 = vmatpush1.msra.mxu0 0.0
        %594 = vmatprep.subr.mxu0 0.0
        %595 = vmatpush1.msra.mxu0 0.0
        %596 = vmatprep.subr.mxu0 0.0
        %597 = vmatpush1.msra.mxu0 0.0
        %598 = vmatprep.subr.mxu0 0.0
        %599 = vmatpush1.msra.mxu0 0.0
        %600 = vmatprep.subr.mxu0 0.0
        %601 = vmatpush1.msra.mxu0 0.0
        %602 = vmatprep.subr.mxu0 0.0
        %603 = vmatpush1.msra.mxu0 0.0
        %604 = vmatprep.subr.mxu0 0.0
        %605 = vmatpush1.msra.mxu0 0.0
        %606 = vmatprep.subr.mxu0 0.0
        %607 = vmatpush1.msra.mxu0 0.0
        %608 = vmatprep.subr.mxu0 0.0
        %609 = vmatpush1.msra.mxu0 0.0
        %610 = vmatprep.subr.mxu0 0.0
        %611 = vmatpush1.msra.mxu0 0.0
        %612 = vmatprep.subr.mxu0 0.0
        %613 = vmatpush1.msra.mxu0 0.0
        %614 = vmatprep.subr.mxu0 0.0
        %615 = vmatpush1.msra.mxu0 0.0
        %616 = vmatprep.mubr.f32.mxu0 0.0
        %617 = vmatmul.mubr.f32.gmra.mrb[0].mxu0 %v550
        %v618 = vpop.f32.mrb[0].mxu0
        %v619 = vadd.f32 0.0, %v618
        %v620 = vpop.f32.mrb[0].mxu0
        %621 = vdwg.mxu0
        %v622 = vadd.f32 %v534, %v619
        %s623 = scalar_lea.vmem %s2, 192
        %v624 = vld [vmem:[%s623] sm:$0xff]
        %v625 = vld [vmem:[%s623 + $0x8] sm:$0xff]
        %v626 = vld [vmem:[%s623 + $0x10] sm:$0xff]
        %v627 = vld [vmem:[%s623 + $0x18] sm:$0xff]
        %v628 = vld [vmem:[%s623 + $0x20] sm:$0xff]
        %v629 = vld [vmem:[%s623 + $0x28] sm:$0xff]
        %v630 = vld [vmem:[%s623 + $0x30] sm:$0xff]
        %v631 = vld [vmem:[%s623 + $0x38] sm:$0xff]
        %vm632 = vcmask 1044480
        %v633 = vrot.slane %v362, 3
        %v634 = vrot.slane %v363, 3
        %v635 = vsel %vm632, %v633, %v634
        %v636 = vsel %vm392, %v635, 0
        %638 = vmatprep.subr.mxu0 0.0
        %639 = vmatpush1.msra.mxu0 %v624
        %640 = vmatprep.subr.mxu0 0.0
        %641 = vmatpush1.msra.mxu0 %v625
        %642 = vmatprep.subr.mxu0 0.0
        %643 = vmatpush1.msra.mxu0 %v626
        %644 = vmatprep.subr.mxu0 0.0
        %645 = vmatpush1.msra.mxu0 %v627
        %646 = vmatprep.subr.mxu0 0.0
        %647 = vmatpush1.msra.mxu0 %v628
        %648 = vmatprep.subr.mxu0 0.0
        %649 = vmatpush1.msra.mxu0 %v629
        %650 = vmatprep.subr.mxu0 0.0
        %651 = vmatpush1.msra.mxu0 %v630
        %652 = vmatprep.subr.mxu0 0.0
        %653 = vmatpush1.msra.mxu0 %v631
        %654 = vmatprep.subr.mxu0 0.0
        %655 = vmatpush1.msra.mxu0 0.0
        %656 = vmatprep.subr.mxu0 0.0
        %657 = vmatpush1.msra.mxu0 0.0
        %658 = vmatprep.subr.mxu0 0.0
        %659 = vmatpush1.msra.mxu0 0.0
        %660 = vmatprep.subr.mxu0 0.0
        %661 = vmatpush1.msra.mxu0 0.0
        %662 = vmatprep.subr.mxu0 0.0
        %663 = vmatpush1.msra.mxu0 0.0
        %664 = vmatprep.subr.mxu0 0.0
        %665 = vmatpush1.msra.mxu0 0.0
        %666 = vmatprep.subr.mxu0 0.0
        %667 = vmatpush1.msra.mxu0 0.0
        %668 = vmatprep.subr.mxu0 0.0
        %669 = vmatpush1.msra.mxu0 0.0
        %670 = vmatprep.subr.mxu0 0.0
        %671 = vmatpush1.msra.mxu0 0.0
        %672 = vmatprep.subr.mxu0 0.0
        %673 = vmatpush1.msra.mxu0 0.0
        %674 = vmatprep.subr.mxu0 0.0
        %675 = vmatpush1.msra.mxu0 0.0
        %676 = vmatprep.subr.mxu0 0.0
        %677 = vmatpush1.msra.mxu0 0.0
        %678 = vmatprep.subr.mxu0 0.0
        %679 = vmatpush1.msra.mxu0 0.0
        %680 = vmatprep.subr.mxu0 0.0
        %681 = vmatpush1.msra.mxu0 0.0
        %682 = vmatprep.subr.mxu0 0.0
        %683 = vmatpush1.msra.mxu0 0.0
        %684 = vmatprep.subr.mxu0 0.0
        %685 = vmatpush1.msra.mxu0 0.0
        %686 = vmatprep.subr.mxu0 0.0
        %687 = vmatpush1.msra.mxu0 0.0
        %688 = vmatprep.subr.mxu0 0.0
        %689 = vmatpush1.msra.mxu0 0.0
        %690 = vmatprep.subr.mxu0 0.0
        %691 = vmatpush1.msra.mxu0 0.0
        %692 = vmatprep.subr.mxu0 0.0
        %693 = vmatpush1.msra.mxu0 0.0
        %694 = vmatprep.subr.mxu0 0.0
        %695 = vmatpush1.msra.mxu0 0.0
        %696 = vmatprep.subr.mxu0 0.0
        %697 = vmatpush1.msra.mxu0 0.0
        %698 = vmatprep.subr.mxu0 0.0
        %699 = vmatpush1.msra.mxu0 0.0
        %700 = vmatprep.subr.mxu0 0.0
        %701 = vmatpush1.msra.mxu0 0.0
        %702 = vmatprep.mubr.f32.mxu0 0.0
        %703 = vmatmul.mubr.f32.gmra.mrb[0].mxu0 %v636
        %v704 = vpop.f32.mrb[0].mxu0
        %v705 = vadd.f32 0.0, %v704
        %v706 = vpop.f32.mrb[0].mxu0
        %707 = vdwg.mxu0
        %v708 = vadd.f32 %v622, %v705
        %s709 = scalar_lea.vmem %s2, 256
        %v710 = vld [vmem:[%s709] sm:$0xff]
        %v711 = vld [vmem:[%s709 + $0x8] sm:$0xff]
        %v712 = vld [vmem:[%s709 + $0x10] sm:$0xff]
        %v713 = vld [vmem:[%s709 + $0x18] sm:$0xff]
        %v714 = vld [vmem:[%s709 + $0x20] sm:$0xff]
        %v715 = vld [vmem:[%s709 + $0x28] sm:$0xff]
        %v716 = vld [vmem:[%s709 + $0x30] sm:$0xff]
        %v717 = vld [vmem:[%s709 + $0x38] sm:$0xff]
        %vm718 = vcmask 1043456
        %v719 = vrot.slane %v362, 4
        %v720 = vrot.slane %v363, 4
        %v721 = vsel %vm718, %v719, %v720
        %v722 = vsel %vm392, %v721, 0
        %724 = vmatprep.subr.mxu0 0.0
        %725 = vmatpush1.msra.mxu0 %v710
        %726 = vmatprep.subr.mxu0 0.0
        %727 = vmatpush1.msra.mxu0 %v711
        %728 = vmatprep.subr.mxu0 0.0
        %729 = vmatpush1.msra.mxu0 %v712
        %730 = vmatprep.subr.mxu0 0.0
        %731 = vmatpush1.msra.mxu0 %v713
        %732 = vmatprep.subr.mxu0 0.0
        %733 = vmatpush1.msra.mxu0 %v714
        %734 = vmatprep.subr.mxu0 0.0
        %735 = vmatpush1.msra.mxu0 %v715
        %736 = vmatprep.subr.mxu0 0.0
        %737 = vmatpush1.msra.mxu0 %v716
        %738 = vmatprep.subr.mxu0 0.0
        %739 = vmatpush1.msra.mxu0 %v717
        %740 = vmatprep.subr.mxu0 0.0
        %741 = vmatpush1.msra.mxu0 0.0
        %742 = vmatprep.subr.mxu0 0.0
        %743 = vmatpush1.msra.mxu0 0.0
        %744 = vmatprep.subr.mxu0 0.0
        %745 = vmatpush1.msra.mxu0 0.0
        %746 = vmatprep.subr.mxu0 0.0
        %747 = vmatpush1.msra.mxu0 0.0
        %748 = vmatprep.subr.mxu0 0.0
        %749 = vmatpush1.msra.mxu0 0.0
        %750 = vmatprep.subr.mxu0 0.0
        %751 = vmatpush1.msra.mxu0 0.0
        %752 = vmatprep.subr.mxu0 0.0
        %753 = vmatpush1.msra.mxu0 0.0
        %754 = vmatprep.subr.mxu0 0.0
        %755 = vmatpush1.msra.mxu0 0.0
        %756 = vmatprep.subr.mxu0 0.0
        %757 = vmatpush1.msra.mxu0 0.0
        %758 = vmatprep.subr.mxu0 0.0
        %759 = vmatpush1.msra.mxu0 0.0
        %760 = vmatprep.subr.mxu0 0.0
        %761 = vmatpush1.msra.mxu0 0.0
        %762 = vmatprep.subr.mxu0 0.0
        %763 = vmatpush1.msra.mxu0 0.0
        %764 = vmatprep.subr.mxu0 0.0
        %765 = vmatpush1.msra.mxu0 0.0
        %766 = vmatprep.subr.mxu0 0.0
        %767 = vmatpush1.msra.mxu0 0.0
        %768 = vmatprep.subr.mxu0 0.0
        %769 = vmatpush1.msra.mxu0 0.0
        %770 = vmatprep.subr.mxu0 0.0
        %771 = vmatpush1.msra.mxu0 0.0
        %772 = vmatprep.subr.mxu0 0.0
        %773 = vmatpush1.msra.mxu0 0.0
        %774 = vmatprep.subr.mxu0 0.0
        %775 = vmatpush1.msra.mxu0 0.0
        %776 = vmatprep.subr.mxu0 0.0
        %777 = vmatpush1.msra.mxu0 0.0
        %778 = vmatprep.subr.mxu0 0.0
        %779 = vmatpush1.msra.mxu0 0.0
        %780 = vmatprep.subr.mxu0 0.0
        %781 = vmatpush1.msra.mxu0 0.0
        %782 = vmatprep.subr.mxu0 0.0
        %783 = vmatpush1.msra.mxu0 0.0
        %784 = vmatprep.subr.mxu0 0.0
        %785 = vmatpush1.msra.mxu0 0.0
        %786 = vmatprep.subr.mxu0 0.0
        %787 = vmatpush1.msra.mxu0 0.0
        %788 = vmatprep.mubr.f32.mxu0 0.0
        %789 = vmatmul.mubr.f32.gmra.mrb[0].mxu0 %v722
        %v790 = vpop.f32.mrb[0].mxu0
        %v791 = vadd.f32 0.0, %v790
        %v792 = vpop.f32.mrb[0].mxu0
        %793 = vdwg.mxu0
        %v794 = vadd.f32 %v708, %v791
        %s795 = scalar_lea.vmem %s2, 320
        %v796 = vld [vmem:[%s795] sm:$0xff]
        %v797 = vld [vmem:[%s795 + $0x8] sm:$0xff]
        %v798 = vld [vmem:[%s795 + $0x10] sm:$0xff]
        %v799 = vld [vmem:[%s795 + $0x18] sm:$0xff]
        %v800 = vld [vmem:[%s795 + $0x20] sm:$0xff]
        %v801 = vld [vmem:[%s795 + $0x28] sm:$0xff]
        %v802 = vld [vmem:[%s795 + $0x30] sm:$0xff]
        %v803 = vld [vmem:[%s795 + $0x38] sm:$0xff]
        %v804 = vrot.slane %v362, 5
        %v805 = vrot.slane %v363, 5
        %v806 = vsel %vm361, %v804, %v805
        %v807 = vsel %vm392, %v806, 0
        %809 = vmatprep.subr.mxu0 0.0
        %810 = vmatpush1.msra.mxu0 %v796
        %811 = vmatprep.subr.mxu0 0.0
        %812 = vmatpush1.msra.mxu0 %v797
        %813 = vmatprep.subr.mxu0 0.0
        %814 = vmatpush1.msra.mxu0 %v798
        %815 = vmatprep.subr.mxu0 0.0
        %816 = vmatpush1.msra.mxu0 %v799
        %817 = vmatprep.subr.mxu0 0.0
        %818 = vmatpush1.msra.mxu0 %v800
        %819 = vmatprep.subr.mxu0 0.0
        %820 = vmatpush1.msra.mxu0 %v801
        %821 = vmatprep.subr.mxu0 0.0
        %822 = vmatpush1.msra.mxu0 %v802
        %823 = vmatprep.subr.mxu0 0.0
        %824 = vmatpush1.msra.mxu0 %v803
        %825 = vmatprep.subr.mxu0 0.0
        %826 = vmatpush1.msra.mxu0 0.0
        %827 = vmatprep.subr.mxu0 0.0
        %828 = vmatpush1.msra.mxu0 0.0
        %829 = vmatprep.subr.mxu0 0.0
        %830 = vmatpush1.msra.mxu0 0.0
        %831 = vmatprep.subr.mxu0 0.0
        %832 = vmatpush1.msra.mxu0 0.0
        %833 = vmatprep.subr.mxu0 0.0
        %834 = vmatpush1.msra.mxu0 0.0
        %835 = vmatprep.subr.mxu0 0.0
        %836 = vmatpush1.msra.mxu0 0.0
        %837 = vmatprep.subr.mxu0 0.0
        %838 = vmatpush1.msra.mxu0 0.0
        %839 = vmatprep.subr.mxu0 0.0
        %840 = vmatpush1.msra.mxu0 0.0
        %841 = vmatprep.subr.mxu0 0.0
        %842 = vmatpush1.msra.mxu0 0.0
        %843 = vmatprep.subr.mxu0 0.0
        %844 = vmatpush1.msra.mxu0 0.0
        %845 = vmatprep.subr.mxu0 0.0
        %846 = vmatpush1.msra.mxu0 0.0
        %847 = vmatprep.subr.mxu0 0.0
        %848 = vmatpush1.msra.mxu0 0.0
        %849 = vmatprep.subr.mxu0 0.0
        %850 = vmatpush1.msra.mxu0 0.0
        %851 = vmatprep.subr.mxu0 0.0
        %852 = vmatpush1.msra.mxu0 0.0
        %853 = vmatprep.subr.mxu0 0.0
        %854 = vmatpush1.msra.mxu0 0.0
        %855 = vmatprep.subr.mxu0 0.0
        %856 = vmatpush1.msra.mxu0 0.0
        %857 = vmatprep.subr.mxu0 0.0
        %858 = vmatpush1.msra.mxu0 0.0
        %859 = vmatprep.subr.mxu0 0.0
        %860 = vmatpush1.msra.mxu0 0.0
        %861 = vmatprep.subr.mxu0 0.0
        %862 = vmatpush1.msra.mxu0 0.0
        %863 = vmatprep.subr.mxu0 0.0
        %864 = vmatpush1.msra.mxu0 0.0
        %865 = vmatprep.subr.mxu0 0.0
        %866 = vmatpush1.msra.mxu0 0.0
        %867 = vmatprep.subr.mxu0 0.0
        %868 = vmatpush1.msra.mxu0 0.0
        %869 = vmatprep.subr.mxu0 0.0
        %870 = vmatpush1.msra.mxu0 0.0
        %871 = vmatprep.subr.mxu0 0.0
        %872 = vmatpush1.msra.mxu0 0.0
        %873 = vmatprep.mubr.f32.mxu0 0.0
        %874 = vmatmul.mubr.f32.gmra.mrb[0].mxu0 %v807
        %v875 = vpop.f32.mrb[0].mxu0
        %v876 = vadd.f32 0.0, %v875
        %v877 = vpop.f32.mrb[0].mxu0
        %878 = vdwg.mxu0
        %v879 = vadd.f32 %v794, %v876
        %s880 = scalar_lea.vmem %s2, 384
        %v881 = vld [vmem:[%s880] sm:$0xff]
        %v882 = vld [vmem:[%s880 + $0x8] sm:$0xff]
        %v883 = vld [vmem:[%s880 + $0x10] sm:$0xff]
        %v884 = vld [vmem:[%s880 + $0x18] sm:$0xff]
        %v885 = vld [vmem:[%s880 + $0x20] sm:$0xff]
        %v886 = vld [vmem:[%s880 + $0x28] sm:$0xff]
        %v887 = vld [vmem:[%s880 + $0x30] sm:$0xff]
        %v888 = vld [vmem:[%s880 + $0x38] sm:$0xff]
        %vm889 = vcmask 1041408
        %v890 = vrot.slane %v362, 6
        %v891 = vrot.slane %v363, 6
        %v892 = vsel %vm889, %v890, %v891
        %v893 = vsel %vm392, %v892, 0
        %895 = vmatprep.subr.mxu0 0.0
        %896 = vmatpush1.msra.mxu0 %v881
        %897 = vmatprep.subr.mxu0 0.0
        %898 = vmatpush1.msra.mxu0 %v882
        %899 = vmatprep.subr.mxu0 0.0
        %900 = vmatpush1.msra.mxu0 %v883
        %901 = vmatprep.subr.mxu0 0.0
        %902 = vmatpush1.msra.mxu0 %v884
        %903 = vmatprep.subr.mxu0 0.0
        %904 = vmatpush1.msra.mxu0 %v885
        %905 = vmatprep.subr.mxu0 0.0
        %906 = vmatpush1.msra.mxu0 %v886
        %907 = vmatprep.subr.mxu0 0.0
        %908 = vmatpush1.msra.mxu0 %v887
        %909 = vmatprep.subr.mxu0 0.0
        %910 = vmatpush1.msra.mxu0 %v888
        %911 = vmatprep.subr.mxu0 0.0
        %912 = vmatpush1.msra.mxu0 0.0
        %913 = vmatprep.subr.mxu0 0.0
        %914 = vmatpush1.msra.mxu0 0.0
        %915 = vmatprep.subr.mxu0 0.0
        %916 = vmatpush1.msra.mxu0 0.0
        %917 = vmatprep.subr.mxu0 0.0
        %918 = vmatpush1.msra.mxu0 0.0
        %919 = vmatprep.subr.mxu0 0.0
        %920 = vmatpush1.msra.mxu0 0.0
        %921 = vmatprep.subr.mxu0 0.0
        %922 = vmatpush1.msra.mxu0 0.0
        %923 = vmatprep.subr.mxu0 0.0
        %924 = vmatpush1.msra.mxu0 0.0
        %925 = vmatprep.subr.mxu0 0.0
        %926 = vmatpush1.msra.mxu0 0.0
        %927 = vmatprep.subr.mxu0 0.0
        %928 = vmatpush1.msra.mxu0 0.0
        %929 = vmatprep.subr.mxu0 0.0
        %930 = vmatpush1.msra.mxu0 0.0
        %931 = vmatprep.subr.mxu0 0.0
        %932 = vmatpush1.msra.mxu0 0.0
        %933 = vmatprep.subr.mxu0 0.0
        %934 = vmatpush1.msra.mxu0 0.0
        %935 = vmatprep.subr.mxu0 0.0
        %936 = vmatpush1.msra.mxu0 0.0
        %937 = vmatprep.subr.mxu0 0.0
        %938 = vmatpush1.msra.mxu0 0.0
        %939 = vmatprep.subr.mxu0 0.0
        %940 = vmatpush1.msra.mxu0 0.0
        %941 = vmatprep.subr.mxu0 0.0
        %942 = vmatpush1.msra.mxu0 0.0
        %943 = vmatprep.subr.mxu0 0.0
        %944 = vmatpush1.msra.mxu0 0.0
        %945 = vmatprep.subr.mxu0 0.0
        %946 = vmatpush1.msra.mxu0 0.0
        %947 = vmatprep.subr.mxu0 0.0
        %948 = vmatpush1.msra.mxu0 0.0
        %949 = vmatprep.subr.mxu0 0.0
        %950 = vmatpush1.msra.mxu0 0.0
        %951 = vmatprep.subr.mxu0 0.0
        %952 = vmatpush1.msra.mxu0 0.0
        %953 = vmatprep.subr.mxu0 0.0
        %954 = vmatpush1.msra.mxu0 0.0
        %955 = vmatprep.subr.mxu0 0.0
        %956 = vmatpush1.msra.mxu0 0.0
        %957 = vmatprep.subr.mxu0 0.0
        %958 = vmatpush1.msra.mxu0 0.0
        %959 = vmatprep.mubr.f32.mxu0 0.0
        %960 = vmatmul.mubr.f32.gmra.mrb[0].mxu0 %v893
        %v961 = vpop.f32.mrb[0].mxu0
        %v962 = vadd.f32 0.0, %v961
        %v963 = vpop.f32.mrb[0].mxu0
        %964 = vdwg.mxu0
        %v965 = vadd.f32 %v879, %v962
        %s966 = scalar_lea.vmem %s2, 448
        %v967 = vld [vmem:[%s966] sm:$0xff]
        %v968 = vld [vmem:[%s966 + $0x8] sm:$0xff]
        %v969 = vld [vmem:[%s966 + $0x10] sm:$0xff]
        %v970 = vld [vmem:[%s966 + $0x18] sm:$0xff]
        %v971 = vld [vmem:[%s966 + $0x20] sm:$0xff]
        %v972 = vld [vmem:[%s966 + $0x28] sm:$0xff]
        %v973 = vld [vmem:[%s966 + $0x30] sm:$0xff]
        %v974 = vld [vmem:[%s966 + $0x38] sm:$0xff]
        %v976 = vsel %vm392, %v367, 0
        %978 = vmatprep.subr.mxu0 0.0
        %979 = vmatpush1.msra.mxu0 %v967
        %980 = vmatprep.subr.mxu0 0.0
        %981 = vmatpush1.msra.mxu0 %v968
        %982 = vmatprep.subr.mxu0 0.0
        %983 = vmatpush1.msra.mxu0 %v969
        %984 = vmatprep.subr.mxu0 0.0
        %985 = vmatpush1.msra.mxu0 %v970
        %986 = vmatprep.subr.mxu0 0.0
        %987 = vmatpush1.msra.mxu0 %v971
        %988 = vmatprep.subr.mxu0 0.0
        %989 = vmatpush1.msra.mxu0 %v972
        %990 = vmatprep.subr.mxu0 0.0
        %991 = vmatpush1.msra.mxu0 %v973
        %992 = vmatprep.subr.mxu0 0.0
        %993 = vmatpush1.msra.mxu0 %v974
        %994 = vmatprep.subr.mxu0 0.0
        %995 = vmatpush1.msra.mxu0 0.0
        %996 = vmatprep.subr.mxu0 0.0
        %997 = vmatpush1.msra.mxu0 0.0
        %998 = vmatprep.subr.mxu0 0.0
        %999 = vmatpush1.msra.mxu0 0.0
        %1000 = vmatprep.subr.mxu0 0.0
        %1001 = vmatpush1.msra.mxu0 0.0
        %1002 = vmatprep.subr.mxu0 0.0
        %1003 = vmatpush1.msra.mxu0 0.0
        %1004 = vmatprep.subr.mxu0 0.0
        %1005 = vmatpush1.msra.mxu0 0.0
        %1006 = vmatprep.subr.mxu0 0.0
        %1007 = vmatpush1.msra.mxu0 0.0
        %1008 = vmatprep.subr.mxu0 0.0
        %1009 = vmatpush1.msra.mxu0 0.0
        %1010 = vmatprep.subr.mxu0 0.0
        %1011 = vmatpush1.msra.mxu0 0.0
        %1012 = vmatprep.subr.mxu0 0.0
        %1013 = vmatpush1.msra.mxu0 0.0
        %1014 = vmatprep.subr.mxu0 0.0
        %1015 = vmatpush1.msra.mxu0 0.0
        %1016 = vmatprep.subr.mxu0 0.0
        %1017 = vmatpush1.msra.mxu0 0.0
        %1018 = vmatprep.subr.mxu0 0.0
        %1019 = vmatpush1.msra.mxu0 0.0
        %1020 = vmatprep.subr.mxu0 0.0
        %1021 = vmatpush1.msra.mxu0 0.0
        %1022 = vmatprep.subr.mxu0 0.0
        %1023 = vmatpush1.msra.mxu0 0.0
        %1024 = vmatprep.subr.mxu0 0.0
        %1025 = vmatpush1.msra.mxu0 0.0
        %1026 = vmatprep.subr.mxu0 0.0
        %1027 = vmatpush1.msra.mxu0 0.0
        %1028 = vmatprep.subr.mxu0 0.0
        %1029 = vmatpush1.msra.mxu0 0.0
        %1030 = vmatprep.subr.mxu0 0.0
        %1031 = vmatpush1.msra.mxu0 0.0
        %1032 = vmatprep.subr.mxu0 0.0
        %1033 = vmatpush1.msra.mxu0 0.0
        %1034 = vmatprep.subr.mxu0 0.0
        %1035 = vmatpush1.msra.mxu0 0.0
        %1036 = vmatprep.subr.mxu0 0.0
        %1037 = vmatpush1.msra.mxu0 0.0
        %1038 = vmatprep.subr.mxu0 0.0
        %1039 = vmatpush1.msra.mxu0 0.0
        %1040 = vmatprep.subr.mxu0 0.0
        %1041 = vmatpush1.msra.mxu0 0.0
        %1042 = vmatprep.mubr.f32.mxu0 0.0
        %1043 = vmatmul.mubr.f32.gmra.mrb[0].mxu0 %v976
        %v1044 = vpop.f32.mrb[0].mxu0
        %v1045 = vadd.f32 0.0, %v1044
        %v1046 = vpop.f32.mrb[0].mxu0
        %1047 = vdwg.mxu0
        %v1048 = vadd.f32 %v965, %v1045
        %s1049 = scalar_lea.vmem %s2, 512
        %v1050 = vld [vmem:[%s1049] sm:$0xff]
        %v1051 = vld [vmem:[%s1049 + $0x8] sm:$0xff]
        %v1052 = vld [vmem:[%s1049 + $0x10] sm:$0xff]
        %v1053 = vld [vmem:[%s1049 + $0x18] sm:$0xff]
        %v1054 = vld [vmem:[%s1049 + $0x20] sm:$0xff]
        %v1055 = vld [vmem:[%s1049 + $0x28] sm:$0xff]
        %v1056 = vld [vmem:[%s1049 + $0x30] sm:$0xff]
        %v1057 = vld [vmem:[%s1049 + $0x38] sm:$0xff]
        %v1059 = vrot.slane %v367, 1
        %v1060 = vrot.slane %v368, 1
        %v1061 = vsel %vm388, %v1059, %v1060
        %v1062 = vsel %vm392, %v1061, 0
        %1064 = vmatprep.subr.mxu0 0.0
        %1065 = vmatpush1.msra.mxu0 %v1050
        %1066 = vmatprep.subr.mxu0 0.0
        %1067 = vmatpush1.msra.mxu0 %v1051
        %1068 = vmatprep.subr.mxu0 0.0
        %1069 = vmatpush1.msra.mxu0 %v1052
        %1070 = vmatprep.subr.mxu0 0.0
        %1071 = vmatpush1.msra.mxu0 %v1053
        %1072 = vmatprep.subr.mxu0 0.0
        %1073 = vmatpush1.msra.mxu0 %v1054
        %1074 = vmatprep.subr.mxu0 0.0
        %1075 = vmatpush1.msra.mxu0 %v1055
        %1076 = vmatprep.subr.mxu0 0.0
        %1077 = vmatpush1.msra.mxu0 %v1056
        %1078 = vmatprep.subr.mxu0 0.0
        %1079 = vmatpush1.msra.mxu0 %v1057
        %1080 = vmatprep.subr.mxu0 0.0
        %1081 = vmatpush1.msra.mxu0 0.0
        %1082 = vmatprep.subr.mxu0 0.0
        %1083 = vmatpush1.msra.mxu0 0.0
        %1084 = vmatprep.subr.mxu0 0.0
        %1085 = vmatpush1.msra.mxu0 0.0
        %1086 = vmatprep.subr.mxu0 0.0
        %1087 = vmatpush1.msra.mxu0 0.0
        %1088 = vmatprep.subr.mxu0 0.0
        %1089 = vmatpush1.msra.mxu0 0.0
        %1090 = vmatprep.subr.mxu0 0.0
        %1091 = vmatpush1.msra.mxu0 0.0
        %1092 = vmatprep.subr.mxu0 0.0
        %1093 = vmatpush1.msra.mxu0 0.0
        %1094 = vmatprep.subr.mxu0 0.0
        %1095 = vmatpush1.msra.mxu0 0.0
        %1096 = vmatprep.subr.mxu0 0.0
        %1097 = vmatpush1.msra.mxu0 0.0
        %1098 = vmatprep.subr.mxu0 0.0
        %1099 = vmatpush1.msra.mxu0 0.0
        %1100 = vmatprep.subr.mxu0 0.0
        %1101 = vmatpush1.msra.mxu0 0.0
        %1102 = vmatprep.subr.mxu0 0.0
        %1103 = vmatpush1.msra.mxu0 0.0
        %1104 = vmatprep.subr.mxu0 0.0
        %1105 = vmatpush1.msra.mxu0 0.0
        %1106 = vmatprep.subr.mxu0 0.0
        %1107 = vmatpush1.msra.mxu0 0.0
        %1108 = vmatprep.subr.mxu0 0.0
        %1109 = vmatpush1.msra.mxu0 0.0
        %1110 = vmatprep.subr.mxu0 0.0
        %1111 = vmatpush1.msra.mxu0 0.0
        %1112 = vmatprep.subr.mxu0 0.0
        %1113 = vmatpush1.msra.mxu0 0.0
        %1114 = vmatprep.subr.mxu0 0.0
        %1115 = vmatpush1.msra.mxu0 0.0
        %1116 = vmatprep.subr.mxu0 0.0
        %1117 = vmatpush1.msra.mxu0 0.0
        %1118 = vmatprep.subr.mxu0 0.0
        %1119 = vmatpush1.msra.mxu0 0.0
        %1120 = vmatprep.subr.mxu0 0.0
        %1121 = vmatpush1.msra.mxu0 0.0
        %1122 = vmatprep.subr.mxu0 0.0
        %1123 = vmatpush1.msra.mxu0 0.0
        %1124 = vmatprep.subr.mxu0 0.0
        %1125 = vmatpush1.msra.mxu0 0.0
        %1126 = vmatprep.subr.mxu0 0.0
        %1127 = vmatpush1.msra.mxu0 0.0
        %1128 = vmatprep.mubr.f32.mxu0 0.0
        %1129 = vmatmul.mubr.f32.gmra.mrb[0].mxu0 %v1062
        %v1130 = vpop.f32.mrb[0].mxu0
        %v1131 = vadd.f32 0.0, %v1130
        %v1132 = vpop.f32.mrb[0].mxu0
        %1133 = vdwg.mxu0
        %v1134 = vadd.f32 %v1048, %v1131
        %s1135 = scalar_lea.vmem %s2, 576
        %v1136 = vld [vmem:[%s1135] sm:$0xff]
        %v1137 = vld [vmem:[%s1135 + $0x8] sm:$0xff]
        %v1138 = vld [vmem:[%s1135 + $0x10] sm:$0xff]
        %v1139 = vld [vmem:[%s1135 + $0x18] sm:$0xff]
        %v1140 = vld [vmem:[%s1135 + $0x20] sm:$0xff]
        %v1141 = vld [vmem:[%s1135 + $0x28] sm:$0xff]
        %v1142 = vld [vmem:[%s1135 + $0x30] sm:$0xff]
        %v1143 = vld [vmem:[%s1135 + $0x38] sm:$0xff]
        %v1144 = vrot.slane %v367, 2
        %v1145 = vrot.slane %v368, 2
        %v1146 = vsel %vm546, %v1144, %v1145
        %v1147 = vsel %vm392, %v1146, 0
        %1149 = vmatprep.subr.mxu0 0.0
        %1150 = vmatpush1.msra.mxu0 %v1136
        %1151 = vmatprep.subr.mxu0 0.0
        %1152 = vmatpush1.msra.mxu0 %v1137
        %1153 = vmatprep.subr.mxu0 0.0
        %1154 = vmatpush1.msra.mxu0 %v1138
        %1155 = vmatprep.subr.mxu0 0.0
        %1156 = vmatpush1.msra.mxu0 %v1139
        %1157 = vmatprep.subr.mxu0 0.0
        %1158 = vmatpush1.msra.mxu0 %v1140
        %1159 = vmatprep.subr.mxu0 0.0
        %1160 = vmatpush1.msra.mxu0 %v1141
        %1161 = vmatprep.subr.mxu0 0.0
        %1162 = vmatpush1.msra.mxu0 %v1142
        %1163 = vmatprep.subr.mxu0 0.0
        %1164 = vmatpush1.msra.mxu0 %v1143
        %1165 = vmatprep.subr.mxu0 0.0
        %1166 = vmatpush1.msra.mxu0 0.0
        %1167 = vmatprep.subr.mxu0 0.0
        %1168 = vmatpush1.msra.mxu0 0.0
        %1169 = vmatprep.subr.mxu0 0.0
        %1170 = vmatpush1.msra.mxu0 0.0
        %1171 = vmatprep.subr.mxu0 0.0
        %1172 = vmatpush1.msra.mxu0 0.0
        %1173 = vmatprep.subr.mxu0 0.0
        %1174 = vmatpush1.msra.mxu0 0.0
        %1175 = vmatprep.subr.mxu0 0.0
        %1176 = vmatpush1.msra.mxu0 0.0
        %1177 = vmatprep.subr.mxu0 0.0
        %1178 = vmatpush1.msra.mxu0 0.0
        %1179 = vmatprep.subr.mxu0 0.0
        %1180 = vmatpush1.msra.mxu0 0.0
        %1181 = vmatprep.subr.mxu0 0.0
        %1182 = vmatpush1.msra.mxu0 0.0
        %1183 = vmatprep.subr.mxu0 0.0
        %1184 = vmatpush1.msra.mxu0 0.0
        %1185 = vmatprep.subr.mxu0 0.0
        %1186 = vmatpush1.msra.mxu0 0.0
        %1187 = vmatprep.subr.mxu0 0.0
        %1188 = vmatpush1.msra.mxu0 0.0
        %1189 = vmatprep.subr.mxu0 0.0
        %1190 = vmatpush1.msra.mxu0 0.0
        %1191 = vmatprep.subr.mxu0 0.0
        %1192 = vmatpush1.msra.mxu0 0.0
        %1193 = vmatprep.subr.mxu0 0.0
        %1194 = vmatpush1.msra.mxu0 0.0
        %1195 = vmatprep.subr.mxu0 0.0
        %1196 = vmatpush1.msra.mxu0 0.0
        %1197 = vmatprep.subr.mxu0 0.0
        %1198 = vmatpush1.msra.mxu0 0.0
        %1199 = vmatprep.subr.mxu0 0.0
        %1200 = vmatpush1.msra.mxu0 0.0
        %1201 = vmatprep.subr.mxu0 0.0
        %1202 = vmatpush1.msra.mxu0 0.0
        %1203 = vmatprep.subr.mxu0 0.0
        %1204 = vmatpush1.msra.mxu0 0.0
        %1205 = vmatprep.subr.mxu0 0.0
        %1206 = vmatpush1.msra.mxu0 0.0
        %1207 = vmatprep.subr.mxu0 0.0
        %1208 = vmatpush1.msra.mxu0 0.0
        %1209 = vmatprep.subr.mxu0 0.0
        %1210 = vmatpush1.msra.mxu0 0.0
        %1211 = vmatprep.subr.mxu0 0.0
        %1212 = vmatpush1.msra.mxu0 0.0
        %1213 = vmatprep.mubr.f32.mxu0 0.0
        %1214 = vmatmul.mubr.f32.gmra.mrb[0].mxu0 %v1147
        %v1215 = vpop.f32.mrb[0].mxu0
        %v1216 = vadd.f32 0.0, %v1215
        %v1217 = vpop.f32.mrb[0].mxu0
        %1218 = vdwg.mxu0
        %v1219 = vadd.f32 %v1134, %v1216
        %s1220 = scalar_lea.vmem %s2, 640
        %v1221 = vld [vmem:[%s1220] sm:$0xff]
        %v1222 = vld [vmem:[%s1220 + $0x8] sm:$0xff]
        %v1223 = vld [vmem:[%s1220 + $0x10] sm:$0xff]
        %v1224 = vld [vmem:[%s1220 + $0x18] sm:$0xff]
        %v1225 = vld [vmem:[%s1220 + $0x20] sm:$0xff]
        %v1226 = vld [vmem:[%s1220 + $0x28] sm:$0xff]
        %v1227 = vld [vmem:[%s1220 + $0x30] sm:$0xff]
        %v1228 = vld [vmem:[%s1220 + $0x38] sm:$0xff]
        %v1229 = vrot.slane %v367, 3
        %v1230 = vrot.slane %v368, 3
        %v1231 = vsel %vm632, %v1229, %v1230
        %v1232 = vsel %vm392, %v1231, 0
        %1234 = vmatprep.subr.mxu0 0.0
        %1235 = vmatpush1.msra.mxu0 %v1221
        %1236 = vmatprep.subr.mxu0 0.0
        %1237 = vmatpush1.msra.mxu0 %v1222
        %1238 = vmatprep.subr.mxu0 0.0
        %1239 = vmatpush1.msra.mxu0 %v1223
        %1240 = vmatprep.subr.mxu0 0.0
        %1241 = vmatpush1.msra.mxu0 %v1224
        %1242 = vmatprep.subr.mxu0 0.0
        %1243 = vmatpush1.msra.mxu0 %v1225
        %1244 = vmatprep.subr.mxu0 0.0
        %1245 = vmatpush1.msra.mxu0 %v1226
        %1246 = vmatprep.subr.mxu0 0.0
        %1247 = vmatpush1.msra.mxu0 %v1227
        %1248 = vmatprep.subr.mxu0 0.0
        %1249 = vmatpush1.msra.mxu0 %v1228
        %1250 = vmatprep.subr.mxu0 0.0
        %1251 = vmatpush1.msra.mxu0 0.0
        %1252 = vmatprep.subr.mxu0 0.0
        %1253 = vmatpush1.msra.mxu0 0.0
        %1254 = vmatprep.subr.mxu0 0.0
        %1255 = vmatpush1.msra.mxu0 0.0
        %1256 = vmatprep.subr.mxu0 0.0
        %1257 = vmatpush1.msra.mxu0 0.0
        %1258 = vmatprep.subr.mxu0 0.0
        %1259 = vmatpush1.msra.mxu0 0.0
        %1260 = vmatprep.subr.mxu0 0.0
        %1261 = vmatpush1.msra.mxu0 0.0
        %1262 = vmatprep.subr.mxu0 0.0
        %1263 = vmatpush1.msra.mxu0 0.0
        %1264 = vmatprep.subr.mxu0 0.0
        %1265 = vmatpush1.msra.mxu0 0.0
        %1266 = vmatprep.subr.mxu0 0.0
        %1267 = vmatpush1.msra.mxu0 0.0
        %1268 = vmatprep.subr.mxu0 0.0
        %1269 = vmatpush1.msra.mxu0 0.0
        %1270 = vmatprep.subr.mxu0 0.0
        %1271 = vmatpush1.msra.mxu0 0.0
        %1272 = vmatprep.subr.mxu0 0.0
        %1273 = vmatpush1.msra.mxu0 0.0
        %1274 = vmatprep.subr.mxu0 0.0
        %1275 = vmatpush1.msra.mxu0 0.0
        %1276 = vmatprep.subr.mxu0 0.0
        %1277 = vmatpush1.msra.mxu0 0.0
        %1278 = vmatprep.subr.mxu0 0.0
        %1279 = vmatpush1.msra.mxu0 0.0
        %1280 = vmatprep.subr.mxu0 0.0
        %1281 = vmatpush1.msra.mxu0 0.0
        %1282 = vmatprep.subr.mxu0 0.0
        %1283 = vmatpush1.msra.mxu0 0.0
        %1284 = vmatprep.subr.mxu0 0.0
        %1285 = vmatpush1.msra.mxu0 0.0
        %1286 = vmatprep.subr.mxu0 0.0
        %1287 = vmatpush1.msra.mxu0 0.0
        %1288 = vmatprep.subr.mxu0 0.0
        %1289 = vmatpush1.msra.mxu0 0.0
        %1290 = vmatprep.subr.mxu0 0.0
        %1291 = vmatpush1.msra.mxu0 0.0
        %1292 = vmatprep.subr.mxu0 0.0
        %1293 = vmatpush1.msra.mxu0 0.0
        %1294 = vmatprep.subr.mxu0 0.0
        %1295 = vmatpush1.msra.mxu0 0.0
        %1296 = vmatprep.subr.mxu0 0.0
        %1297 = vmatpush1.msra.mxu0 0.0
        %1298 = vmatprep.mubr.f32.mxu0 0.0
        %1299 = vmatmul.mubr.f32.gmra.mrb[0].mxu0 %v1232
        %v1300 = vpop.f32.mrb[0].mxu0
        %v1301 = vadd.f32 0.0, %v1300
        %v1302 = vpop.f32.mrb[0].mxu0
        %1303 = vdwg.mxu0
        %v1304 = vadd.f32 %v1219, %v1301
        %s1305 = scalar_lea.vmem %s2, 704
        %v1306 = vld [vmem:[%s1305] sm:$0xff]
        %v1307 = vld [vmem:[%s1305 + $0x8] sm:$0xff]
        %v1308 = vld [vmem:[%s1305 + $0x10] sm:$0xff]
        %v1309 = vld [vmem:[%s1305 + $0x18] sm:$0xff]
        %v1310 = vld [vmem:[%s1305 + $0x20] sm:$0xff]
        %v1311 = vld [vmem:[%s1305 + $0x28] sm:$0xff]
        %v1312 = vld [vmem:[%s1305 + $0x30] sm:$0xff]
        %v1313 = vld [vmem:[%s1305 + $0x38] sm:$0xff]
        %v1314 = vrot.slane %v367, 4
        %v1315 = vrot.slane %v368, 4
        %v1316 = vsel %vm718, %v1314, %v1315
        %v1317 = vsel %vm392, %v1316, 0
        %1319 = vmatprep.subr.mxu0 0.0
        %1320 = vmatpush1.msra.mxu0 %v1306
        %1321 = vmatprep.subr.mxu0 0.0
        %1322 = vmatpush1.msra.mxu0 %v1307
        %1323 = vmatprep.subr.mxu0 0.0
        %1324 = vmatpush1.msra.mxu0 %v1308
        %1325 = vmatprep.subr.mxu0 0.0
        %1326 = vmatpush1.msra.mxu0 %v1309
        %1327 = vmatprep.subr.mxu0 0.0
        %1328 = vmatpush1.msra.mxu0 %v1310
        %1329 = vmatprep.subr.mxu0 0.0
        %1330 = vmatpush1.msra.mxu0 %v1311
        %1331 = vmatprep.subr.mxu0 0.0
        %1332 = vmatpush1.msra.mxu0 %v1312
        %1333 = vmatprep.subr.mxu0 0.0
        %1334 = vmatpush1.msra.mxu0 %v1313
        %1335 = vmatprep.subr.mxu0 0.0
        %1336 = vmatpush1.msra.mxu0 0.0
        %1337 = vmatprep.subr.mxu0 0.0
        %1338 = vmatpush1.msra.mxu0 0.0
        %1339 = vmatprep.subr.mxu0 0.0
        %1340 = vmatpush1.msra.mxu0 0.0
        %1341 = vmatprep.subr.mxu0 0.0
        %1342 = vmatpush1.msra.mxu0 0.0
        %1343 = vmatprep.subr.mxu0 0.0
        %1344 = vmatpush1.msra.mxu0 0.0
        %1345 = vmatprep.subr.mxu0 0.0
        %1346 = vmatpush1.msra.mxu0 0.0
        %1347 = vmatprep.subr.mxu0 0.0
        %1348 = vmatpush1.msra.mxu0 0.0
        %1349 = vmatprep.subr.mxu0 0.0
        %1350 = vmatpush1.msra.mxu0 0.0
        %1351 = vmatprep.subr.mxu0 0.0
        %1352 = vmatpush1.msra.mxu0 0.0
        %1353 = vmatprep.subr.mxu0 0.0
        %1354 = vmatpush1.msra.mxu0 0.0
        %1355 = vmatprep.subr.mxu0 0.0
        %1356 = vmatpush1.msra.mxu0 0.0
        %1357 = vmatprep.subr.mxu0 0.0
        %1358 = vmatpush1.msra.mxu0 0.0
        %1359 = vmatprep.subr.mxu0 0.0
        %1360 = vmatpush1.msra.mxu0 0.0
        %1361 = vmatprep.subr.mxu0 0.0
        %1362 = vmatpush1.msra.mxu0 0.0
        %1363 = vmatprep.subr.mxu0 0.0
        %1364 = vmatpush1.msra.mxu0 0.0
        %1365 = vmatprep.subr.mxu0 0.0
        %1366 = vmatpush1.msra.mxu0 0.0
        %1367 = vmatprep.subr.mxu0 0.0
        %1368 = vmatpush1.msra.mxu0 0.0
        %1369 = vmatprep.subr.mxu0 0.0
        %1370 = vmatpush1.msra.mxu0 0.0
        %1371 = vmatprep.subr.mxu0 0.0
        %1372 = vmatpush1.msra.mxu0 0.0
        %1373 = vmatprep.subr.mxu0 0.0
        %1374 = vmatpush1.msra.mxu0 0.0
        %1375 = vmatprep.subr.mxu0 0.0
        %1376 = vmatpush1.msra.mxu0 0.0
        %1377 = vmatprep.subr.mxu0 0.0
        %1378 = vmatpush1.msra.mxu0 0.0
        %1379 = vmatprep.subr.mxu0 0.0
        %1380 = vmatpush1.msra.mxu0 0.0
        %1381 = vmatprep.subr.mxu0 0.0
        %1382 = vmatpush1.msra.mxu0 0.0
        %1383 = vmatprep.mubr.f32.mxu0 0.0
        %1384 = vmatmul.mubr.f32.gmra.mrb[0].mxu0 %v1317
        %v1385 = vpop.f32.mrb[0].mxu0
        %v1386 = vadd.f32 0.0, %v1385
        %v1387 = vpop.f32.mrb[0].mxu0
        %1388 = vdwg.mxu0
        %v1389 = vadd.f32 %v1304, %v1386
        %s1390 = scalar_lea.vmem %s2, 768
        %v1391 = vld [vmem:[%s1390] sm:$0xff]
        %v1392 = vld [vmem:[%s1390 + $0x8] sm:$0xff]
        %v1393 = vld [vmem:[%s1390 + $0x10] sm:$0xff]
        %v1394 = vld [vmem:[%s1390 + $0x18] sm:$0xff]
        %v1395 = vld [vmem:[%s1390 + $0x20] sm:$0xff]
        %v1396 = vld [vmem:[%s1390 + $0x28] sm:$0xff]
        %v1397 = vld [vmem:[%s1390 + $0x30] sm:$0xff]
        %v1398 = vld [vmem:[%s1390 + $0x38] sm:$0xff]
        %v1399 = vrot.slane %v367, 5
        %v1400 = vrot.slane %v368, 5
        %v1401 = vsel %vm361, %v1399, %v1400
        %v1402 = vsel %vm392, %v1401, 0
        %1404 = vmatprep.subr.mxu0 0.0
        %1405 = vmatpush1.msra.mxu0 %v1391
        %1406 = vmatprep.subr.mxu0 0.0
        %1407 = vmatpush1.msra.mxu0 %v1392
        %1408 = vmatprep.subr.mxu0 0.0
        %1409 = vmatpush1.msra.mxu0 %v1393
        %1410 = vmatprep.subr.mxu0 0.0
        %1411 = vmatpush1.msra.mxu0 %v1394
        %1412 = vmatprep.subr.mxu0 0.0
        %1413 = vmatpush1.msra.mxu0 %v1395
        %1414 = vmatprep.subr.mxu0 0.0
        %1415 = vmatpush1.msra.mxu0 %v1396
        %1416 = vmatprep.subr.mxu0 0.0
        %1417 = vmatpush1.msra.mxu0 %v1397
        %1418 = vmatprep.subr.mxu0 0.0
        %1419 = vmatpush1.msra.mxu0 %v1398
        %1420 = vmatprep.subr.mxu0 0.0
        %1421 = vmatpush1.msra.mxu0 0.0
        %1422 = vmatprep.subr.mxu0 0.0
        %1423 = vmatpush1.msra.mxu0 0.0
        %1424 = vmatprep.subr.mxu0 0.0
        %1425 = vmatpush1.msra.mxu0 0.0
        %1426 = vmatprep.subr.mxu0 0.0
        %1427 = vmatpush1.msra.mxu0 0.0
        %1428 = vmatprep.subr.mxu0 0.0
        %1429 = vmatpush1.msra.mxu0 0.0
        %1430 = vmatprep.subr.mxu0 0.0
        %1431 = vmatpush1.msra.mxu0 0.0
        %1432 = vmatprep.subr.mxu0 0.0
        %1433 = vmatpush1.msra.mxu0 0.0
        %1434 = vmatprep.subr.mxu0 0.0
        %1435 = vmatpush1.msra.mxu0 0.0
        %1436 = vmatprep.subr.mxu0 0.0
        %1437 = vmatpush1.msra.mxu0 0.0
        %1438 = vmatprep.subr.mxu0 0.0
        %1439 = vmatpush1.msra.mxu0 0.0
        %1440 = vmatprep.subr.mxu0 0.0
        %1441 = vmatpush1.msra.mxu0 0.0
        %1442 = vmatprep.subr.mxu0 0.0
        %1443 = vmatpush1.msra.mxu0 0.0
        %1444 = vmatprep.subr.mxu0 0.0
        %1445 = vmatpush1.msra.mxu0 0.0
        %1446 = vmatprep.subr.mxu0 0.0
        %1447 = vmatpush1.msra.mxu0 0.0
        %1448 = vmatprep.subr.mxu0 0.0
        %1449 = vmatpush1.msra.mxu0 0.0
        %1450 = vmatprep.subr.mxu0 0.0
        %1451 = vmatpush1.msra.mxu0 0.0
        %1452 = vmatprep.subr.mxu0 0.0
        %1453 = vmatpush1.msra.mxu0 0.0
        %1454 = vmatprep.subr.mxu0 0.0
        %1455 = vmatpush1.msra.mxu0 0.0
        %1456 = vmatprep.subr.mxu0 0.0
        %1457 = vmatpush1.msra.mxu0 0.0
        %1458 = vmatprep.subr.mxu0 0.0
        %1459 = vmatpush1.msra.mxu0 0.0
        %1460 = vmatprep.subr.mxu0 0.0
        %1461 = vmatpush1.msra.mxu0 0.0
        %1462 = vmatprep.subr.mxu0 0.0
        %1463 = vmatpush1.msra.mxu0 0.0
        %1464 = vmatprep.subr.mxu0 0.0
        %1465 = vmatpush1.msra.mxu0 0.0
        %1466 = vmatprep.subr.mxu0 0.0
        %1467 = vmatpush1.msra.mxu0 0.0
        %1468 = vmatprep.mubr.f32.mxu0 0.0
        %1469 = vmatmul.mubr.f32.gmra.mrb[0].mxu0 %v1402
        %v1470 = vpop.f32.mrb[0].mxu0
        %v1471 = vadd.f32 0.0, %v1470
        %v1472 = vpop.f32.mrb[0].mxu0
        %1473 = vdwg.mxu0
        %v1474 = vadd.f32 %v1389, %v1471
        %s1475 = scalar_lea.vmem %s2, 832
        %v1476 = vld [vmem:[%s1475] sm:$0xff]
        %v1477 = vld [vmem:[%s1475 + $0x8] sm:$0xff]
        %v1478 = vld [vmem:[%s1475 + $0x10] sm:$0xff]
        %v1479 = vld [vmem:[%s1475 + $0x18] sm:$0xff]
        %v1480 = vld [vmem:[%s1475 + $0x20] sm:$0xff]
        %v1481 = vld [vmem:[%s1475 + $0x28] sm:$0xff]
        %v1482 = vld [vmem:[%s1475 + $0x30] sm:$0xff]
        %v1483 = vld [vmem:[%s1475 + $0x38] sm:$0xff]
        %v1484 = vrot.slane %v367, 6
        %v1485 = vrot.slane %v368, 6
        %v1486 = vsel %vm889, %v1484, %v1485
        %v1487 = vsel %vm392, %v1486, 0
        %1489 = vmatprep.subr.mxu0 0.0
        %1490 = vmatpush1.msra.mxu0 %v1476
        %1491 = vmatprep.subr.mxu0 0.0
        %1492 = vmatpush1.msra.mxu0 %v1477
        %1493 = vmatprep.subr.mxu0 0.0
        %1494 = vmatpush1.msra.mxu0 %v1478
        %1495 = vmatprep.subr.mxu0 0.0
        %1496 = vmatpush1.msra.mxu0 %v1479
        %1497 = vmatprep.subr.mxu0 0.0
        %1498 = vmatpush1.msra.mxu0 %v1480
        %1499 = vmatprep.subr.mxu0 0.0
        %1500 = vmatpush1.msra.mxu0 %v1481
        %1501 = vmatprep.subr.mxu0 0.0
        %1502 = vmatpush1.msra.mxu0 %v1482
        %1503 = vmatprep.subr.mxu0 0.0
        %1504 = vmatpush1.msra.mxu0 %v1483
        %1505 = vmatprep.subr.mxu0 0.0
        %1506 = vmatpush1.msra.mxu0 0.0
        %1507 = vmatprep.subr.mxu0 0.0
        %1508 = vmatpush1.msra.mxu0 0.0
        %1509 = vmatprep.subr.mxu0 0.0
        %1510 = vmatpush1.msra.mxu0 0.0
        %1511 = vmatprep.subr.mxu0 0.0
        %1512 = vmatpush1.msra.mxu0 0.0
        %1513 = vmatprep.subr.mxu0 0.0
        %1514 = vmatpush1.msra.mxu0 0.0
        %1515 = vmatprep.subr.mxu0 0.0
        %1516 = vmatpush1.msra.mxu0 0.0
        %1517 = vmatprep.subr.mxu0 0.0
        %1518 = vmatpush1.msra.mxu0 0.0
        %1519 = vmatprep.subr.mxu0 0.0
        %1520 = vmatpush1.msra.mxu0 0.0
        %1521 = vmatprep.subr.mxu0 0.0
        %1522 = vmatpush1.msra.mxu0 0.0
        %1523 = vmatprep.subr.mxu0 0.0
        %1524 = vmatpush1.msra.mxu0 0.0
        %1525 = vmatprep.subr.mxu0 0.0
        %1526 = vmatpush1.msra.mxu0 0.0
        %1527 = vmatprep.subr.mxu0 0.0
        %1528 = vmatpush1.msra.mxu0 0.0
        %1529 = vmatprep.subr.mxu0 0.0
        %1530 = vmatpush1.msra.mxu0 0.0
        %1531 = vmatprep.subr.mxu0 0.0
        %1532 = vmatpush1.msra.mxu0 0.0
        %1533 = vmatprep.subr.mxu0 0.0
        %1534 = vmatpush1.msra.mxu0 0.0
        %1535 = vmatprep.subr.mxu0 0.0
        %1536 = vmatpush1.msra.mxu0 0.0
        %1537 = vmatprep.subr.mxu0 0.0
        %1538 = vmatpush1.msra.mxu0 0.0
        %1539 = vmatprep.subr.mxu0 0.0
        %1540 = vmatpush1.msra.mxu0 0.0
        %1541 = vmatprep.subr.mxu0 0.0
        %1542 = vmatpush1.msra.mxu0 0.0
        %1543 = vmatprep.subr.mxu0 0.0
        %1544 = vmatpush1.msra.mxu0 0.0
        %1545 = vmatprep.subr.mxu0 0.0
        %1546 = vmatpush1.msra.mxu0 0.0
        %1547 = vmatprep.subr.mxu0 0.0
        %1548 = vmatpush1.msra.mxu0 0.0
        %1549 = vmatprep.subr.mxu0 0.0
        %1550 = vmatpush1.msra.mxu0 0.0
        %1551 = vmatprep.subr.mxu0 0.0
        %1552 = vmatpush1.msra.mxu0 0.0
        %1553 = vmatprep.mubr.f32.mxu0 0.0
        %1554 = vmatmul.mubr.f32.gmra.mrb[0].mxu0 %v1487
        %v1555 = vpop.f32.mrb[0].mxu0
        %v1556 = vadd.f32 0.0, %v1555
        %v1557 = vpop.f32.mrb[0].mxu0
        %1558 = vdwg.mxu0
        %v1559 = vadd.f32 %v1474, %v1556
        %s1560 = sld [smem:[#allocation4]]
        %v1561 = vstv %s1560
        %v1562 = vadd.f32 %v1559, %v1561
        %v1563 = vxor.u32 %v1562, 2147483648
        %v1564 = vmul.f32 %v1563, 1.442695
        %v1565 = vpow.pop %v1564
        %v1566 = vadd.f32 %v1565, 1.0
        %v1567 = vrcp.pop %v1566
        %v1568 = vmul.f32 1.0, %v1567
        %v1569 = vmul.f32 %v1568, %v344
        %v1570 = vmul.f32 %v1568, %v354
        %v1572 = vrot.slane %v1570, 7
        %vm1574 = vcmask 1040384
        %v1575 = vsel %vm1574, 0.0, %v1572
        %v1576 = vsel %vm1574, %v1572, 0.0
        %v1577 = vld [vmem:[%s3] sm:$0xff]
        %v1578 = vld [vmem:[%s3 + $0x8] sm:$0xff]
        %v1579 = vld [vmem:[%s3 + $0x10] sm:$0xff]
        %v1580 = vld [vmem:[%s3 + $0x18] sm:$0xff]
        %v1581 = vld [vmem:[%s3 + $0x20] sm:$0xff]
        %v1582 = vld [vmem:[%s3 + $0x28] sm:$0xff]
        %v1583 = vld [vmem:[%s3 + $0x30] sm:$0xff]
        %v1584 = vld [vmem:[%s3 + $0x38] sm:$0xff]
        %s1585 = scalar_lea.vmem %s3, 64
        %v1586 = vld [vmem:[%s1585] sm:$0xff]
        %v1587 = vld [vmem:[%s1585 + $0x8] sm:$0xff]
        %v1588 = vld [vmem:[%s1585 + $0x10] sm:$0xff]
        %v1589 = vld [vmem:[%s1585 + $0x18] sm:$0xff]
        %v1590 = vld [vmem:[%s1585 + $0x20] sm:$0xff]
        %v1591 = vld [vmem:[%s1585 + $0x28] sm:$0xff]
        %v1592 = vld [vmem:[%s1585 + $0x30] sm:$0xff]
        %v1593 = vld [vmem:[%s1585 + $0x38] sm:$0xff]
        %v1596 = vrot.slane %v1575, 1
        %v1597 = vrot.slane %v1576, 1
        %v1598 = vsel %vm388, %v1596, %v1597
        %v1599 = vsel %vm392, %v1598, 0
        %1601 = vmatprep.subr.mxu0 0.0
        %1602 = vmatpush1.msra.mxu0 %v1586
        %1603 = vmatprep.subr.mxu0 0.0
        %1604 = vmatpush1.msra.mxu0 %v1587
        %1605 = vmatprep.subr.mxu0 0.0
        %1606 = vmatpush1.msra.mxu0 %v1588
        %1607 = vmatprep.subr.mxu0 0.0
        %1608 = vmatpush1.msra.mxu0 %v1589
        %1609 = vmatprep.subr.mxu0 0.0
        %1610 = vmatpush1.msra.mxu0 %v1590
        %1611 = vmatprep.subr.mxu0 0.0
        %1612 = vmatpush1.msra.mxu0 %v1591
        %1613 = vmatprep.subr.mxu0 0.0
        %1614 = vmatpush1.msra.mxu0 %v1592
        %1615 = vmatprep.subr.mxu0 0.0
        %1616 = vmatpush1.msra.mxu0 %v1593
        %1617 = vmatprep.subr.mxu0 0.0
        %1618 = vmatpush1.msra.mxu0 0.0
        %1619 = vmatprep.subr.mxu0 0.0
        %1620 = vmatpush1.msra.mxu0 0.0
        %1621 = vmatprep.subr.mxu0 0.0
        %1622 = vmatpush1.msra.mxu0 0.0
        %1623 = vmatprep.subr.mxu0 0.0
        %1624 = vmatpush1.msra.mxu0 0.0
        %1625 = vmatprep.subr.mxu0 0.0
        %1626 = vmatpush1.msra.mxu0 0.0
        %1627 = vmatprep.subr.mxu0 0.0
        %1628 = vmatpush1.msra.mxu0 0.0
        %1629 = vmatprep.subr.mxu0 0.0
        %1630 = vmatpush1.msra.mxu0 0.0
        %1631 = vmatprep.subr.mxu0 0.0
        %1632 = vmatpush1.msra.mxu0 0.0
        %1633 = vmatprep.subr.mxu0 0.0
        %1634 = vmatpush1.msra.mxu0 0.0
        %1635 = vmatprep.subr.mxu0 0.0
        %1636 = vmatpush1.msra.mxu0 0.0
        %1637 = vmatprep.subr.mxu0 0.0
        %1638 = vmatpush1.msra.mxu0 0.0
        %1639 = vmatprep.subr.mxu0 0.0
        %1640 = vmatpush1.msra.mxu0 0.0
        %1641 = vmatprep.subr.mxu0 0.0
        %1642 = vmatpush1.msra.mxu0 0.0
        %1643 = vmatprep.subr.mxu0 0.0
        %1644 = vmatpush1.msra.mxu0 0.0
        %1645 = vmatprep.subr.mxu0 0.0
        %1646 = vmatpush1.msra.mxu0 0.0
        %1647 = vmatprep.subr.mxu0 0.0
        %1648 = vmatpush1.msra.mxu0 0.0
        %1649 = vmatprep.subr.mxu0 0.0
        %1650 = vmatpush1.msra.mxu0 0.0
        %1651 = vmatprep.subr.mxu0 0.0
        %1652 = vmatpush1.msra.mxu0 0.0
        %1653 = vmatprep.subr.mxu0 0.0
        %1654 = vmatpush1.msra.mxu0 0.0
        %1655 = vmatprep.subr.mxu0 0.0
        %1656 = vmatpush1.msra.mxu0 0.0
        %1657 = vmatprep.subr.mxu0 0.0
        %1658 = vmatpush1.msra.mxu0 0.0
        %1659 = vmatprep.subr.mxu0 0.0
        %1660 = vmatpush1.msra.mxu0 0.0
        %1661 = vmatprep.subr.mxu0 0.0
        %1662 = vmatpush1.msra.mxu0 0.0
        %1663 = vmatprep.subr.mxu0 0.0
        %1664 = vmatpush1.msra.mxu0 0.0
        %1665 = vmatprep.mubr.f32.mxu0 0.0
        %1666 = vmatmul.mubr.f32.gmra.mrb[0].mxu0 %v1599
        %v1667 = vpop.f32.mrb[0].mxu0
        %v1668 = vadd.f32 0.0, %v1667
        %v1669 = vpop.f32.mrb[0].mxu0
        %1670 = vdwg.mxu0
        %v1671 = vsel %vm392, %v1575, 0
        %1673 = vmatprep.subr.mxu0 0.0
        %1674 = vmatpush1.msra.mxu0 %v1577
        %1675 = vmatprep.subr.mxu0 0.0
        %1676 = vmatpush1.msra.mxu0 %v1578
        %1677 = vmatprep.subr.mxu0 0.0
        %1678 = vmatpush1.msra.mxu0 %v1579
        %1679 = vmatprep.subr.mxu0 0.0
        %1680 = vmatpush1.msra.mxu0 %v1580
        %1681 = vmatprep.subr.mxu0 0.0
        %1682 = vmatpush1.msra.mxu0 %v1581
        %1683 = vmatprep.subr.mxu0 0.0
        %1684 = vmatpush1.msra.mxu0 %v1582
        %1685 = vmatprep.subr.mxu0 0.0
        %1686 = vmatpush1.msra.mxu0 %v1583
        %1687 = vmatprep.subr.mxu0 0.0
        %1688 = vmatpush1.msra.mxu0 %v1584
        %1689 = vmatprep.subr.mxu0 0.0
        %1690 = vmatpush1.msra.mxu0 0.0
        %1691 = vmatprep.subr.mxu0 0.0
        %1692 = vmatpush1.msra.mxu0 0.0
        %1693 = vmatprep.subr.mxu0 0.0
        %1694 = vmatpush1.msra.mxu0 0.0
        %1695 = vmatprep.subr.mxu0 0.0
        %1696 = vmatpush1.msra.mxu0 0.0
        %1697 = vmatprep.subr.mxu0 0.0
        %1698 = vmatpush1.msra.mxu0 0.0
        %1699 = vmatprep.subr.mxu0 0.0
        %1700 = vmatpush1.msra.mxu0 0.0
        %1701 = vmatprep.subr.mxu0 0.0
        %1702 = vmatpush1.msra.mxu0 0.0
        %1703 = vmatprep.subr.mxu0 0.0
        %1704 = vmatpush1.msra.mxu0 0.0
        %1705 = vmatprep.subr.mxu0 0.0
        %1706 = vmatpush1.msra.mxu0 0.0
        %1707 = vmatprep.subr.mxu0 0.0
        %1708 = vmatpush1.msra.mxu0 0.0
        %1709 = vmatprep.subr.mxu0 0.0
        %1710 = vmatpush1.msra.mxu0 0.0
        %1711 = vmatprep.subr.mxu0 0.0
        %1712 = vmatpush1.msra.mxu0 0.0
        %1713 = vmatprep.subr.mxu0 0.0
        %1714 = vmatpush1.msra.mxu0 0.0
        %1715 = vmatprep.subr.mxu0 0.0
        %1716 = vmatpush1.msra.mxu0 0.0
        %1717 = vmatprep.subr.mxu0 0.0
        %1718 = vmatpush1.msra.mxu0 0.0
        %1719 = vmatprep.subr.mxu0 0.0
        %1720 = vmatpush1.msra.mxu0 0.0
        %1721 = vmatprep.subr.mxu0 0.0
        %1722 = vmatpush1.msra.mxu0 0.0
        %1723 = vmatprep.subr.mxu0 0.0
        %1724 = vmatpush1.msra.mxu0 0.0
        %1725 = vmatprep.subr.mxu0 0.0
        %1726 = vmatpush1.msra.mxu0 0.0
        %1727 = vmatprep.subr.mxu0 0.0
        %1728 = vmatpush1.msra.mxu0 0.0
        %1729 = vmatprep.subr.mxu0 0.0
        %1730 = vmatpush1.msra.mxu0 0.0
        %1731 = vmatprep.subr.mxu0 0.0
        %1732 = vmatpush1.msra.mxu0 0.0
        %1733 = vmatprep.subr.mxu0 0.0
        %1734 = vmatpush1.msra.mxu0 0.0
        %1735 = vmatprep.subr.mxu0 0.0
        %1736 = vmatpush1.msra.mxu0 0.0
        %1737 = vmatprep.mubr.f32.mxu0 0.0
        %1738 = vmatmul.mubr.f32.gmra.mrb[0].mxu0 %v1671
        %v1739 = vpop.f32.mrb[0].mxu0
        %v1740 = vadd.f32 %v1668, %v1739
        %v1741 = vpop.f32.mrb[0].mxu0
        %1742 = vdwg.mxu0
        %s1743 = scalar_lea.vmem %s3, 128
        %v1744 = vld [vmem:[%s1743] sm:$0xff]
        %v1745 = vld [vmem:[%s1743 + $0x8] sm:$0xff]
        %v1746 = vld [vmem:[%s1743 + $0x10] sm:$0xff]
        %v1747 = vld [vmem:[%s1743 + $0x18] sm:$0xff]
        %v1748 = vld [vmem:[%s1743 + $0x20] sm:$0xff]
        %v1749 = vld [vmem:[%s1743 + $0x28] sm:$0xff]
        %v1750 = vld [vmem:[%s1743 + $0x30] sm:$0xff]
        %v1751 = vld [vmem:[%s1743 + $0x38] sm:$0xff]
        %v1752 = vrot.slane %v1575, 2
        %v1753 = vrot.slane %v1576, 2
        %v1754 = vsel %vm546, %v1752, %v1753
        %v1755 = vsel %vm392, %v1754, 0
        %1757 = vmatprep.subr.mxu0 0.0
        %1758 = vmatpush1.msra.mxu0 %v1744
        %1759 = vmatprep.subr.mxu0 0.0
        %1760 = vmatpush1.msra.mxu0 %v1745
        %1761 = vmatprep.subr.mxu0 0.0
        %1762 = vmatpush1.msra.mxu0 %v1746
        %1763 = vmatprep.subr.mxu0 0.0
        %1764 = vmatpush1.msra.mxu0 %v1747
        %1765 = vmatprep.subr.mxu0 0.0
        %1766 = vmatpush1.msra.mxu0 %v1748
        %1767 = vmatprep.subr.mxu0 0.0
        %1768 = vmatpush1.msra.mxu0 %v1749
        %1769 = vmatprep.subr.mxu0 0.0
        %1770 = vmatpush1.msra.mxu0 %v1750
        %1771 = vmatprep.subr.mxu0 0.0
        %1772 = vmatpush1.msra.mxu0 %v1751
        %1773 = vmatprep.subr.mxu0 0.0
        %1774 = vmatpush1.msra.mxu0 0.0
        %1775 = vmatprep.subr.mxu0 0.0
        %1776 = vmatpush1.msra.mxu0 0.0
        %1777 = vmatprep.subr.mxu0 0.0
        %1778 = vmatpush1.msra.mxu0 0.0
        %1779 = vmatprep.subr.mxu0 0.0
        %1780 = vmatpush1.msra.mxu0 0.0
        %1781 = vmatprep.subr.mxu0 0.0
        %1782 = vmatpush1.msra.mxu0 0.0
        %1783 = vmatprep.subr.mxu0 0.0
        %1784 = vmatpush1.msra.mxu0 0.0
        %1785 = vmatprep.subr.mxu0 0.0
        %1786 = vmatpush1.msra.mxu0 0.0
        %1787 = vmatprep.subr.mxu0 0.0
        %1788 = vmatpush1.msra.mxu0 0.0
        %1789 = vmatprep.subr.mxu0 0.0
        %1790 = vmatpush1.msra.mxu0 0.0
        %1791 = vmatprep.subr.mxu0 0.0
        %1792 = vmatpush1.msra.mxu0 0.0
        %1793 = vmatprep.subr.mxu0 0.0
        %1794 = vmatpush1.msra.mxu0 0.0
        %1795 = vmatprep.subr.mxu0 0.0
        %1796 = vmatpush1.msra.mxu0 0.0
        %1797 = vmatprep.subr.mxu0 0.0
        %1798 = vmatpush1.msra.mxu0 0.0
        %1799 = vmatprep.subr.mxu0 0.0
        %1800 = vmatpush1.msra.mxu0 0.0
        %1801 = vmatprep.subr.mxu0 0.0
        %1802 = vmatpush1.msra.mxu0 0.0
        %1803 = vmatprep.subr.mxu0 0.0
        %1804 = vmatpush1.msra.mxu0 0.0
        %1805 = vmatprep.subr.mxu0 0.0
        %1806 = vmatpush1.msra.mxu0 0.0
        %1807 = vmatprep.subr.mxu0 0.0
        %1808 = vmatpush1.msra.mxu0 0.0
        %1809 = vmatprep.subr.mxu0 0.0
        %1810 = vmatpush1.msra.mxu0 0.0
        %1811 = vmatprep.subr.mxu0 0.0
        %1812 = vmatpush1.msra.mxu0 0.0
        %1813 = vmatprep.subr.mxu0 0.0
        %1814 = vmatpush1.msra.mxu0 0.0
        %1815 = vmatprep.subr.mxu0 0.0
        %1816 = vmatpush1.msra.mxu0 0.0
        %1817 = vmatprep.subr.mxu0 0.0
        %1818 = vmatpush1.msra.mxu0 0.0
        %1819 = vmatprep.subr.mxu0 0.0
        %1820 = vmatpush1.msra.mxu0 0.0
        %1821 = vmatprep.mubr.f32.mxu0 0.0
        %1822 = vmatmul.mubr.f32.gmra.mrb[0].mxu0 %v1755
        %v1823 = vpop.f32.mrb[0].mxu0
        %v1824 = vadd.f32 0.0, %v1823
        %v1825 = vpop.f32.mrb[0].mxu0
        %1826 = vdwg.mxu0
        %v1827 = vadd.f32 %v1740, %v1824
        %s1828 = sld [smem:[#allocation4 + $0x1]]
        %v1829 = vstv %s1828
        %v1830 = vadd.f32 %v1827, %v1829
        %s1831 = sld [smem:[#allocation4 + $0x2]]
        %v1832 = vstv %s1831
        %v1833 = vmul.f32 %v1830, %v1832
        %s1834 = sld [smem:[#allocation4 + $0x3]]
        %v1835 = vstv %s1834
        %v1836 = vadd.f32 %v1833, %v1835
        %v1837 = vmul.f32 %v1836, 0.5
        %v1838 = vmul.f32 %v1836, 0.70710677
        %vm1839 = vcmp.ge.f32.partialorder %v1838, 0.0
        %v1840 = vsel %vm1839, 1.0, -1.0
        %v1841 = vand.u32 2147483647, %v1838
        %v1842 = vmul.f32 %v1841, 0.3275911
        %v1843 = vadd.f32 %v1842, 1.0
        %v1844 = vrcp.pop %v1843
        %v1845 = vmul.f32 %v1844, 1.0614054
        %v1846 = vadd.f32 %v1845, -1.4531521
        %v1847 = vmul.f32 %v1844, %v1846
        %v1848 = vadd.f32 %v1847, 1.4214138
        %v1849 = vmul.f32 %v1844, %v1848
        %v1850 = vadd.f32 %v1849, -0.28449672
        %v1851 = vmul.f32 %v1844, %v1850
        %v1852 = vadd.f32 %v1851, 0.2548296
        %v1853 = vmul.f32 %v1844, %v1852
        %v1854 = vsub.f32 0.0, %v1841
        %v1855 = vmul.f32 %v1854, %v1841
        %v1856 = vmul.f32 %v1855, 1.442695
        %v1857 = vpow.pop %v1856
        %v1858 = vmul.f32 %v1853, %v1857
        %v1859 = vsub.f32 1.0, %v1858
        %v1860 = vmul.f32 %v1840, %v1859
        %v1861 = vadd.f32 %v1860, 1.0
        %v1862 = vmul.f32 %v1837, %v1861
        %v1863 = vmul.f32 %v1569, %v1862
        %v1864 = vld [vmem:[%s293] sm:$0xff]
        %v1865 = vld [vmem:[%s293 + $0x8] sm:$0xff]
        %v1866 = vld [vmem:[%s293 + $0x10] sm:$0xff]
        %v1867 = vld [vmem:[%s293 + $0x18] sm:$0xff]
        %v1868 = vmul.f32 %v1863, %v1864
        %v1869 = vmul.f32 %v1863, %v1865
        %v1870 = vmul.f32 %v1863, %v1866
        %v1871 = vmul.f32 %v1863, %v1867
        %1872 = vst.msk [vmem:[%s298] sm:$0xff] %vm392, %v1868
        %1873 = vst.msk [vmem:[%s298 + $0x8] sm:$0xff] %vm392, %v1869
        %1874 = vst.msk [vmem:[%s298 + $0x10] sm:$0xff] %vm392, %v1870
        %1875 = vst.msk [vmem:[%s298 + $0x18] sm:$0xff] %vm392, %v1871
        %p1876 = scmp.lt.s32.totalorder %s19, 1
        %s1877 = scalar_select %p1876, %s19, 1
        %s1878 = smul.addr %s1877, 4
        %s1879 = smul.addr %s1878, 8
        %s1880 = scalar_lea.vmem %s6, %s1879
        // Predicated region
        $region53: #{dcla_forward.9} parent=43 // pred_check
          %p1881 = pneg %p173
        $region54: #{dcla_forward.9} parent=43 // pred_check_branch
          %1883 = sbr.rel (%p1881) target = $region56
        $region55: #{dcla_forward.9} parent=43 // pred_region
          _
        $region56: #{dcla_forward.9} parent=43 // pred_fallthru
          _
      $region44: #{dcla_forward.9} parent=5 // pred_fallthru
        _
      %p1884 = scmp.le.s32.totalorder 2, %s14
      // Predicated region
      $region57: #{dcla_forward.9} parent=5 // pred_check
        %p1885 = pneg %p1884
      $region58: #{dcla_forward.9} parent=5 // pred_check_branch
        %1887 = sbr.rel (%p1885) target = $region60
      $region59: #{dcla_forward.9} parent=5 // pred_region
        %s1888 = ssub.s32 %s14, 2
        // Predicated region
        $region61: #{dcla_forward.9} parent=59 // pred_check
          %p1889 = pneg %p179
        $region62: #{dcla_forward.9} parent=59 // pred_check_branch
          %1891 = sbr.rel (%p1889) target = $region64
        $region63: #{dcla_forward.9} parent=59 // pred_region
          %p1892 = scmp.lt.s32.totalorder %s20, 1
          %s1893 = scalar_select %p1892, %s20, 1
          %s1894 = smul.addr %s1893, 4
          %s1895 = smul.addr %s1894, 8
          %s1896 = scalar_lea.vmem %s6, %s1895
        $region64: #{dcla_forward.9} parent=59 // pred_fallthru
          _
      $region60: #{dcla_forward.9} parent=5 // pred_fallthru
        _
    $region6: #{dcla_forward.9} parent=1 // loop_footer
      %s18 = sadd.s32 1, %s14
    $region7: #{dcla_forward.9} parent=1 // loop_footer_branch
      %13 = sbr.rel target = $region3
    $region8: #{dcla_forward.9} parent=1 // loop_exit
      _
    %1897 = vsyncpa [#allocation3], 1
    %s1898 = scalar_lea.sflag [#allocation3], 1
    %1899 = vsyncpa %s1898, 1
    %1900 = vsyncpa [#allocation5], 1

</llo_original>
